<compile_context>
chip_gen: v7x
topology: tpu7x:2x2x1
jax: 0.10.0
libtpu: 0.0.40
codegen_flags: <defaults>
</compile_context>

<pallas_src>
import numpy as np
import jax
import jax.numpy as jnp
from jax.experimental import pallas as pl
from jax.experimental.pallas import tpu as pltpu

EMB_DIM = 128            # emb_dim
N_CLASSES = 100          # args.no_of_classes default
VIT_LOGITS = 1000        # ViT classifier logits
LOGITS_PAD = 1024        # lane-aligned padded logits width
INTERMEDIATE = 512       # self.intermediate_embeddings
BIFPN_FEAT = 128         # BiFPN feature_size
N_BIFPN_LEVELS = 5       # 5 * 128 + 512 == last_embedding_size (512 + 640)
HIDDEN_EMB = 384         # fc_embedding hidden width
CONCAT_DIM = N_BIFPN_LEVELS * BIFPN_FEAT + INTERMEDIATE   # 1152


def _gelu(x):
    # TODO(synk): torch nn.GELU() default is the exact erf formulation; the
    # tanh approximation is used here (well within the 2e-2 tolerance).
    c = 0.7978845608028654  # sqrt(2/pi)
    return 0.5 * x * (1.0 + jnp.tanh(c * (x + 0.044715 * x * x * x)))


def _dot(x, w_ref):
    # x: f32 activation, w_ref: bf16 weight resident in VMEM.
    # Upcast weight in-register so activation math stays f32 (v5e VPU/EUP have
    # no bf16 path); the HBM DMA still moves only bf16 bytes.
    return jnp.dot(x, w_ref[...].astype(jnp.float32),
                   preferred_element_type=jnp.float32)


# ---------------------------------------------------------------------------
# Single fused kernel: GAP(5 BiFPN maps) + fc_classes + softmax + concat +
# fc_embedding + sigmoid + embedding matmul + EmbeddingAdapter.
# ---------------------------------------------------------------------------
def cide_head_kernel(logits_ref, f0_ref, f1_ref, f2_ref, f3_ref, f4_ref,
                     wc1_ref, bc1_ref, wc2_ref, bc2_ref,
                     we1_ref, be1_ref, we2_ref, be2_ref,
                     wemb_ref, wa1_ref, ba1_ref, wa2_ref, ba2_ref, gamma_ref,
                     o_ref):
    # fc_classes: Linear(1024[=1000 zero-padded], 512) -> GELU -> Linear(512, 512)
    h = _dot(logits_ref[...], wc1_ref) + bc1_ref[...]
    h = _gelu(h)
    h = _dot(h, wc2_ref) + bc2_ref[...]

    # softmax along dim=1 (EUP approx reciprocal for the normalization)
    m = jnp.max(h, axis=-1, keepdims=True)
    e = jnp.exp(h - m)
    soft = e * pl.reciprocal(jnp.sum(e, axis=-1, keepdims=True), approx=True)

    # Fused global average pooling of the 5 BiFPN maps (B, 128, H*W) -> (B, 128)
    pooled = [jnp.mean(r[...], axis=-1)
              for r in (f0_ref, f1_ref, f2_ref, f3_ref, f4_ref)]
    # torch.cat([gap0..gap4, softmax], dim=1) -> (B, 1152)
    cat = jnp.concatenate(pooled + [soft], axis=-1)

    # fc_embedding: Linear(1152, 384) -> GELU -> Linear(384, 100)
    z = _gelu(_dot(cat, we1_ref) + be1_ref[...])
    z = _dot(z, we2_ref) + be2_ref[...]

    # sigmoid activation via EUP reciprocal, then scene = act @ embeddings.weight
    act = pl.reciprocal(1.0 + jnp.exp(-z), approx=True)
    scene = _dot(act, wemb_ref)

    # EmbeddingAdapter: scene + gamma * (Linear -> GELU -> Linear)(scene)
    a = _gelu(_dot(scene, wa1_ref) + ba1_ref[...])
    a = _dot(a, wa2_ref) + ba2_ref[...]

    o_ref[...] = scene + gamma_ref[...] * a


def cide_forward(vit_logits, bifpn_feats, params):
    """vit_logits: (B, 1000); bifpn_feats: list of 5 NCHW maps (B, 128, H, W)."""
    b = vit_logits.shape[0]
    # Lane-pad logits 1000 -> 1024 (wc1 rows 1000..1023 are zero, so math is exact).
    logits_p = jnp.pad(vit_logits, ((0, 0), (0, LOGITS_PAD - VIT_LOGITS)))
    # Flatten spatial dims; means are computed inside the kernel.
    flats = [f.reshape(b, f.shape[1], f.shape[2] * f.shape[3]) for f in bifpn_feats]

    args = (logits_p, *flats,
            params['wc1'], params['bc1'], params['wc2'], params['bc2'],
            params['we1'], params['be1'], params['we2'], params['be2'],
            params['wemb'],
            params['wa1'], params['ba1'], params['wa2'], params['ba2'],
            params['gamma'])

    out = pl.pallas_call(
        cide_head_kernel,
        out_shape=jax.ShapeDtypeStruct((b, EMB_DIM), jnp.float32),
        in_specs=[pl.BlockSpec(memory_space=pltpu.MemorySpace.VMEM)] * len(args),
        out_specs=pl.BlockSpec(memory_space=pltpu.MemorySpace.VMEM),
    )(*args)

    # repeat(texts, 'n c -> n b c', b=1)
    return out[:, None, :]


# ---------------------------------------------------------------------------
# Pure-JAX reference (mirrors CIDE.forward downstream of the frozen backbone)
# ---------------------------------------------------------------------------
def cide_reference(vit_logits, bifpn_feats, params):
    f32 = jnp.float32
    wc1 = params['wc1'][:VIT_LOGITS].astype(f32)
    h = _gelu(vit_logits @ wc1 + params['bc1'])
    h = h @ params['wc2'].astype(f32) + params['bc2']
    soft = jax.nn.softmax(h, axis=1)
    pooled = [jnp.mean(f, axis=(2, 3)) for f in bifpn_feats]
    cat = jnp.concatenate(pooled + [soft], axis=1)
    z = _gelu(cat @ params['we1'].astype(f32) + params['be1'])
    z = z @ params['we2'].astype(f32) + params['be2']
    act = jax.nn.sigmoid(z)
    scene = act @ params['wemb'].astype(f32)
    a = _gelu(scene @ params['wa1'].astype(f32) + params['ba1'])
    a = a @ params['wa2'].astype(f32) + params['ba2']
    texts = scene + params['gamma'] * a
    return texts[:, None, :]


def init_params(key):
    ks = jax.random.split(key, 13)
    bf16 = jnp.bfloat16

    def w(k, shape, scale=0.02):
        return (scale * jax.random.normal(k, shape)).astype(jnp.float32)

    # wc1 with K padded to 1024 (rows 1000..1023 are zeros).
    wc1 = jnp.zeros((LOGITS_PAD, INTERMEDIATE), jnp.float32)
    wc1 = wc1.at[:VIT_LOGITS].set(w(ks[0], (VIT_LOGITS, INTERMEDIATE)))

    return {
        # fc_classes
        'wc1': wc1.astype(bf16),
        'bc1': w(ks[1], (1, INTERMEDIATE), 0.01),
        'wc2': w(ks[2], (INTERMEDIATE, INTERMEDIATE)).astype(bf16),
        'bc2': w(ks[3], (1, INTERMEDIATE), 0.01),
        # fc_embedding (single combined first-layer weight: rows = [GAPs | softmax])
        'we1': w(ks[4], (CONCAT_DIM, HIDDEN_EMB)).astype(bf16),
        'be1': w(ks[5], (1, HIDDEN_EMB), 0.01),
        'we2': w(ks[6], (HIDDEN_EMB, N_CLASSES)).astype(bf16),
        'be2': w(ks[7], (1, N_CLASSES), 0.01),
        # nn.Embedding(num_embeddings=100, embedding_dim=emb_dim)
        'wemb': w(ks[8], (N_CLASSES, EMB_DIM), 1.0).astype(bf16),
        # EmbeddingAdapter.fc
        'wa1': w(ks[9], (EMB_DIM, EMB_DIM)).astype(bf16),
        'ba1': w(ks[10], (1, EMB_DIM), 0.01),
        'wa2': w(ks[11], (EMB_DIM, EMB_DIM)).astype(bf16),
        'ba2': w(ks[12], (1, EMB_DIM), 0.01),
        # self.gamma = nn.Parameter(torch.full((emb_dim,), 0.0001))
        'gamma': jnp.full((1, EMB_DIM), 1e-4, dtype=jnp.float32),
    }


if __name__ == "__main__":
    B = 2
    key = jax.random.PRNGKey(0)
    kp, kl, *kf = jax.random.split(key, 2 + N_BIFPN_LEVELS)
    params = init_params(kp)

    # TODO(synk): frozen SwinV2 ViT (+ AutoImageProcessor preprocessing) and the
    # external BiFPN module have no Pallas equivalent; their outputs are the
    # kernel inputs, synthesized deterministically here.
    vit_logits = jax.random.normal(kl, (B, VIT_LOGITS), dtype=jnp.float32)
    level_hw = [8, 4, 2, 2, 1]   # 5 BiFPN pyramid levels, 128 channels each
    bifpn_feats = [
        jax.random.normal(kf[i], (B, BIFPN_FEAT, s, s), dtype=jnp.float32)
        for i, s in enumerate(level_hw)
    ]

    out = cide_forward(vit_logits, bifpn_feats, params)
    out = jax.block_until_ready(out)

    ref = cide_reference(vit_logits, bifpn_feats, params)
    assert out.shape == (B, 1, EMB_DIM), out.shape
    np.testing.assert_allclose(np.asarray(out), np.asarray(ref), rtol=2e-2, atol=2e-2)
    print("KERNEL_OK")
</pallas_src>

<mosaic_0001>
module attributes {stable_mosaic.version = 11 : i64} {
  func.func @cide_head_kernel(%arg0: memref<2x1024xf32, #tpu.memory_space<vmem>>, %arg1: memref<2x128x64xf32, #tpu.memory_space<vmem>>, %arg2: memref<2x128x16xf32, #tpu.memory_space<vmem>>, %arg3: memref<2x128x4xf32, #tpu.memory_space<vmem>>, %arg4: memref<2x128x4xf32, #tpu.memory_space<vmem>>, %arg5: memref<2x128x1xf32, #tpu.memory_space<vmem>>, %arg6: memref<1024x512xbf16, #tpu.memory_space<vmem>>, %arg7: memref<1x512xf32, #tpu.memory_space<vmem>>, %arg8: memref<512x512xbf16, #tpu.memory_space<vmem>>, %arg9: memref<1x512xf32, #tpu.memory_space<vmem>>, %arg10: memref<1152x384xbf16, #tpu.memory_space<vmem>>, %arg11: memref<1x384xf32, #tpu.memory_space<vmem>>, %arg12: memref<384x100xbf16, #tpu.memory_space<vmem>>, %arg13: memref<1x100xf32, #tpu.memory_space<vmem>>, %arg14: memref<100x128xbf16, #tpu.memory_space<vmem>>, %arg15: memref<128x128xbf16, #tpu.memory_space<vmem>>, %arg16: memref<1x128xf32, #tpu.memory_space<vmem>>, %arg17: memref<128x128xbf16, #tpu.memory_space<vmem>>, %arg18: memref<1x128xf32, #tpu.memory_space<vmem>>, %arg19: memref<1x128xf32, #tpu.memory_space<vmem>>, %arg20: memref<2x128xf32, #tpu.memory_space<vmem>>) attributes {dimension_semantics = [], scalar_prefetch = 0 : i64, scratch_operands = 0 : i64, tpu.core_type = #tpu.core_type<tc>} {
    %c0 = arith.constant 0 : index
    %c0_0 = arith.constant 0 : index
    %0 = vector.load %arg0[%c0, %c0_0] : memref<2x1024xf32, #tpu.memory_space<vmem>>, vector<2x1024xf32>
    %c0_1 = arith.constant 0 : index
    %c0_2 = arith.constant 0 : index
    %1 = vector.load %arg6[%c0_1, %c0_2] : memref<1024x512xbf16, #tpu.memory_space<vmem>>, vector<1024x512xbf16>
    %2 = arith.extf %1 : vector<1024x512xbf16> to vector<1024x512xf32>
    %cst = arith.constant dense<0.000000e+00> : vector<2x512xf32>
    %3 = tpu.matmul %0, %2, %cst {dimension_numbers = #tpu.dot_dimension_numbers<[1], [0], [0], [1], [0, 0, 1, 1], [], []>} : vector<2x1024xf32>, vector<1024x512xf32>, vector<2x512xf32> -> vector<2x512xf32>
    %c0_3 = arith.constant 0 : index
    %c0_4 = arith.constant 0 : index
    %4 = vector.load %arg7[%c0_3, %c0_4] : memref<1x512xf32, #tpu.memory_space<vmem>>, vector<1x512xf32>
    %5 = vector.broadcast %4 : vector<1x512xf32> to vector<2x512xf32>
    %6 = arith.addf %3, %5 : vector<2x512xf32>
    %cst_5 = arith.constant 5.000000e-01 : f32
    %7 = vector.broadcast %cst_5 : f32 to vector<2x512xf32>
    %8 = arith.mulf %7, %6 : vector<2x512xf32>
    %cst_6 = arith.constant 4.471500e-02 : f32
    %9 = vector.broadcast %cst_6 : f32 to vector<2x512xf32>
    %10 = arith.mulf %9, %6 : vector<2x512xf32>
    %11 = arith.mulf %10, %6 : vector<2x512xf32>
    %12 = arith.mulf %11, %6 : vector<2x512xf32>
    %13 = arith.addf %6, %12 : vector<2x512xf32>
    %cst_7 = arith.constant 0.797884583 : f32
    %14 = vector.broadcast %cst_7 : f32 to vector<2x512xf32>
    %15 = arith.mulf %14, %13 : vector<2x512xf32>
    %16 = math.tanh %15 : vector<2x512xf32>
    %cst_8 = arith.constant 1.000000e+00 : f32
    %17 = vector.broadcast %cst_8 : f32 to vector<2x512xf32>
    %18 = arith.addf %17, %16 : vector<2x512xf32>
    %19 = arith.mulf %8, %18 : vector<2x512xf32>
    %c0_9 = arith.constant 0 : index
    %c0_10 = arith.constant 0 : index
    %20 = vector.load %arg8[%c0_9, %c0_10] : memref<512x512xbf16, #tpu.memory_space<vmem>>, vector<512x512xbf16>
    %21 = arith.extf %20 : vector<512x512xbf16> to vector<512x512xf32>
    %cst_11 = arith.constant dense<0.000000e+00> : vector<2x512xf32>
    %22 = tpu.matmul %19, %21, %cst_11 {dimension_numbers = #tpu.dot_dimension_numbers<[1], [0], [0], [1], [0, 0, 1, 1], [], []>} : vector<2x512xf32>, vector<512x512xf32>, vector<2x512xf32> -> vector<2x512xf32>
    %c0_12 = arith.constant 0 : index
    %c0_13 = arith.constant 0 : index
    %23 = vector.load %arg9[%c0_12, %c0_13] : memref<1x512xf32, #tpu.memory_space<vmem>>, vector<1x512xf32>
    %24 = vector.broadcast %23 : vector<1x512xf32> to vector<2x512xf32>
    %25 = arith.addf %22, %24 : vector<2x512xf32>
    %cst_14 = arith.constant dense<0xFF800000> : vector<2xf32>
    %26 = vector.multi_reduction <maximumf>, %25, %cst_14 [1] : vector<2x512xf32> to vector<2xf32>
    %27 = vector.shape_cast %26 : vector<2xf32> to vector<2x1xf32>
    %28 = vector.broadcast %27 : vector<2x1xf32> to vector<2x512xf32>
    %29 = arith.subf %25, %28 : vector<2x512xf32>
    %30 = math.exp %29 : vector<2x512xf32>
    %cst_15 = arith.constant dense<0.000000e+00> : vector<2xf32>
    %31 = vector.multi_reduction <add>, %30, %cst_15 [1] : vector<2x512xf32> to vector<2xf32>
    %32 = vector.shape_cast %31 : vector<2xf32> to vector<2x1xf32>
    %33 = tpu.reciprocal %32 {approx = true} : vector<2x1xf32> -> vector<2x1xf32>
    %34 = vector.broadcast %33 : vector<2x1xf32> to vector<2x512xf32>
    %35 = arith.mulf %30, %34 : vector<2x512xf32>
    %c0_16 = arith.constant 0 : index
    %c0_17 = arith.constant 0 : index
    %c0_18 = arith.constant 0 : index
    %36 = vector.load %arg1[%c0_16, %c0_17, %c0_18] : memref<2x128x64xf32, #tpu.memory_space<vmem>>, vector<2x128x64xf32>
    %cst_19 = arith.constant dense<0.000000e+00> : vector<2x128xf32>
    %37 = vector.multi_reduction <add>, %36, %cst_19 [2] : vector<2x128x64xf32> to vector<2x128xf32>
    %cst_20 = arith.constant 6.400000e+01 : f32
    %38 = vector.broadcast %cst_20 : f32 to vector<2x128xf32>
    %39 = arith.divf %37, %38 : vector<2x128xf32>
    %c0_21 = arith.constant 0 : index
    %c0_22 = arith.constant 0 : index
    %c0_23 = arith.constant 0 : index
    %40 = vector.load %arg2[%c0_21, %c0_22, %c0_23] : memref<2x128x16xf32, #tpu.memory_space<vmem>>, vector<2x128x16xf32>
    %cst_24 = arith.constant dense<0.000000e+00> : vector<2x128xf32>
    %41 = vector.multi_reduction <add>, %40, %cst_24 [2] : vector<2x128x16xf32> to vector<2x128xf32>
    %cst_25 = arith.constant 1.600000e+01 : f32
    %42 = vector.broadcast %cst_25 : f32 to vector<2x128xf32>
    %43 = arith.divf %41, %42 : vector<2x128xf32>
    %c0_26 = arith.constant 0 : index
    %c0_27 = arith.constant 0 : index
    %c0_28 = arith.constant 0 : index
    %44 = vector.load %arg3[%c0_26, %c0_27, %c0_28] : memref<2x128x4xf32, #tpu.memory_space<vmem>>, vector<2x128x4xf32>
    %cst_29 = arith.constant dense<0.000000e+00> : vector<2x128xf32>
    %45 = vector.multi_reduction <add>, %44, %cst_29 [2] : vector<2x128x4xf32> to vector<2x128xf32>
    %cst_30 = arith.constant 4.000000e+00 : f32
    %46 = vector.broadcast %cst_30 : f32 to vector<2x128xf32>
    %47 = arith.divf %45, %46 : vector<2x128xf32>
    %c0_31 = arith.constant 0 : index
    %c0_32 = arith.constant 0 : index
    %c0_33 = arith.constant 0 : index
    %48 = vector.load %arg4[%c0_31, %c0_32, %c0_33] : memref<2x128x4xf32, #tpu.memory_space<vmem>>, vector<2x128x4xf32>
    %cst_34 = arith.constant dense<0.000000e+00> : vector<2x128xf32>
    %49 = vector.multi_reduction <add>, %48, %cst_34 [2] : vector<2x128x4xf32> to vector<2x128xf32>
    %cst_35 = arith.constant 4.000000e+00 : f32
    %50 = vector.broadcast %cst_35 : f32 to vector<2x128xf32>
    %51 = arith.divf %49, %50 : vector<2x128xf32>
    %c0_36 = arith.constant 0 : index
    %c0_37 = arith.constant 0 : index
    %c0_38 = arith.constant 0 : index
    %52 = vector.load %arg5[%c0_36, %c0_37, %c0_38] : memref<2x128x1xf32, #tpu.memory_space<vmem>>, vector<2x128x1xf32>
    %cst_39 = arith.constant dense<0.000000e+00> : vector<2x128xf32>
    %53 = vector.multi_reduction <add>, %52, %cst_39 [2] : vector<2x128x1xf32> to vector<2x128xf32>
    %cst_40 = arith.constant 1.000000e+00 : f32
    %54 = vector.broadcast %cst_40 : f32 to vector<2x128xf32>
    %55 = arith.divf %53, %54 : vector<2x128xf32>
    %56 = tpu.concatenate %39, %43, %47, %51, %55, %35 in 1 : vector<2x128xf32>, vector<2x128xf32>, vector<2x128xf32>, vector<2x128xf32>, vector<2x128xf32>, vector<2x512xf32> -> vector<2x1152xf32>
    %c0_41 = arith.constant 0 : index
    %c0_42 = arith.constant 0 : index
    %57 = vector.load %arg10[%c0_41, %c0_42] : memref<1152x384xbf16, #tpu.memory_space<vmem>>, vector<1152x384xbf16>
    %58 = arith.extf %57 : vector<1152x384xbf16> to vector<1152x384xf32>
    %cst_43 = arith.constant dense<0.000000e+00> : vector<2x384xf32>
    %59 = tpu.matmul %56, %58, %cst_43 {dimension_numbers = #tpu.dot_dimension_numbers<[1], [0], [0], [1], [0, 0, 1, 1], [], []>} : vector<2x1152xf32>, vector<1152x384xf32>, vector<2x384xf32> -> vector<2x384xf32>
    %c0_44 = arith.constant 0 : index
    %c0_45 = arith.constant 0 : index
    %60 = vector.load %arg11[%c0_44, %c0_45] : memref<1x384xf32, #tpu.memory_space<vmem>>, vector<1x384xf32>
    %61 = vector.broadcast %60 : vector<1x384xf32> to vector<2x384xf32>
    %62 = arith.addf %59, %61 : vector<2x384xf32>
    %cst_46 = arith.constant 5.000000e-01 : f32
    %63 = vector.broadcast %cst_46 : f32 to vector<2x384xf32>
    %64 = arith.mulf %63, %62 : vector<2x384xf32>
    %cst_47 = arith.constant 4.471500e-02 : f32
    %65 = vector.broadcast %cst_47 : f32 to vector<2x384xf32>
    %66 = arith.mulf %65, %62 : vector<2x384xf32>
    %67 = arith.mulf %66, %62 : vector<2x384xf32>
    %68 = arith.mulf %67, %62 : vector<2x384xf32>
    %69 = arith.addf %62, %68 : vector<2x384xf32>
    %cst_48 = arith.constant 0.797884583 : f32
    %70 = vector.broadcast %cst_48 : f32 to vector<2x384xf32>
    %71 = arith.mulf %70, %69 : vector<2x384xf32>
    %72 = math.tanh %71 : vector<2x384xf32>
    %cst_49 = arith.constant 1.000000e+00 : f32
    %73 = vector.broadcast %cst_49 : f32 to vector<2x384xf32>
    %74 = arith.addf %73, %72 : vector<2x384xf32>
    %75 = arith.mulf %64, %74 : vector<2x384xf32>
    %c0_50 = arith.constant 0 : index
    %c0_51 = arith.constant 0 : index
    %76 = vector.load %arg12[%c0_50, %c0_51] : memref<384x100xbf16, #tpu.memory_space<vmem>>, vector<384x100xbf16>
    %77 = arith.extf %76 : vector<384x100xbf16> to vector<384x100xf32>
    %cst_52 = arith.constant dense<0.000000e+00> : vector<2x100xf32>
    %78 = tpu.matmul %75, %77, %cst_52 {dimension_numbers = #tpu.dot_dimension_numbers<[1], [0], [0], [1], [0, 0, 1, 1], [], []>} : vector<2x384xf32>, vector<384x100xf32>, vector<2x100xf32> -> vector<2x100xf32>
    %c0_53 = arith.constant 0 : index
    %c0_54 = arith.constant 0 : index
    %79 = vector.load %arg13[%c0_53, %c0_54] : memref<1x100xf32, #tpu.memory_space<vmem>>, vector<1x100xf32>
    %80 = vector.broadcast %79 : vector<1x100xf32> to vector<2x100xf32>
    %81 = arith.addf %78, %80 : vector<2x100xf32>
    %cst_55 = arith.constant 0.000000e+00 : f32
    %82 = vector.broadcast %cst_55 : f32 to vector<2x100xf32>
    %83 = arith.subf %82, %81 : vector<2x100xf32>
    %84 = math.exp %83 : vector<2x100xf32>
    %cst_56 = arith.constant 1.000000e+00 : f32
    %85 = vector.broadcast %cst_56 : f32 to vector<2x100xf32>
    %86 = arith.addf %85, %84 : vector<2x100xf32>
    %87 = tpu.reciprocal %86 {approx = true} : vector<2x100xf32> -> vector<2x100xf32>
    %c0_57 = arith.constant 0 : index
    %c0_58 = arith.constant 0 : index
    %88 = vector.load %arg14[%c0_57, %c0_58] : memref<100x128xbf16, #tpu.memory_space<vmem>>, vector<100x128xbf16>
    %89 = arith.extf %88 : vector<100x128xbf16> to vector<100x128xf32>
    %cst_59 = arith.constant dense<0.000000e+00> : vector<2x128xf32>
    %90 = tpu.matmul %87, %89, %cst_59 {dimension_numbers = #tpu.dot_dimension_numbers<[1], [0], [0], [1], [0, 0, 1, 1], [], []>} : vector<2x100xf32>, vector<100x128xf32>, vector<2x128xf32> -> vector<2x128xf32>
    %c0_60 = arith.constant 0 : index
    %c0_61 = arith.constant 0 : index
    %91 = vector.load %arg15[%c0_60, %c0_61] : memref<128x128xbf16, #tpu.memory_space<vmem>>, vector<128x128xbf16>
    %92 = arith.extf %91 : vector<128x128xbf16> to vector<128x128xf32>
    %cst_62 = arith.constant dense<0.000000e+00> : vector<2x128xf32>
    %93 = tpu.matmul %90, %92, %cst_62 {dimension_numbers = #tpu.dot_dimension_numbers<[1], [0], [0], [1], [0, 0, 1, 1], [], []>} : vector<2x128xf32>, vector<128x128xf32>, vector<2x128xf32> -> vector<2x128xf32>
    %c0_63 = arith.constant 0 : index
    %c0_64 = arith.constant 0 : index
    %94 = vector.load %arg16[%c0_63, %c0_64] : memref<1x128xf32, #tpu.memory_space<vmem>>, vector<1x128xf32>
    %95 = vector.broadcast %94 : vector<1x128xf32> to vector<2x128xf32>
    %96 = arith.addf %93, %95 : vector<2x128xf32>
    %cst_65 = arith.constant 5.000000e-01 : f32
    %97 = vector.broadcast %cst_65 : f32 to vector<2x128xf32>
    %98 = arith.mulf %97, %96 : vector<2x128xf32>
    %cst_66 = arith.constant 4.471500e-02 : f32
    %99 = vector.broadcast %cst_66 : f32 to vector<2x128xf32>
    %100 = arith.mulf %99, %96 : vector<2x128xf32>
    %101 = arith.mulf %100, %96 : vector<2x128xf32>
    %102 = arith.mulf %101, %96 : vector<2x128xf32>
    %103 = arith.addf %96, %102 : vector<2x128xf32>
    %cst_67 = arith.constant 0.797884583 : f32
    %104 = vector.broadcast %cst_67 : f32 to vector<2x128xf32>
    %105 = arith.mulf %104, %103 : vector<2x128xf32>
    %106 = math.tanh %105 : vector<2x128xf32>
    %cst_68 = arith.constant 1.000000e+00 : f32
    %107 = vector.broadcast %cst_68 : f32 to vector<2x128xf32>
    %108 = arith.addf %107, %106 : vector<2x128xf32>
    %109 = arith.mulf %98, %108 : vector<2x128xf32>
    %c0_69 = arith.constant 0 : index
    %c0_70 = arith.constant 0 : index
    %110 = vector.load %arg17[%c0_69, %c0_70] : memref<128x128xbf16, #tpu.memory_space<vmem>>, vector<128x128xbf16>
    %111 = arith.extf %110 : vector<128x128xbf16> to vector<128x128xf32>
    %cst_71 = arith.constant dense<0.000000e+00> : vector<2x128xf32>
    %112 = tpu.matmul %109, %111, %cst_71 {dimension_numbers = #tpu.dot_dimension_numbers<[1], [0], [0], [1], [0, 0, 1, 1], [], []>} : vector<2x128xf32>, vector<128x128xf32>, vector<2x128xf32> -> vector<2x128xf32>
    %c0_72 = arith.constant 0 : index
    %c0_73 = arith.constant 0 : index
    %113 = vector.load %arg18[%c0_72, %c0_73] : memref<1x128xf32, #tpu.memory_space<vmem>>, vector<1x128xf32>
    %114 = vector.broadcast %113 : vector<1x128xf32> to vector<2x128xf32>
    %115 = arith.addf %112, %114 : vector<2x128xf32>
    %c0_74 = arith.constant 0 : index
    %c0_75 = arith.constant 0 : index
    %116 = vector.load %arg19[%c0_74, %c0_75] : memref<1x128xf32, #tpu.memory_space<vmem>>, vector<1x128xf32>
    %117 = vector.broadcast %116 : vector<1x128xf32> to vector<2x128xf32>
    %118 = arith.mulf %117, %115 : vector<2x128xf32>
    %119 = arith.addf %90, %118 : vector<2x128xf32>
    %c0_76 = arith.constant 0 : index
    %c0_77 = arith.constant 0 : index
    %120 = vector.load %arg20[%c0_76, %c0_77] : memref<2x128xf32, #tpu.memory_space<vmem>>, vector<2x128xf32>
    tpu.vector_store %arg20[%c0_76, %c0_77], %119 {strides = array<i32>} : memref<2x128xf32, #tpu.memory_space<vmem>>, vector<2x128xf32>,
    return
  }
}

</mosaic_0001>

<llo_original>
// kernel: tpu_custom_call.1
$region0: #{tpu_custom_call.1}
  #allocation0 [shape = 'u32[]', space=smem, size = 0x4, offset = 0x4, fixed_abs, tag = 'smem constant byte address 0x4 - core index']
  #allocation1 [shape = 'u32[144,128]{1,0:T(1,128)}', space=vmem, size = 0x12000, scoped, tag = 'internal scratch']
  %s0 = inlined_call_operand.hbm [shape: f32[2,1024], index: 0, kind: input, shape index: {}]
  %s1 = inlined_call_operand.vmem [shape: f32[2,128,64], index: 1, kind: input, shape index: {}]
  %s2 = inlined_call_operand.vmem [shape: f32[2,128,16], index: 2, kind: input, shape index: {}]
  %s3 = inlined_call_operand.vmem [shape: f32[2,128,4], index: 3, kind: input, shape index: {}]
  %s4 = inlined_call_operand.vmem [shape: f32[2,128,4], index: 4, kind: input, shape index: {}]
  %s5 = inlined_call_operand.vmem [shape: f32[2,128,1], index: 5, kind: input, shape index: {}]
  %s6 = inlined_call_operand.hbm [shape: bf16[1024,512], index: 6, kind: input, shape index: {}]
  %s7 = inlined_call_operand.vmem [shape: f32[1,512], index: 7, kind: input, shape index: {}]
  %s8 = inlined_call_operand.hbm [shape: bf16[512,512], index: 8, kind: input, shape index: {}]
  %s9 = inlined_call_operand.hbm [shape: f32[1,512], index: 9, kind: input, shape index: {}]
  %s10 = inlined_call_operand.vmem [shape: bf16[1152,384], index: 10, kind: input, shape index: {}]
  %s11 = inlined_call_operand.hbm [shape: f32[1,384], index: 11, kind: input, shape index: {}]
  %s12 = inlined_call_operand.vmem [shape: bf16[384,100], index: 12, kind: input, shape index: {}]
  %s13 = inlined_call_operand.vmem [shape: f32[1,100], index: 13, kind: input, shape index: {}]
  %s14 = inlined_call_operand.hbm [shape: bf16[100,128], index: 14, kind: input, shape index: {}]
  %s15 = inlined_call_operand.vmem [shape: bf16[128,128], index: 15, kind: input, shape index: {}]
  %s16 = inlined_call_operand.vmem [shape: f32[1,128], index: 16, kind: input, shape index: {}]
  %s17 = inlined_call_operand.vmem [shape: bf16[128,128], index: 17, kind: input, shape index: {}]
  %s18 = inlined_call_operand.hbm [shape: f32[1,128], index: 18, kind: input, shape index: {}]
  %s19 = inlined_call_operand.hbm [shape: f32[1,128], index: 19, kind: input, shape index: {}]
  %s20 = inlined_call_operand.hbm [shape: f32[2,128], index: 20, kind: output, shape index: {}]
  %s21 = sld [smem:[#allocation0]]
  $region122: #{tpu_custom_call.1} parent=0
    _
  %s23 = ssub.s32 1, %s21
  %s24 = scalar_select 0, %s23, %s21
  $region1: #{tpu_custom_call.1} parent=0
    #allocation2 [shape = 'u8[8192]{0}', space=vmem, size = 0x2000, scoped, tag = 'input window, operand 0, single buffered']
    #allocation3 [shape = 's32[1]{0}', space=sflag, size = 0x4, scoped, tag = 'scoped memory for tpu_custom_call.1']
    #allocation4 [shape = 's32[1]{0}', space=sflag, size = 0x4, scoped, tag = 'scoped memory for tpu_custom_call.1']
    #allocation5 [shape = 'u8[1048576]{0}', space=vmem, size = 0x100000, scoped, tag = 'input window, operand 6, single buffered']
    #allocation6 [shape = 's32[1]{0}', space=sflag, size = 0x4, scoped, tag = 'scoped memory for tpu_custom_call.1']
    #allocation7 [shape = 'u8[524288]{0}', space=vmem, size = 0x80000, scoped, tag = 'input window, operand 8, single buffered']
    #allocation8 [shape = 'u8[2048]{0}', space=vmem, size = 0x800, scoped, tag = 'input window, operand 9, single buffered']
    #allocation9 [shape = 's32[1]{0}', space=sflag, size = 0x4, scoped, tag = 'scoped memory for tpu_custom_call.1']
    #allocation10 [shape = 'u8[1536]{0}', space=vmem, size = 0x800, scoped, tag = 'input window, operand 11, single buffered']
    #allocation11 [shape = 'u8[26624]{0}', space=vmem, size = 0x6800, scoped, tag = 'input window, operand 14, single buffered']
    #allocation12 [shape = 's32[1]{0}', space=sflag, size = 0x4, scoped, tag = 'scoped memory for tpu_custom_call.1']
    #allocation13 [shape = 'u8[512]{0}', space=vmem, size = 0x400, scoped, tag = 'input window, operand 18, single buffered']
    #allocation14 [shape = 'u8[512]{0}', space=vmem, size = 0x400, scoped, tag = 'input window, operand 19, single buffered']
    #allocation15 [shape = 's32[1]{0}', space=sflag, size = 0x4, scoped, tag = 'scoped memory for tpu_custom_call.1']
    #allocation16 [shape = 'u8[1024]{0}', space=vmem, size = 0x400, scoped, tag = 'output window, operand 0, single buffered']
    %25 = vsyncpa [#allocation3], 0
    %26 = vsyncpa [#allocation6], 0
    %27 = vsyncpa [#allocation9], 0
    %28 = vsyncpa [#allocation12], 0
    %29 = vsyncpa [#allocation15], 0
    %30 = vsyncpa [#allocation4], 0
    // Predicated region
    $region2: #{tpu_custom_call.1} parent=1 // pred_check
      _
    $region3: #{tpu_custom_call.1} parent=1 // pred_check_branch
      %32 = sbr.rel (0) target = $region5
    $region4: #{tpu_custom_call.1} parent=1 // pred_region
      %s34 = ssub.s32 256, 256
      %35 = vsyncadd [#allocation3], %s34
      %s37 = sshll.u32 [#allocation2], 4
      %s38 = int_to_ptr.vmem [resolvable:$true] %s37
      %40 = dma.hbm_to_vmem [thread:$0]  %s0, 256, %s38, [#allocation3]
    $region5: #{tpu_custom_call.1} parent=1 // pred_fallthru
      _
    // Predicated region
    $region6: #{tpu_custom_call.1} parent=1 // pred_check
      _
    $region7: #{tpu_custom_call.1} parent=1 // pred_check_branch
      %42 = sbr.rel (0) target = $region9
    $region8: #{tpu_custom_call.1} parent=1 // pred_region
      _
    $region9: #{tpu_custom_call.1} parent=1 // pred_fallthru
      _
    // Predicated region
    $region10: #{tpu_custom_call.1} parent=1 // pred_check
      _
    $region11: #{tpu_custom_call.1} parent=1 // pred_check_branch
      %44 = sbr.rel (0) target = $region13
    $region12: #{tpu_custom_call.1} parent=1 // pred_region
      _
    $region13: #{tpu_custom_call.1} parent=1 // pred_fallthru
      _
    // Predicated region
    $region14: #{tpu_custom_call.1} parent=1 // pred_check
      _
    $region15: #{tpu_custom_call.1} parent=1 // pred_check_branch
      %46 = sbr.rel (0) target = $region17
    $region16: #{tpu_custom_call.1} parent=1 // pred_region
      _
    $region17: #{tpu_custom_call.1} parent=1 // pred_fallthru
      _
    // Predicated region
    $region18: #{tpu_custom_call.1} parent=1 // pred_check
      _
    $region19: #{tpu_custom_call.1} parent=1 // pred_check_branch
      %48 = sbr.rel (0) target = $region21
    $region20: #{tpu_custom_call.1} parent=1 // pred_region
      _
    $region21: #{tpu_custom_call.1} parent=1 // pred_fallthru
      _
    // Predicated region
    $region22: #{tpu_custom_call.1} parent=1 // pred_check
      _
    $region23: #{tpu_custom_call.1} parent=1 // pred_check_branch
      %50 = sbr.rel (0) target = $region25
    $region24: #{tpu_custom_call.1} parent=1 // pred_region
      _
    $region25: #{tpu_custom_call.1} parent=1 // pred_fallthru
      _
    // Predicated region
    $region26: #{tpu_custom_call.1} parent=1 // pred_check
      _
    $region27: #{tpu_custom_call.1} parent=1 // pred_check_branch
      %52 = sbr.rel (0) target = $region29
    $region28: #{tpu_custom_call.1} parent=1 // pred_region
      %s54 = ssub.s32 32768, 32768
      %55 = vsyncadd [#allocation6], %s54
      %s56 = sshll.u32 [#allocation5], 4
      %s57 = int_to_ptr.vmem [resolvable:$true] %s56
      %62 = dma.hbm_to_vmem [thread:$0]  %s6, 32768, %s57, [#allocation6], 256, 256, 16
    $region29: #{tpu_custom_call.1} parent=1 // pred_fallthru
      _
    // Predicated region
    $region30: #{tpu_custom_call.1} parent=1 // pred_check
      _
    $region31: #{tpu_custom_call.1} parent=1 // pred_check_branch
      %64 = sbr.rel (0) target = $region33
    $region32: #{tpu_custom_call.1} parent=1 // pred_region
      _
    $region33: #{tpu_custom_call.1} parent=1 // pred_fallthru
      _
    // Predicated region
    $region34: #{tpu_custom_call.1} parent=1 // pred_check
      _
    $region35: #{tpu_custom_call.1} parent=1 // pred_check_branch
      %66 = sbr.rel (0) target = $region37
    $region36: #{tpu_custom_call.1} parent=1 // pred_region
      %s68 = ssub.s32 16384, 16384
      %69 = vsyncadd [#allocation6], %s68
      %s70 = sshll.u32 [#allocation7], 4
      %s71 = int_to_ptr.vmem [resolvable:$true] %s70
      %76 = dma.hbm_to_vmem [thread:$0]  %s8, 16384, %s71, [#allocation6], 256, 256, 16
    $region37: #{tpu_custom_call.1} parent=1 // pred_fallthru
      _
    // Predicated region
    $region38: #{tpu_custom_call.1} parent=1 // pred_check
      _
    $region39: #{tpu_custom_call.1} parent=1 // pred_check_branch
      %78 = sbr.rel (0) target = $region41
    $region40: #{tpu_custom_call.1} parent=1 // pred_region
      %s80 = ssub.s32 64, 64
      %81 = vsyncadd [#allocation9], %s80
      %s83 = sshll.u32 [#allocation8], 4
      %s84 = int_to_ptr.vmem [resolvable:$true] %s83
      %86 = dma.hbm_to_vmem [thread:$0]  %s9, 64, %s84, [#allocation9]
    $region41: #{tpu_custom_call.1} parent=1 // pred_fallthru
      _
    // Predicated region
    $region42: #{tpu_custom_call.1} parent=1 // pred_check
      _
    $region43: #{tpu_custom_call.1} parent=1 // pred_check_branch
      %88 = sbr.rel (0) target = $region45
    $region44: #{tpu_custom_call.1} parent=1 // pred_region
      _
    $region45: #{tpu_custom_call.1} parent=1 // pred_fallthru
      _
    // Predicated region
    $region46: #{tpu_custom_call.1} parent=1 // pred_check
      _
    $region47: #{tpu_custom_call.1} parent=1 // pred_check_branch
      %90 = sbr.rel (0) target = $region49
    $region48: #{tpu_custom_call.1} parent=1 // pred_region
      %s92 = ssub.s32 48, 48
      %93 = vsyncadd [#allocation9], %s92
      %s95 = sshll.u32 [#allocation10], 4
      %s96 = int_to_ptr.vmem [resolvable:$true] %s95
      %98 = dma.hbm_to_vmem [thread:$0]  %s11, 48, %s96, [#allocation9]
    $region49: #{tpu_custom_call.1} parent=1 // pred_fallthru
      _
    // Predicated region
    $region50: #{tpu_custom_call.1} parent=1 // pred_check
      _
    $region51: #{tpu_custom_call.1} parent=1 // pred_check_branch
      %100 = sbr.rel (0) target = $region53
    $region52: #{tpu_custom_call.1} parent=1 // pred_region
      _
    $region53: #{tpu_custom_call.1} parent=1 // pred_fallthru
      _
    // Predicated region
    $region54: #{tpu_custom_call.1} parent=1 // pred_check
      _
    $region55: #{tpu_custom_call.1} parent=1 // pred_check_branch
      %102 = sbr.rel (0) target = $region57
    $region56: #{tpu_custom_call.1} parent=1 // pred_region
      _
    $region57: #{tpu_custom_call.1} parent=1 // pred_fallthru
      _
    // Predicated region
    $region58: #{tpu_custom_call.1} parent=1 // pred_check
      _
    $region59: #{tpu_custom_call.1} parent=1 // pred_check_branch
      %104 = sbr.rel (0) target = $region61
    $region60: #{tpu_custom_call.1} parent=1 // pred_region
      %s106 = ssub.s32 832, 832
      %107 = vsyncadd [#allocation12], %s106
      %s108 = sshll.u32 [#allocation11], 4
      %s109 = int_to_ptr.vmem [resolvable:$true] %s108
      %114 = dma.hbm_to_vmem [thread:$0]  %s14, 832, %s109, [#allocation12], 64, 64, 4
    $region61: #{tpu_custom_call.1} parent=1 // pred_fallthru
      _
    // Predicated region
    $region62: #{tpu_custom_call.1} parent=1 // pred_check
      _
    $region63: #{tpu_custom_call.1} parent=1 // pred_check_branch
      %116 = sbr.rel (0) target = $region65
    $region64: #{tpu_custom_call.1} parent=1 // pred_region
      _
    $region65: #{tpu_custom_call.1} parent=1 // pred_fallthru
      _
    // Predicated region
    $region66: #{tpu_custom_call.1} parent=1 // pred_check
      _
    $region67: #{tpu_custom_call.1} parent=1 // pred_check_branch
      %118 = sbr.rel (0) target = $region69
    $region68: #{tpu_custom_call.1} parent=1 // pred_region
      _
    $region69: #{tpu_custom_call.1} parent=1 // pred_fallthru
      _
    // Predicated region
    $region70: #{tpu_custom_call.1} parent=1 // pred_check
      _
    $region71: #{tpu_custom_call.1} parent=1 // pred_check_branch
      %120 = sbr.rel (0) target = $region73
    $region72: #{tpu_custom_call.1} parent=1 // pred_region
      _
    $region73: #{tpu_custom_call.1} parent=1 // pred_fallthru
      _
    // Predicated region
    $region74: #{tpu_custom_call.1} parent=1 // pred_check
      _
    $region75: #{tpu_custom_call.1} parent=1 // pred_check_branch
      %122 = sbr.rel (0) target = $region77
    $region76: #{tpu_custom_call.1} parent=1 // pred_region
      %s124 = ssub.s32 16, 16
      %125 = vsyncadd [#allocation12], %s124
      %s127 = sshll.u32 [#allocation13], 4
      %s128 = int_to_ptr.vmem [resolvable:$true] %s127
      %130 = dma.hbm_to_vmem [thread:$0]  %s18, 16, %s128, [#allocation12]
    $region77: #{tpu_custom_call.1} parent=1 // pred_fallthru
      _
    // Predicated region
    $region78: #{tpu_custom_call.1} parent=1 // pred_check
      _
    $region79: #{tpu_custom_call.1} parent=1 // pred_check_branch
      %132 = sbr.rel (0) target = $region81
    $region80: #{tpu_custom_call.1} parent=1 // pred_region
      %s134 = ssub.s32 16, 16
      %135 = vsyncadd [#allocation15], %s134
      %s137 = sshll.u32 [#allocation14], 4
      %s138 = int_to_ptr.vmem [resolvable:$true] %s137
      %140 = dma.hbm_to_vmem [thread:$0]  %s19, 16, %s138, [#allocation15]
    $region81: #{tpu_custom_call.1} parent=1 // pred_fallthru
      _
    // Predicated region
    $region82: #{tpu_custom_call.1} parent=1 // pred_check
      _
    $region83: #{tpu_custom_call.1} parent=1 // pred_check_branch
      %142 = sbr.rel (0) target = $region85
    $region84: #{tpu_custom_call.1} parent=1 // pred_region
      %143 = dma.done [#allocation3], 256
    $region85: #{tpu_custom_call.1} parent=1 // pred_fallthru
      _
    // Predicated region
    $region86: #{tpu_custom_call.1} parent=1 // pred_check
      _
    $region87: #{tpu_custom_call.1} parent=1 // pred_check_branch
      %145 = sbr.rel (0) target = $region89
    $region88: #{tpu_custom_call.1} parent=1 // pred_region
      %146 = dma.done [#allocation6], 32768
    $region89: #{tpu_custom_call.1} parent=1 // pred_fallthru
      _
    // Predicated region
    $region90: #{tpu_custom_call.1} parent=1 // pred_check
      _
    $region91: #{tpu_custom_call.1} parent=1 // pred_check_branch
      %148 = sbr.rel (0) target = $region93
    $region92: #{tpu_custom_call.1} parent=1 // pred_region
      %149 = dma.done [#allocation6], 16384
    $region93: #{tpu_custom_call.1} parent=1 // pred_fallthru
      _
    // Predicated region
    $region94: #{tpu_custom_call.1} parent=1 // pred_check
      _
    $region95: #{tpu_custom_call.1} parent=1 // pred_check_branch
      %151 = sbr.rel (0) target = $region97
    $region96: #{tpu_custom_call.1} parent=1 // pred_region
      %152 = dma.done [#allocation9], 64
    $region97: #{tpu_custom_call.1} parent=1 // pred_fallthru
      _
    // Predicated region
    $region98: #{tpu_custom_call.1} parent=1 // pred_check
      _
    $region99: #{tpu_custom_call.1} parent=1 // pred_check_branch
      %154 = sbr.rel (0) target = $region101
    $region100: #{tpu_custom_call.1} parent=1 // pred_region
      %155 = dma.done [#allocation9], 48
    $region101: #{tpu_custom_call.1} parent=1 // pred_fallthru
      _
    // Predicated region
    $region102: #{tpu_custom_call.1} parent=1 // pred_check
      _
    $region103: #{tpu_custom_call.1} parent=1 // pred_check_branch
      %157 = sbr.rel (0) target = $region105
    $region104: #{tpu_custom_call.1} parent=1 // pred_region
      %158 = dma.done [#allocation12], 832
    $region105: #{tpu_custom_call.1} parent=1 // pred_fallthru
      _
    // Predicated region
    $region106: #{tpu_custom_call.1} parent=1 // pred_check
      _
    $region107: #{tpu_custom_call.1} parent=1 // pred_check_branch
      %160 = sbr.rel (0) target = $region109
    $region108: #{tpu_custom_call.1} parent=1 // pred_region
      %161 = dma.done [#allocation12], 16
    $region109: #{tpu_custom_call.1} parent=1 // pred_fallthru
      _
    // Predicated region
    $region110: #{tpu_custom_call.1} parent=1 // pred_check
      _
    $region111: #{tpu_custom_call.1} parent=1 // pred_check_branch
      %163 = sbr.rel (0) target = $region113
    $region112: #{tpu_custom_call.1} parent=1 // pred_region
      %164 = dma.done [#allocation15], 16
    $region113: #{tpu_custom_call.1} parent=1 // pred_fallthru
      _
    %v165 = vld [vmem:[#allocation2] sm:$0xff]
    %v166 = vld [vmem:[#allocation2 + $0x8] sm:$0xff]
    %v167 = vld [vmem:[#allocation5] sm:$0xff]
    %v168 = vld [vmem:[#allocation5 + $0x8] sm:$0xff]
    %v169 = vld [vmem:[#allocation5 + $0x10] sm:$0xff]
    %v170 = vld [vmem:[#allocation5 + $0x18] sm:$0xff]
    %v171 = vld [vmem:[#allocation5 + $0x20] sm:$0xff]
    %v172 = vld [vmem:[#allocation5 + $0x28] sm:$0xff]
    %v173 = vld [vmem:[#allocation5 + $0x30] sm:$0xff]
    %v174 = vld [vmem:[#allocation5 + $0x38] sm:$0xff]
    %v175 = vld [vmem:[#allocation5 + $0x40] sm:$0xff]
    %v176 = vld [vmem:[#allocation5 + $0x48] sm:$0xff]
    %v177 = vld [vmem:[#allocation5 + $0x50] sm:$0xff]
    %v178 = vld [vmem:[#allocation5 + $0x58] sm:$0xff]
    %v179 = vld [vmem:[#allocation5 + $0x60] sm:$0xff]
    %v180 = vld [vmem:[#allocation5 + $0x68] sm:$0xff]
    %v181 = vld [vmem:[#allocation5 + $0x70] sm:$0xff]
    %v182 = vld [vmem:[#allocation5 + $0x78] sm:$0xff]
    %v183 = vld [vmem:[#allocation5 + $0x80] sm:$0xff]
    %v184 = vld [vmem:[#allocation5 + $0x88] sm:$0xff]
    %v185 = vld [vmem:[#allocation5 + $0x90] sm:$0xff]
    %v186 = vld [vmem:[#allocation5 + $0x98] sm:$0xff]
    %v187 = vld [vmem:[#allocation5 + $0xa0] sm:$0xff]
    %v188 = vld [vmem:[#allocation5 + $0xa8] sm:$0xff]
    %v189 = vld [vmem:[#allocation5 + $0xb0] sm:$0xff]
    %v190 = vld [vmem:[#allocation5 + $0xb8] sm:$0xff]
    %v191 = vld [vmem:[#allocation5 + $0xc0] sm:$0xff]
    %v192 = vld [vmem:[#allocation5 + $0xc8] sm:$0xff]
    %v193 = vld [vmem:[#allocation5 + $0xd0] sm:$0xff]
    %v194 = vld [vmem:[#allocation5 + $0xd8] sm:$0xff]
    %v195 = vld [vmem:[#allocation5 + $0xe0] sm:$0xff]
    %v196 = vld [vmem:[#allocation5 + $0xe8] sm:$0xff]
    %v197 = vld [vmem:[#allocation5 + $0xf0] sm:$0xff]
    %v198 = vld [vmem:[#allocation5 + $0xf8] sm:$0xff]
    %v199 = vld [vmem:[#allocation5 + $0x100] sm:$0xff]
    %v200 = vld [vmem:[#allocation5 + $0x108] sm:$0xff]
    %v201 = vld [vmem:[#allocation5 + $0x110] sm:$0xff]
    %v202 = vld [vmem:[#allocation5 + $0x118] sm:$0xff]
    %v203 = vld [vmem:[#allocation5 + $0x120] sm:$0xff]
    %v204 = vld [vmem:[#allocation5 + $0x128] sm:$0xff]
    %v205 = vld [vmem:[#allocation5 + $0x130] sm:$0xff]
    %v206 = vld [vmem:[#allocation5 + $0x138] sm:$0xff]
    %v207 = vld [vmem:[#allocation5 + $0x140] sm:$0xff]
    %v208 = vld [vmem:[#allocation5 + $0x148] sm:$0xff]
    %v209 = vld [vmem:[#allocation5 + $0x150] sm:$0xff]
    %v210 = vld [vmem:[#allocation5 + $0x158] sm:$0xff]
    %v211 = vld [vmem:[#allocation5 + $0x160] sm:$0xff]
    %v212 = vld [vmem:[#allocation5 + $0x168] sm:$0xff]
    %v213 = vld [vmem:[#allocation5 + $0x170] sm:$0xff]
    %v214 = vld [vmem:[#allocation5 + $0x178] sm:$0xff]
    %v215 = vld [vmem:[#allocation5 + $0x180] sm:$0xff]
    %v216 = vld [vmem:[#allocation5 + $0x188] sm:$0xff]
    %v217 = vld [vmem:[#allocation5 + $0x190] sm:$0xff]
    %v218 = vld [vmem:[#allocation5 + $0x198] sm:$0xff]
    %v219 = vld [vmem:[#allocation5 + $0x1a0] sm:$0xff]
    %v220 = vld [vmem:[#allocation5 + $0x1a8] sm:$0xff]
    %v221 = vld [vmem:[#allocation5 + $0x1b0] sm:$0xff]
    %v222 = vld [vmem:[#allocation5 + $0x1b8] sm:$0xff]
    %v223 = vld [vmem:[#allocation5 + $0x1c0] sm:$0xff]
    %v224 = vld [vmem:[#allocation5 + $0x1c8] sm:$0xff]
    %v225 = vld [vmem:[#allocation5 + $0x1d0] sm:$0xff]
    %v226 = vld [vmem:[#allocation5 + $0x1d8] sm:$0xff]
    %v227 = vld [vmem:[#allocation5 + $0x1e0] sm:$0xff]
    %v228 = vld [vmem:[#allocation5 + $0x1e8] sm:$0xff]
    %v229 = vld [vmem:[#allocation5 + $0x1f0] sm:$0xff]
    %v230 = vld [vmem:[#allocation5 + $0x1f8] sm:$0xff]
    %v231 = vld [vmem:[#allocation5 + $0x200] sm:$0xff]
    %v232 = vld [vmem:[#allocation5 + $0x208] sm:$0xff]
    %v233 = vld [vmem:[#allocation5 + $0x210] sm:$0xff]
    %v234 = vld [vmem:[#allocation5 + $0x218] sm:$0xff]
    %v235 = vld [vmem:[#allocation5 + $0x220] sm:$0xff]
    %v236 = vld [vmem:[#allocation5 + $0x228] sm:$0xff]
    %v237 = vld [vmem:[#allocation5 + $0x230] sm:$0xff]
    %v238 = vld [vmem:[#allocation5 + $0x238] sm:$0xff]
    %v239 = vld [vmem:[#allocation5 + $0x240] sm:$0xff]
    %v240 = vld [vmem:[#allocation5 + $0x248] sm:$0xff]
    %v241 = vld [vmem:[#allocation5 + $0x250] sm:$0xff]
    %v242 = vld [vmem:[#allocation5 + $0x258] sm:$0xff]
    %v243 = vld [vmem:[#allocation5 + $0x260] sm:$0xff]
    %v244 = vld [vmem:[#allocation5 + $0x268] sm:$0xff]
    %v245 = vld [vmem:[#allocation5 + $0x270] sm:$0xff]
    %v246 = vld [vmem:[#allocation5 + $0x278] sm:$0xff]
    %v247 = vld [vmem:[#allocation5 + $0x280] sm:$0xff]
    %v248 = vld [vmem:[#allocation5 + $0x288] sm:$0xff]
    %v249 = vld [vmem:[#allocation5 + $0x290] sm:$0xff]
    %v250 = vld [vmem:[#allocation5 + $0x298] sm:$0xff]
    %v251 = vld [vmem:[#allocation5 + $0x2a0] sm:$0xff]
    %v252 = vld [vmem:[#allocation5 + $0x2a8] sm:$0xff]
    %v253 = vld [vmem:[#allocation5 + $0x2b0] sm:$0xff]
    %v254 = vld [vmem:[#allocation5 + $0x2b8] sm:$0xff]
    %v255 = vld [vmem:[#allocation5 + $0x2c0] sm:$0xff]
    %v256 = vld [vmem:[#allocation5 + $0x2c8] sm:$0xff]
    %v257 = vld [vmem:[#allocation5 + $0x2d0] sm:$0xff]
    %v258 = vld [vmem:[#allocation5 + $0x2d8] sm:$0xff]
    %v259 = vld [vmem:[#allocation5 + $0x2e0] sm:$0xff]
    %v260 = vld [vmem:[#allocation5 + $0x2e8] sm:$0xff]
    %v261 = vld [vmem:[#allocation5 + $0x2f0] sm:$0xff]
    %v262 = vld [vmem:[#allocation5 + $0x2f8] sm:$0xff]
    %v263 = vld [vmem:[#allocation5 + $0x300] sm:$0xff]
    %v264 = vld [vmem:[#allocation5 + $0x308] sm:$0xff]
    %v265 = vld [vmem:[#allocation5 + $0x310] sm:$0xff]
    %v266 = vld [vmem:[#allocation5 + $0x318] sm:$0xff]
    %v267 = vld [vmem:[#allocation5 + $0x320] sm:$0xff]
    %v268 = vld [vmem:[#allocation5 + $0x328] sm:$0xff]
    %v269 = vld [vmem:[#allocation5 + $0x330] sm:$0xff]
    %v270 = vld [vmem:[#allocation5 + $0x338] sm:$0xff]
    %v271 = vld [vmem:[#allocation5 + $0x340] sm:$0xff]
    %v272 = vld [vmem:[#allocation5 + $0x348] sm:$0xff]
    %v273 = vld [vmem:[#allocation5 + $0x350] sm:$0xff]
    %v274 = vld [vmem:[#allocation5 + $0x358] sm:$0xff]
    %v275 = vld [vmem:[#allocation5 + $0x360] sm:$0xff]
    %v276 = vld [vmem:[#allocation5 + $0x368] sm:$0xff]
    %v277 = vld [vmem:[#allocation5 + $0x370] sm:$0xff]
    %v278 = vld [vmem:[#allocation5 + $0x378] sm:$0xff]
    %v279 = vld [vmem:[#allocation5 + $0x380] sm:$0xff]
    %v280 = vld [vmem:[#allocation5 + $0x388] sm:$0xff]
    %v281 = vld [vmem:[#allocation5 + $0x390] sm:$0xff]
    %v282 = vld [vmem:[#allocation5 + $0x398] sm:$0xff]
    %v283 = vld [vmem:[#allocation5 + $0x3a0] sm:$0xff]
    %v284 = vld [vmem:[#allocation5 + $0x3a8] sm:$0xff]
    %v285 = vld [vmem:[#allocation5 + $0x3b0] sm:$0xff]
    %v286 = vld [vmem:[#allocation5 + $0x3b8] sm:$0xff]
    %v287 = vld [vmem:[#allocation5 + $0x3c0] sm:$0xff]
    %v288 = vld [vmem:[#allocation5 + $0x3c8] sm:$0xff]
    %v289 = vld [vmem:[#allocation5 + $0x3d0] sm:$0xff]
    %v290 = vld [vmem:[#allocation5 + $0x3d8] sm:$0xff]
    %v291 = vld [vmem:[#allocation5 + $0x3e0] sm:$0xff]
    %v292 = vld [vmem:[#allocation5 + $0x3e8] sm:$0xff]
    %v293 = vld [vmem:[#allocation5 + $0x3f0] sm:$0xff]
    %v294 = vld [vmem:[#allocation5 + $0x3f8] sm:$0xff]
    %v295 = vld [vmem:[#allocation5 + $0x400] sm:$0xff]
    %v296 = vld [vmem:[#allocation5 + $0x408] sm:$0xff]
    %v297 = vld [vmem:[#allocation5 + $0x410] sm:$0xff]
    %v298 = vld [vmem:[#allocation5 + $0x418] sm:$0xff]
    %v299 = vld [vmem:[#allocation5 + $0x420] sm:$0xff]
    %v300 = vld [vmem:[#allocation5 + $0x428] sm:$0xff]
    %v301 = vld [vmem:[#allocation5 + $0x430] sm:$0xff]
    %v302 = vld [vmem:[#allocation5 + $0x438] sm:$0xff]
    %v303 = vld [vmem:[#allocation5 + $0x440] sm:$0xff]
    %v304 = vld [vmem:[#allocation5 + $0x448] sm:$0xff]
    %v305 = vld [vmem:[#allocation5 + $0x450] sm:$0xff]
    %v306 = vld [vmem:[#allocation5 + $0x458] sm:$0xff]
    %v307 = vld [vmem:[#allocation5 + $0x460] sm:$0xff]
    %v308 = vld [vmem:[#allocation5 + $0x468] sm:$0xff]
    %v309 = vld [vmem:[#allocation5 + $0x470] sm:$0xff]
    %v310 = vld [vmem:[#allocation5 + $0x478] sm:$0xff]
    %v311 = vld [vmem:[#allocation5 + $0x480] sm:$0xff]
    %v312 = vld [vmem:[#allocation5 + $0x488] sm:$0xff]
    %v313 = vld [vmem:[#allocation5 + $0x490] sm:$0xff]
    %v314 = vld [vmem:[#allocation5 + $0x498] sm:$0xff]
    %v315 = vld [vmem:[#allocation5 + $0x4a0] sm:$0xff]
    %v316 = vld [vmem:[#allocation5 + $0x4a8] sm:$0xff]
    %v317 = vld [vmem:[#allocation5 + $0x4b0] sm:$0xff]
    %v318 = vld [vmem:[#allocation5 + $0x4b8] sm:$0xff]
    %v319 = vld [vmem:[#allocation5 + $0x4c0] sm:$0xff]
    %v320 = vld [vmem:[#allocation5 + $0x4c8] sm:$0xff]
    %v321 = vld [vmem:[#allocation5 + $0x4d0] sm:$0xff]
    %v322 = vld [vmem:[#allocation5 + $0x4d8] sm:$0xff]
    %v323 = vld [vmem:[#allocation5 + $0x4e0] sm:$0xff]
    %v324 = vld [vmem:[#allocation5 + $0x4e8] sm:$0xff]
    %v325 = vld [vmem:[#allocation5 + $0x4f0] sm:$0xff]
    %v326 = vld [vmem:[#allocation5 + $0x4f8] sm:$0xff]
    %v327 = vld [vmem:[#allocation5 + $0x500] sm:$0xff]
    %v328 = vld [vmem:[#allocation5 + $0x508] sm:$0xff]
    %v329 = vld [vmem:[#allocation5 + $0x510] sm:$0xff]
    %v330 = vld [vmem:[#allocation5 + $0x518] sm:$0xff]
    %v331 = vld [vmem:[#allocation5 + $0x520] sm:$0xff]
    %v332 = vld [vmem:[#allocation5 + $0x528] sm:$0xff]
    %v333 = vld [vmem:[#allocation5 + $0x530] sm:$0xff]
    %v334 = vld [vmem:[#allocation5 + $0x538] sm:$0xff]
    %v335 = vld [vmem:[#allocation5 + $0x540] sm:$0xff]
    %v336 = vld [vmem:[#allocation5 + $0x548] sm:$0xff]
    %v337 = vld [vmem:[#allocation5 + $0x550] sm:$0xff]
    %v338 = vld [vmem:[#allocation5 + $0x558] sm:$0xff]
    %v339 = vld [vmem:[#allocation5 + $0x560] sm:$0xff]
    %v340 = vld [vmem:[#allocation5 + $0x568] sm:$0xff]
    %v341 = vld [vmem:[#allocation5 + $0x570] sm:$0xff]
    %v342 = vld [vmem:[#allocation5 + $0x578] sm:$0xff]
    %v343 = vld [vmem:[#allocation5 + $0x580] sm:$0xff]
    %v344 = vld [vmem:[#allocation5 + $0x588] sm:$0xff]
    %v345 = vld [vmem:[#allocation5 + $0x590] sm:$0xff]
    %v346 = vld [vmem:[#allocation5 + $0x598] sm:$0xff]
    %v347 = vld [vmem:[#allocation5 + $0x5a0] sm:$0xff]
    %v348 = vld [vmem:[#allocation5 + $0x5a8] sm:$0xff]
    %v349 = vld [vmem:[#allocation5 + $0x5b0] sm:$0xff]
    %v350 = vld [vmem:[#allocation5 + $0x5b8] sm:$0xff]
    %v351 = vld [vmem:[#allocation5 + $0x5c0] sm:$0xff]
    %v352 = vld [vmem:[#allocation5 + $0x5c8] sm:$0xff]
    %v353 = vld [vmem:[#allocation5 + $0x5d0] sm:$0xff]
    %v354 = vld [vmem:[#allocation5 + $0x5d8] sm:$0xff]
    %v355 = vld [vmem:[#allocation5 + $0x5e0] sm:$0xff]
    %v356 = vld [vmem:[#allocation5 + $0x5e8] sm:$0xff]
    %v357 = vld [vmem:[#allocation5 + $0x5f0] sm:$0xff]
    %v358 = vld [vmem:[#allocation5 + $0x5f8] sm:$0xff]
    %v359 = vld [vmem:[#allocation5 + $0x600] sm:$0xff]
    %v360 = vld [vmem:[#allocation5 + $0x608] sm:$0xff]
    %v361 = vld [vmem:[#allocation5 + $0x610] sm:$0xff]
    %v362 = vld [vmem:[#allocation5 + $0x618] sm:$0xff]
    %v363 = vld [vmem:[#allocation5 + $0x620] sm:$0xff]
    %v364 = vld [vmem:[#allocation5 + $0x628] sm:$0xff]
    %v365 = vld [vmem:[#allocation5 + $0x630] sm:$0xff]
    %v366 = vld [vmem:[#allocation5 + $0x638] sm:$0xff]
    %v367 = vld [vmem:[#allocation5 + $0x640] sm:$0xff]
    %v368 = vld [vmem:[#allocation5 + $0x648] sm:$0xff]
    %v369 = vld [vmem:[#allocation5 + $0x650] sm:$0xff]
    %v370 = vld [vmem:[#allocation5 + $0x658] sm:$0xff]
    %v371 = vld [vmem:[#allocation5 + $0x660] sm:$0xff]
    %v372 = vld [vmem:[#allocation5 + $0x668] sm:$0xff]
    %v373 = vld [vmem:[#allocation5 + $0x670] sm:$0xff]
    %v374 = vld [vmem:[#allocation5 + $0x678] sm:$0xff]
    %v375 = vld [vmem:[#allocation5 + $0x680] sm:$0xff]
    %v376 = vld [vmem:[#allocation5 + $0x688] sm:$0xff]
    %v377 = vld [vmem:[#allocation5 + $0x690] sm:$0xff]
    %v378 = vld [vmem:[#allocation5 + $0x698] sm:$0xff]
    %v379 = vld [vmem:[#allocation5 + $0x6a0] sm:$0xff]
    %v380 = vld [vmem:[#allocation5 + $0x6a8] sm:$0xff]
    %v381 = vld [vmem:[#allocation5 + $0x6b0] sm:$0xff]
    %v382 = vld [vmem:[#allocation5 + $0x6b8] sm:$0xff]
    %v383 = vld [vmem:[#allocation5 + $0x6c0] sm:$0xff]
    %v384 = vld [vmem:[#allocation5 + $0x6c8] sm:$0xff]
    %v385 = vld [vmem:[#allocation5 + $0x6d0] sm:$0xff]
    %v386 = vld [vmem:[#allocation5 + $0x6d8] sm:$0xff]
    %v387 = vld [vmem:[#allocation5 + $0x6e0] sm:$0xff]
    %v388 = vld [vmem:[#allocation5 + $0x6e8] sm:$0xff]
    %v389 = vld [vmem:[#allocation5 + $0x6f0] sm:$0xff]
    %v390 = vld [vmem:[#allocation5 + $0x6f8] sm:$0xff]
    %v391 = vld [vmem:[#allocation5 + $0x700] sm:$0xff]
    %v392 = vld [vmem:[#allocation5 + $0x708] sm:$0xff]
    %v393 = vld [vmem:[#allocation5 + $0x710] sm:$0xff]
    %v394 = vld [vmem:[#allocation5 + $0x718] sm:$0xff]
    %v395 = vld [vmem:[#allocation5 + $0x720] sm:$0xff]
    %v396 = vld [vmem:[#allocation5 + $0x728] sm:$0xff]
    %v397 = vld [vmem:[#allocation5 + $0x730] sm:$0xff]
    %v398 = vld [vmem:[#allocation5 + $0x738] sm:$0xff]
    %v399 = vld [vmem:[#allocation5 + $0x740] sm:$0xff]
    %v400 = vld [vmem:[#allocation5 + $0x748] sm:$0xff]
    %v401 = vld [vmem:[#allocation5 + $0x750] sm:$0xff]
    %v402 = vld [vmem:[#allocation5 + $0x758] sm:$0xff]
    %v403 = vld [vmem:[#allocation5 + $0x760] sm:$0xff]
    %v404 = vld [vmem:[#allocation5 + $0x768] sm:$0xff]
    %v405 = vld [vmem:[#allocation5 + $0x770] sm:$0xff]
    %v406 = vld [vmem:[#allocation5 + $0x778] sm:$0xff]
    %v407 = vld [vmem:[#allocation5 + $0x780] sm:$0xff]
    %v408 = vld [vmem:[#allocation5 + $0x788] sm:$0xff]
    %v409 = vld [vmem:[#allocation5 + $0x790] sm:$0xff]
    %v410 = vld [vmem:[#allocation5 + $0x798] sm:$0xff]
    %v411 = vld [vmem:[#allocation5 + $0x7a0] sm:$0xff]
    %v412 = vld [vmem:[#allocation5 + $0x7a8] sm:$0xff]
    %v413 = vld [vmem:[#allocation5 + $0x7b0] sm:$0xff]
    %v414 = vld [vmem:[#allocation5 + $0x7b8] sm:$0xff]
    %v415 = vld [vmem:[#allocation5 + $0x7c0] sm:$0xff]
    %v416 = vld [vmem:[#allocation5 + $0x7c8] sm:$0xff]
    %v417 = vld [vmem:[#allocation5 + $0x7d0] sm:$0xff]
    %v418 = vld [vmem:[#allocation5 + $0x7d8] sm:$0xff]
    %v419 = vld [vmem:[#allocation5 + $0x7e0] sm:$0xff]
    %v420 = vld [vmem:[#allocation5 + $0x7e8] sm:$0xff]
    %v421 = vld [vmem:[#allocation5 + $0x7f0] sm:$0xff]
    %v422 = vld [vmem:[#allocation5 + $0x7f8] sm:$0xff]
    %v423 = vunpack.c.l.bf16 %v167
    %v424 = vunpack.c.h.bf16 %v167
    %v425 = vunpack.c.l.bf16 %v168
    %v426 = vunpack.c.h.bf16 %v168
    %v427 = vunpack.c.l.bf16 %v169
    %v428 = vunpack.c.h.bf16 %v169
    %v429 = vunpack.c.l.bf16 %v170
    %v430 = vunpack.c.h.bf16 %v170
    %v431 = vunpack.c.l.bf16 %v171
    %v432 = vunpack.c.h.bf16 %v171
    %v433 = vunpack.c.l.bf16 %v172
    %v434 = vunpack.c.h.bf16 %v172
    %v435 = vunpack.c.l.bf16 %v173
    %v436 = vunpack.c.h.bf16 %v173
    %v437 = vunpack.c.l.bf16 %v174
    %v438 = vunpack.c.h.bf16 %v174
    %v439 = vunpack.c.l.bf16 %v175
    %v440 = vunpack.c.h.bf16 %v175
    %v441 = vunpack.c.l.bf16 %v176
    %v442 = vunpack.c.h.bf16 %v176
    %v443 = vunpack.c.l.bf16 %v177
    %v444 = vunpack.c.h.bf16 %v177
    %v445 = vunpack.c.l.bf16 %v178
    %v446 = vunpack.c.h.bf16 %v178
    %v447 = vunpack.c.l.bf16 %v179
    %v448 = vunpack.c.h.bf16 %v179
    %v449 = vunpack.c.l.bf16 %v180
    %v450 = vunpack.c.h.bf16 %v180
    %v451 = vunpack.c.l.bf16 %v181
    %v452 = vunpack.c.h.bf16 %v181
    %v453 = vunpack.c.l.bf16 %v182
    %v454 = vunpack.c.h.bf16 %v182
    %v455 = vunpack.c.l.bf16 %v183
    %v456 = vunpack.c.h.bf16 %v183
    %v457 = vunpack.c.l.bf16 %v184
    %v458 = vunpack.c.h.bf16 %v184
    %v459 = vunpack.c.l.bf16 %v185
    %v460 = vunpack.c.h.bf16 %v185
    %v461 = vunpack.c.l.bf16 %v186
    %v462 = vunpack.c.h.bf16 %v186
    %v463 = vunpack.c.l.bf16 %v187
    %v464 = vunpack.c.h.bf16 %v187
    %v465 = vunpack.c.l.bf16 %v188
    %v466 = vunpack.c.h.bf16 %v188
    %v467 = vunpack.c.l.bf16 %v189
    %v468 = vunpack.c.h.bf16 %v189
    %v469 = vunpack.c.l.bf16 %v190
    %v470 = vunpack.c.h.bf16 %v190
    %v471 = vunpack.c.l.bf16 %v191
    %v472 = vunpack.c.h.bf16 %v191
    %v473 = vunpack.c.l.bf16 %v192
    %v474 = vunpack.c.h.bf16 %v192
    %v475 = vunpack.c.l.bf16 %v193
    %v476 = vunpack.c.h.bf16 %v193
    %v477 = vunpack.c.l.bf16 %v194
    %v478 = vunpack.c.h.bf16 %v194
    %v479 = vunpack.c.l.bf16 %v195
    %v480 = vunpack.c.h.bf16 %v195
    %v481 = vunpack.c.l.bf16 %v196
    %v482 = vunpack.c.h.bf16 %v196
    %v483 = vunpack.c.l.bf16 %v197
    %v484 = vunpack.c.h.bf16 %v197
    %v485 = vunpack.c.l.bf16 %v198
    %v486 = vunpack.c.h.bf16 %v198
    %v487 = vunpack.c.l.bf16 %v199
    %v488 = vunpack.c.h.bf16 %v199
    %v489 = vunpack.c.l.bf16 %v200
    %v490 = vunpack.c.h.bf16 %v200
    %v491 = vunpack.c.l.bf16 %v201
    %v492 = vunpack.c.h.bf16 %v201
    %v493 = vunpack.c.l.bf16 %v202
    %v494 = vunpack.c.h.bf16 %v202
    %v495 = vunpack.c.l.bf16 %v203
    %v496 = vunpack.c.h.bf16 %v203
    %v497 = vunpack.c.l.bf16 %v204
    %v498 = vunpack.c.h.bf16 %v204
    %v499 = vunpack.c.l.bf16 %v205
    %v500 = vunpack.c.h.bf16 %v205
    %v501 = vunpack.c.l.bf16 %v206
    %v502 = vunpack.c.h.bf16 %v206
    %v503 = vunpack.c.l.bf16 %v207
    %v504 = vunpack.c.h.bf16 %v207
    %v505 = vunpack.c.l.bf16 %v208
    %v506 = vunpack.c.h.bf16 %v208
    %v507 = vunpack.c.l.bf16 %v209
    %v508 = vunpack.c.h.bf16 %v209
    %v509 = vunpack.c.l.bf16 %v210
    %v510 = vunpack.c.h.bf16 %v210
    %v511 = vunpack.c.l.bf16 %v211
    %v512 = vunpack.c.h.bf16 %v211
    %v513 = vunpack.c.l.bf16 %v212
    %v514 = vunpack.c.h.bf16 %v212
    %v515 = vunpack.c.l.bf16 %v213
    %v516 = vunpack.c.h.bf16 %v213
    %v517 = vunpack.c.l.bf16 %v214
    %v518 = vunpack.c.h.bf16 %v214
    %v519 = vunpack.c.l.bf16 %v215
    %v520 = vunpack.c.h.bf16 %v215
    %v521 = vunpack.c.l.bf16 %v216
    %v522 = vunpack.c.h.bf16 %v216
    %v523 = vunpack.c.l.bf16 %v217
    %v524 = vunpack.c.h.bf16 %v217
    %v525 = vunpack.c.l.bf16 %v218
    %v526 = vunpack.c.h.bf16 %v218
    %v527 = vunpack.c.l.bf16 %v219
    %v528 = vunpack.c.h.bf16 %v219
    %v529 = vunpack.c.l.bf16 %v220
    %v530 = vunpack.c.h.bf16 %v220
    %v531 = vunpack.c.l.bf16 %v221
    %v532 = vunpack.c.h.bf16 %v221
    %v533 = vunpack.c.l.bf16 %v222
    %v534 = vunpack.c.h.bf16 %v222
    %v535 = vunpack.c.l.bf16 %v223
    %v536 = vunpack.c.h.bf16 %v223
    %v537 = vunpack.c.l.bf16 %v224
    %v538 = vunpack.c.h.bf16 %v224
    %v539 = vunpack.c.l.bf16 %v225
    %v540 = vunpack.c.h.bf16 %v225
    %v541 = vunpack.c.l.bf16 %v226
    %v542 = vunpack.c.h.bf16 %v226
    %v543 = vunpack.c.l.bf16 %v227
    %v544 = vunpack.c.h.bf16 %v227
    %v545 = vunpack.c.l.bf16 %v228
    %v546 = vunpack.c.h.bf16 %v228
    %v547 = vunpack.c.l.bf16 %v229
    %v548 = vunpack.c.h.bf16 %v229
    %v549 = vunpack.c.l.bf16 %v230
    %v550 = vunpack.c.h.bf16 %v230
    %v551 = vunpack.c.l.bf16 %v231
    %v552 = vunpack.c.h.bf16 %v231
    %v553 = vunpack.c.l.bf16 %v232
    %v554 = vunpack.c.h.bf16 %v232
    %v555 = vunpack.c.l.bf16 %v233
    %v556 = vunpack.c.h.bf16 %v233
    %v557 = vunpack.c.l.bf16 %v234
    %v558 = vunpack.c.h.bf16 %v234
    %v559 = vunpack.c.l.bf16 %v235
    %v560 = vunpack.c.h.bf16 %v235
    %v561 = vunpack.c.l.bf16 %v236
    %v562 = vunpack.c.h.bf16 %v236
    %v563 = vunpack.c.l.bf16 %v237
    %v564 = vunpack.c.h.bf16 %v237
    %v565 = vunpack.c.l.bf16 %v238
    %v566 = vunpack.c.h.bf16 %v238
    %v567 = vunpack.c.l.bf16 %v239
    %v568 = vunpack.c.h.bf16 %v239
    %v569 = vunpack.c.l.bf16 %v240
    %v570 = vunpack.c.h.bf16 %v240
    %v571 = vunpack.c.l.bf16 %v241
    %v572 = vunpack.c.h.bf16 %v241
    %v573 = vunpack.c.l.bf16 %v242
    %v574 = vunpack.c.h.bf16 %v242
    %v575 = vunpack.c.l.bf16 %v243
    %v576 = vunpack.c.h.bf16 %v243
    %v577 = vunpack.c.l.bf16 %v244
    %v578 = vunpack.c.h.bf16 %v244
    %v579 = vunpack.c.l.bf16 %v245
    %v580 = vunpack.c.h.bf16 %v245
    %v581 = vunpack.c.l.bf16 %v246
    %v582 = vunpack.c.h.bf16 %v246
    %v583 = vunpack.c.l.bf16 %v247
    %v584 = vunpack.c.h.bf16 %v247
    %v585 = vunpack.c.l.bf16 %v248
    %v586 = vunpack.c.h.bf16 %v248
    %v587 = vunpack.c.l.bf16 %v249
    %v588 = vunpack.c.h.bf16 %v249
    %v589 = vunpack.c.l.bf16 %v250
    %v590 = vunpack.c.h.bf16 %v250
    %v591 = vunpack.c.l.bf16 %v251
    %v592 = vunpack.c.h.bf16 %v251
    %v593 = vunpack.c.l.bf16 %v252
    %v594 = vunpack.c.h.bf16 %v252
    %v595 = vunpack.c.l.bf16 %v253
    %v596 = vunpack.c.h.bf16 %v253
    %v597 = vunpack.c.l.bf16 %v254
    %v598 = vunpack.c.h.bf16 %v254
    %v599 = vunpack.c.l.bf16 %v255
    %v600 = vunpack.c.h.bf16 %v255
    %v601 = vunpack.c.l.bf16 %v256
    %v602 = vunpack.c.h.bf16 %v256
    %v603 = vunpack.c.l.bf16 %v257
    %v604 = vunpack.c.h.bf16 %v257
    %v605 = vunpack.c.l.bf16 %v258
    %v606 = vunpack.c.h.bf16 %v258
    %v607 = vunpack.c.l.bf16 %v259
    %v608 = vunpack.c.h.bf16 %v259
    %v609 = vunpack.c.l.bf16 %v260
    %v610 = vunpack.c.h.bf16 %v260
    %v611 = vunpack.c.l.bf16 %v261
    %v612 = vunpack.c.h.bf16 %v261
    %v613 = vunpack.c.l.bf16 %v262
    %v614 = vunpack.c.h.bf16 %v262
    %v615 = vunpack.c.l.bf16 %v263
    %v616 = vunpack.c.h.bf16 %v263
    %v617 = vunpack.c.l.bf16 %v264
    %v618 = vunpack.c.h.bf16 %v264
    %v619 = vunpack.c.l.bf16 %v265
    %v620 = vunpack.c.h.bf16 %v265
    %v621 = vunpack.c.l.bf16 %v266
    %v622 = vunpack.c.h.bf16 %v266
    %v623 = vunpack.c.l.bf16 %v267
    %v624 = vunpack.c.h.bf16 %v267
    %v625 = vunpack.c.l.bf16 %v268
    %v626 = vunpack.c.h.bf16 %v268
    %v627 = vunpack.c.l.bf16 %v269
    %v628 = vunpack.c.h.bf16 %v269
    %v629 = vunpack.c.l.bf16 %v270
    %v630 = vunpack.c.h.bf16 %v270
    %v631 = vunpack.c.l.bf16 %v271
    %v632 = vunpack.c.h.bf16 %v271
    %v633 = vunpack.c.l.bf16 %v272
    %v634 = vunpack.c.h.bf16 %v272
    %v635 = vunpack.c.l.bf16 %v273
    %v636 = vunpack.c.h.bf16 %v273
    %v637 = vunpack.c.l.bf16 %v274
    %v638 = vunpack.c.h.bf16 %v274
    %v639 = vunpack.c.l.bf16 %v275
    %v640 = vunpack.c.h.bf16 %v275
    %v641 = vunpack.c.l.bf16 %v276
    %v642 = vunpack.c.h.bf16 %v276
    %v643 = vunpack.c.l.bf16 %v277
    %v644 = vunpack.c.h.bf16 %v277
    %v645 = vunpack.c.l.bf16 %v278
    %v646 = vunpack.c.h.bf16 %v278
    %v647 = vunpack.c.l.bf16 %v279
    %v648 = vunpack.c.h.bf16 %v279
    %v649 = vunpack.c.l.bf16 %v280
    %v650 = vunpack.c.h.bf16 %v280
    %v651 = vunpack.c.l.bf16 %v281
    %v652 = vunpack.c.h.bf16 %v281
    %v653 = vunpack.c.l.bf16 %v282
    %v654 = vunpack.c.h.bf16 %v282
    %v655 = vunpack.c.l.bf16 %v283
    %v656 = vunpack.c.h.bf16 %v283
    %v657 = vunpack.c.l.bf16 %v284
    %v658 = vunpack.c.h.bf16 %v284
    %v659 = vunpack.c.l.bf16 %v285
    %v660 = vunpack.c.h.bf16 %v285
    %v661 = vunpack.c.l.bf16 %v286
    %v662 = vunpack.c.h.bf16 %v286
    %v663 = vunpack.c.l.bf16 %v287
    %v664 = vunpack.c.h.bf16 %v287
    %v665 = vunpack.c.l.bf16 %v288
    %v666 = vunpack.c.h.bf16 %v288
    %v667 = vunpack.c.l.bf16 %v289
    %v668 = vunpack.c.h.bf16 %v289
    %v669 = vunpack.c.l.bf16 %v290
    %v670 = vunpack.c.h.bf16 %v290
    %v671 = vunpack.c.l.bf16 %v291
    %v672 = vunpack.c.h.bf16 %v291
    %v673 = vunpack.c.l.bf16 %v292
    %v674 = vunpack.c.h.bf16 %v292
    %v675 = vunpack.c.l.bf16 %v293
    %v676 = vunpack.c.h.bf16 %v293
    %v677 = vunpack.c.l.bf16 %v294
    %v678 = vunpack.c.h.bf16 %v294
    %v679 = vunpack.c.l.bf16 %v295
    %v680 = vunpack.c.h.bf16 %v295
    %v681 = vunpack.c.l.bf16 %v296
    %v682 = vunpack.c.h.bf16 %v296
    %v683 = vunpack.c.l.bf16 %v297
    %v684 = vunpack.c.h.bf16 %v297
    %v685 = vunpack.c.l.bf16 %v298
    %v686 = vunpack.c.h.bf16 %v298
    %v687 = vunpack.c.l.bf16 %v299
    %v688 = vunpack.c.h.bf16 %v299
    %v689 = vunpack.c.l.bf16 %v300
    %v690 = vunpack.c.h.bf16 %v300
    %v691 = vunpack.c.l.bf16 %v301
    %v692 = vunpack.c.h.bf16 %v301
    %v693 = vunpack.c.l.bf16 %v302
    %v694 = vunpack.c.h.bf16 %v302
    %v695 = vunpack.c.l.bf16 %v303
    %v696 = vunpack.c.h.bf16 %v303
    %v697 = vunpack.c.l.bf16 %v304
    %v698 = vunpack.c.h.bf16 %v304
    %v699 = vunpack.c.l.bf16 %v305
    %v700 = vunpack.c.h.bf16 %v305
    %v701 = vunpack.c.l.bf16 %v306
    %v702 = vunpack.c.h.bf16 %v306
    %v703 = vunpack.c.l.bf16 %v307
    %v704 = vunpack.c.h.bf16 %v307
    %v705 = vunpack.c.l.bf16 %v308
    %v706 = vunpack.c.h.bf16 %v308
    %v707 = vunpack.c.l.bf16 %v309
    %v708 = vunpack.c.h.bf16 %v309
    %v709 = vunpack.c.l.bf16 %v310
    %v710 = vunpack.c.h.bf16 %v310
    %v711 = vunpack.c.l.bf16 %v311
    %v712 = vunpack.c.h.bf16 %v311
    %v713 = vunpack.c.l.bf16 %v312
    %v714 = vunpack.c.h.bf16 %v312
    %v715 = vunpack.c.l.bf16 %v313
    %v716 = vunpack.c.h.bf16 %v313
    %v717 = vunpack.c.l.bf16 %v314
    %v718 = vunpack.c.h.bf16 %v314
    %v719 = vunpack.c.l.bf16 %v315
    %v720 = vunpack.c.h.bf16 %v315
    %v721 = vunpack.c.l.bf16 %v316
    %v722 = vunpack.c.h.bf16 %v316
    %v723 = vunpack.c.l.bf16 %v317
    %v724 = vunpack.c.h.bf16 %v317
    %v725 = vunpack.c.l.bf16 %v318
    %v726 = vunpack.c.h.bf16 %v318
    %v727 = vunpack.c.l.bf16 %v319
    %v728 = vunpack.c.h.bf16 %v319
    %v729 = vunpack.c.l.bf16 %v320
    %v730 = vunpack.c.h.bf16 %v320
    %v731 = vunpack.c.l.bf16 %v321
    %v732 = vunpack.c.h.bf16 %v321
    %v733 = vunpack.c.l.bf16 %v322
    %v734 = vunpack.c.h.bf16 %v322
    %v735 = vunpack.c.l.bf16 %v323
    %v736 = vunpack.c.h.bf16 %v323
    %v737 = vunpack.c.l.bf16 %v324
    %v738 = vunpack.c.h.bf16 %v324
    %v739 = vunpack.c.l.bf16 %v325
    %v740 = vunpack.c.h.bf16 %v325
    %v741 = vunpack.c.l.bf16 %v326
    %v742 = vunpack.c.h.bf16 %v326
    %v743 = vunpack.c.l.bf16 %v327
    %v744 = vunpack.c.h.bf16 %v327
    %v745 = vunpack.c.l.bf16 %v328
    %v746 = vunpack.c.h.bf16 %v328
    %v747 = vunpack.c.l.bf16 %v329
    %v748 = vunpack.c.h.bf16 %v329
    %v749 = vunpack.c.l.bf16 %v330
    %v750 = vunpack.c.h.bf16 %v330
    %v751 = vunpack.c.l.bf16 %v331
    %v752 = vunpack.c.h.bf16 %v331
    %v753 = vunpack.c.l.bf16 %v332
    %v754 = vunpack.c.h.bf16 %v332
    %v755 = vunpack.c.l.bf16 %v333
    %v756 = vunpack.c.h.bf16 %v333
    %v757 = vunpack.c.l.bf16 %v334
    %v758 = vunpack.c.h.bf16 %v334
    %v759 = vunpack.c.l.bf16 %v335
    %v760 = vunpack.c.h.bf16 %v335
    %v761 = vunpack.c.l.bf16 %v336
    %v762 = vunpack.c.h.bf16 %v336
    %v763 = vunpack.c.l.bf16 %v337
    %v764 = vunpack.c.h.bf16 %v337
    %v765 = vunpack.c.l.bf16 %v338
    %v766 = vunpack.c.h.bf16 %v338
    %v767 = vunpack.c.l.bf16 %v339
    %v768 = vunpack.c.h.bf16 %v339
    %v769 = vunpack.c.l.bf16 %v340
    %v770 = vunpack.c.h.bf16 %v340
    %v771 = vunpack.c.l.bf16 %v341
    %v772 = vunpack.c.h.bf16 %v341
    %v773 = vunpack.c.l.bf16 %v342
    %v774 = vunpack.c.h.bf16 %v342
    %v775 = vunpack.c.l.bf16 %v343
    %v776 = vunpack.c.h.bf16 %v343
    %v777 = vunpack.c.l.bf16 %v344
    %v778 = vunpack.c.h.bf16 %v344
    %v779 = vunpack.c.l.bf16 %v345
    %v780 = vunpack.c.h.bf16 %v345
    %v781 = vunpack.c.l.bf16 %v346
    %v782 = vunpack.c.h.bf16 %v346
    %v783 = vunpack.c.l.bf16 %v347
    %v784 = vunpack.c.h.bf16 %v347
    %v785 = vunpack.c.l.bf16 %v348
    %v786 = vunpack.c.h.bf16 %v348
    %v787 = vunpack.c.l.bf16 %v349
    %v788 = vunpack.c.h.bf16 %v349
    %v789 = vunpack.c.l.bf16 %v350
    %v790 = vunpack.c.h.bf16 %v350
    %v791 = vunpack.c.l.bf16 %v351
    %v792 = vunpack.c.h.bf16 %v351
    %v793 = vunpack.c.l.bf16 %v352
    %v794 = vunpack.c.h.bf16 %v352
    %v795 = vunpack.c.l.bf16 %v353
    %v796 = vunpack.c.h.bf16 %v353
    %v797 = vunpack.c.l.bf16 %v354
    %v798 = vunpack.c.h.bf16 %v354
    %v799 = vunpack.c.l.bf16 %v355
    %v800 = vunpack.c.h.bf16 %v355
    %v801 = vunpack.c.l.bf16 %v356
    %v802 = vunpack.c.h.bf16 %v356
    %v803 = vunpack.c.l.bf16 %v357
    %v804 = vunpack.c.h.bf16 %v357
    %v805 = vunpack.c.l.bf16 %v358
    %v806 = vunpack.c.h.bf16 %v358
    %v807 = vunpack.c.l.bf16 %v359
    %v808 = vunpack.c.h.bf16 %v359
    %v809 = vunpack.c.l.bf16 %v360
    %v810 = vunpack.c.h.bf16 %v360
    %v811 = vunpack.c.l.bf16 %v361
    %v812 = vunpack.c.h.bf16 %v361
    %v813 = vunpack.c.l.bf16 %v362
    %v814 = vunpack.c.h.bf16 %v362
    %v815 = vunpack.c.l.bf16 %v363
    %v816 = vunpack.c.h.bf16 %v363
    %v817 = vunpack.c.l.bf16 %v364
    %v818 = vunpack.c.h.bf16 %v364
    %v819 = vunpack.c.l.bf16 %v365
    %v820 = vunpack.c.h.bf16 %v365
    %v821 = vunpack.c.l.bf16 %v366
    %v822 = vunpack.c.h.bf16 %v366
    %v823 = vunpack.c.l.bf16 %v367
    %v824 = vunpack.c.h.bf16 %v367
    %v825 = vunpack.c.l.bf16 %v368
    %v826 = vunpack.c.h.bf16 %v368
    %v827 = vunpack.c.l.bf16 %v369
    %v828 = vunpack.c.h.bf16 %v369
    %v829 = vunpack.c.l.bf16 %v370
    %v830 = vunpack.c.h.bf16 %v370
    %v831 = vunpack.c.l.bf16 %v371
    %v832 = vunpack.c.h.bf16 %v371
    %v833 = vunpack.c.l.bf16 %v372
    %v834 = vunpack.c.h.bf16 %v372
    %v835 = vunpack.c.l.bf16 %v373
    %v836 = vunpack.c.h.bf16 %v373
    %v837 = vunpack.c.l.bf16 %v374
    %v838 = vunpack.c.h.bf16 %v374
    %v839 = vunpack.c.l.bf16 %v375
    %v840 = vunpack.c.h.bf16 %v375
    %v841 = vunpack.c.l.bf16 %v376
    %v842 = vunpack.c.h.bf16 %v376
    %v843 = vunpack.c.l.bf16 %v377
    %v844 = vunpack.c.h.bf16 %v377
    %v845 = vunpack.c.l.bf16 %v378
    %v846 = vunpack.c.h.bf16 %v378
    %v847 = vunpack.c.l.bf16 %v379
    %v848 = vunpack.c.h.bf16 %v379
    %v849 = vunpack.c.l.bf16 %v380
    %v850 = vunpack.c.h.bf16 %v380
    %v851 = vunpack.c.l.bf16 %v381
    %v852 = vunpack.c.h.bf16 %v381
    %v853 = vunpack.c.l.bf16 %v382
    %v854 = vunpack.c.h.bf16 %v382
    %v855 = vunpack.c.l.bf16 %v383
    %v856 = vunpack.c.h.bf16 %v383
    %v857 = vunpack.c.l.bf16 %v384
    %v858 = vunpack.c.h.bf16 %v384
    %v859 = vunpack.c.l.bf16 %v385
    %v860 = vunpack.c.h.bf16 %v385
    %v861 = vunpack.c.l.bf16 %v386
    %v862 = vunpack.c.h.bf16 %v386
    %v863 = vunpack.c.l.bf16 %v387
    %v864 = vunpack.c.h.bf16 %v387
    %v865 = vunpack.c.l.bf16 %v388
    %v866 = vunpack.c.h.bf16 %v388
    %v867 = vunpack.c.l.bf16 %v389
    %v868 = vunpack.c.h.bf16 %v389
    %v869 = vunpack.c.l.bf16 %v390
    %v870 = vunpack.c.h.bf16 %v390
    %v871 = vunpack.c.l.bf16 %v391
    %v872 = vunpack.c.h.bf16 %v391
    %v873 = vunpack.c.l.bf16 %v392
    %v874 = vunpack.c.h.bf16 %v392
    %v875 = vunpack.c.l.bf16 %v393
    %v876 = vunpack.c.h.bf16 %v393
    %v877 = vunpack.c.l.bf16 %v394
    %v878 = vunpack.c.h.bf16 %v394
    %v879 = vunpack.c.l.bf16 %v395
    %v880 = vunpack.c.h.bf16 %v395
    %v881 = vunpack.c.l.bf16 %v396
    %v882 = vunpack.c.h.bf16 %v396
    %v883 = vunpack.c.l.bf16 %v397
    %v884 = vunpack.c.h.bf16 %v397
    %v885 = vunpack.c.l.bf16 %v398
    %v886 = vunpack.c.h.bf16 %v398
    %v887 = vunpack.c.l.bf16 %v399
    %v888 = vunpack.c.h.bf16 %v399
    %v889 = vunpack.c.l.bf16 %v400
    %v890 = vunpack.c.h.bf16 %v400
    %v891 = vunpack.c.l.bf16 %v401
    %v892 = vunpack.c.h.bf16 %v401
    %v893 = vunpack.c.l.bf16 %v402
    %v894 = vunpack.c.h.bf16 %v402
    %v895 = vunpack.c.l.bf16 %v403
    %v896 = vunpack.c.h.bf16 %v403
    %v897 = vunpack.c.l.bf16 %v404
    %v898 = vunpack.c.h.bf16 %v404
    %v899 = vunpack.c.l.bf16 %v405
    %v900 = vunpack.c.h.bf16 %v405
    %v901 = vunpack.c.l.bf16 %v406
    %v902 = vunpack.c.h.bf16 %v406
    %v903 = vunpack.c.l.bf16 %v407
    %v904 = vunpack.c.h.bf16 %v407
    %v905 = vunpack.c.l.bf16 %v408
    %v906 = vunpack.c.h.bf16 %v408
    %v907 = vunpack.c.l.bf16 %v409
    %v908 = vunpack.c.h.bf16 %v409
    %v909 = vunpack.c.l.bf16 %v410
    %v910 = vunpack.c.h.bf16 %v410
    %v911 = vunpack.c.l.bf16 %v411
    %v912 = vunpack.c.h.bf16 %v411
    %v913 = vunpack.c.l.bf16 %v412
    %v914 = vunpack.c.h.bf16 %v412
    %v915 = vunpack.c.l.bf16 %v413
    %v916 = vunpack.c.h.bf16 %v413
    %v917 = vunpack.c.l.bf16 %v414
    %v918 = vunpack.c.h.bf16 %v414
    %v919 = vunpack.c.l.bf16 %v415
    %v920 = vunpack.c.h.bf16 %v415
    %v921 = vunpack.c.l.bf16 %v416
    %v922 = vunpack.c.h.bf16 %v416
    %v923 = vunpack.c.l.bf16 %v417
    %v924 = vunpack.c.h.bf16 %v417
    %v925 = vunpack.c.l.bf16 %v418
    %v926 = vunpack.c.h.bf16 %v418
    %v927 = vunpack.c.l.bf16 %v419
    %v928 = vunpack.c.h.bf16 %v419
    %v929 = vunpack.c.l.bf16 %v420
    %v930 = vunpack.c.h.bf16 %v420
    %v931 = vunpack.c.l.bf16 %v421
    %v932 = vunpack.c.h.bf16 %v421
    %v933 = vunpack.c.l.bf16 %v422
    %v934 = vunpack.c.h.bf16 %v422
    %v935 = vld [vmem:[%s7] sm:$0xf]
    %v937 = vlaneseq
    %v938 = vshrl.u32 %v937, 7
    %v939 = vsub.s32 0, %v938
    %v940 = vrot.slane %v935, %v939
    %v941 = vlaneseq
    %v942 = vshrl.u32 %v941, 7
    %v943 = vsub.s32 1, %v942
    %v944 = vrot.slane %v935, %v943
    %v945 = vlaneseq
    %v946 = vshrl.u32 %v945, 7
    %v947 = vsub.s32 2, %v946
    %v948 = vrot.slane %v935, %v947
    %v949 = vlaneseq
    %v950 = vshrl.u32 %v949, 7
    %v951 = vsub.s32 3, %v950
    %v952 = vrot.slane %v935, %v951
    %v959 = vcombine.high %v165, %v165
    %v961 = vunpack.c.l.s4 1983009808
    %v962 = vunpack.c.0.s8 %v961
    %v963 = vlaneseq
    %v964 = vshrl.u32 %v963, 7
    %v965 = vsub.s32 %v962, %v964
    %v966 = vrot.slane %v165, %v965
    %v968 = vunpack.c.l.s4 1983009808
    %v969 = vunpack.c.0.s8 %v968
    %v970 = vlaneseq
    %v971 = vshrl.u32 %v970, 7
    %v972 = vsub.s32 %v969, %v971
    %v973 = vrot.slane %v959, %v972
    %v974 = vcombine.high %v966, %v966
    %v975 = vcombine.high %v973, %v973
    %v976 = vcombine.high %v166, %v166
    %v978 = vunpack.c.l.s4 1983009808
    %v979 = vunpack.c.0.s8 %v978
    %v980 = vlaneseq
    %v981 = vshrl.u32 %v980, 7
    %v982 = vsub.s32 %v979, %v981
    %v983 = vrot.slane %v166, %v982
    %v985 = vunpack.c.l.s4 1983009808
    %v986 = vunpack.c.0.s8 %v985
    %v987 = vlaneseq
    %v988 = vshrl.u32 %v987, 7
    %v989 = vsub.s32 %v986, %v988
    %v990 = vrot.slane %v976, %v989
    %v991 = vcombine.high %v983, %v983
    %v992 = vcombine.high %v990, %v990
    %1001 = vmatprep.subr.mxu0 %v424
    %1002 = vmatpush1.msra.mxu0 %v423
    %1003 = vmatprep.subr.mxu0 %v428
    %1004 = vmatpush1.msra.mxu0 %v427
    %1005 = vmatprep.subr.mxu0 %v432
    %1006 = vmatpush1.msra.mxu0 %v431
    %1007 = vmatprep.subr.mxu0 %v436
    %1008 = vmatpush1.msra.mxu0 %v435
    %1009 = vmatprep.subr.mxu0 %v440
    %1010 = vmatpush1.msra.mxu0 %v439
    %1011 = vmatprep.subr.mxu0 %v444
    %1012 = vmatpush1.msra.mxu0 %v443
    %1013 = vmatprep.subr.mxu0 %v448
    %1014 = vmatpush1.msra.mxu0 %v447
    %1015 = vmatprep.subr.mxu0 %v452
    %1016 = vmatpush1.msra.mxu0 %v451
    %1017 = vmatprep.subr.mxu0 %v456
    %1018 = vmatpush1.msra.mxu0 %v455
    %1019 = vmatprep.subr.mxu0 %v460
    %1020 = vmatpush1.msra.mxu0 %v459
    %1021 = vmatprep.subr.mxu0 %v464
    %1022 = vmatpush1.msra.mxu0 %v463
    %1023 = vmatprep.subr.mxu0 %v468
    %1024 = vmatpush1.msra.mxu0 %v467
    %1025 = vmatprep.subr.mxu0 %v472
    %1026 = vmatpush1.msra.mxu0 %v471
    %1027 = vmatprep.subr.mxu0 %v476
    %1028 = vmatpush1.msra.mxu0 %v475
    %1029 = vmatprep.subr.mxu0 %v480
    %1030 = vmatpush1.msra.mxu0 %v479
    %1031 = vmatprep.subr.mxu0 %v484
    %1032 = vmatpush1.msra.mxu0 %v483
    %1033 = vmatprep.subr.mxu0 %v488
    %1034 = vmatpush1.msra.mxu0 %v487
    %1035 = vmatprep.subr.mxu0 %v492
    %1036 = vmatpush1.msra.mxu0 %v491
    %1037 = vmatprep.subr.mxu0 %v496
    %1038 = vmatpush1.msra.mxu0 %v495
    %1039 = vmatprep.subr.mxu0 %v500
    %1040 = vmatpush1.msra.mxu0 %v499
    %1041 = vmatprep.subr.mxu0 %v504
    %1042 = vmatpush1.msra.mxu0 %v503
    %1043 = vmatprep.subr.mxu0 %v508
    %1044 = vmatpush1.msra.mxu0 %v507
    %1045 = vmatprep.subr.mxu0 %v512
    %1046 = vmatpush1.msra.mxu0 %v511
    %1047 = vmatprep.subr.mxu0 %v516
    %1048 = vmatpush1.msra.mxu0 %v515
    %1049 = vmatprep.subr.mxu0 %v520
    %1050 = vmatpush1.msra.mxu0 %v519
    %1051 = vmatprep.subr.mxu0 %v524
    %1052 = vmatpush1.msra.mxu0 %v523
    %1053 = vmatprep.subr.mxu0 %v528
    %1054 = vmatpush1.msra.mxu0 %v527
    %1055 = vmatprep.subr.mxu0 %v532
    %1056 = vmatpush1.msra.mxu0 %v531
    %1057 = vmatprep.subr.mxu0 %v536
    %1058 = vmatpush1.msra.mxu0 %v535
    %1059 = vmatprep.subr.mxu0 %v540
    %1060 = vmatpush1.msra.mxu0 %v539
    %1061 = vmatprep.subr.mxu0 %v544
    %1062 = vmatpush1.msra.mxu0 %v543
    %1063 = vmatprep.subr.mxu0 %v548
    %1064 = vmatpush1.msra.mxu0 %v547
    %1065 = vmatprep.mubr.f32.mxu0 %v974
    %1066 = vmatmul.mubr.f32.gmra.mrb[0].mxu0 %v966
    %v1067 = vpop.f32.mrb[0].mxu0
    %v1068 = vadd.f32 %v940, %v1067
    %v1069 = vpop.f32.mrb[0].mxu0
    %v1070 = vadd.f32 %v944, %v1069
    %1071 = vdwg.mxu0
    %1072 = vmatprep.subr.mxu0 %v552
    %1073 = vmatpush1.msra.mxu0 %v551
    %1074 = vmatprep.subr.mxu0 %v556
    %1075 = vmatpush1.msra.mxu0 %v555
    %1076 = vmatprep.subr.mxu0 %v560
    %1077 = vmatpush1.msra.mxu0 %v559
    %1078 = vmatprep.subr.mxu0 %v564
    %1079 = vmatpush1.msra.mxu0 %v563
    %1080 = vmatprep.subr.mxu0 %v568
    %1081 = vmatpush1.msra.mxu0 %v567
    %1082 = vmatprep.subr.mxu0 %v572
    %1083 = vmatpush1.msra.mxu0 %v571
    %1084 = vmatprep.subr.mxu0 %v576
    %1085 = vmatpush1.msra.mxu0 %v575
    %1086 = vmatprep.subr.mxu0 %v580
    %1087 = vmatpush1.msra.mxu0 %v579
    %1088 = vmatprep.subr.mxu0 %v584
    %1089 = vmatpush1.msra.mxu0 %v583
    %1090 = vmatprep.subr.mxu0 %v588
    %1091 = vmatpush1.msra.mxu0 %v587
    %1092 = vmatprep.subr.mxu0 %v592
    %1093 = vmatpush1.msra.mxu0 %v591
    %1094 = vmatprep.subr.mxu0 %v596
    %1095 = vmatpush1.msra.mxu0 %v595
    %1096 = vmatprep.subr.mxu0 %v600
    %1097 = vmatpush1.msra.mxu0 %v599
    %1098 = vmatprep.subr.mxu0 %v604
    %1099 = vmatpush1.msra.mxu0 %v603
    %1100 = vmatprep.subr.mxu0 %v608
    %1101 = vmatpush1.msra.mxu0 %v607
    %1102 = vmatprep.subr.mxu0 %v612
    %1103 = vmatpush1.msra.mxu0 %v611
    %1104 = vmatprep.subr.mxu0 %v616
    %1105 = vmatpush1.msra.mxu0 %v615
    %1106 = vmatprep.subr.mxu0 %v620
    %1107 = vmatpush1.msra.mxu0 %v619
    %1108 = vmatprep.subr.mxu0 %v624
    %1109 = vmatpush1.msra.mxu0 %v623
    %1110 = vmatprep.subr.mxu0 %v628
    %1111 = vmatpush1.msra.mxu0 %v627
    %1112 = vmatprep.subr.mxu0 %v632
    %1113 = vmatpush1.msra.mxu0 %v631
    %1114 = vmatprep.subr.mxu0 %v636
    %1115 = vmatpush1.msra.mxu0 %v635
    %1116 = vmatprep.subr.mxu0 %v640
    %1117 = vmatpush1.msra.mxu0 %v639
    %1118 = vmatprep.subr.mxu0 %v644
    %1119 = vmatpush1.msra.mxu0 %v643
    %1120 = vmatprep.subr.mxu0 %v648
    %1121 = vmatpush1.msra.mxu0 %v647
    %1122 = vmatprep.subr.mxu0 %v652
    %1123 = vmatpush1.msra.mxu0 %v651
    %1124 = vmatprep.subr.mxu0 %v656
    %1125 = vmatpush1.msra.mxu0 %v655
    %1126 = vmatprep.subr.mxu0 %v660
    %1127 = vmatpush1.msra.mxu0 %v659
    %1128 = vmatprep.subr.mxu0 %v664
    %1129 = vmatpush1.msra.mxu0 %v663
    %1130 = vmatprep.subr.mxu0 %v668
    %1131 = vmatpush1.msra.mxu0 %v667
    %1132 = vmatprep.subr.mxu0 %v672
    %1133 = vmatpush1.msra.mxu0 %v671
    %1134 = vmatprep.subr.mxu0 %v676
    %1135 = vmatpush1.msra.mxu0 %v675
    %1136 = vmatprep.mubr.f32.mxu0 %v975
    %1137 = vmatmul.mubr.f32.gmra.mrb[0].mxu0 %v973
    %v1138 = vpop.f32.mrb[0].mxu0
    %v1139 = vadd.f32 %v1068, %v1138
    %v1140 = vpop.f32.mrb[0].mxu0
    %v1141 = vadd.f32 %v1070, %v1140
    %1142 = vdwg.mxu0
    %1143 = vmatprep.subr.mxu0 %v680
    %1144 = vmatpush1.msra.mxu0 %v679
    %1145 = vmatprep.subr.mxu0 %v684
    %1146 = vmatpush1.msra.mxu0 %v683
    %1147 = vmatprep.subr.mxu0 %v688
    %1148 = vmatpush1.msra.mxu0 %v687
    %1149 = vmatprep.subr.mxu0 %v692
    %1150 = vmatpush1.msra.mxu0 %v691
    %1151 = vmatprep.subr.mxu0 %v696
    %1152 = vmatpush1.msra.mxu0 %v695
    %1153 = vmatprep.subr.mxu0 %v700
    %1154 = vmatpush1.msra.mxu0 %v699
    %1155 = vmatprep.subr.mxu0 %v704
    %1156 = vmatpush1.msra.mxu0 %v703
    %1157 = vmatprep.subr.mxu0 %v708
    %1158 = vmatpush1.msra.mxu0 %v707
    %1159 = vmatprep.subr.mxu0 %v712
    %1160 = vmatpush1.msra.mxu0 %v711
    %1161 = vmatprep.subr.mxu0 %v716
    %1162 = vmatpush1.msra.mxu0 %v715
    %1163 = vmatprep.subr.mxu0 %v720
    %1164 = vmatpush1.msra.mxu0 %v719
    %1165 = vmatprep.subr.mxu0 %v724
    %1166 = vmatpush1.msra.mxu0 %v723
    %1167 = vmatprep.subr.mxu0 %v728
    %1168 = vmatpush1.msra.mxu0 %v727
    %1169 = vmatprep.subr.mxu0 %v732
    %1170 = vmatpush1.msra.mxu0 %v731
    %1171 = vmatprep.subr.mxu0 %v736
    %1172 = vmatpush1.msra.mxu0 %v735
    %1173 = vmatprep.subr.mxu0 %v740
    %1174 = vmatpush1.msra.mxu0 %v739
    %1175 = vmatprep.subr.mxu0 %v744
    %1176 = vmatpush1.msra.mxu0 %v743
    %1177 = vmatprep.subr.mxu0 %v748
    %1178 = vmatpush1.msra.mxu0 %v747
    %1179 = vmatprep.subr.mxu0 %v752
    %1180 = vmatpush1.msra.mxu0 %v751
    %1181 = vmatprep.subr.mxu0 %v756
    %1182 = vmatpush1.msra.mxu0 %v755
    %1183 = vmatprep.subr.mxu0 %v760
    %1184 = vmatpush1.msra.mxu0 %v759
    %1185 = vmatprep.subr.mxu0 %v764
    %1186 = vmatpush1.msra.mxu0 %v763
    %1187 = vmatprep.subr.mxu0 %v768
    %1188 = vmatpush1.msra.mxu0 %v767
    %1189 = vmatprep.subr.mxu0 %v772
    %1190 = vmatpush1.msra.mxu0 %v771
    %1191 = vmatprep.subr.mxu0 %v776
    %1192 = vmatpush1.msra.mxu0 %v775
    %1193 = vmatprep.subr.mxu0 %v780
    %1194 = vmatpush1.msra.mxu0 %v779
    %1195 = vmatprep.subr.mxu0 %v784
    %1196 = vmatpush1.msra.mxu0 %v783
    %1197 = vmatprep.subr.mxu0 %v788
    %1198 = vmatpush1.msra.mxu0 %v787
    %1199 = vmatprep.subr.mxu0 %v792
    %1200 = vmatpush1.msra.mxu0 %v791
    %1201 = vmatprep.subr.mxu0 %v796
    %1202 = vmatpush1.msra.mxu0 %v795
    %1203 = vmatprep.subr.mxu0 %v800
    %1204 = vmatpush1.msra.mxu0 %v799
    %1205 = vmatprep.subr.mxu0 %v804
    %1206 = vmatpush1.msra.mxu0 %v803
    %1207 = vmatprep.mubr.f32.mxu0 %v991
    %1208 = vmatmul.mubr.f32.gmra.mrb[0].mxu0 %v983
    %v1209 = vpop.f32.mrb[0].mxu0
    %v1210 = vadd.f32 %v1139, %v1209
    %v1211 = vpop.f32.mrb[0].mxu0
    %v1212 = vadd.f32 %v1141, %v1211
    %1213 = vdwg.mxu0
    %1214 = vmatprep.subr.mxu0 %v808
    %1215 = vmatpush1.msra.mxu0 %v807
    %1216 = vmatprep.subr.mxu0 %v812
    %1217 = vmatpush1.msra.mxu0 %v811
    %1218 = vmatprep.subr.mxu0 %v816
    %1219 = vmatpush1.msra.mxu0 %v815
    %1220 = vmatprep.subr.mxu0 %v820
    %1221 = vmatpush1.msra.mxu0 %v819
    %1222 = vmatprep.subr.mxu0 %v824
    %1223 = vmatpush1.msra.mxu0 %v823
    %1224 = vmatprep.subr.mxu0 %v828
    %1225 = vmatpush1.msra.mxu0 %v827
    %1226 = vmatprep.subr.mxu0 %v832
    %1227 = vmatpush1.msra.mxu0 %v831
    %1228 = vmatprep.subr.mxu0 %v836
    %1229 = vmatpush1.msra.mxu0 %v835
    %1230 = vmatprep.subr.mxu0 %v840
    %1231 = vmatpush1.msra.mxu0 %v839
    %1232 = vmatprep.subr.mxu0 %v844
    %1233 = vmatpush1.msra.mxu0 %v843
    %1234 = vmatprep.subr.mxu0 %v848
    %1235 = vmatpush1.msra.mxu0 %v847
    %1236 = vmatprep.subr.mxu0 %v852
    %1237 = vmatpush1.msra.mxu0 %v851
    %1238 = vmatprep.subr.mxu0 %v856
    %1239 = vmatpush1.msra.mxu0 %v855
    %1240 = vmatprep.subr.mxu0 %v860
    %1241 = vmatpush1.msra.mxu0 %v859
    %1242 = vmatprep.subr.mxu0 %v864
    %1243 = vmatpush1.msra.mxu0 %v863
    %1244 = vmatprep.subr.mxu0 %v868
    %1245 = vmatpush1.msra.mxu0 %v867
    %1246 = vmatprep.subr.mxu0 %v872
    %1247 = vmatpush1.msra.mxu0 %v871
    %1248 = vmatprep.subr.mxu0 %v876
    %1249 = vmatpush1.msra.mxu0 %v875
    %1250 = vmatprep.subr.mxu0 %v880
    %1251 = vmatpush1.msra.mxu0 %v879
    %1252 = vmatprep.subr.mxu0 %v884
    %1253 = vmatpush1.msra.mxu0 %v883
    %1254 = vmatprep.subr.mxu0 %v888
    %1255 = vmatpush1.msra.mxu0 %v887
    %1256 = vmatprep.subr.mxu0 %v892
    %1257 = vmatpush1.msra.mxu0 %v891
    %1258 = vmatprep.subr.mxu0 %v896
    %1259 = vmatpush1.msra.mxu0 %v895
    %1260 = vmatprep.subr.mxu0 %v900
    %1261 = vmatpush1.msra.mxu0 %v899
    %1262 = vmatprep.subr.mxu0 %v904
    %1263 = vmatpush1.msra.mxu0 %v903
    %1264 = vmatprep.subr.mxu0 %v908
    %1265 = vmatpush1.msra.mxu0 %v907
    %1266 = vmatprep.subr.mxu0 %v912
    %1267 = vmatpush1.msra.mxu0 %v911
    %1268 = vmatprep.subr.mxu0 %v916
    %1269 = vmatpush1.msra.mxu0 %v915
    %1270 = vmatprep.subr.mxu0 %v920
    %1271 = vmatpush1.msra.mxu0 %v919
    %1272 = vmatprep.subr.mxu0 %v924
    %1273 = vmatpush1.msra.mxu0 %v923
    %1274 = vmatprep.subr.mxu0 %v928
    %1275 = vmatpush1.msra.mxu0 %v927
    %1276 = vmatprep.subr.mxu0 %v932
    %1277 = vmatpush1.msra.mxu0 %v931
    %1278 = vmatprep.mubr.f32.mxu0 %v992
    %1279 = vmatmul.mubr.f32.gmra.mrb[0].mxu0 %v990
    %v1280 = vpop.f32.mrb[0].mxu0
    %v1281 = vadd.f32 %v1210, %v1280
    %v1282 = vpop.f32.mrb[0].mxu0
    %v1283 = vadd.f32 %v1212, %v1282
    %1284 = vdwg.mxu0
    %1285 = vmatprep.subr.mxu0 %v426
    %1286 = vmatpush1.msra.mxu0 %v425
    %1287 = vmatprep.subr.mxu0 %v430
    %1288 = vmatpush1.msra.mxu0 %v429
    %1289 = vmatprep.subr.mxu0 %v434
    %1290 = vmatpush1.msra.mxu0 %v433
    %1291 = vmatprep.subr.mxu0 %v438
    %1292 = vmatpush1.msra.mxu0 %v437
    %1293 = vmatprep.subr.mxu0 %v442
    %1294 = vmatpush1.msra.mxu0 %v441
    %1295 = vmatprep.subr.mxu0 %v446
    %1296 = vmatpush1.msra.mxu0 %v445
    %1297 = vmatprep.subr.mxu0 %v450
    %1298 = vmatpush1.msra.mxu0 %v449
    %1299 = vmatprep.subr.mxu0 %v454
    %1300 = vmatpush1.msra.mxu0 %v453
    %1301 = vmatprep.subr.mxu0 %v458
    %1302 = vmatpush1.msra.mxu0 %v457
    %1303 = vmatprep.subr.mxu0 %v462
    %1304 = vmatpush1.msra.mxu0 %v461
    %1305 = vmatprep.subr.mxu0 %v466
    %1306 = vmatpush1.msra.mxu0 %v465
    %1307 = vmatprep.subr.mxu0 %v470
    %1308 = vmatpush1.msra.mxu0 %v469
    %1309 = vmatprep.subr.mxu0 %v474
    %1310 = vmatpush1.msra.mxu0 %v473
    %1311 = vmatprep.subr.mxu0 %v478
    %1312 = vmatpush1.msra.mxu0 %v477
    %1313 = vmatprep.subr.mxu0 %v482
    %1314 = vmatpush1.msra.mxu0 %v481
    %1315 = vmatprep.subr.mxu0 %v486
    %1316 = vmatpush1.msra.mxu0 %v485
    %1317 = vmatprep.subr.mxu0 %v490
    %1318 = vmatpush1.msra.mxu0 %v489
    %1319 = vmatprep.subr.mxu0 %v494
    %1320 = vmatpush1.msra.mxu0 %v493
    %1321 = vmatprep.subr.mxu0 %v498
    %1322 = vmatpush1.msra.mxu0 %v497
    %1323 = vmatprep.subr.mxu0 %v502
    %1324 = vmatpush1.msra.mxu0 %v501
    %1325 = vmatprep.subr.mxu0 %v506
    %1326 = vmatpush1.msra.mxu0 %v505
    %1327 = vmatprep.subr.mxu0 %v510
    %1328 = vmatpush1.msra.mxu0 %v509
    %1329 = vmatprep.subr.mxu0 %v514
    %1330 = vmatpush1.msra.mxu0 %v513
    %1331 = vmatprep.subr.mxu0 %v518
    %1332 = vmatpush1.msra.mxu0 %v517
    %1333 = vmatprep.subr.mxu0 %v522
    %1334 = vmatpush1.msra.mxu0 %v521
    %1335 = vmatprep.subr.mxu0 %v526
    %1336 = vmatpush1.msra.mxu0 %v525
    %1337 = vmatprep.subr.mxu0 %v530
    %1338 = vmatpush1.msra.mxu0 %v529
    %1339 = vmatprep.subr.mxu0 %v534
    %1340 = vmatpush1.msra.mxu0 %v533
    %1341 = vmatprep.subr.mxu0 %v538
    %1342 = vmatpush1.msra.mxu0 %v537
    %1343 = vmatprep.subr.mxu0 %v542
    %1344 = vmatpush1.msra.mxu0 %v541
    %1345 = vmatprep.subr.mxu0 %v546
    %1346 = vmatpush1.msra.mxu0 %v545
    %1347 = vmatprep.subr.mxu0 %v550
    %1348 = vmatpush1.msra.mxu0 %v549
    %1349 = vmatprep.mubr.f32.mxu0 %v974
    %1350 = vmatmul.mubr.f32.gmra.mrb[0].mxu0 %v966
    %v1351 = vpop.f32.mrb[0].mxu0
    %v1352 = vadd.f32 %v948, %v1351
    %v1353 = vpop.f32.mrb[0].mxu0
    %v1354 = vadd.f32 %v952, %v1353
    %1355 = vdwg.mxu0
    %1356 = vmatprep.subr.mxu0 %v554
    %1357 = vmatpush1.msra.mxu0 %v553
    %1358 = vmatprep.subr.mxu0 %v558
    %1359 = vmatpush1.msra.mxu0 %v557
    %1360 = vmatprep.subr.mxu0 %v562
    %1361 = vmatpush1.msra.mxu0 %v561
    %1362 = vmatprep.subr.mxu0 %v566
    %1363 = vmatpush1.msra.mxu0 %v565
    %1364 = vmatprep.subr.mxu0 %v570
    %1365 = vmatpush1.msra.mxu0 %v569
    %1366 = vmatprep.subr.mxu0 %v574
    %1367 = vmatpush1.msra.mxu0 %v573
    %1368 = vmatprep.subr.mxu0 %v578
    %1369 = vmatpush1.msra.mxu0 %v577
    %1370 = vmatprep.subr.mxu0 %v582
    %1371 = vmatpush1.msra.mxu0 %v581
    %1372 = vmatprep.subr.mxu0 %v586
    %1373 = vmatpush1.msra.mxu0 %v585
    %1374 = vmatprep.subr.mxu0 %v590
    %1375 = vmatpush1.msra.mxu0 %v589
    %1376 = vmatprep.subr.mxu0 %v594
    %1377 = vmatpush1.msra.mxu0 %v593
    %1378 = vmatprep.subr.mxu0 %v598
    %1379 = vmatpush1.msra.mxu0 %v597
    %1380 = vmatprep.subr.mxu0 %v602
    %1381 = vmatpush1.msra.mxu0 %v601
    %1382 = vmatprep.subr.mxu0 %v606
    %1383 = vmatpush1.msra.mxu0 %v605
    %1384 = vmatprep.subr.mxu0 %v610
    %1385 = vmatpush1.msra.mxu0 %v609
    %1386 = vmatprep.subr.mxu0 %v614
    %1387 = vmatpush1.msra.mxu0 %v613
    %1388 = vmatprep.subr.mxu0 %v618
    %1389 = vmatpush1.msra.mxu0 %v617
    %1390 = vmatprep.subr.mxu0 %v622
    %1391 = vmatpush1.msra.mxu0 %v621
    %1392 = vmatprep.subr.mxu0 %v626
    %1393 = vmatpush1.msra.mxu0 %v625
    %1394 = vmatprep.subr.mxu0 %v630
    %1395 = vmatpush1.msra.mxu0 %v629
    %1396 = vmatprep.subr.mxu0 %v634
    %1397 = vmatpush1.msra.mxu0 %v633
    %1398 = vmatprep.subr.mxu0 %v638
    %1399 = vmatpush1.msra.mxu0 %v637
    %1400 = vmatprep.subr.mxu0 %v642
    %1401 = vmatpush1.msra.mxu0 %v641
    %1402 = vmatprep.subr.mxu0 %v646
    %1403 = vmatpush1.msra.mxu0 %v645
    %1404 = vmatprep.subr.mxu0 %v650
    %1405 = vmatpush1.msra.mxu0 %v649
    %1406 = vmatprep.subr.mxu0 %v654
    %1407 = vmatpush1.msra.mxu0 %v653
    %1408 = vmatprep.subr.mxu0 %v658
    %1409 = vmatpush1.msra.mxu0 %v657
    %1410 = vmatprep.subr.mxu0 %v662
    %1411 = vmatpush1.msra.mxu0 %v661
    %1412 = vmatprep.subr.mxu0 %v666
    %1413 = vmatpush1.msra.mxu0 %v665
    %1414 = vmatprep.subr.mxu0 %v670
    %1415 = vmatpush1.msra.mxu0 %v669
    %1416 = vmatprep.subr.mxu0 %v674
    %1417 = vmatpush1.msra.mxu0 %v673
    %1418 = vmatprep.subr.mxu0 %v678
    %1419 = vmatpush1.msra.mxu0 %v677
    %1420 = vmatprep.mubr.f32.mxu0 %v975
    %1421 = vmatmul.mubr.f32.gmra.mrb[0].mxu0 %v973
    %v1422 = vpop.f32.mrb[0].mxu0
    %v1423 = vadd.f32 %v1352, %v1422
    %v1424 = vpop.f32.mrb[0].mxu0
    %v1425 = vadd.f32 %v1354, %v1424
    %1426 = vdwg.mxu0
    %1427 = vmatprep.subr.mxu0 %v682
    %1428 = vmatpush1.msra.mxu0 %v681
    %1429 = vmatprep.subr.mxu0 %v686
    %1430 = vmatpush1.msra.mxu0 %v685
    %1431 = vmatprep.subr.mxu0 %v690
    %1432 = vmatpush1.msra.mxu0 %v689
    %1433 = vmatprep.subr.mxu0 %v694
    %1434 = vmatpush1.msra.mxu0 %v693
    %1435 = vmatprep.subr.mxu0 %v698
    %1436 = vmatpush1.msra.mxu0 %v697
    %1437 = vmatprep.subr.mxu0 %v702
    %1438 = vmatpush1.msra.mxu0 %v701
    %1439 = vmatprep.subr.mxu0 %v706
    %1440 = vmatpush1.msra.mxu0 %v705
    %1441 = vmatprep.subr.mxu0 %v710
    %1442 = vmatpush1.msra.mxu0 %v709
    %1443 = vmatprep.subr.mxu0 %v714
    %1444 = vmatpush1.msra.mxu0 %v713
    %1445 = vmatprep.subr.mxu0 %v718
    %1446 = vmatpush1.msra.mxu0 %v717
    %1447 = vmatprep.subr.mxu0 %v722
    %1448 = vmatpush1.msra.mxu0 %v721
    %1449 = vmatprep.subr.mxu0 %v726
    %1450 = vmatpush1.msra.mxu0 %v725
    %1451 = vmatprep.subr.mxu0 %v730
    %1452 = vmatpush1.msra.mxu0 %v729
    %1453 = vmatprep.subr.mxu0 %v734
    %1454 = vmatpush1.msra.mxu0 %v733
    %1455 = vmatprep.subr.mxu0 %v738
    %1456 = vmatpush1.msra.mxu0 %v737
    %1457 = vmatprep.subr.mxu0 %v742
    %1458 = vmatpush1.msra.mxu0 %v741
    %1459 = vmatprep.subr.mxu0 %v746
    %1460 = vmatpush1.msra.mxu0 %v745
    %1461 = vmatprep.subr.mxu0 %v750
    %1462 = vmatpush1.msra.mxu0 %v749
    %1463 = vmatprep.subr.mxu0 %v754
    %1464 = vmatpush1.msra.mxu0 %v753
    %1465 = vmatprep.subr.mxu0 %v758
    %1466 = vmatpush1.msra.mxu0 %v757
    %1467 = vmatprep.subr.mxu0 %v762
    %1468 = vmatpush1.msra.mxu0 %v761
    %1469 = vmatprep.subr.mxu0 %v766
    %1470 = vmatpush1.msra.mxu0 %v765
    %1471 = vmatprep.subr.mxu0 %v770
    %1472 = vmatpush1.msra.mxu0 %v769
    %1473 = vmatprep.subr.mxu0 %v774
    %1474 = vmatpush1.msra.mxu0 %v773
    %1475 = vmatprep.subr.mxu0 %v778
    %1476 = vmatpush1.msra.mxu0 %v777
    %1477 = vmatprep.subr.mxu0 %v782
    %1478 = vmatpush1.msra.mxu0 %v781
    %1479 = vmatprep.subr.mxu0 %v786
    %1480 = vmatpush1.msra.mxu0 %v785
    %1481 = vmatprep.subr.mxu0 %v790
    %1482 = vmatpush1.msra.mxu0 %v789
    %1483 = vmatprep.subr.mxu0 %v794
    %1484 = vmatpush1.msra.mxu0 %v793
    %1485 = vmatprep.subr.mxu0 %v798
    %1486 = vmatpush1.msra.mxu0 %v797
    %1487 = vmatprep.subr.mxu0 %v802
    %1488 = vmatpush1.msra.mxu0 %v801
    %1489 = vmatprep.subr.mxu0 %v806
    %1490 = vmatpush1.msra.mxu0 %v805
    %1491 = vmatprep.mubr.f32.mxu0 %v991
    %1492 = vmatmul.mubr.f32.gmra.mrb[0].mxu0 %v983
    %v1493 = vpop.f32.mrb[0].mxu0
    %v1494 = vadd.f32 %v1423, %v1493
    %v1495 = vpop.f32.mrb[0].mxu0
    %v1496 = vadd.f32 %v1425, %v1495
    %1497 = vdwg.mxu0
    %1498 = vmatprep.subr.mxu0 %v810
    %1499 = vmatpush1.msra.mxu0 %v809
    %1500 = vmatprep.subr.mxu0 %v814
    %1501 = vmatpush1.msra.mxu0 %v813
    %1502 = vmatprep.subr.mxu0 %v818
    %1503 = vmatpush1.msra.mxu0 %v817
    %1504 = vmatprep.subr.mxu0 %v822
    %1505 = vmatpush1.msra.mxu0 %v821
    %1506 = vmatprep.subr.mxu0 %v826
    %1507 = vmatpush1.msra.mxu0 %v825
    %1508 = vmatprep.subr.mxu0 %v830
    %1509 = vmatpush1.msra.mxu0 %v829
    %1510 = vmatprep.subr.mxu0 %v834
    %1511 = vmatpush1.msra.mxu0 %v833
    %1512 = vmatprep.subr.mxu0 %v838
    %1513 = vmatpush1.msra.mxu0 %v837
    %1514 = vmatprep.subr.mxu0 %v842
    %1515 = vmatpush1.msra.mxu0 %v841
    %1516 = vmatprep.subr.mxu0 %v846
    %1517 = vmatpush1.msra.mxu0 %v845
    %1518 = vmatprep.subr.mxu0 %v850
    %1519 = vmatpush1.msra.mxu0 %v849
    %1520 = vmatprep.subr.mxu0 %v854
    %1521 = vmatpush1.msra.mxu0 %v853
    %1522 = vmatprep.subr.mxu0 %v858
    %1523 = vmatpush1.msra.mxu0 %v857
    %1524 = vmatprep.subr.mxu0 %v862
    %1525 = vmatpush1.msra.mxu0 %v861
    %1526 = vmatprep.subr.mxu0 %v866
    %1527 = vmatpush1.msra.mxu0 %v865
    %1528 = vmatprep.subr.mxu0 %v870
    %1529 = vmatpush1.msra.mxu0 %v869
    %1530 = vmatprep.subr.mxu0 %v874
    %1531 = vmatpush1.msra.mxu0 %v873
    %1532 = vmatprep.subr.mxu0 %v878
    %1533 = vmatpush1.msra.mxu0 %v877
    %1534 = vmatprep.subr.mxu0 %v882
    %1535 = vmatpush1.msra.mxu0 %v881
    %1536 = vmatprep.subr.mxu0 %v886
    %1537 = vmatpush1.msra.mxu0 %v885
    %1538 = vmatprep.subr.mxu0 %v890
    %1539 = vmatpush1.msra.mxu0 %v889
    %1540 = vmatprep.subr.mxu0 %v894
    %1541 = vmatpush1.msra.mxu0 %v893
    %1542 = vmatprep.subr.mxu0 %v898
    %1543 = vmatpush1.msra.mxu0 %v897
    %1544 = vmatprep.subr.mxu0 %v902
    %1545 = vmatpush1.msra.mxu0 %v901
    %1546 = vmatprep.subr.mxu0 %v906
    %1547 = vmatpush1.msra.mxu0 %v905
    %1548 = vmatprep.subr.mxu0 %v910
    %1549 = vmatpush1.msra.mxu0 %v909
    %1550 = vmatprep.subr.mxu0 %v914
    %1551 = vmatpush1.msra.mxu0 %v913
    %1552 = vmatprep.subr.mxu0 %v918
    %1553 = vmatpush1.msra.mxu0 %v917
    %1554 = vmatprep.subr.mxu0 %v922
    %1555 = vmatpush1.msra.mxu0 %v921
    %1556 = vmatprep.subr.mxu0 %v926
    %1557 = vmatpush1.msra.mxu0 %v925
    %1558 = vmatprep.subr.mxu0 %v930
    %1559 = vmatpush1.msra.mxu0 %v929
    %1560 = vmatprep.subr.mxu0 %v934
    %1561 = vmatpush1.msra.mxu0 %v933
    %1562 = vmatprep.mubr.f32.mxu0 %v992
    %1563 = vmatmul.mubr.f32.gmra.mrb[0].mxu0 %v990
    %v1564 = vpop.f32.mrb[0].mxu0
    %v1565 = vadd.f32 %v1494, %v1564
    %v1566 = vpop.f32.mrb[0].mxu0
    %v1567 = vadd.f32 %v1496, %v1566
    %1568 = vdwg.mxu0
    %v1569 = vmul.f32 %v1281, 0.5
    %v1570 = vmul.f32 %v1283, 0.5
    %v1571 = vmul.f32 %v1565, 0.5
    %v1572 = vmul.f32 %v1567, 0.5
    %v1573 = vmul.f32 %v1281, 0.044715
    %v1574 = vmul.f32 %v1283, 0.044715
    %v1575 = vmul.f32 %v1565, 0.044715
    %v1576 = vmul.f32 %v1567, 0.044715
    %v1577 = vmul.f32 %v1573, %v1281
    %v1578 = vmul.f32 %v1574, %v1283
    %v1579 = vmul.f32 %v1575, %v1565
    %v1580 = vmul.f32 %v1576, %v1567
    %v1581 = vmul.f32 %v1577, %v1281
    %v1582 = vmul.f32 %v1578, %v1283
    %v1583 = vmul.f32 %v1579, %v1565
    %v1584 = vmul.f32 %v1580, %v1567
    %v1585 = vadd.f32 %v1281, %v1581
    %v1586 = vadd.f32 %v1283, %v1582
    %v1587 = vadd.f32 %v1565, %v1583
    %v1588 = vadd.f32 %v1567, %v1584
    %v1589 = vmul.f32 %v1585, 0.7978846
    %v1590 = vmul.f32 %v1586, 0.7978846
    %v1591 = vmul.f32 %v1587, 0.7978846
    %v1592 = vmul.f32 %v1588, 0.7978846
    %v1593 = vtanh.pop %v1589
    %v1594 = vtanh.pop %v1590
    %v1595 = vtanh.pop %v1591
    %v1596 = vtanh.pop %v1592
    %v1597 = vadd.f32 %v1593, 1.0
    %v1598 = vadd.f32 %v1594, 1.0
    %v1599 = vadd.f32 %v1595, 1.0
    %v1600 = vadd.f32 %v1596, 1.0
    %v1601 = vmul.f32 %v1569, %v1597
    %v1602 = vmul.f32 %v1570, %v1598
    %v1603 = vmul.f32 %v1571, %v1599
    %v1604 = vmul.f32 %v1572, %v1600
    %v1605 = vld [vmem:[#allocation7] sm:$0xff]
    %v1606 = vld [vmem:[#allocation7 + $0x8] sm:$0xff]
    %v1607 = vld [vmem:[#allocation7 + $0x10] sm:$0xff]
    %v1608 = vld [vmem:[#allocation7 + $0x18] sm:$0xff]
    %v1609 = vld [vmem:[#allocation7 + $0x20] sm:$0xff]
    %v1610 = vld [vmem:[#allocation7 + $0x28] sm:$0xff]
    %v1611 = vld [vmem:[#allocation7 + $0x30] sm:$0xff]
    %v1612 = vld [vmem:[#allocation7 + $0x38] sm:$0xff]
    %v1613 = vld [vmem:[#allocation7 + $0x40] sm:$0xff]
    %v1614 = vld [vmem:[#allocation7 + $0x48] sm:$0xff]
    %v1615 = vld [vmem:[#allocation7 + $0x50] sm:$0xff]
    %v1616 = vld [vmem:[#allocation7 + $0x58] sm:$0xff]
    %v1617 = vld [vmem:[#allocation7 + $0x60] sm:$0xff]
    %v1618 = vld [vmem:[#allocation7 + $0x68] sm:$0xff]
    %v1619 = vld [vmem:[#allocation7 + $0x70] sm:$0xff]
    %v1620 = vld [vmem:[#allocation7 + $0x78] sm:$0xff]
    %v1621 = vld [vmem:[#allocation7 + $0x80] sm:$0xff]
    %v1622 = vld [vmem:[#allocation7 + $0x88] sm:$0xff]
    %v1623 = vld [vmem:[#allocation7 + $0x90] sm:$0xff]
    %v1624 = vld [vmem:[#allocation7 + $0x98] sm:$0xff]
    %v1625 = vld [vmem:[#allocation7 + $0xa0] sm:$0xff]
    %v1626 = vld [vmem:[#allocation7 + $0xa8] sm:$0xff]
    %v1627 = vld [vmem:[#allocation7 + $0xb0] sm:$0xff]
    %v1628 = vld [vmem:[#allocation7 + $0xb8] sm:$0xff]
    %v1629 = vld [vmem:[#allocation7 + $0xc0] sm:$0xff]
    %v1630 = vld [vmem:[#allocation7 + $0xc8] sm:$0xff]
    %v1631 = vld [vmem:[#allocation7 + $0xd0] sm:$0xff]
    %v1632 = vld [vmem:[#allocation7 + $0xd8] sm:$0xff]
    %v1633 = vld [vmem:[#allocation7 + $0xe0] sm:$0xff]
    %v1634 = vld [vmem:[#allocation7 + $0xe8] sm:$0xff]
    %v1635 = vld [vmem:[#allocation7 + $0xf0] sm:$0xff]
    %v1636 = vld [vmem:[#allocation7 + $0xf8] sm:$0xff]
    %v1637 = vld [vmem:[#allocation7 + $0x100] sm:$0xff]
    %v1638 = vld [vmem:[#allocation7 + $0x108] sm:$0xff]
    %v1639 = vld [vmem:[#allocation7 + $0x110] sm:$0xff]
    %v1640 = vld [vmem:[#allocation7 + $0x118] sm:$0xff]
    %v1641 = vld [vmem:[#allocation7 + $0x120] sm:$0xff]
    %v1642 = vld [vmem:[#allocation7 + $0x128] sm:$0xff]
    %v1643 = vld [vmem:[#allocation7 + $0x130] sm:$0xff]
    %v1644 = vld [vmem:[#allocation7 + $0x138] sm:$0xff]
    %v1645 = vld [vmem:[#allocation7 + $0x140] sm:$0xff]
    %v1646 = vld [vmem:[#allocation7 + $0x148] sm:$0xff]
    %v1647 = vld [vmem:[#allocation7 + $0x150] sm:$0xff]
    %v1648 = vld [vmem:[#allocation7 + $0x158] sm:$0xff]
    %v1649 = vld [vmem:[#allocation7 + $0x160] sm:$0xff]
    %v1650 = vld [vmem:[#allocation7 + $0x168] sm:$0xff]
    %v1651 = vld [vmem:[#allocation7 + $0x170] sm:$0xff]
    %v1652 = vld [vmem:[#allocation7 + $0x178] sm:$0xff]
    %v1653 = vld [vmem:[#allocation7 + $0x180] sm:$0xff]
    %v1654 = vld [vmem:[#allocation7 + $0x188] sm:$0xff]
    %v1655 = vld [vmem:[#allocation7 + $0x190] sm:$0xff]
    %v1656 = vld [vmem:[#allocation7 + $0x198] sm:$0xff]
    %v1657 = vld [vmem:[#allocation7 + $0x1a0] sm:$0xff]
    %v1658 = vld [vmem:[#allocation7 + $0x1a8] sm:$0xff]
    %v1659 = vld [vmem:[#allocation7 + $0x1b0] sm:$0xff]
    %v1660 = vld [vmem:[#allocation7 + $0x1b8] sm:$0xff]
    %v1661 = vld [vmem:[#allocation7 + $0x1c0] sm:$0xff]
    %v1662 = vld [vmem:[#allocation7 + $0x1c8] sm:$0xff]
    %v1663 = vld [vmem:[#allocation7 + $0x1d0] sm:$0xff]
    %v1664 = vld [vmem:[#allocation7 + $0x1d8] sm:$0xff]
    %v1665 = vld [vmem:[#allocation7 + $0x1e0] sm:$0xff]
    %v1666 = vld [vmem:[#allocation7 + $0x1e8] sm:$0xff]
    %v1667 = vld [vmem:[#allocation7 + $0x1f0] sm:$0xff]
    %v1668 = vld [vmem:[#allocation7 + $0x1f8] sm:$0xff]
    %v1669 = vld [vmem:[#allocation7 + $0x200] sm:$0xff]
    %v1670 = vld [vmem:[#allocation7 + $0x208] sm:$0xff]
    %v1671 = vld [vmem:[#allocation7 + $0x210] sm:$0xff]
    %v1672 = vld [vmem:[#allocation7 + $0x218] sm:$0xff]
    %v1673 = vld [vmem:[#allocation7 + $0x220] sm:$0xff]
    %v1674 = vld [vmem:[#allocation7 + $0x228] sm:$0xff]
    %v1675 = vld [vmem:[#allocation7 + $0x230] sm:$0xff]
    %v1676 = vld [vmem:[#allocation7 + $0x238] sm:$0xff]
    %v1677 = vld [vmem:[#allocation7 + $0x240] sm:$0xff]
    %v1678 = vld [vmem:[#allocation7 + $0x248] sm:$0xff]
    %v1679 = vld [vmem:[#allocation7 + $0x250] sm:$0xff]
    %v1680 = vld [vmem:[#allocation7 + $0x258] sm:$0xff]
    %v1681 = vld [vmem:[#allocation7 + $0x260] sm:$0xff]
    %v1682 = vld [vmem:[#allocation7 + $0x268] sm:$0xff]
    %v1683 = vld [vmem:[#allocation7 + $0x270] sm:$0xff]
    %v1684 = vld [vmem:[#allocation7 + $0x278] sm:$0xff]
    %v1685 = vld [vmem:[#allocation7 + $0x280] sm:$0xff]
    %v1686 = vld [vmem:[#allocation7 + $0x288] sm:$0xff]
    %v1687 = vld [vmem:[#allocation7 + $0x290] sm:$0xff]
    %v1688 = vld [vmem:[#allocation7 + $0x298] sm:$0xff]
    %v1689 = vld [vmem:[#allocation7 + $0x2a0] sm:$0xff]
    %v1690 = vld [vmem:[#allocation7 + $0x2a8] sm:$0xff]
    %v1691 = vld [vmem:[#allocation7 + $0x2b0] sm:$0xff]
    %v1692 = vld [vmem:[#allocation7 + $0x2b8] sm:$0xff]
    %v1693 = vld [vmem:[#allocation7 + $0x2c0] sm:$0xff]
    %v1694 = vld [vmem:[#allocation7 + $0x2c8] sm:$0xff]
    %v1695 = vld [vmem:[#allocation7 + $0x2d0] sm:$0xff]
    %v1696 = vld [vmem:[#allocation7 + $0x2d8] sm:$0xff]
    %v1697 = vld [vmem:[#allocation7 + $0x2e0] sm:$0xff]
    %v1698 = vld [vmem:[#allocation7 + $0x2e8] sm:$0xff]
    %v1699 = vld [vmem:[#allocation7 + $0x2f0] sm:$0xff]
    %v1700 = vld [vmem:[#allocation7 + $0x2f8] sm:$0xff]
    %v1701 = vld [vmem:[#allocation7 + $0x300] sm:$0xff]
    %v1702 = vld [vmem:[#allocation7 + $0x308] sm:$0xff]
    %v1703 = vld [vmem:[#allocation7 + $0x310] sm:$0xff]
    %v1704 = vld [vmem:[#allocation7 + $0x318] sm:$0xff]
    %v1705 = vld [vmem:[#allocation7 + $0x320] sm:$0xff]
    %v1706 = vld [vmem:[#allocation7 + $0x328] sm:$0xff]
    %v1707 = vld [vmem:[#allocation7 + $0x330] sm:$0xff]
    %v1708 = vld [vmem:[#allocation7 + $0x338] sm:$0xff]
    %v1709 = vld [vmem:[#allocation7 + $0x340] sm:$0xff]
    %v1710 = vld [vmem:[#allocation7 + $0x348] sm:$0xff]
    %v1711 = vld [vmem:[#allocation7 + $0x350] sm:$0xff]
    %v1712 = vld [vmem:[#allocation7 + $0x358] sm:$0xff]
    %v1713 = vld [vmem:[#allocation7 + $0x360] sm:$0xff]
    %v1714 = vld [vmem:[#allocation7 + $0x368] sm:$0xff]
    %v1715 = vld [vmem:[#allocation7 + $0x370] sm:$0xff]
    %v1716 = vld [vmem:[#allocation7 + $0x378] sm:$0xff]
    %v1717 = vld [vmem:[#allocation7 + $0x380] sm:$0xff]
    %v1718 = vld [vmem:[#allocation7 + $0x388] sm:$0xff]
    %v1719 = vld [vmem:[#allocation7 + $0x390] sm:$0xff]
    %v1720 = vld [vmem:[#allocation7 + $0x398] sm:$0xff]
    %v1721 = vld [vmem:[#allocation7 + $0x3a0] sm:$0xff]
    %v1722 = vld [vmem:[#allocation7 + $0x3a8] sm:$0xff]
    %v1723 = vld [vmem:[#allocation7 + $0x3b0] sm:$0xff]
    %v1724 = vld [vmem:[#allocation7 + $0x3b8] sm:$0xff]
    %v1725 = vld [vmem:[#allocation7 + $0x3c0] sm:$0xff]
    %v1726 = vld [vmem:[#allocation7 + $0x3c8] sm:$0xff]
    %v1727 = vld [vmem:[#allocation7 + $0x3d0] sm:$0xff]
    %v1728 = vld [vmem:[#allocation7 + $0x3d8] sm:$0xff]
    %v1729 = vld [vmem:[#allocation7 + $0x3e0] sm:$0xff]
    %v1730 = vld [vmem:[#allocation7 + $0x3e8] sm:$0xff]
    %v1731 = vld [vmem:[#allocation7 + $0x3f0] sm:$0xff]
    %v1732 = vld [vmem:[#allocation7 + $0x3f8] sm:$0xff]
    %v1733 = vunpack.c.l.bf16 %v1605
    %v1734 = vunpack.c.h.bf16 %v1605
    %v1735 = vunpack.c.l.bf16 %v1606
    %v1736 = vunpack.c.h.bf16 %v1606
    %v1737 = vunpack.c.l.bf16 %v1607
    %v1738 = vunpack.c.h.bf16 %v1607
    %v1739 = vunpack.c.l.bf16 %v1608
    %v1740 = vunpack.c.h.bf16 %v1608
    %v1741 = vunpack.c.l.bf16 %v1609
    %v1742 = vunpack.c.h.bf16 %v1609
    %v1743 = vunpack.c.l.bf16 %v1610
    %v1744 = vunpack.c.h.bf16 %v1610
    %v1745 = vunpack.c.l.bf16 %v1611
    %v1746 = vunpack.c.h.bf16 %v1611
    %v1747 = vunpack.c.l.bf16 %v1612
    %v1748 = vunpack.c.h.bf16 %v1612
    %v1749 = vunpack.c.l.bf16 %v1613
    %v1750 = vunpack.c.h.bf16 %v1613
    %v1751 = vunpack.c.l.bf16 %v1614
    %v1752 = vunpack.c.h.bf16 %v1614
    %v1753 = vunpack.c.l.bf16 %v1615
    %v1754 = vunpack.c.h.bf16 %v1615
    %v1755 = vunpack.c.l.bf16 %v1616
    %v1756 = vunpack.c.h.bf16 %v1616
    %v1757 = vunpack.c.l.bf16 %v1617
    %v1758 = vunpack.c.h.bf16 %v1617
    %v1759 = vunpack.c.l.bf16 %v1618
    %v1760 = vunpack.c.h.bf16 %v1618
    %v1761 = vunpack.c.l.bf16 %v1619
    %v1762 = vunpack.c.h.bf16 %v1619
    %v1763 = vunpack.c.l.bf16 %v1620
    %v1764 = vunpack.c.h.bf16 %v1620
    %v1765 = vunpack.c.l.bf16 %v1621
    %v1766 = vunpack.c.h.bf16 %v1621
    %v1767 = vunpack.c.l.bf16 %v1622
    %v1768 = vunpack.c.h.bf16 %v1622
    %v1769 = vunpack.c.l.bf16 %v1623
    %v1770 = vunpack.c.h.bf16 %v1623
    %v1771 = vunpack.c.l.bf16 %v1624
    %v1772 = vunpack.c.h.bf16 %v1624
    %v1773 = vunpack.c.l.bf16 %v1625
    %v1774 = vunpack.c.h.bf16 %v1625
    %v1775 = vunpack.c.l.bf16 %v1626
    %v1776 = vunpack.c.h.bf16 %v1626
    %v1777 = vunpack.c.l.bf16 %v1627
    %v1778 = vunpack.c.h.bf16 %v1627
    %v1779 = vunpack.c.l.bf16 %v1628
    %v1780 = vunpack.c.h.bf16 %v1628
    %v1781 = vunpack.c.l.bf16 %v1629
    %v1782 = vunpack.c.h.bf16 %v1629
    %v1783 = vunpack.c.l.bf16 %v1630
    %v1784 = vunpack.c.h.bf16 %v1630
    %v1785 = vunpack.c.l.bf16 %v1631
    %v1786 = vunpack.c.h.bf16 %v1631
    %v1787 = vunpack.c.l.bf16 %v1632
    %v1788 = vunpack.c.h.bf16 %v1632
    %v1789 = vunpack.c.l.bf16 %v1633
    %v1790 = vunpack.c.h.bf16 %v1633
    %v1791 = vunpack.c.l.bf16 %v1634
    %v1792 = vunpack.c.h.bf16 %v1634
    %v1793 = vunpack.c.l.bf16 %v1635
    %v1794 = vunpack.c.h.bf16 %v1635
    %v1795 = vunpack.c.l.bf16 %v1636
    %v1796 = vunpack.c.h.bf16 %v1636
    %v1797 = vunpack.c.l.bf16 %v1637
    %v1798 = vunpack.c.h.bf16 %v1637
    %v1799 = vunpack.c.l.bf16 %v1638
    %v1800 = vunpack.c.h.bf16 %v1638
    %v1801 = vunpack.c.l.bf16 %v1639
    %v1802 = vunpack.c.h.bf16 %v1639
    %v1803 = vunpack.c.l.bf16 %v1640
    %v1804 = vunpack.c.h.bf16 %v1640
    %v1805 = vunpack.c.l.bf16 %v1641
    %v1806 = vunpack.c.h.bf16 %v1641
    %v1807 = vunpack.c.l.bf16 %v1642
    %v1808 = vunpack.c.h.bf16 %v1642
    %v1809 = vunpack.c.l.bf16 %v1643
    %v1810 = vunpack.c.h.bf16 %v1643
    %v1811 = vunpack.c.l.bf16 %v1644
    %v1812 = vunpack.c.h.bf16 %v1644
    %v1813 = vunpack.c.l.bf16 %v1645
    %v1814 = vunpack.c.h.bf16 %v1645
    %v1815 = vunpack.c.l.bf16 %v1646
    %v1816 = vunpack.c.h.bf16 %v1646
    %v1817 = vunpack.c.l.bf16 %v1647
    %v1818 = vunpack.c.h.bf16 %v1647
    %v1819 = vunpack.c.l.bf16 %v1648
    %v1820 = vunpack.c.h.bf16 %v1648
    %v1821 = vunpack.c.l.bf16 %v1649
    %v1822 = vunpack.c.h.bf16 %v1649
    %v1823 = vunpack.c.l.bf16 %v1650
    %v1824 = vunpack.c.h.bf16 %v1650
    %v1825 = vunpack.c.l.bf16 %v1651
    %v1826 = vunpack.c.h.bf16 %v1651
    %v1827 = vunpack.c.l.bf16 %v1652
    %v1828 = vunpack.c.h.bf16 %v1652
    %v1829 = vunpack.c.l.bf16 %v1653
    %v1830 = vunpack.c.h.bf16 %v1653
    %v1831 = vunpack.c.l.bf16 %v1654
    %v1832 = vunpack.c.h.bf16 %v1654
    %v1833 = vunpack.c.l.bf16 %v1655
    %v1834 = vunpack.c.h.bf16 %v1655
    %v1835 = vunpack.c.l.bf16 %v1656
    %v1836 = vunpack.c.h.bf16 %v1656
    %v1837 = vunpack.c.l.bf16 %v1657
    %v1838 = vunpack.c.h.bf16 %v1657
    %v1839 = vunpack.c.l.bf16 %v1658
    %v1840 = vunpack.c.h.bf16 %v1658
    %v1841 = vunpack.c.l.bf16 %v1659
    %v1842 = vunpack.c.h.bf16 %v1659
    %v1843 = vunpack.c.l.bf16 %v1660
    %v1844 = vunpack.c.h.bf16 %v1660
    %v1845 = vunpack.c.l.bf16 %v1661
    %v1846 = vunpack.c.h.bf16 %v1661
    %v1847 = vunpack.c.l.bf16 %v1662
    %v1848 = vunpack.c.h.bf16 %v1662
    %v1849 = vunpack.c.l.bf16 %v1663
    %v1850 = vunpack.c.h.bf16 %v1663
    %v1851 = vunpack.c.l.bf16 %v1664
    %v1852 = vunpack.c.h.bf16 %v1664
    %v1853 = vunpack.c.l.bf16 %v1665
    %v1854 = vunpack.c.h.bf16 %v1665
    %v1855 = vunpack.c.l.bf16 %v1666
    %v1856 = vunpack.c.h.bf16 %v1666
    %v1857 = vunpack.c.l.bf16 %v1667
    %v1858 = vunpack.c.h.bf16 %v1667
    %v1859 = vunpack.c.l.bf16 %v1668
    %v1860 = vunpack.c.h.bf16 %v1668
    %v1861 = vunpack.c.l.bf16 %v1669
    %v1862 = vunpack.c.h.bf16 %v1669
    %v1863 = vunpack.c.l.bf16 %v1670
    %v1864 = vunpack.c.h.bf16 %v1670
    %v1865 = vunpack.c.l.bf16 %v1671
    %v1866 = vunpack.c.h.bf16 %v1671
    %v1867 = vunpack.c.l.bf16 %v1672
    %v1868 = vunpack.c.h.bf16 %v1672
    %v1869 = vunpack.c.l.bf16 %v1673
    %v1870 = vunpack.c.h.bf16 %v1673
    %v1871 = vunpack.c.l.bf16 %v1674
    %v1872 = vunpack.c.h.bf16 %v1674
    %v1873 = vunpack.c.l.bf16 %v1675
    %v1874 = vunpack.c.h.bf16 %v1675
    %v1875 = vunpack.c.l.bf16 %v1676
    %v1876 = vunpack.c.h.bf16 %v1676
    %v1877 = vunpack.c.l.bf16 %v1677
    %v1878 = vunpack.c.h.bf16 %v1677
    %v1879 = vunpack.c.l.bf16 %v1678
    %v1880 = vunpack.c.h.bf16 %v1678
    %v1881 = vunpack.c.l.bf16 %v1679
    %v1882 = vunpack.c.h.bf16 %v1679
    %v1883 = vunpack.c.l.bf16 %v1680
    %v1884 = vunpack.c.h.bf16 %v1680
    %v1885 = vunpack.c.l.bf16 %v1681
    %v1886 = vunpack.c.h.bf16 %v1681
    %v1887 = vunpack.c.l.bf16 %v1682
    %v1888 = vunpack.c.h.bf16 %v1682
    %v1889 = vunpack.c.l.bf16 %v1683
    %v1890 = vunpack.c.h.bf16 %v1683
    %v1891 = vunpack.c.l.bf16 %v1684
    %v1892 = vunpack.c.h.bf16 %v1684
    %v1893 = vunpack.c.l.bf16 %v1685
    %v1894 = vunpack.c.h.bf16 %v1685
    %v1895 = vunpack.c.l.bf16 %v1686
    %v1896 = vunpack.c.h.bf16 %v1686
    %v1897 = vunpack.c.l.bf16 %v1687
    %v1898 = vunpack.c.h.bf16 %v1687
    %v1899 = vunpack.c.l.bf16 %v1688
    %v1900 = vunpack.c.h.bf16 %v1688
    %v1901 = vunpack.c.l.bf16 %v1689
    %v1902 = vunpack.c.h.bf16 %v1689
    %v1903 = vunpack.c.l.bf16 %v1690
    %v1904 = vunpack.c.h.bf16 %v1690
    %v1905 = vunpack.c.l.bf16 %v1691
    %v1906 = vunpack.c.h.bf16 %v1691
    %v1907 = vunpack.c.l.bf16 %v1692
    %v1908 = vunpack.c.h.bf16 %v1692
    %v1909 = vunpack.c.l.bf16 %v1693
    %v1910 = vunpack.c.h.bf16 %v1693
    %v1911 = vunpack.c.l.bf16 %v1694
    %v1912 = vunpack.c.h.bf16 %v1694
    %v1913 = vunpack.c.l.bf16 %v1695
    %v1914 = vunpack.c.h.bf16 %v1695
    %v1915 = vunpack.c.l.bf16 %v1696
    %v1916 = vunpack.c.h.bf16 %v1696
    %v1917 = vunpack.c.l.bf16 %v1697
    %v1918 = vunpack.c.h.bf16 %v1697
    %v1919 = vunpack.c.l.bf16 %v1698
    %v1920 = vunpack.c.h.bf16 %v1698
    %v1921 = vunpack.c.l.bf16 %v1699
    %v1922 = vunpack.c.h.bf16 %v1699
    %v1923 = vunpack.c.l.bf16 %v1700
    %v1924 = vunpack.c.h.bf16 %v1700
    %v1925 = vunpack.c.l.bf16 %v1701
    %v1926 = vunpack.c.h.bf16 %v1701
    %v1927 = vunpack.c.l.bf16 %v1702
    %v1928 = vunpack.c.h.bf16 %v1702
    %v1929 = vunpack.c.l.bf16 %v1703
    %v1930 = vunpack.c.h.bf16 %v1703
    %v1931 = vunpack.c.l.bf16 %v1704
    %v1932 = vunpack.c.h.bf16 %v1704
    %v1933 = vunpack.c.l.bf16 %v1705
    %v1934 = vunpack.c.h.bf16 %v1705
    %v1935 = vunpack.c.l.bf16 %v1706
    %v1936 = vunpack.c.h.bf16 %v1706
    %v1937 = vunpack.c.l.bf16 %v1707
    %v1938 = vunpack.c.h.bf16 %v1707
    %v1939 = vunpack.c.l.bf16 %v1708
    %v1940 = vunpack.c.h.bf16 %v1708
    %v1941 = vunpack.c.l.bf16 %v1709
    %v1942 = vunpack.c.h.bf16 %v1709
    %v1943 = vunpack.c.l.bf16 %v1710
    %v1944 = vunpack.c.h.bf16 %v1710
    %v1945 = vunpack.c.l.bf16 %v1711
    %v1946 = vunpack.c.h.bf16 %v1711
    %v1947 = vunpack.c.l.bf16 %v1712
    %v1948 = vunpack.c.h.bf16 %v1712
    %v1949 = vunpack.c.l.bf16 %v1713
    %v1950 = vunpack.c.h.bf16 %v1713
    %v1951 = vunpack.c.l.bf16 %v1714
    %v1952 = vunpack.c.h.bf16 %v1714
    %v1953 = vunpack.c.l.bf16 %v1715
    %v1954 = vunpack.c.h.bf16 %v1715
    %v1955 = vunpack.c.l.bf16 %v1716
    %v1956 = vunpack.c.h.bf16 %v1716
    %v1957 = vunpack.c.l.bf16 %v1717
    %v1958 = vunpack.c.h.bf16 %v1717
    %v1959 = vunpack.c.l.bf16 %v1718
    %v1960 = vunpack.c.h.bf16 %v1718
    %v1961 = vunpack.c.l.bf16 %v1719
    %v1962 = vunpack.c.h.bf16 %v1719
    %v1963 = vunpack.c.l.bf16 %v1720
    %v1964 = vunpack.c.h.bf16 %v1720
    %v1965 = vunpack.c.l.bf16 %v1721
    %v1966 = vunpack.c.h.bf16 %v1721
    %v1967 = vunpack.c.l.bf16 %v1722
    %v1968 = vunpack.c.h.bf16 %v1722
    %v1969 = vunpack.c.l.bf16 %v1723
    %v1970 = vunpack.c.h.bf16 %v1723
    %v1971 = vunpack.c.l.bf16 %v1724
    %v1972 = vunpack.c.h.bf16 %v1724
    %v1973 = vunpack.c.l.bf16 %v1725
    %v1974 = vunpack.c.h.bf16 %v1725
    %v1975 = vunpack.c.l.bf16 %v1726
    %v1976 = vunpack.c.h.bf16 %v1726
    %v1977 = vunpack.c.l.bf16 %v1727
    %v1978 = vunpack.c.h.bf16 %v1727
    %v1979 = vunpack.c.l.bf16 %v1728
    %v1980 = vunpack.c.h.bf16 %v1728
    %v1981 = vunpack.c.l.bf16 %v1729
    %v1982 = vunpack.c.h.bf16 %v1729
    %v1983 = vunpack.c.l.bf16 %v1730
    %v1984 = vunpack.c.h.bf16 %v1730
    %v1985 = vunpack.c.l.bf16 %v1731
    %v1986 = vunpack.c.h.bf16 %v1731
    %v1987 = vunpack.c.l.bf16 %v1732
    %v1988 = vunpack.c.h.bf16 %v1732
    %v1989 = vld [vmem:[#allocation8] sm:$0xf]
    %v1991 = vlaneseq
    %v1992 = vshrl.u32 %v1991, 7
    %v1993 = vsub.s32 0, %v1992
    %v1994 = vrot.slane %v1989, %v1993
    %v1995 = vlaneseq
    %v1996 = vshrl.u32 %v1995, 7
    %v1997 = vsub.s32 1, %v1996
    %v1998 = vrot.slane %v1989, %v1997
    %v1999 = vlaneseq
    %v2000 = vshrl.u32 %v1999, 7
    %v2001 = vsub.s32 2, %v2000
    %v2002 = vrot.slane %v1989, %v2001
    %v2003 = vlaneseq
    %v2004 = vshrl.u32 %v2003, 7
    %v2005 = vsub.s32 3, %v2004
    %v2006 = vrot.slane %v1989, %v2005
    %2011 = vmatprep.subr.mxu0 %v1734
    %2012 = vmatpush1.msra.mxu0 %v1733
    %2013 = vmatprep.subr.mxu0 %v1738
    %2014 = vmatpush1.msra.mxu0 %v1737
    %2015 = vmatprep.subr.mxu0 %v1742
    %2016 = vmatpush1.msra.mxu0 %v1741
    %2017 = vmatprep.subr.mxu0 %v1746
    %2018 = vmatpush1.msra.mxu0 %v1745
    %2019 = vmatprep.subr.mxu0 %v1750
    %2020 = vmatpush1.msra.mxu0 %v1749
    %2021 = vmatprep.subr.mxu0 %v1754
    %2022 = vmatpush1.msra.mxu0 %v1753
    %2023 = vmatprep.subr.mxu0 %v1758
    %2024 = vmatpush1.msra.mxu0 %v1757
    %2025 = vmatprep.subr.mxu0 %v1762
    %2026 = vmatpush1.msra.mxu0 %v1761
    %2027 = vmatprep.subr.mxu0 %v1766
    %2028 = vmatpush1.msra.mxu0 %v1765
    %2029 = vmatprep.subr.mxu0 %v1770
    %2030 = vmatpush1.msra.mxu0 %v1769
    %2031 = vmatprep.subr.mxu0 %v1774
    %2032 = vmatpush1.msra.mxu0 %v1773
    %2033 = vmatprep.subr.mxu0 %v1778
    %2034 = vmatpush1.msra.mxu0 %v1777
    %2035 = vmatprep.subr.mxu0 %v1782
    %2036 = vmatpush1.msra.mxu0 %v1781
    %2037 = vmatprep.subr.mxu0 %v1786
    %2038 = vmatpush1.msra.mxu0 %v1785
    %2039 = vmatprep.subr.mxu0 %v1790
    %2040 = vmatpush1.msra.mxu0 %v1789
    %2041 = vmatprep.subr.mxu0 %v1794
    %2042 = vmatpush1.msra.mxu0 %v1793
    %2043 = vmatprep.subr.mxu0 %v1798
    %2044 = vmatpush1.msra.mxu0 %v1797
    %2045 = vmatprep.subr.mxu0 %v1802
    %2046 = vmatpush1.msra.mxu0 %v1801
    %2047 = vmatprep.subr.mxu0 %v1806
    %2048 = vmatpush1.msra.mxu0 %v1805
    %2049 = vmatprep.subr.mxu0 %v1810
    %2050 = vmatpush1.msra.mxu0 %v1809
    %2051 = vmatprep.subr.mxu0 %v1814
    %2052 = vmatpush1.msra.mxu0 %v1813
    %2053 = vmatprep.subr.mxu0 %v1818
    %2054 = vmatpush1.msra.mxu0 %v1817
    %2055 = vmatprep.subr.mxu0 %v1822
    %2056 = vmatpush1.msra.mxu0 %v1821
    %2057 = vmatprep.subr.mxu0 %v1826
    %2058 = vmatpush1.msra.mxu0 %v1825
    %2059 = vmatprep.subr.mxu0 %v1830
    %2060 = vmatpush1.msra.mxu0 %v1829
    %2061 = vmatprep.subr.mxu0 %v1834
    %2062 = vmatpush1.msra.mxu0 %v1833
    %2063 = vmatprep.subr.mxu0 %v1838
    %2064 = vmatpush1.msra.mxu0 %v1837
    %2065 = vmatprep.subr.mxu0 %v1842
    %2066 = vmatpush1.msra.mxu0 %v1841
    %2067 = vmatprep.subr.mxu0 %v1846
    %2068 = vmatpush1.msra.mxu0 %v1845
    %2069 = vmatprep.subr.mxu0 %v1850
    %2070 = vmatpush1.msra.mxu0 %v1849
    %2071 = vmatprep.subr.mxu0 %v1854
    %2072 = vmatpush1.msra.mxu0 %v1853
    %2073 = vmatprep.subr.mxu0 %v1858
    %2074 = vmatpush1.msra.mxu0 %v1857
    %2075 = vmatprep.mubr.f32.mxu0 %v1602
    %2076 = vmatmul.mubr.f32.gmra.mrb[0].mxu0 %v1601
    %v2077 = vpop.f32.mrb[0].mxu0
    %v2078 = vadd.f32 %v1994, %v2077
    %v2079 = vpop.f32.mrb[0].mxu0
    %v2080 = vadd.f32 %v1998, %v2079
    %2081 = vdwg.mxu0
    %2082 = vmatprep.subr.mxu0 %v1862
    %2083 = vmatpush1.msra.mxu0 %v1861
    %2084 = vmatprep.subr.mxu0 %v1866
    %2085 = vmatpush1.msra.mxu0 %v1865
    %2086 = vmatprep.subr.mxu0 %v1870
    %2087 = vmatpush1.msra.mxu0 %v1869
    %2088 = vmatprep.subr.mxu0 %v1874
    %2089 = vmatpush1.msra.mxu0 %v1873
    %2090 = vmatprep.subr.mxu0 %v1878
    %2091 = vmatpush1.msra.mxu0 %v1877
    %2092 = vmatprep.subr.mxu0 %v1882
    %2093 = vmatpush1.msra.mxu0 %v1881
    %2094 = vmatprep.subr.mxu0 %v1886
    %2095 = vmatpush1.msra.mxu0 %v1885
    %2096 = vmatprep.subr.mxu0 %v1890
    %2097 = vmatpush1.msra.mxu0 %v1889
    %2098 = vmatprep.subr.mxu0 %v1894
    %2099 = vmatpush1.msra.mxu0 %v1893
    %2100 = vmatprep.subr.mxu0 %v1898
    %2101 = vmatpush1.msra.mxu0 %v1897
    %2102 = vmatprep.subr.mxu0 %v1902
    %2103 = vmatpush1.msra.mxu0 %v1901
    %2104 = vmatprep.subr.mxu0 %v1906
    %2105 = vmatpush1.msra.mxu0 %v1905
    %2106 = vmatprep.subr.mxu0 %v1910
    %2107 = vmatpush1.msra.mxu0 %v1909
    %2108 = vmatprep.subr.mxu0 %v1914
    %2109 = vmatpush1.msra.mxu0 %v1913
    %2110 = vmatprep.subr.mxu0 %v1918
    %2111 = vmatpush1.msra.mxu0 %v1917
    %2112 = vmatprep.subr.mxu0 %v1922
    %2113 = vmatpush1.msra.mxu0 %v1921
    %2114 = vmatprep.subr.mxu0 %v1926
    %2115 = vmatpush1.msra.mxu0 %v1925
    %2116 = vmatprep.subr.mxu0 %v1930
    %2117 = vmatpush1.msra.mxu0 %v1929
    %2118 = vmatprep.subr.mxu0 %v1934
    %2119 = vmatpush1.msra.mxu0 %v1933
    %2120 = vmatprep.subr.mxu0 %v1938
    %2121 = vmatpush1.msra.mxu0 %v1937
    %2122 = vmatprep.subr.mxu0 %v1942
    %2123 = vmatpush1.msra.mxu0 %v1941
    %2124 = vmatprep.subr.mxu0 %v1946
    %2125 = vmatpush1.msra.mxu0 %v1945
    %2126 = vmatprep.subr.mxu0 %v1950
    %2127 = vmatpush1.msra.mxu0 %v1949
    %2128 = vmatprep.subr.mxu0 %v1954
    %2129 = vmatpush1.msra.mxu0 %v1953
    %2130 = vmatprep.subr.mxu0 %v1958
    %2131 = vmatpush1.msra.mxu0 %v1957
    %2132 = vmatprep.subr.mxu0 %v1962
    %2133 = vmatpush1.msra.mxu0 %v1961
    %2134 = vmatprep.subr.mxu0 %v1966
    %2135 = vmatpush1.msra.mxu0 %v1965
    %2136 = vmatprep.subr.mxu0 %v1970
    %2137 = vmatpush1.msra.mxu0 %v1969
    %2138 = vmatprep.subr.mxu0 %v1974
    %2139 = vmatpush1.msra.mxu0 %v1973
    %2140 = vmatprep.subr.mxu0 %v1978
    %2141 = vmatpush1.msra.mxu0 %v1977
    %2142 = vmatprep.subr.mxu0 %v1982
    %2143 = vmatpush1.msra.mxu0 %v1981
    %2144 = vmatprep.subr.mxu0 %v1986
    %2145 = vmatpush1.msra.mxu0 %v1985
    %2146 = vmatprep.mubr.f32.mxu0 %v1604
    %2147 = vmatmul.mubr.f32.gmra.mrb[0].mxu0 %v1603
    %v2148 = vpop.f32.mrb[0].mxu0
    %v2149 = vadd.f32 %v2078, %v2148
    %v2150 = vpop.f32.mrb[0].mxu0
    %v2151 = vadd.f32 %v2080, %v2150
    %2152 = vdwg.mxu0
    %2153 = vmatprep.subr.mxu0 %v1736
    %2154 = vmatpush1.msra.mxu0 %v1735
    %2155 = vmatprep.subr.mxu0 %v1740
    %2156 = vmatpush1.msra.mxu0 %v1739
    %2157 = vmatprep.subr.mxu0 %v1744
    %2158 = vmatpush1.msra.mxu0 %v1743
    %2159 = vmatprep.subr.mxu0 %v1748
    %2160 = vmatpush1.msra.mxu0 %v1747
    %2161 = vmatprep.subr.mxu0 %v1752
    %2162 = vmatpush1.msra.mxu0 %v1751
    %2163 = vmatprep.subr.mxu0 %v1756
    %2164 = vmatpush1.msra.mxu0 %v1755
    %2165 = vmatprep.subr.mxu0 %v1760
    %2166 = vmatpush1.msra.mxu0 %v1759
    %2167 = vmatprep.subr.mxu0 %v1764
    %2168 = vmatpush1.msra.mxu0 %v1763
    %2169 = vmatprep.subr.mxu0 %v1768
    %2170 = vmatpush1.msra.mxu0 %v1767
    %2171 = vmatprep.subr.mxu0 %v1772
    %2172 = vmatpush1.msra.mxu0 %v1771
    %2173 = vmatprep.subr.mxu0 %v1776
    %2174 = vmatpush1.msra.mxu0 %v1775
    %2175 = vmatprep.subr.mxu0 %v1780
    %2176 = vmatpush1.msra.mxu0 %v1779
    %2177 = vmatprep.subr.mxu0 %v1784
    %2178 = vmatpush1.msra.mxu0 %v1783
    %2179 = vmatprep.subr.mxu0 %v1788
    %2180 = vmatpush1.msra.mxu0 %v1787
    %2181 = vmatprep.subr.mxu0 %v1792
    %2182 = vmatpush1.msra.mxu0 %v1791
    %2183 = vmatprep.subr.mxu0 %v1796
    %2184 = vmatpush1.msra.mxu0 %v1795
    %2185 = vmatprep.subr.mxu0 %v1800
    %2186 = vmatpush1.msra.mxu0 %v1799
    %2187 = vmatprep.subr.mxu0 %v1804
    %2188 = vmatpush1.msra.mxu0 %v1803
    %2189 = vmatprep.subr.mxu0 %v1808
    %2190 = vmatpush1.msra.mxu0 %v1807
    %2191 = vmatprep.subr.mxu0 %v1812
    %2192 = vmatpush1.msra.mxu0 %v1811
    %2193 = vmatprep.subr.mxu0 %v1816
    %2194 = vmatpush1.msra.mxu0 %v1815
    %2195 = vmatprep.subr.mxu0 %v1820
    %2196 = vmatpush1.msra.mxu0 %v1819
    %2197 = vmatprep.subr.mxu0 %v1824
    %2198 = vmatpush1.msra.mxu0 %v1823
    %2199 = vmatprep.subr.mxu0 %v1828
    %2200 = vmatpush1.msra.mxu0 %v1827
    %2201 = vmatprep.subr.mxu0 %v1832
    %2202 = vmatpush1.msra.mxu0 %v1831
    %2203 = vmatprep.subr.mxu0 %v1836
    %2204 = vmatpush1.msra.mxu0 %v1835
    %2205 = vmatprep.subr.mxu0 %v1840
    %2206 = vmatpush1.msra.mxu0 %v1839
    %2207 = vmatprep.subr.mxu0 %v1844
    %2208 = vmatpush1.msra.mxu0 %v1843
    %2209 = vmatprep.subr.mxu0 %v1848
    %2210 = vmatpush1.msra.mxu0 %v1847
    %2211 = vmatprep.subr.mxu0 %v1852
    %2212 = vmatpush1.msra.mxu0 %v1851
    %2213 = vmatprep.subr.mxu0 %v1856
    %2214 = vmatpush1.msra.mxu0 %v1855
    %2215 = vmatprep.subr.mxu0 %v1860
    %2216 = vmatpush1.msra.mxu0 %v1859
    %2217 = vmatprep.mubr.f32.mxu0 %v1602
    %2218 = vmatmul.mubr.f32.gmra.mrb[0].mxu0 %v1601
    %v2219 = vpop.f32.mrb[0].mxu0
    %v2220 = vadd.f32 %v2002, %v2219
    %v2221 = vpop.f32.mrb[0].mxu0
    %v2222 = vadd.f32 %v2006, %v2221
    %2223 = vdwg.mxu0
    %2224 = vmatprep.subr.mxu0 %v1864
    %2225 = vmatpush1.msra.mxu0 %v1863
    %2226 = vmatprep.subr.mxu0 %v1868
    %2227 = vmatpush1.msra.mxu0 %v1867
    %2228 = vmatprep.subr.mxu0 %v1872
    %2229 = vmatpush1.msra.mxu0 %v1871
    %2230 = vmatprep.subr.mxu0 %v1876
    %2231 = vmatpush1.msra.mxu0 %v1875
    %2232 = vmatprep.subr.mxu0 %v1880
    %2233 = vmatpush1.msra.mxu0 %v1879
    %2234 = vmatprep.subr.mxu0 %v1884
    %2235 = vmatpush1.msra.mxu0 %v1883
    %2236 = vmatprep.subr.mxu0 %v1888
    %2237 = vmatpush1.msra.mxu0 %v1887
    %2238 = vmatprep.subr.mxu0 %v1892
    %2239 = vmatpush1.msra.mxu0 %v1891
    %2240 = vmatprep.subr.mxu0 %v1896
    %2241 = vmatpush1.msra.mxu0 %v1895
    %2242 = vmatprep.subr.mxu0 %v1900
    %2243 = vmatpush1.msra.mxu0 %v1899
    %2244 = vmatprep.subr.mxu0 %v1904
    %2245 = vmatpush1.msra.mxu0 %v1903
    %2246 = vmatprep.subr.mxu0 %v1908
    %2247 = vmatpush1.msra.mxu0 %v1907
    %2248 = vmatprep.subr.mxu0 %v1912
    %2249 = vmatpush1.msra.mxu0 %v1911
    %2250 = vmatprep.subr.mxu0 %v1916
    %2251 = vmatpush1.msra.mxu0 %v1915
    %2252 = vmatprep.subr.mxu0 %v1920
    %2253 = vmatpush1.msra.mxu0 %v1919
    %2254 = vmatprep.subr.mxu0 %v1924
    %2255 = vmatpush1.msra.mxu0 %v1923
    %2256 = vmatprep.subr.mxu0 %v1928
    %2257 = vmatpush1.msra.mxu0 %v1927
    %2258 = vmatprep.subr.mxu0 %v1932
    %2259 = vmatpush1.msra.mxu0 %v1931
    %2260 = vmatprep.subr.mxu0 %v1936
    %2261 = vmatpush1.msra.mxu0 %v1935
    %2262 = vmatprep.subr.mxu0 %v1940
    %2263 = vmatpush1.msra.mxu0 %v1939
    %2264 = vmatprep.subr.mxu0 %v1944
    %2265 = vmatpush1.msra.mxu0 %v1943
    %2266 = vmatprep.subr.mxu0 %v1948
    %2267 = vmatpush1.msra.mxu0 %v1947
    %2268 = vmatprep.subr.mxu0 %v1952
    %2269 = vmatpush1.msra.mxu0 %v1951
    %2270 = vmatprep.subr.mxu0 %v1956
    %2271 = vmatpush1.msra.mxu0 %v1955
    %2272 = vmatprep.subr.mxu0 %v1960
    %2273 = vmatpush1.msra.mxu0 %v1959
    %2274 = vmatprep.subr.mxu0 %v1964
    %2275 = vmatpush1.msra.mxu0 %v1963
    %2276 = vmatprep.subr.mxu0 %v1968
    %2277 = vmatpush1.msra.mxu0 %v1967
    %2278 = vmatprep.subr.mxu0 %v1972
    %2279 = vmatpush1.msra.mxu0 %v1971
    %2280 = vmatprep.subr.mxu0 %v1976
    %2281 = vmatpush1.msra.mxu0 %v1975
    %2282 = vmatprep.subr.mxu0 %v1980
    %2283 = vmatpush1.msra.mxu0 %v1979
    %2284 = vmatprep.subr.mxu0 %v1984
    %2285 = vmatpush1.msra.mxu0 %v1983
    %2286 = vmatprep.subr.mxu0 %v1988
    %2287 = vmatpush1.msra.mxu0 %v1987
    %2288 = vmatprep.mubr.f32.mxu0 %v1604
    %2289 = vmatmul.mubr.f32.gmra.mrb[0].mxu0 %v1603
    %v2290 = vpop.f32.mrb[0].mxu0
    %v2291 = vadd.f32 %v2220, %v2290
    %v2292 = vpop.f32.mrb[0].mxu0
    %v2293 = vadd.f32 %v2222, %v2292
    %2294 = vdwg.mxu0
    %vm2295 = vcmask 1041408
    %v2296 = vsel %vm2295, %v2149, -inf
    %v2297 = vsel %vm2295, %v2151, -inf
    %v2298 = vsel %vm2295, %v2291, -inf
    %v2299 = vsel %vm2295, %v2293, -inf
    %v2300 = vmax.f32 %v2296, %v2297
    %v2301 = vmax.f32 %v2298, %v2299
    %v2302 = vmax.f32 %v2300, %v2301
    %2303 = vmax.xlane.f32.xlu0 %v2302
    %v2304 = vpop.xlane.xlu0 %2303
    %v2305 = vsub.f32 %v2149, %v2304
    %v2306 = vsub.f32 %v2151, %v2304
    %v2307 = vsub.f32 %v2291, %v2304
    %v2308 = vsub.f32 %v2293, %v2304
    %v2309 = vmul.f32 %v2305, 1.442695
    %v2310 = vpow.pop %v2309
    %v2311 = vmul.f32 %v2306, 1.442695
    %v2312 = vpow.pop %v2311
    %v2313 = vmul.f32 %v2307, 1.442695
    %v2314 = vpow.pop %v2313
    %v2315 = vmul.f32 %v2308, 1.442695
    %v2316 = vpow.pop %v2315
    %v2317 = vsel %vm2295, %v2310, 0.0
    %v2318 = vsel %vm2295, %v2312, 0.0
    %v2319 = vadd.f32 %v2317, %v2318
    %v2320 = vsel %vm2295, %v2314, 0.0
    %v2321 = vadd.f32 %v2319, %v2320
    %v2322 = vsel %vm2295, %v2316, 0.0
    %v2323 = vadd.f32 %v2321, %v2322
    %2324 = vadd.xlane.f32.xlu0 %v2323
    %v2325 = vpop.xlane.xlu0 %2324
    %v2326 = vrcp.pop %v2325
    %v2327 = vmul.f32 %v2310, %v2326
    %v2328 = vmul.f32 %v2312, %v2326
    %v2329 = vmul.f32 %v2314, %v2326
    %v2330 = vmul.f32 %v2316, %v2326
    %v2331 = vld [vmem:[%s1] sm:$0xff]
    %v2332 = vld [vmem:[%s1 + $0x8] sm:$0xff]
    %v2333 = vld [vmem:[%s1 + $0x10] sm:$0xff]
    %v2334 = vld [vmem:[%s1 + $0x18] sm:$0xff]
    %v2335 = vld [vmem:[%s1 + $0x20] sm:$0xff]
    %v2336 = vld [vmem:[%s1 + $0x28] sm:$0xff]
    %v2337 = vld [vmem:[%s1 + $0x30] sm:$0xff]
    %v2338 = vld [vmem:[%s1 + $0x38] sm:$0xff]
    %v2339 = vld [vmem:[%s1 + $0x40] sm:$0xff]
    %v2340 = vld [vmem:[%s1 + $0x48] sm:$0xff]
    %v2341 = vld [vmem:[%s1 + $0x50] sm:$0xff]
    %v2342 = vld [vmem:[%s1 + $0x58] sm:$0xff]
    %v2343 = vld [vmem:[%s1 + $0x60] sm:$0xff]
    %v2344 = vld [vmem:[%s1 + $0x68] sm:$0xff]
    %v2345 = vld [vmem:[%s1 + $0x70] sm:$0xff]
    %v2346 = vld [vmem:[%s1 + $0x78] sm:$0xff]
    %v2347 = vld [vmem:[%s1 + $0x80] sm:$0xff]
    %v2348 = vld [vmem:[%s1 + $0x88] sm:$0xff]
    %v2349 = vld [vmem:[%s1 + $0x90] sm:$0xff]
    %v2350 = vld [vmem:[%s1 + $0x98] sm:$0xff]
    %v2351 = vld [vmem:[%s1 + $0xa0] sm:$0xff]
    %v2352 = vld [vmem:[%s1 + $0xa8] sm:$0xff]
    %v2353 = vld [vmem:[%s1 + $0xb0] sm:$0xff]
    %v2354 = vld [vmem:[%s1 + $0xb8] sm:$0xff]
    %v2355 = vld [vmem:[%s1 + $0xc0] sm:$0xff]
    %v2356 = vld [vmem:[%s1 + $0xc8] sm:$0xff]
    %v2357 = vld [vmem:[%s1 + $0xd0] sm:$0xff]
    %v2358 = vld [vmem:[%s1 + $0xd8] sm:$0xff]
    %v2359 = vld [vmem:[%s1 + $0xe0] sm:$0xff]
    %v2360 = vld [vmem:[%s1 + $0xe8] sm:$0xff]
    %v2361 = vld [vmem:[%s1 + $0xf0] sm:$0xff]
    %v2362 = vld [vmem:[%s1 + $0xf8] sm:$0xff]
    %vm2363 = vcmask 523264
    %v2364 = vsel %vm2363, %v2331, 0.0
    %2365 = vadd.xlane.f32.xlu0 %v2364
    %v2366 = vpop.xlane.xlu0 %2365
    %v2367 = vsel %vm2363, %v2332, 0.0
    %2368 = vadd.xlane.f32.xlu0 %v2367
    %v2369 = vpop.xlane.xlu0 %2368
    %v2370 = vsel %vm2363, %v2333, 0.0
    %2371 = vadd.xlane.f32.xlu0 %v2370
    %v2372 = vpop.xlane.xlu0 %2371
    %v2373 = vsel %vm2363, %v2334, 0.0
    %2374 = vadd.xlane.f32.xlu0 %v2373
    %v2375 = vpop.xlane.xlu0 %2374
    %v2376 = vsel %vm2363, %v2335, 0.0
    %2377 = vadd.xlane.f32.xlu0 %v2376
    %v2378 = vpop.xlane.xlu0 %2377
    %v2379 = vsel %vm2363, %v2336, 0.0
    %2380 = vadd.xlane.f32.xlu0 %v2379
    %v2381 = vpop.xlane.xlu0 %2380
    %v2382 = vsel %vm2363, %v2337, 0.0
    %2383 = vadd.xlane.f32.xlu0 %v2382
    %v2384 = vpop.xlane.xlu0 %2383
    %v2385 = vsel %vm2363, %v2338, 0.0
    %2386 = vadd.xlane.f32.xlu0 %v2385
    %v2387 = vpop.xlane.xlu0 %2386
    %v2388 = vsel %vm2363, %v2339, 0.0
    %2389 = vadd.xlane.f32.xlu0 %v2388
    %v2390 = vpop.xlane.xlu0 %2389
    %v2391 = vsel %vm2363, %v2340, 0.0
    %2392 = vadd.xlane.f32.xlu0 %v2391
    %v2393 = vpop.xlane.xlu0 %2392
    %v2394 = vsel %vm2363, %v2341, 0.0
    %2395 = vadd.xlane.f32.xlu0 %v2394
    %v2396 = vpop.xlane.xlu0 %2395
    %v2397 = vsel %vm2363, %v2342, 0.0
    %2398 = vadd.xlane.f32.xlu0 %v2397
    %v2399 = vpop.xlane.xlu0 %2398
    %v2400 = vsel %vm2363, %v2343, 0.0
    %2401 = vadd.xlane.f32.xlu0 %v2400
    %v2402 = vpop.xlane.xlu0 %2401
    %v2403 = vsel %vm2363, %v2344, 0.0
    %2404 = vadd.xlane.f32.xlu0 %v2403
    %v2405 = vpop.xlane.xlu0 %2404
    %v2406 = vsel %vm2363, %v2345, 0.0
    %2407 = vadd.xlane.f32.xlu0 %v2406
    %v2408 = vpop.xlane.xlu0 %2407
    %v2409 = vsel %vm2363, %v2346, 0.0
    %2410 = vadd.xlane.f32.xlu0 %v2409
    %v2411 = vpop.xlane.xlu0 %2410
    %v2412 = vsel %vm2363, %v2347, 0.0
    %2413 = vadd.xlane.f32.xlu0 %v2412
    %v2414 = vpop.xlane.xlu0 %2413
    %v2415 = vsel %vm2363, %v2348, 0.0
    %2416 = vadd.xlane.f32.xlu0 %v2415
    %v2417 = vpop.xlane.xlu0 %2416
    %v2418 = vsel %vm2363, %v2349, 0.0
    %2419 = vadd.xlane.f32.xlu0 %v2418
    %v2420 = vpop.xlane.xlu0 %2419
    %v2421 = vsel %vm2363, %v2350, 0.0
    %2422 = vadd.xlane.f32.xlu0 %v2421
    %v2423 = vpop.xlane.xlu0 %2422
    %v2424 = vsel %vm2363, %v2351, 0.0
    %2425 = vadd.xlane.f32.xlu0 %v2424
    %v2426 = vpop.xlane.xlu0 %2425
    %v2427 = vsel %vm2363, %v2352, 0.0
    %2428 = vadd.xlane.f32.xlu0 %v2427
    %v2429 = vpop.xlane.xlu0 %2428
    %v2430 = vsel %vm2363, %v2353, 0.0
    %2431 = vadd.xlane.f32.xlu0 %v2430
    %v2432 = vpop.xlane.xlu0 %2431
    %v2433 = vsel %vm2363, %v2354, 0.0
    %2434 = vadd.xlane.f32.xlu0 %v2433
    %v2435 = vpop.xlane.xlu0 %2434
    %v2436 = vsel %vm2363, %v2355, 0.0
    %2437 = vadd.xlane.f32.xlu0 %v2436
    %v2438 = vpop.xlane.xlu0 %2437
    %v2439 = vsel %vm2363, %v2356, 0.0
    %2440 = vadd.xlane.f32.xlu0 %v2439
    %v2441 = vpop.xlane.xlu0 %2440
    %v2442 = vsel %vm2363, %v2357, 0.0
    %2443 = vadd.xlane.f32.xlu0 %v2442
    %v2444 = vpop.xlane.xlu0 %2443
    %v2445 = vsel %vm2363, %v2358, 0.0
    %2446 = vadd.xlane.f32.xlu0 %v2445
    %v2447 = vpop.xlane.xlu0 %2446
    %v2448 = vsel %vm2363, %v2359, 0.0
    %2449 = vadd.xlane.f32.xlu0 %v2448
    %v2450 = vpop.xlane.xlu0 %2449
    %v2451 = vsel %vm2363, %v2360, 0.0
    %2452 = vadd.xlane.f32.xlu0 %v2451
    %v2453 = vpop.xlane.xlu0 %2452
    %v2454 = vsel %vm2363, %v2361, 0.0
    %2455 = vadd.xlane.f32.xlu0 %v2454
    %v2456 = vpop.xlane.xlu0 %2455
    %v2457 = vsel %vm2363, %v2362, 0.0
    %2458 = vadd.xlane.f32.xlu0 %v2457
    %v2459 = vpop.xlane.xlu0 %2458
    %v2460 = vrcp.pop 64.0
    %v2461 = vmul.f32 %v2366, %v2460
    %v2462 = vmul.f32 %v2369, %v2460
    %v2463 = vmul.f32 %v2372, %v2460
    %v2464 = vmul.f32 %v2375, %v2460
    %v2465 = vmul.f32 %v2378, %v2460
    %v2466 = vmul.f32 %v2381, %v2460
    %v2467 = vmul.f32 %v2384, %v2460
    %v2468 = vmul.f32 %v2387, %v2460
    %v2469 = vmul.f32 %v2390, %v2460
    %v2470 = vmul.f32 %v2393, %v2460
    %v2471 = vmul.f32 %v2396, %v2460
    %v2472 = vmul.f32 %v2399, %v2460
    %v2473 = vmul.f32 %v2402, %v2460
    %v2474 = vmul.f32 %v2405, %v2460
    %v2475 = vmul.f32 %v2408, %v2460
    %v2476 = vmul.f32 %v2411, %v2460
    %v2477 = vmul.f32 %v2414, %v2460
    %v2478 = vmul.f32 %v2417, %v2460
    %v2479 = vmul.f32 %v2420, %v2460
    %v2480 = vmul.f32 %v2423, %v2460
    %v2481 = vmul.f32 %v2426, %v2460
    %v2482 = vmul.f32 %v2429, %v2460
    %v2483 = vmul.f32 %v2432, %v2460
    %v2484 = vmul.f32 %v2435, %v2460
    %v2485 = vmul.f32 %v2438, %v2460
    %v2486 = vmul.f32 %v2441, %v2460
    %v2487 = vmul.f32 %v2444, %v2460
    %v2488 = vmul.f32 %v2447, %v2460
    %v2489 = vmul.f32 %v2450, %v2460
    %v2490 = vmul.f32 %v2453, %v2460
    %v2491 = vmul.f32 %v2456, %v2460
    %v2492 = vmul.f32 %v2459, %v2460
    %v2493 = vld [vmem:[%s2] sm:$0xff]
    %v2494 = vld [vmem:[%s2 + $0x8] sm:$0xff]
    %v2495 = vld [vmem:[%s2 + $0x10] sm:$0xff]
    %v2496 = vld [vmem:[%s2 + $0x18] sm:$0xff]
    %v2497 = vld [vmem:[%s2 + $0x20] sm:$0xff]
    %v2498 = vld [vmem:[%s2 + $0x28] sm:$0xff]
    %v2499 = vld [vmem:[%s2 + $0x30] sm:$0xff]
    %v2500 = vld [vmem:[%s2 + $0x38] sm:$0xff]
    %v2501 = vld [vmem:[%s2 + $0x40] sm:$0xff]
    %v2502 = vld [vmem:[%s2 + $0x48] sm:$0xff]
    %v2503 = vld [vmem:[%s2 + $0x50] sm:$0xff]
    %v2504 = vld [vmem:[%s2 + $0x58] sm:$0xff]
    %v2505 = vld [vmem:[%s2 + $0x60] sm:$0xff]
    %v2506 = vld [vmem:[%s2 + $0x68] sm:$0xff]
    %v2507 = vld [vmem:[%s2 + $0x70] sm:$0xff]
    %v2508 = vld [vmem:[%s2 + $0x78] sm:$0xff]
    %v2509 = vld [vmem:[%s2 + $0x80] sm:$0xff]
    %v2510 = vld [vmem:[%s2 + $0x88] sm:$0xff]
    %v2511 = vld [vmem:[%s2 + $0x90] sm:$0xff]
    %v2512 = vld [vmem:[%s2 + $0x98] sm:$0xff]
    %v2513 = vld [vmem:[%s2 + $0xa0] sm:$0xff]
    %v2514 = vld [vmem:[%s2 + $0xa8] sm:$0xff]
    %v2515 = vld [vmem:[%s2 + $0xb0] sm:$0xff]
    %v2516 = vld [vmem:[%s2 + $0xb8] sm:$0xff]
    %v2517 = vld [vmem:[%s2 + $0xc0] sm:$0xff]
    %v2518 = vld [vmem:[%s2 + $0xc8] sm:$0xff]
    %v2519 = vld [vmem:[%s2 + $0xd0] sm:$0xff]
    %v2520 = vld [vmem:[%s2 + $0xd8] sm:$0xff]
    %v2521 = vld [vmem:[%s2 + $0xe0] sm:$0xff]
    %v2522 = vld [vmem:[%s2 + $0xe8] sm:$0xff]
    %v2523 = vld [vmem:[%s2 + $0xf0] sm:$0xff]
    %v2524 = vld [vmem:[%s2 + $0xf8] sm:$0xff]
    %vm2525 = vcmask 130048
    %v2526 = vsel %vm2525, %v2493, 0.0
    %2527 = vadd.xlane.f32.xlu0 %v2526
    %v2528 = vpop.xlane.xlu0 %2527
    %v2529 = vsel %vm2525, %v2494, 0.0
    %2530 = vadd.xlane.f32.xlu0 %v2529
    %v2531 = vpop.xlane.xlu0 %2530
    %v2532 = vsel %vm2525, %v2495, 0.0
    %2533 = vadd.xlane.f32.xlu0 %v2532
    %v2534 = vpop.xlane.xlu0 %2533
    %v2535 = vsel %vm2525, %v2496, 0.0
    %2536 = vadd.xlane.f32.xlu0 %v2535
    %v2537 = vpop.xlane.xlu0 %2536
    %v2538 = vsel %vm2525, %v2497, 0.0
    %2539 = vadd.xlane.f32.xlu0 %v2538
    %v2540 = vpop.xlane.xlu0 %2539
    %v2541 = vsel %vm2525, %v2498, 0.0
    %2542 = vadd.xlane.f32.xlu0 %v2541
    %v2543 = vpop.xlane.xlu0 %2542
    %v2544 = vsel %vm2525, %v2499, 0.0
    %2545 = vadd.xlane.f32.xlu0 %v2544
    %v2546 = vpop.xlane.xlu0 %2545
    %v2547 = vsel %vm2525, %v2500, 0.0
    %2548 = vadd.xlane.f32.xlu0 %v2547
    %v2549 = vpop.xlane.xlu0 %2548
    %v2550 = vsel %vm2525, %v2501, 0.0
    %2551 = vadd.xlane.f32.xlu0 %v2550
    %v2552 = vpop.xlane.xlu0 %2551
    %v2553 = vsel %vm2525, %v2502, 0.0
    %2554 = vadd.xlane.f32.xlu0 %v2553
    %v2555 = vpop.xlane.xlu0 %2554
    %v2556 = vsel %vm2525, %v2503, 0.0
    %2557 = vadd.xlane.f32.xlu0 %v2556
    %v2558 = vpop.xlane.xlu0 %2557
    %v2559 = vsel %vm2525, %v2504, 0.0
    %2560 = vadd.xlane.f32.xlu0 %v2559
    %v2561 = vpop.xlane.xlu0 %2560
    %v2562 = vsel %vm2525, %v2505, 0.0
    %2563 = vadd.xlane.f32.xlu0 %v2562
    %v2564 = vpop.xlane.xlu0 %2563
    %v2565 = vsel %vm2525, %v2506, 0.0
    %2566 = vadd.xlane.f32.xlu0 %v2565
    %v2567 = vpop.xlane.xlu0 %2566
    %v2568 = vsel %vm2525, %v2507, 0.0
    %2569 = vadd.xlane.f32.xlu0 %v2568
    %v2570 = vpop.xlane.xlu0 %2569
    %v2571 = vsel %vm2525, %v2508, 0.0
    %2572 = vadd.xlane.f32.xlu0 %v2571
    %v2573 = vpop.xlane.xlu0 %2572
    %v2574 = vsel %vm2525, %v2509, 0.0
    %2575 = vadd.xlane.f32.xlu0 %v2574
    %v2576 = vpop.xlane.xlu0 %2575
    %v2577 = vsel %vm2525, %v2510, 0.0
    %2578 = vadd.xlane.f32.xlu0 %v2577
    %v2579 = vpop.xlane.xlu0 %2578
    %v2580 = vsel %vm2525, %v2511, 0.0
    %2581 = vadd.xlane.f32.xlu0 %v2580
    %v2582 = vpop.xlane.xlu0 %2581
    %v2583 = vsel %vm2525, %v2512, 0.0
    %2584 = vadd.xlane.f32.xlu0 %v2583
    %v2585 = vpop.xlane.xlu0 %2584
    %v2586 = vsel %vm2525, %v2513, 0.0
    %2587 = vadd.xlane.f32.xlu0 %v2586
    %v2588 = vpop.xlane.xlu0 %2587
    %v2589 = vsel %vm2525, %v2514, 0.0
    %2590 = vadd.xlane.f32.xlu0 %v2589
    %v2591 = vpop.xlane.xlu0 %2590
    %v2592 = vsel %vm2525, %v2515, 0.0
    %2593 = vadd.xlane.f32.xlu0 %v2592
    %v2594 = vpop.xlane.xlu0 %2593
    %v2595 = vsel %vm2525, %v2516, 0.0
    %2596 = vadd.xlane.f32.xlu0 %v2595
    %v2597 = vpop.xlane.xlu0 %2596
    %v2598 = vsel %vm2525, %v2517, 0.0
    %2599 = vadd.xlane.f32.xlu0 %v2598
    %v2600 = vpop.xlane.xlu0 %2599
    %v2601 = vsel %vm2525, %v2518, 0.0
    %2602 = vadd.xlane.f32.xlu0 %v2601
    %v2603 = vpop.xlane.xlu0 %2602
    %v2604 = vsel %vm2525, %v2519, 0.0
    %2605 = vadd.xlane.f32.xlu0 %v2604
    %v2606 = vpop.xlane.xlu0 %2605
    %v2607 = vsel %vm2525, %v2520, 0.0
    %2608 = vadd.xlane.f32.xlu0 %v2607
    %v2609 = vpop.xlane.xlu0 %2608
    %v2610 = vsel %vm2525, %v2521, 0.0
    %2611 = vadd.xlane.f32.xlu0 %v2610
    %v2612 = vpop.xlane.xlu0 %2611
    %v2613 = vsel %vm2525, %v2522, 0.0
    %2614 = vadd.xlane.f32.xlu0 %v2613
    %v2615 = vpop.xlane.xlu0 %2614
    %v2616 = vsel %vm2525, %v2523, 0.0
    %2617 = vadd.xlane.f32.xlu0 %v2616
    %v2618 = vpop.xlane.xlu0 %2617
    %v2619 = vsel %vm2525, %v2524, 0.0
    %2620 = vadd.xlane.f32.xlu0 %v2619
    %v2621 = vpop.xlane.xlu0 %2620
    %v2622 = vrcp.pop 16.0
    %v2623 = vmul.f32 %v2528, %v2622
    %v2624 = vmul.f32 %v2531, %v2622
    %v2625 = vmul.f32 %v2534, %v2622
    %v2626 = vmul.f32 %v2537, %v2622
    %v2627 = vmul.f32 %v2540, %v2622
    %v2628 = vmul.f32 %v2543, %v2622
    %v2629 = vmul.f32 %v2546, %v2622
    %v2630 = vmul.f32 %v2549, %v2622
    %v2631 = vmul.f32 %v2552, %v2622
    %v2632 = vmul.f32 %v2555, %v2622
    %v2633 = vmul.f32 %v2558, %v2622
    %v2634 = vmul.f32 %v2561, %v2622
    %v2635 = vmul.f32 %v2564, %v2622
    %v2636 = vmul.f32 %v2567, %v2622
    %v2637 = vmul.f32 %v2570, %v2622
    %v2638 = vmul.f32 %v2573, %v2622
    %v2639 = vmul.f32 %v2576, %v2622
    %v2640 = vmul.f32 %v2579, %v2622
    %v2641 = vmul.f32 %v2582, %v2622
    %v2642 = vmul.f32 %v2585, %v2622
    %v2643 = vmul.f32 %v2588, %v2622
    %v2644 = vmul.f32 %v2591, %v2622
    %v2645 = vmul.f32 %v2594, %v2622
    %v2646 = vmul.f32 %v2597, %v2622
    %v2647 = vmul.f32 %v2600, %v2622
    %v2648 = vmul.f32 %v2603, %v2622
    %v2649 = vmul.f32 %v2606, %v2622
    %v2650 = vmul.f32 %v2609, %v2622
    %v2651 = vmul.f32 %v2612, %v2622
    %v2652 = vmul.f32 %v2615, %v2622
    %v2653 = vmul.f32 %v2618, %v2622
    %v2654 = vmul.f32 %v2621, %v2622
    %v2655 = vld [vmem:[%s3] sm:$0xff]
    %v2656 = vld [vmem:[%s3 + $0x8] sm:$0xff]
    %v2657 = vld [vmem:[%s3 + $0x10] sm:$0xff]
    %v2658 = vld [vmem:[%s3 + $0x18] sm:$0xff]
    %v2659 = vld [vmem:[%s3 + $0x20] sm:$0xff]
    %v2660 = vld [vmem:[%s3 + $0x28] sm:$0xff]
    %v2661 = vld [vmem:[%s3 + $0x30] sm:$0xff]
    %v2662 = vld [vmem:[%s3 + $0x38] sm:$0xff]
    %v2663 = vld [vmem:[%s3 + $0x40] sm:$0xff]
    %v2664 = vld [vmem:[%s3 + $0x48] sm:$0xff]
    %v2665 = vld [vmem:[%s3 + $0x50] sm:$0xff]
    %v2666 = vld [vmem:[%s3 + $0x58] sm:$0xff]
    %v2667 = vld [vmem:[%s3 + $0x60] sm:$0xff]
    %v2668 = vld [vmem:[%s3 + $0x68] sm:$0xff]
    %v2669 = vld [vmem:[%s3 + $0x70] sm:$0xff]
    %v2670 = vld [vmem:[%s3 + $0x78] sm:$0xff]
    %v2671 = vld [vmem:[%s3 + $0x80] sm:$0xff]
    %v2672 = vld [vmem:[%s3 + $0x88] sm:$0xff]
    %v2673 = vld [vmem:[%s3 + $0x90] sm:$0xff]
    %v2674 = vld [vmem:[%s3 + $0x98] sm:$0xff]
    %v2675 = vld [vmem:[%s3 + $0xa0] sm:$0xff]
    %v2676 = vld [vmem:[%s3 + $0xa8] sm:$0xff]
    %v2677 = vld [vmem:[%s3 + $0xb0] sm:$0xff]
    %v2678 = vld [vmem:[%s3 + $0xb8] sm:$0xff]
    %v2679 = vld [vmem:[%s3 + $0xc0] sm:$0xff]
    %v2680 = vld [vmem:[%s3 + $0xc8] sm:$0xff]
    %v2681 = vld [vmem:[%s3 + $0xd0] sm:$0xff]
    %v2682 = vld [vmem:[%s3 + $0xd8] sm:$0xff]
    %v2683 = vld [vmem:[%s3 + $0xe0] sm:$0xff]
    %v2684 = vld [vmem:[%s3 + $0xe8] sm:$0xff]
    %v2685 = vld [vmem:[%s3 + $0xf0] sm:$0xff]
    %v2686 = vld [vmem:[%s3 + $0xf8] sm:$0xff]
    %vm2687 = vcmask 31744
    %v2688 = vsel %vm2687, %v2655, 0.0
    %2689 = vadd.xlane.f32.xlu0 %v2688
    %v2690 = vpop.xlane.xlu0 %2689
    %v2691 = vsel %vm2687, %v2656, 0.0
    %2692 = vadd.xlane.f32.xlu0 %v2691
    %v2693 = vpop.xlane.xlu0 %2692
    %v2694 = vsel %vm2687, %v2657, 0.0
    %2695 = vadd.xlane.f32.xlu0 %v2694
    %v2696 = vpop.xlane.xlu0 %2695
    %v2697 = vsel %vm2687, %v2658, 0.0
    %2698 = vadd.xlane.f32.xlu0 %v2697
    %v2699 = vpop.xlane.xlu0 %2698
    %v2700 = vsel %vm2687, %v2659, 0.0
    %2701 = vadd.xlane.f32.xlu0 %v2700
    %v2702 = vpop.xlane.xlu0 %2701
    %v2703 = vsel %vm2687, %v2660, 0.0
    %2704 = vadd.xlane.f32.xlu0 %v2703
    %v2705 = vpop.xlane.xlu0 %2704
    %v2706 = vsel %vm2687, %v2661, 0.0
    %2707 = vadd.xlane.f32.xlu0 %v2706
    %v2708 = vpop.xlane.xlu0 %2707
    %v2709 = vsel %vm2687, %v2662, 0.0
    %2710 = vadd.xlane.f32.xlu0 %v2709
    %v2711 = vpop.xlane.xlu0 %2710
    %v2712 = vsel %vm2687, %v2663, 0.0
    %2713 = vadd.xlane.f32.xlu0 %v2712
    %v2714 = vpop.xlane.xlu0 %2713
    %v2715 = vsel %vm2687, %v2664, 0.0
    %2716 = vadd.xlane.f32.xlu0 %v2715
    %v2717 = vpop.xlane.xlu0 %2716
    %v2718 = vsel %vm2687, %v2665, 0.0
    %2719 = vadd.xlane.f32.xlu0 %v2718
    %v2720 = vpop.xlane.xlu0 %2719
    %v2721 = vsel %vm2687, %v2666, 0.0
    %2722 = vadd.xlane.f32.xlu0 %v2721
    %v2723 = vpop.xlane.xlu0 %2722
    %v2724 = vsel %vm2687, %v2667, 0.0
    %2725 = vadd.xlane.f32.xlu0 %v2724
    %v2726 = vpop.xlane.xlu0 %2725
    %v2727 = vsel %vm2687, %v2668, 0.0
    %2728 = vadd.xlane.f32.xlu0 %v2727
    %v2729 = vpop.xlane.xlu0 %2728
    %v2730 = vsel %vm2687, %v2669, 0.0
    %2731 = vadd.xlane.f32.xlu0 %v2730
    %v2732 = vpop.xlane.xlu0 %2731
    %v2733 = vsel %vm2687, %v2670, 0.0
    %2734 = vadd.xlane.f32.xlu0 %v2733
    %v2735 = vpop.xlane.xlu0 %2734
    %v2736 = vsel %vm2687, %v2671, 0.0
    %2737 = vadd.xlane.f32.xlu0 %v2736
    %v2738 = vpop.xlane.xlu0 %2737
    %v2739 = vsel %vm2687, %v2672, 0.0
    %2740 = vadd.xlane.f32.xlu0 %v2739
    %v2741 = vpop.xlane.xlu0 %2740
    %v2742 = vsel %vm2687, %v2673, 0.0
    %2743 = vadd.xlane.f32.xlu0 %v2742
    %v2744 = vpop.xlane.xlu0 %2743
    %v2745 = vsel %vm2687, %v2674, 0.0
    %2746 = vadd.xlane.f32.xlu0 %v2745
    %v2747 = vpop.xlane.xlu0 %2746
    %v2748 = vsel %vm2687, %v2675, 0.0
    %2749 = vadd.xlane.f32.xlu0 %v2748
    %v2750 = vpop.xlane.xlu0 %2749
    %v2751 = vsel %vm2687, %v2676, 0.0
    %2752 = vadd.xlane.f32.xlu0 %v2751
    %v2753 = vpop.xlane.xlu0 %2752
    %v2754 = vsel %vm2687, %v2677, 0.0
    %2755 = vadd.xlane.f32.xlu0 %v2754
    %v2756 = vpop.xlane.xlu0 %2755
    %v2757 = vsel %vm2687, %v2678, 0.0
    %2758 = vadd.xlane.f32.xlu0 %v2757
    %v2759 = vpop.xlane.xlu0 %2758
    %v2760 = vsel %vm2687, %v2679, 0.0
    %2761 = vadd.xlane.f32.xlu0 %v2760
    %v2762 = vpop.xlane.xlu0 %2761
    %v2763 = vsel %vm2687, %v2680, 0.0
    %2764 = vadd.xlane.f32.xlu0 %v2763
    %v2765 = vpop.xlane.xlu0 %2764
    %v2766 = vsel %vm2687, %v2681, 0.0
    %2767 = vadd.xlane.f32.xlu0 %v2766
    %v2768 = vpop.xlane.xlu0 %2767
    %v2769 = vsel %vm2687, %v2682, 0.0
    %2770 = vadd.xlane.f32.xlu0 %v2769
    %v2771 = vpop.xlane.xlu0 %2770
    %v2772 = vsel %vm2687, %v2683, 0.0
    %2773 = vadd.xlane.f32.xlu0 %v2772
    %v2774 = vpop.xlane.xlu0 %2773
    %v2775 = vsel %vm2687, %v2684, 0.0
    %2776 = vadd.xlane.f32.xlu0 %v2775
    %v2777 = vpop.xlane.xlu0 %2776
    %v2778 = vsel %vm2687, %v2685, 0.0
    %2779 = vadd.xlane.f32.xlu0 %v2778
    %v2780 = vpop.xlane.xlu0 %2779
    %v2781 = vsel %vm2687, %v2686, 0.0
    %2782 = vadd.xlane.f32.xlu0 %v2781
    %v2783 = vpop.xlane.xlu0 %2782
    %v2784 = vrcp.pop 4.0
    %v2785 = vmul.f32 %v2690, %v2784
    %v2786 = vmul.f32 %v2693, %v2784
    %v2787 = vmul.f32 %v2696, %v2784
    %v2788 = vmul.f32 %v2699, %v2784
    %v2789 = vmul.f32 %v2702, %v2784
    %v2790 = vmul.f32 %v2705, %v2784
    %v2791 = vmul.f32 %v2708, %v2784
    %v2792 = vmul.f32 %v2711, %v2784
    %v2793 = vmul.f32 %v2714, %v2784
    %v2794 = vmul.f32 %v2717, %v2784
    %v2795 = vmul.f32 %v2720, %v2784
    %v2796 = vmul.f32 %v2723, %v2784
    %v2797 = vmul.f32 %v2726, %v2784
    %v2798 = vmul.f32 %v2729, %v2784
    %v2799 = vmul.f32 %v2732, %v2784
    %v2800 = vmul.f32 %v2735, %v2784
    %v2801 = vmul.f32 %v2738, %v2784
    %v2802 = vmul.f32 %v2741, %v2784
    %v2803 = vmul.f32 %v2744, %v2784
    %v2804 = vmul.f32 %v2747, %v2784
    %v2805 = vmul.f32 %v2750, %v2784
    %v2806 = vmul.f32 %v2753, %v2784
    %v2807 = vmul.f32 %v2756, %v2784
    %v2808 = vmul.f32 %v2759, %v2784
    %v2809 = vmul.f32 %v2762, %v2784
    %v2810 = vmul.f32 %v2765, %v2784
    %v2811 = vmul.f32 %v2768, %v2784
    %v2812 = vmul.f32 %v2771, %v2784
    %v2813 = vmul.f32 %v2774, %v2784
    %v2814 = vmul.f32 %v2777, %v2784
    %v2815 = vmul.f32 %v2780, %v2784
    %v2816 = vmul.f32 %v2783, %v2784
    %v2817 = vld [vmem:[%s4] sm:$0xff]
    %v2818 = vld [vmem:[%s4 + $0x8] sm:$0xff]
    %v2819 = vld [vmem:[%s4 + $0x10] sm:$0xff]
    %v2820 = vld [vmem:[%s4 + $0x18] sm:$0xff]
    %v2821 = vld [vmem:[%s4 + $0x20] sm:$0xff]
    %v2822 = vld [vmem:[%s4 + $0x28] sm:$0xff]
    %v2823 = vld [vmem:[%s4 + $0x30] sm:$0xff]
    %v2824 = vld [vmem:[%s4 + $0x38] sm:$0xff]
    %v2825 = vld [vmem:[%s4 + $0x40] sm:$0xff]
    %v2826 = vld [vmem:[%s4 + $0x48] sm:$0xff]
    %v2827 = vld [vmem:[%s4 + $0x50] sm:$0xff]
    %v2828 = vld [vmem:[%s4 + $0x58] sm:$0xff]
    %v2829 = vld [vmem:[%s4 + $0x60] sm:$0xff]
    %v2830 = vld [vmem:[%s4 + $0x68] sm:$0xff]
    %v2831 = vld [vmem:[%s4 + $0x70] sm:$0xff]
    %v2832 = vld [vmem:[%s4 + $0x78] sm:$0xff]
    %v2833 = vld [vmem:[%s4 + $0x80] sm:$0xff]
    %v2834 = vld [vmem:[%s4 + $0x88] sm:$0xff]
    %v2835 = vld [vmem:[%s4 + $0x90] sm:$0xff]
    %v2836 = vld [vmem:[%s4 + $0x98] sm:$0xff]
    %v2837 = vld [vmem:[%s4 + $0xa0] sm:$0xff]
    %v2838 = vld [vmem:[%s4 + $0xa8] sm:$0xff]
    %v2839 = vld [vmem:[%s4 + $0xb0] sm:$0xff]
    %v2840 = vld [vmem:[%s4 + $0xb8] sm:$0xff]
    %v2841 = vld [vmem:[%s4 + $0xc0] sm:$0xff]
    %v2842 = vld [vmem:[%s4 + $0xc8] sm:$0xff]
    %v2843 = vld [vmem:[%s4 + $0xd0] sm:$0xff]
    %v2844 = vld [vmem:[%s4 + $0xd8] sm:$0xff]
    %v2845 = vld [vmem:[%s4 + $0xe0] sm:$0xff]
    %v2846 = vld [vmem:[%s4 + $0xe8] sm:$0xff]
    %v2847 = vld [vmem:[%s4 + $0xf0] sm:$0xff]
    %v2848 = vld [vmem:[%s4 + $0xf8] sm:$0xff]
    %v2849 = vsel %vm2687, %v2817, 0.0
    %2850 = vadd.xlane.f32.xlu0 %v2849
    %v2851 = vpop.xlane.xlu0 %2850
    %v2852 = vsel %vm2687, %v2818, 0.0
    %2853 = vadd.xlane.f32.xlu0 %v2852
    %v2854 = vpop.xlane.xlu0 %2853
    %v2855 = vsel %vm2687, %v2819, 0.0
    %2856 = vadd.xlane.f32.xlu0 %v2855
    %v2857 = vpop.xlane.xlu0 %2856
    %v2858 = vsel %vm2687, %v2820, 0.0
    %2859 = vadd.xlane.f32.xlu0 %v2858
    %v2860 = vpop.xlane.xlu0 %2859
    %v2861 = vsel %vm2687, %v2821, 0.0
    %2862 = vadd.xlane.f32.xlu0 %v2861
    %v2863 = vpop.xlane.xlu0 %2862
    %v2864 = vsel %vm2687, %v2822, 0.0
    %2865 = vadd.xlane.f32.xlu0 %v2864
    %v2866 = vpop.xlane.xlu0 %2865
    %v2867 = vsel %vm2687, %v2823, 0.0
    %2868 = vadd.xlane.f32.xlu0 %v2867
    %v2869 = vpop.xlane.xlu0 %2868
    %v2870 = vsel %vm2687, %v2824, 0.0
    %2871 = vadd.xlane.f32.xlu0 %v2870
    %v2872 = vpop.xlane.xlu0 %2871
    %v2873 = vsel %vm2687, %v2825, 0.0
    %2874 = vadd.xlane.f32.xlu0 %v2873
    %v2875 = vpop.xlane.xlu0 %2874
    %v2876 = vsel %vm2687, %v2826, 0.0
    %2877 = vadd.xlane.f32.xlu0 %v2876
    %v2878 = vpop.xlane.xlu0 %2877
    %v2879 = vsel %vm2687, %v2827, 0.0
    %2880 = vadd.xlane.f32.xlu0 %v2879
    %v2881 = vpop.xlane.xlu0 %2880
    %v2882 = vsel %vm2687, %v2828, 0.0
    %2883 = vadd.xlane.f32.xlu0 %v2882
    %v2884 = vpop.xlane.xlu0 %2883
    %v2885 = vsel %vm2687, %v2829, 0.0
    %2886 = vadd.xlane.f32.xlu0 %v2885
    %v2887 = vpop.xlane.xlu0 %2886
    %v2888 = vsel %vm2687, %v2830, 0.0
    %2889 = vadd.xlane.f32.xlu0 %v2888
    %v2890 = vpop.xlane.xlu0 %2889
    %v2891 = vsel %vm2687, %v2831, 0.0
    %2892 = vadd.xlane.f32.xlu0 %v2891
    %v2893 = vpop.xlane.xlu0 %2892
    %v2894 = vsel %vm2687, %v2832, 0.0
    %2895 = vadd.xlane.f32.xlu0 %v2894
    %v2896 = vpop.xlane.xlu0 %2895
    %v2897 = vsel %vm2687, %v2833, 0.0
    %2898 = vadd.xlane.f32.xlu0 %v2897
    %v2899 = vpop.xlane.xlu0 %2898
    %v2900 = vsel %vm2687, %v2834, 0.0
    %2901 = vadd.xlane.f32.xlu0 %v2900
    %v2902 = vpop.xlane.xlu0 %2901
    %v2903 = vsel %vm2687, %v2835, 0.0
    %2904 = vadd.xlane.f32.xlu0 %v2903
    %v2905 = vpop.xlane.xlu0 %2904
    %v2906 = vsel %vm2687, %v2836, 0.0
    %2907 = vadd.xlane.f32.xlu0 %v2906
    %v2908 = vpop.xlane.xlu0 %2907
    %v2909 = vsel %vm2687, %v2837, 0.0
    %2910 = vadd.xlane.f32.xlu0 %v2909
    %v2911 = vpop.xlane.xlu0 %2910
    %v2912 = vsel %vm2687, %v2838, 0.0
    %2913 = vadd.xlane.f32.xlu0 %v2912
    %v2914 = vpop.xlane.xlu0 %2913
    %v2915 = vsel %vm2687, %v2839, 0.0
    %2916 = vadd.xlane.f32.xlu0 %v2915
    %v2917 = vpop.xlane.xlu0 %2916
    %v2918 = vsel %vm2687, %v2840, 0.0
    %2919 = vadd.xlane.f32.xlu0 %v2918
    %v2920 = vpop.xlane.xlu0 %2919
    %v2921 = vsel %vm2687, %v2841, 0.0
    %2922 = vadd.xlane.f32.xlu0 %v2921
    %v2923 = vpop.xlane.xlu0 %2922
    %v2924 = vsel %vm2687, %v2842, 0.0
    %2925 = vadd.xlane.f32.xlu0 %v2924
    %v2926 = vpop.xlane.xlu0 %2925
    %v2927 = vsel %vm2687, %v2843, 0.0
    %2928 = vadd.xlane.f32.xlu0 %v2927
    %v2929 = vpop.xlane.xlu0 %2928
    %v2930 = vsel %vm2687, %v2844, 0.0
    %2931 = vadd.xlane.f32.xlu0 %v2930
    %v2932 = vpop.xlane.xlu0 %2931
    %v2933 = vsel %vm2687, %v2845, 0.0
    %2934 = vadd.xlane.f32.xlu0 %v2933
    %v2935 = vpop.xlane.xlu0 %2934
    %v2936 = vsel %vm2687, %v2846, 0.0
    %2937 = vadd.xlane.f32.xlu0 %v2936
    %v2938 = vpop.xlane.xlu0 %2937
    %v2939 = vsel %vm2687, %v2847, 0.0
    %2940 = vadd.xlane.f32.xlu0 %v2939
    %v2941 = vpop.xlane.xlu0 %2940
    %v2942 = vsel %vm2687, %v2848, 0.0
    %2943 = vadd.xlane.f32.xlu0 %v2942
    %v2944 = vpop.xlane.xlu0 %2943
    %v2945 = vmul.f32 %v2851, %v2784
    %v2946 = vmul.f32 %v2854, %v2784
    %v2947 = vmul.f32 %v2857, %v2784
    %v2948 = vmul.f32 %v2860, %v2784
    %v2949 = vmul.f32 %v2863, %v2784
    %v2950 = vmul.f32 %v2866, %v2784
    %v2951 = vmul.f32 %v2869, %v2784
    %v2952 = vmul.f32 %v2872, %v2784
    %v2953 = vmul.f32 %v2875, %v2784
    %v2954 = vmul.f32 %v2878, %v2784
    %v2955 = vmul.f32 %v2881, %v2784
    %v2956 = vmul.f32 %v2884, %v2784
    %v2957 = vmul.f32 %v2887, %v2784
    %v2958 = vmul.f32 %v2890, %v2784
    %v2959 = vmul.f32 %v2893, %v2784
    %v2960 = vmul.f32 %v2896, %v2784
    %v2961 = vmul.f32 %v2899, %v2784
    %v2962 = vmul.f32 %v2902, %v2784
    %v2963 = vmul.f32 %v2905, %v2784
    %v2964 = vmul.f32 %v2908, %v2784
    %v2965 = vmul.f32 %v2911, %v2784
    %v2966 = vmul.f32 %v2914, %v2784
    %v2967 = vmul.f32 %v2917, %v2784
    %v2968 = vmul.f32 %v2920, %v2784
    %v2969 = vmul.f32 %v2923, %v2784
    %v2970 = vmul.f32 %v2926, %v2784
    %v2971 = vmul.f32 %v2929, %v2784
    %v2972 = vmul.f32 %v2932, %v2784
    %v2973 = vmul.f32 %v2935, %v2784
    %v2974 = vmul.f32 %v2938, %v2784
    %v2975 = vmul.f32 %v2941, %v2784
    %v2976 = vmul.f32 %v2944, %v2784
    %v2977 = vld [vmem:[%s5] sm:$0xff]
    %v2978 = vld [vmem:[%s5 + $0x8] sm:$0xff]
    %v2979 = vld [vmem:[%s5 + $0x10] sm:$0xff]
    %v2980 = vld [vmem:[%s5 + $0x18] sm:$0xff]
    %v2981 = vld [vmem:[%s5 + $0x20] sm:$0xff]
    %v2982 = vld [vmem:[%s5 + $0x28] sm:$0xff]
    %v2983 = vld [vmem:[%s5 + $0x30] sm:$0xff]
    %v2984 = vld [vmem:[%s5 + $0x38] sm:$0xff]
    %v2985 = vld [vmem:[%s5 + $0x40] sm:$0xff]
    %v2986 = vld [vmem:[%s5 + $0x48] sm:$0xff]
    %v2987 = vld [vmem:[%s5 + $0x50] sm:$0xff]
    %v2988 = vld [vmem:[%s5 + $0x58] sm:$0xff]
    %v2989 = vld [vmem:[%s5 + $0x60] sm:$0xff]
    %v2990 = vld [vmem:[%s5 + $0x68] sm:$0xff]
    %v2991 = vld [vmem:[%s5 + $0x70] sm:$0xff]
    %v2992 = vld [vmem:[%s5 + $0x78] sm:$0xff]
    %v2993 = vld [vmem:[%s5 + $0x80] sm:$0xff]
    %v2994 = vld [vmem:[%s5 + $0x88] sm:$0xff]
    %v2995 = vld [vmem:[%s5 + $0x90] sm:$0xff]
    %v2996 = vld [vmem:[%s5 + $0x98] sm:$0xff]
    %v2997 = vld [vmem:[%s5 + $0xa0] sm:$0xff]
    %v2998 = vld [vmem:[%s5 + $0xa8] sm:$0xff]
    %v2999 = vld [vmem:[%s5 + $0xb0] sm:$0xff]
    %v3000 = vld [vmem:[%s5 + $0xb8] sm:$0xff]
    %v3001 = vld [vmem:[%s5 + $0xc0] sm:$0xff]
    %v3002 = vld [vmem:[%s5 + $0xc8] sm:$0xff]
    %v3003 = vld [vmem:[%s5 + $0xd0] sm:$0xff]
    %v3004 = vld [vmem:[%s5 + $0xd8] sm:$0xff]
    %v3005 = vld [vmem:[%s5 + $0xe0] sm:$0xff]
    %v3006 = vld [vmem:[%s5 + $0xe8] sm:$0xff]
    %v3007 = vld [vmem:[%s5 + $0xf0] sm:$0xff]
    %v3008 = vld [vmem:[%s5 + $0xf8] sm:$0xff]
    %v3009 = vadd.f32 %v2977, 0.0
    %v3010 = vadd.f32 %v2978, 0.0
    %v3011 = vadd.f32 %v2979, 0.0
    %v3012 = vadd.f32 %v2980, 0.0
    %v3013 = vadd.f32 %v2981, 0.0
    %v3014 = vadd.f32 %v2982, 0.0
    %v3015 = vadd.f32 %v2983, 0.0
    %v3016 = vadd.f32 %v2984, 0.0
    %v3017 = vadd.f32 %v2985, 0.0
    %v3018 = vadd.f32 %v2986, 0.0
    %v3019 = vadd.f32 %v2987, 0.0
    %v3020 = vadd.f32 %v2988, 0.0
    %v3021 = vadd.f32 %v2989, 0.0
    %v3022 = vadd.f32 %v2990, 0.0
    %v3023 = vadd.f32 %v2991, 0.0
    %v3024 = vadd.f32 %v2992, 0.0
    %v3025 = vadd.f32 %v2993, 0.0
    %v3026 = vadd.f32 %v2994, 0.0
    %v3027 = vadd.f32 %v2995, 0.0
    %v3028 = vadd.f32 %v2996, 0.0
    %v3029 = vadd.f32 %v2997, 0.0
    %v3030 = vadd.f32 %v2998, 0.0
    %v3031 = vadd.f32 %v2999, 0.0
    %v3032 = vadd.f32 %v3000, 0.0
    %v3033 = vadd.f32 %v3001, 0.0
    %v3034 = vadd.f32 %v3002, 0.0
    %v3035 = vadd.f32 %v3003, 0.0
    %v3036 = vadd.f32 %v3004, 0.0
    %v3037 = vadd.f32 %v3005, 0.0
    %v3038 = vadd.f32 %v3006, 0.0
    %v3039 = vadd.f32 %v3007, 0.0
    %v3040 = vadd.f32 %v3008, 0.0
    %v3073 = vlaneseq
    %v3074 = vand.u32 %v3073, 127
    %v3075 = vlaneseq
    %v3076 = vshrl.u32 %v3075, 7
    %v3077 = vsub.s32 %v3074, %v3076
    %v3078 = vrot.slane %v2461, %v3077
    %v3079 = vadd.s32 %v3074, 4294967288
    %v3080 = vlaneseq
    %v3081 = vshrl.u32 %v3080, 7
    %v3082 = vsub.s32 %v3079, %v3081
    %v3083 = vrot.slane %v2462, %v3082
    %vm3084 = vcmask 130112
    %v3085 = vsel %vm3084, %v3083, %v3078
    %v3086 = vadd.s32 %v3074, 4294967280
    %v3087 = vlaneseq
    %v3088 = vshrl.u32 %v3087, 7
    %v3089 = vsub.s32 %v3086, %v3088
    %v3090 = vrot.slane %v2463, %v3089
    %vm3091 = vcmask 195712
    %v3092 = vsel %vm3091, %v3090, %v3085
    %v3093 = vadd.s32 %v3074, 4294967272
    %v3094 = vlaneseq
    %v3095 = vshrl.u32 %v3094, 7
    %v3096 = vsub.s32 %v3093, %v3095
    %v3097 = vrot.slane %v2464, %v3096
    %vm3098 = vcmask 261312
    %v3099 = vsel %vm3098, %v3097, %v3092
    %v3100 = vadd.s32 %v3074, 4294967264
    %v3101 = vlaneseq
    %v3102 = vshrl.u32 %v3101, 7
    %v3103 = vsub.s32 %v3100, %v3102
    %v3104 = vrot.slane %v2465, %v3103
    %vm3105 = vcmask 326912
    %v3106 = vsel %vm3105, %v3104, %v3099
    %v3107 = vadd.s32 %v3074, 4294967256
    %v3108 = vlaneseq
    %v3109 = vshrl.u32 %v3108, 7
    %v3110 = vsub.s32 %v3107, %v3109
    %v3111 = vrot.slane %v2466, %v3110
    %vm3112 = vcmask 392512
    %v3113 = vsel %vm3112, %v3111, %v3106
    %v3114 = vadd.s32 %v3074, 4294967248
    %v3115 = vlaneseq
    %v3116 = vshrl.u32 %v3115, 7
    %v3117 = vsub.s32 %v3114, %v3116
    %v3118 = vrot.slane %v2467, %v3117
    %vm3119 = vcmask 458112
    %v3120 = vsel %vm3119, %v3118, %v3113
    %v3121 = vadd.s32 %v3074, 4294967240
    %v3122 = vlaneseq
    %v3123 = vshrl.u32 %v3122, 7
    %v3124 = vsub.s32 %v3121, %v3123
    %v3125 = vrot.slane %v2468, %v3124
    %vm3126 = vcmask 523712
    %v3127 = vsel %vm3126, %v3125, %v3120
    %v3128 = vadd.s32 %v3074, 4294967232
    %v3129 = vlaneseq
    %v3130 = vshrl.u32 %v3129, 7
    %v3131 = vsub.s32 %v3128, %v3130
    %v3132 = vrot.slane %v2469, %v3131
    %vm3133 = vcmask 589312
    %v3134 = vsel %vm3133, %v3132, %v3127
    %v3135 = vadd.s32 %v3074, 4294967224
    %v3136 = vlaneseq
    %v3137 = vshrl.u32 %v3136, 7
    %v3138 = vsub.s32 %v3135, %v3137
    %v3139 = vrot.slane %v2470, %v3138
    %vm3140 = vcmask 654912
    %v3141 = vsel %vm3140, %v3139, %v3134
    %v3142 = vadd.s32 %v3074, 4294967216
    %v3143 = vlaneseq
    %v3144 = vshrl.u32 %v3143, 7
    %v3145 = vsub.s32 %v3142, %v3144
    %v3146 = vrot.slane %v2471, %v3145
    %vm3147 = vcmask 720512
    %v3148 = vsel %vm3147, %v3146, %v3141
    %v3149 = vadd.s32 %v3074, 4294967208
    %v3150 = vlaneseq
    %v3151 = vshrl.u32 %v3150, 7
    %v3152 = vsub.s32 %v3149, %v3151
    %v3153 = vrot.slane %v2472, %v3152
    %vm3154 = vcmask 786112
    %v3155 = vsel %vm3154, %v3153, %v3148
    %v3156 = vadd.s32 %v3074, 4294967200
    %v3157 = vlaneseq
    %v3158 = vshrl.u32 %v3157, 7
    %v3159 = vsub.s32 %v3156, %v3158
    %v3160 = vrot.slane %v2473, %v3159
    %vm3161 = vcmask 851712
    %v3162 = vsel %vm3161, %v3160, %v3155
    %v3163 = vadd.s32 %v3074, 4294967192
    %v3164 = vlaneseq
    %v3165 = vshrl.u32 %v3164, 7
    %v3166 = vsub.s32 %v3163, %v3165
    %v3167 = vrot.slane %v2474, %v3166
    %vm3168 = vcmask 917312
    %v3169 = vsel %vm3168, %v3167, %v3162
    %v3170 = vadd.s32 %v3074, 4294967184
    %v3171 = vlaneseq
    %v3172 = vshrl.u32 %v3171, 7
    %v3173 = vsub.s32 %v3170, %v3172
    %v3174 = vrot.slane %v2475, %v3173
    %vm3175 = vcmask 982912
    %v3176 = vsel %vm3175, %v3174, %v3169
    %v3177 = vadd.s32 %v3074, 4294967176
    %v3178 = vlaneseq
    %v3179 = vshrl.u32 %v3178, 7
    %v3180 = vsub.s32 %v3177, %v3179
    %v3181 = vrot.slane %v2476, %v3180
    %vm3182 = vcmask 1048512
    %v3183 = vsel %vm3182, %v3181, %v3176
    %v3184 = vlaneseq
    %v3185 = vshrl.u32 %v3184, 7
    %v3186 = vsub.s32 %v3074, %v3185
    %v3187 = vrot.slane %v2477, %v3186
    %v3188 = vlaneseq
    %v3189 = vshrl.u32 %v3188, 7
    %v3190 = vsub.s32 %v3079, %v3189
    %v3191 = vrot.slane %v2478, %v3190
    %v3192 = vsel %vm3084, %v3191, %v3187
    %v3193 = vlaneseq
    %v3194 = vshrl.u32 %v3193, 7
    %v3195 = vsub.s32 %v3086, %v3194
    %v3196 = vrot.slane %v2479, %v3195
    %v3197 = vsel %vm3091, %v3196, %v3192
    %v3198 = vlaneseq
    %v3199 = vshrl.u32 %v3198, 7
    %v3200 = vsub.s32 %v3093, %v3199
    %v3201 = vrot.slane %v2480, %v3200
    %v3202 = vsel %vm3098, %v3201, %v3197
    %v3203 = vlaneseq
    %v3204 = vshrl.u32 %v3203, 7
    %v3205 = vsub.s32 %v3100, %v3204
    %v3206 = vrot.slane %v2481, %v3205
    %v3207 = vsel %vm3105, %v3206, %v3202
    %v3208 = vlaneseq
    %v3209 = vshrl.u32 %v3208, 7
    %v3210 = vsub.s32 %v3107, %v3209
    %v3211 = vrot.slane %v2482, %v3210
    %v3212 = vsel %vm3112, %v3211, %v3207
    %v3213 = vlaneseq
    %v3214 = vshrl.u32 %v3213, 7
    %v3215 = vsub.s32 %v3114, %v3214
    %v3216 = vrot.slane %v2483, %v3215
    %v3217 = vsel %vm3119, %v3216, %v3212
    %v3218 = vlaneseq
    %v3219 = vshrl.u32 %v3218, 7
    %v3220 = vsub.s32 %v3121, %v3219
    %v3221 = vrot.slane %v2484, %v3220
    %v3222 = vsel %vm3126, %v3221, %v3217
    %v3223 = vlaneseq
    %v3224 = vshrl.u32 %v3223, 7
    %v3225 = vsub.s32 %v3128, %v3224
    %v3226 = vrot.slane %v2485, %v3225
    %v3227 = vsel %vm3133, %v3226, %v3222
    %v3228 = vlaneseq
    %v3229 = vshrl.u32 %v3228, 7
    %v3230 = vsub.s32 %v3135, %v3229
    %v3231 = vrot.slane %v2486, %v3230
    %v3232 = vsel %vm3140, %v3231, %v3227
    %v3233 = vlaneseq
    %v3234 = vshrl.u32 %v3233, 7
    %v3235 = vsub.s32 %v3142, %v3234
    %v3236 = vrot.slane %v2487, %v3235
    %v3237 = vsel %vm3147, %v3236, %v3232
    %v3238 = vlaneseq
    %v3239 = vshrl.u32 %v3238, 7
    %v3240 = vsub.s32 %v3149, %v3239
    %v3241 = vrot.slane %v2488, %v3240
    %v3242 = vsel %vm3154, %v3241, %v3237
    %v3243 = vlaneseq
    %v3244 = vshrl.u32 %v3243, 7
    %v3245 = vsub.s32 %v3156, %v3244
    %v3246 = vrot.slane %v2489, %v3245
    %v3247 = vsel %vm3161, %v3246, %v3242
    %v3248 = vlaneseq
    %v3249 = vshrl.u32 %v3248, 7
    %v3250 = vsub.s32 %v3163, %v3249
    %v3251 = vrot.slane %v2490, %v3250
    %v3252 = vsel %vm3168, %v3251, %v3247
    %v3253 = vlaneseq
    %v3254 = vshrl.u32 %v3253, 7
    %v3255 = vsub.s32 %v3170, %v3254
    %v3256 = vrot.slane %v2491, %v3255
    %v3257 = vsel %vm3175, %v3256, %v3252
    %v3258 = vlaneseq
    %v3259 = vshrl.u32 %v3258, 7
    %v3260 = vsub.s32 %v3177, %v3259
    %v3261 = vrot.slane %v2492, %v3260
    %v3262 = vsel %vm3182, %v3261, %v3257
    %vm3263 = vcmask 1041409
    %v3264 = vsel %vm3263, %v3262, %v3183
    %v3298 = vlaneseq
    %v3299 = vshrl.u32 %v3298, 7
    %v3300 = vsub.s32 %v3074, %v3299
    %v3301 = vrot.slane %v2623, %v3300
    %v3302 = vlaneseq
    %v3303 = vshrl.u32 %v3302, 7
    %v3304 = vsub.s32 %v3079, %v3303
    %v3305 = vrot.slane %v2624, %v3304
    %v3306 = vsel %vm3084, %v3305, %v3301
    %v3307 = vlaneseq
    %v3308 = vshrl.u32 %v3307, 7
    %v3309 = vsub.s32 %v3086, %v3308
    %v3310 = vrot.slane %v2625, %v3309
    %v3311 = vsel %vm3091, %v3310, %v3306
    %v3312 = vlaneseq
    %v3313 = vshrl.u32 %v3312, 7
    %v3314 = vsub.s32 %v3093, %v3313
    %v3315 = vrot.slane %v2626, %v3314
    %v3316 = vsel %vm3098, %v3315, %v3311
    %v3317 = vlaneseq
    %v3318 = vshrl.u32 %v3317, 7
    %v3319 = vsub.s32 %v3100, %v3318
    %v3320 = vrot.slane %v2627, %v3319
    %v3321 = vsel %vm3105, %v3320, %v3316
    %v3322 = vlaneseq
    %v3323 = vshrl.u32 %v3322, 7
    %v3324 = vsub.s32 %v3107, %v3323
    %v3325 = vrot.slane %v2628, %v3324
    %v3326 = vsel %vm3112, %v3325, %v3321
    %v3327 = vlaneseq
    %v3328 = vshrl.u32 %v3327, 7
    %v3329 = vsub.s32 %v3114, %v3328
    %v3330 = vrot.slane %v2629, %v3329
    %v3331 = vsel %vm3119, %v3330, %v3326
    %v3332 = vlaneseq
    %v3333 = vshrl.u32 %v3332, 7
    %v3334 = vsub.s32 %v3121, %v3333
    %v3335 = vrot.slane %v2630, %v3334
    %v3336 = vsel %vm3126, %v3335, %v3331
    %v3337 = vlaneseq
    %v3338 = vshrl.u32 %v3337, 7
    %v3339 = vsub.s32 %v3128, %v3338
    %v3340 = vrot.slane %v2631, %v3339
    %v3341 = vsel %vm3133, %v3340, %v3336
    %v3342 = vlaneseq
    %v3343 = vshrl.u32 %v3342, 7
    %v3344 = vsub.s32 %v3135, %v3343
    %v3345 = vrot.slane %v2632, %v3344
    %v3346 = vsel %vm3140, %v3345, %v3341
    %v3347 = vlaneseq
    %v3348 = vshrl.u32 %v3347, 7
    %v3349 = vsub.s32 %v3142, %v3348
    %v3350 = vrot.slane %v2633, %v3349
    %v3351 = vsel %vm3147, %v3350, %v3346
    %v3352 = vlaneseq
    %v3353 = vshrl.u32 %v3352, 7
    %v3354 = vsub.s32 %v3149, %v3353
    %v3355 = vrot.slane %v2634, %v3354
    %v3356 = vsel %vm3154, %v3355, %v3351
    %v3357 = vlaneseq
    %v3358 = vshrl.u32 %v3357, 7
    %v3359 = vsub.s32 %v3156, %v3358
    %v3360 = vrot.slane %v2635, %v3359
    %v3361 = vsel %vm3161, %v3360, %v3356
    %v3362 = vlaneseq
    %v3363 = vshrl.u32 %v3362, 7
    %v3364 = vsub.s32 %v3163, %v3363
    %v3365 = vrot.slane %v2636, %v3364
    %v3366 = vsel %vm3168, %v3365, %v3361
    %v3367 = vlaneseq
    %v3368 = vshrl.u32 %v3367, 7
    %v3369 = vsub.s32 %v3170, %v3368
    %v3370 = vrot.slane %v2637, %v3369
    %v3371 = vsel %vm3175, %v3370, %v3366
    %v3372 = vlaneseq
    %v3373 = vshrl.u32 %v3372, 7
    %v3374 = vsub.s32 %v3177, %v3373
    %v3375 = vrot.slane %v2638, %v3374
    %v3376 = vsel %vm3182, %v3375, %v3371
    %v3377 = vlaneseq
    %v3378 = vshrl.u32 %v3377, 7
    %v3379 = vsub.s32 %v3074, %v3378
    %v3380 = vrot.slane %v2639, %v3379
    %v3381 = vlaneseq
    %v3382 = vshrl.u32 %v3381, 7
    %v3383 = vsub.s32 %v3079, %v3382
    %v3384 = vrot.slane %v2640, %v3383
    %v3385 = vsel %vm3084, %v3384, %v3380
    %v3386 = vlaneseq
    %v3387 = vshrl.u32 %v3386, 7
    %v3388 = vsub.s32 %v3086, %v3387
    %v3389 = vrot.slane %v2641, %v3388
    %v3390 = vsel %vm3091, %v3389, %v3385
    %v3391 = vlaneseq
    %v3392 = vshrl.u32 %v3391, 7
    %v3393 = vsub.s32 %v3093, %v3392
    %v3394 = vrot.slane %v2642, %v3393
    %v3395 = vsel %vm3098, %v3394, %v3390
    %v3396 = vlaneseq
    %v3397 = vshrl.u32 %v3396, 7
    %v3398 = vsub.s32 %v3100, %v3397
    %v3399 = vrot.slane %v2643, %v3398
    %v3400 = vsel %vm3105, %v3399, %v3395
    %v3401 = vlaneseq
    %v3402 = vshrl.u32 %v3401, 7
    %v3403 = vsub.s32 %v3107, %v3402
    %v3404 = vrot.slane %v2644, %v3403
    %v3405 = vsel %vm3112, %v3404, %v3400
    %v3406 = vlaneseq
    %v3407 = vshrl.u32 %v3406, 7
    %v3408 = vsub.s32 %v3114, %v3407
    %v3409 = vrot.slane %v2645, %v3408
    %v3410 = vsel %vm3119, %v3409, %v3405
    %v3411 = vlaneseq
    %v3412 = vshrl.u32 %v3411, 7
    %v3413 = vsub.s32 %v3121, %v3412
    %v3414 = vrot.slane %v2646, %v3413
    %v3415 = vsel %vm3126, %v3414, %v3410
    %v3416 = vlaneseq
    %v3417 = vshrl.u32 %v3416, 7
    %v3418 = vsub.s32 %v3128, %v3417
    %v3419 = vrot.slane %v2647, %v3418
    %v3420 = vsel %vm3133, %v3419, %v3415
    %v3421 = vlaneseq
    %v3422 = vshrl.u32 %v3421, 7
    %v3423 = vsub.s32 %v3135, %v3422
    %v3424 = vrot.slane %v2648, %v3423
    %v3425 = vsel %vm3140, %v3424, %v3420
    %v3426 = vlaneseq
    %v3427 = vshrl.u32 %v3426, 7
    %v3428 = vsub.s32 %v3142, %v3427
    %v3429 = vrot.slane %v2649, %v3428
    %v3430 = vsel %vm3147, %v3429, %v3425
    %v3431 = vlaneseq
    %v3432 = vshrl.u32 %v3431, 7
    %v3433 = vsub.s32 %v3149, %v3432
    %v3434 = vrot.slane %v2650, %v3433
    %v3435 = vsel %vm3154, %v3434, %v3430
    %v3436 = vlaneseq
    %v3437 = vshrl.u32 %v3436, 7
    %v3438 = vsub.s32 %v3156, %v3437
    %v3439 = vrot.slane %v2651, %v3438
    %v3440 = vsel %vm3161, %v3439, %v3435
    %v3441 = vlaneseq
    %v3442 = vshrl.u32 %v3441, 7
    %v3443 = vsub.s32 %v3163, %v3442
    %v3444 = vrot.slane %v2652, %v3443
    %v3445 = vsel %vm3168, %v3444, %v3440
    %v3446 = vlaneseq
    %v3447 = vshrl.u32 %v3446, 7
    %v3448 = vsub.s32 %v3170, %v3447
    %v3449 = vrot.slane %v2653, %v3448
    %v3450 = vsel %vm3175, %v3449, %v3445
    %v3451 = vlaneseq
    %v3452 = vshrl.u32 %v3451, 7
    %v3453 = vsub.s32 %v3177, %v3452
    %v3454 = vrot.slane %v2654, %v3453
    %v3455 = vsel %vm3182, %v3454, %v3450
    %v3456 = vsel %vm3263, %v3455, %v3376
    %v3490 = vlaneseq
    %v3491 = vshrl.u32 %v3490, 7
    %v3492 = vsub.s32 %v3074, %v3491
    %v3493 = vrot.slane %v2785, %v3492
    %v3494 = vlaneseq
    %v3495 = vshrl.u32 %v3494, 7
    %v3496 = vsub.s32 %v3079, %v3495
    %v3497 = vrot.slane %v2786, %v3496
    %v3498 = vsel %vm3084, %v3497, %v3493
    %v3499 = vlaneseq
    %v3500 = vshrl.u32 %v3499, 7
    %v3501 = vsub.s32 %v3086, %v3500
    %v3502 = vrot.slane %v2787, %v3501
    %v3503 = vsel %vm3091, %v3502, %v3498
    %v3504 = vlaneseq
    %v3505 = vshrl.u32 %v3504, 7
    %v3506 = vsub.s32 %v3093, %v3505
    %v3507 = vrot.slane %v2788, %v3506
    %v3508 = vsel %vm3098, %v3507, %v3503
    %v3509 = vlaneseq
    %v3510 = vshrl.u32 %v3509, 7
    %v3511 = vsub.s32 %v3100, %v3510
    %v3512 = vrot.slane %v2789, %v3511
    %v3513 = vsel %vm3105, %v3512, %v3508
    %v3514 = vlaneseq
    %v3515 = vshrl.u32 %v3514, 7
    %v3516 = vsub.s32 %v3107, %v3515
    %v3517 = vrot.slane %v2790, %v3516
    %v3518 = vsel %vm3112, %v3517, %v3513
    %v3519 = vlaneseq
    %v3520 = vshrl.u32 %v3519, 7
    %v3521 = vsub.s32 %v3114, %v3520
    %v3522 = vrot.slane %v2791, %v3521
    %v3523 = vsel %vm3119, %v3522, %v3518
    %v3524 = vlaneseq
    %v3525 = vshrl.u32 %v3524, 7
    %v3526 = vsub.s32 %v3121, %v3525
    %v3527 = vrot.slane %v2792, %v3526
    %v3528 = vsel %vm3126, %v3527, %v3523
    %v3529 = vlaneseq
    %v3530 = vshrl.u32 %v3529, 7
    %v3531 = vsub.s32 %v3128, %v3530
    %v3532 = vrot.slane %v2793, %v3531
    %v3533 = vsel %vm3133, %v3532, %v3528
    %v3534 = vlaneseq
    %v3535 = vshrl.u32 %v3534, 7
    %v3536 = vsub.s32 %v3135, %v3535
    %v3537 = vrot.slane %v2794, %v3536
    %v3538 = vsel %vm3140, %v3537, %v3533
    %v3539 = vlaneseq
    %v3540 = vshrl.u32 %v3539, 7
    %v3541 = vsub.s32 %v3142, %v3540
    %v3542 = vrot.slane %v2795, %v3541
    %v3543 = vsel %vm3147, %v3542, %v3538
    %v3544 = vlaneseq
    %v3545 = vshrl.u32 %v3544, 7
    %v3546 = vsub.s32 %v3149, %v3545
    %v3547 = vrot.slane %v2796, %v3546
    %v3548 = vsel %vm3154, %v3547, %v3543
    %v3549 = vlaneseq
    %v3550 = vshrl.u32 %v3549, 7
    %v3551 = vsub.s32 %v3156, %v3550
    %v3552 = vrot.slane %v2797, %v3551
    %v3553 = vsel %vm3161, %v3552, %v3548
    %v3554 = vlaneseq
    %v3555 = vshrl.u32 %v3554, 7
    %v3556 = vsub.s32 %v3163, %v3555
    %v3557 = vrot.slane %v2798, %v3556
    %v3558 = vsel %vm3168, %v3557, %v3553
    %v3559 = vlaneseq
    %v3560 = vshrl.u32 %v3559, 7
    %v3561 = vsub.s32 %v3170, %v3560
    %v3562 = vrot.slane %v2799, %v3561
    %v3563 = vsel %vm3175, %v3562, %v3558
    %v3564 = vlaneseq
    %v3565 = vshrl.u32 %v3564, 7
    %v3566 = vsub.s32 %v3177, %v3565
    %v3567 = vrot.slane %v2800, %v3566
    %v3568 = vsel %vm3182, %v3567, %v3563
    %v3569 = vlaneseq
    %v3570 = vshrl.u32 %v3569, 7
    %v3571 = vsub.s32 %v3074, %v3570
    %v3572 = vrot.slane %v2801, %v3571
    %v3573 = vlaneseq
    %v3574 = vshrl.u32 %v3573, 7
    %v3575 = vsub.s32 %v3079, %v3574
    %v3576 = vrot.slane %v2802, %v3575
    %v3577 = vsel %vm3084, %v3576, %v3572
    %v3578 = vlaneseq
    %v3579 = vshrl.u32 %v3578, 7
    %v3580 = vsub.s32 %v3086, %v3579
    %v3581 = vrot.slane %v2803, %v3580
    %v3582 = vsel %vm3091, %v3581, %v3577
    %v3583 = vlaneseq
    %v3584 = vshrl.u32 %v3583, 7
    %v3585 = vsub.s32 %v3093, %v3584
    %v3586 = vrot.slane %v2804, %v3585
    %v3587 = vsel %vm3098, %v3586, %v3582
    %v3588 = vlaneseq
    %v3589 = vshrl.u32 %v3588, 7
    %v3590 = vsub.s32 %v3100, %v3589
    %v3591 = vrot.slane %v2805, %v3590
    %v3592 = vsel %vm3105, %v3591, %v3587
    %v3593 = vlaneseq
    %v3594 = vshrl.u32 %v3593, 7
    %v3595 = vsub.s32 %v3107, %v3594
    %v3596 = vrot.slane %v2806, %v3595
    %v3597 = vsel %vm3112, %v3596, %v3592
    %v3598 = vlaneseq
    %v3599 = vshrl.u32 %v3598, 7
    %v3600 = vsub.s32 %v3114, %v3599
    %v3601 = vrot.slane %v2807, %v3600
    %v3602 = vsel %vm3119, %v3601, %v3597
    %v3603 = vlaneseq
    %v3604 = vshrl.u32 %v3603, 7
    %v3605 = vsub.s32 %v3121, %v3604
    %v3606 = vrot.slane %v2808, %v3605
    %v3607 = vsel %vm3126, %v3606, %v3602
    %v3608 = vlaneseq
    %v3609 = vshrl.u32 %v3608, 7
    %v3610 = vsub.s32 %v3128, %v3609
    %v3611 = vrot.slane %v2809, %v3610
    %v3612 = vsel %vm3133, %v3611, %v3607
    %v3613 = vlaneseq
    %v3614 = vshrl.u32 %v3613, 7
    %v3615 = vsub.s32 %v3135, %v3614
    %v3616 = vrot.slane %v2810, %v3615
    %v3617 = vsel %vm3140, %v3616, %v3612
    %v3618 = vlaneseq
    %v3619 = vshrl.u32 %v3618, 7
    %v3620 = vsub.s32 %v3142, %v3619
    %v3621 = vrot.slane %v2811, %v3620
    %v3622 = vsel %vm3147, %v3621, %v3617
    %v3623 = vlaneseq
    %v3624 = vshrl.u32 %v3623, 7
    %v3625 = vsub.s32 %v3149, %v3624
    %v3626 = vrot.slane %v2812, %v3625
    %v3627 = vsel %vm3154, %v3626, %v3622
    %v3628 = vlaneseq
    %v3629 = vshrl.u32 %v3628, 7
    %v3630 = vsub.s32 %v3156, %v3629
    %v3631 = vrot.slane %v2813, %v3630
    %v3632 = vsel %vm3161, %v3631, %v3627
    %v3633 = vlaneseq
    %v3634 = vshrl.u32 %v3633, 7
    %v3635 = vsub.s32 %v3163, %v3634
    %v3636 = vrot.slane %v2814, %v3635
    %v3637 = vsel %vm3168, %v3636, %v3632
    %v3638 = vlaneseq
    %v3639 = vshrl.u32 %v3638, 7
    %v3640 = vsub.s32 %v3170, %v3639
    %v3641 = vrot.slane %v2815, %v3640
    %v3642 = vsel %vm3175, %v3641, %v3637
    %v3643 = vlaneseq
    %v3644 = vshrl.u32 %v3643, 7
    %v3645 = vsub.s32 %v3177, %v3644
    %v3646 = vrot.slane %v2816, %v3645
    %v3647 = vsel %vm3182, %v3646, %v3642
    %v3648 = vsel %vm3263, %v3647, %v3568
    %v3682 = vlaneseq
    %v3683 = vshrl.u32 %v3682, 7
    %v3684 = vsub.s32 %v3074, %v3683
    %v3685 = vrot.slane %v2945, %v3684
    %v3686 = vlaneseq
    %v3687 = vshrl.u32 %v3686, 7
    %v3688 = vsub.s32 %v3079, %v3687
    %v3689 = vrot.slane %v2946, %v3688
    %v3690 = vsel %vm3084, %v3689, %v3685
    %v3691 = vlaneseq
    %v3692 = vshrl.u32 %v3691, 7
    %v3693 = vsub.s32 %v3086, %v3692
    %v3694 = vrot.slane %v2947, %v3693
    %v3695 = vsel %vm3091, %v3694, %v3690
    %v3696 = vlaneseq
    %v3697 = vshrl.u32 %v3696, 7
    %v3698 = vsub.s32 %v3093, %v3697
    %v3699 = vrot.slane %v2948, %v3698
    %v3700 = vsel %vm3098, %v3699, %v3695
    %v3701 = vlaneseq
    %v3702 = vshrl.u32 %v3701, 7
    %v3703 = vsub.s32 %v3100, %v3702
    %v3704 = vrot.slane %v2949, %v3703
    %v3705 = vsel %vm3105, %v3704, %v3700
    %v3706 = vlaneseq
    %v3707 = vshrl.u32 %v3706, 7
    %v3708 = vsub.s32 %v3107, %v3707
    %v3709 = vrot.slane %v2950, %v3708
    %v3710 = vsel %vm3112, %v3709, %v3705
    %v3711 = vlaneseq
    %v3712 = vshrl.u32 %v3711, 7
    %v3713 = vsub.s32 %v3114, %v3712
    %v3714 = vrot.slane %v2951, %v3713
    %v3715 = vsel %vm3119, %v3714, %v3710
    %v3716 = vlaneseq
    %v3717 = vshrl.u32 %v3716, 7
    %v3718 = vsub.s32 %v3121, %v3717
    %v3719 = vrot.slane %v2952, %v3718
    %v3720 = vsel %vm3126, %v3719, %v3715
    %v3721 = vlaneseq
    %v3722 = vshrl.u32 %v3721, 7
    %v3723 = vsub.s32 %v3128, %v3722
    %v3724 = vrot.slane %v2953, %v3723
    %v3725 = vsel %vm3133, %v3724, %v3720
    %v3726 = vlaneseq
    %v3727 = vshrl.u32 %v3726, 7
    %v3728 = vsub.s32 %v3135, %v3727
    %v3729 = vrot.slane %v2954, %v3728
    %v3730 = vsel %vm3140, %v3729, %v3725
    %v3731 = vlaneseq
    %v3732 = vshrl.u32 %v3731, 7
    %v3733 = vsub.s32 %v3142, %v3732
    %v3734 = vrot.slane %v2955, %v3733
    %v3735 = vsel %vm3147, %v3734, %v3730
    %v3736 = vlaneseq
    %v3737 = vshrl.u32 %v3736, 7
    %v3738 = vsub.s32 %v3149, %v3737
    %v3739 = vrot.slane %v2956, %v3738
    %v3740 = vsel %vm3154, %v3739, %v3735
    %v3741 = vlaneseq
    %v3742 = vshrl.u32 %v3741, 7
    %v3743 = vsub.s32 %v3156, %v3742
    %v3744 = vrot.slane %v2957, %v3743
    %v3745 = vsel %vm3161, %v3744, %v3740
    %v3746 = vlaneseq
    %v3747 = vshrl.u32 %v3746, 7
    %v3748 = vsub.s32 %v3163, %v3747
    %v3749 = vrot.slane %v2958, %v3748
    %v3750 = vsel %vm3168, %v3749, %v3745
    %v3751 = vlaneseq
    %v3752 = vshrl.u32 %v3751, 7
    %v3753 = vsub.s32 %v3170, %v3752
    %v3754 = vrot.slane %v2959, %v3753
    %v3755 = vsel %vm3175, %v3754, %v3750
    %v3756 = vlaneseq
    %v3757 = vshrl.u32 %v3756, 7
    %v3758 = vsub.s32 %v3177, %v3757
    %v3759 = vrot.slane %v2960, %v3758
    %v3760 = vsel %vm3182, %v3759, %v3755
    %v3761 = vlaneseq
    %v3762 = vshrl.u32 %v3761, 7
    %v3763 = vsub.s32 %v3074, %v3762
    %v3764 = vrot.slane %v2961, %v3763
    %v3765 = vlaneseq
    %v3766 = vshrl.u32 %v3765, 7
    %v3767 = vsub.s32 %v3079, %v3766
    %v3768 = vrot.slane %v2962, %v3767
    %v3769 = vsel %vm3084, %v3768, %v3764
    %v3770 = vlaneseq
    %v3771 = vshrl.u32 %v3770, 7
    %v3772 = vsub.s32 %v3086, %v3771
    %v3773 = vrot.slane %v2963, %v3772
    %v3774 = vsel %vm3091, %v3773, %v3769
    %v3775 = vlaneseq
    %v3776 = vshrl.u32 %v3775, 7
    %v3777 = vsub.s32 %v3093, %v3776
    %v3778 = vrot.slane %v2964, %v3777
    %v3779 = vsel %vm3098, %v3778, %v3774
    %v3780 = vlaneseq
    %v3781 = vshrl.u32 %v3780, 7
    %v3782 = vsub.s32 %v3100, %v3781
    %v3783 = vrot.slane %v2965, %v3782
    %v3784 = vsel %vm3105, %v3783, %v3779
    %v3785 = vlaneseq
    %v3786 = vshrl.u32 %v3785, 7
    %v3787 = vsub.s32 %v3107, %v3786
    %v3788 = vrot.slane %v2966, %v3787
    %v3789 = vsel %vm3112, %v3788, %v3784
    %v3790 = vlaneseq
    %v3791 = vshrl.u32 %v3790, 7
    %v3792 = vsub.s32 %v3114, %v3791
    %v3793 = vrot.slane %v2967, %v3792
    %v3794 = vsel %vm3119, %v3793, %v3789
    %v3795 = vlaneseq
    %v3796 = vshrl.u32 %v3795, 7
    %v3797 = vsub.s32 %v3121, %v3796
    %v3798 = vrot.slane %v2968, %v3797
    %v3799 = vsel %vm3126, %v3798, %v3794
    %v3800 = vlaneseq
    %v3801 = vshrl.u32 %v3800, 7
    %v3802 = vsub.s32 %v3128, %v3801
    %v3803 = vrot.slane %v2969, %v3802
    %v3804 = vsel %vm3133, %v3803, %v3799
    %v3805 = vlaneseq
    %v3806 = vshrl.u32 %v3805, 7
    %v3807 = vsub.s32 %v3135, %v3806
    %v3808 = vrot.slane %v2970, %v3807
    %v3809 = vsel %vm3140, %v3808, %v3804
    %v3810 = vlaneseq
    %v3811 = vshrl.u32 %v3810, 7
    %v3812 = vsub.s32 %v3142, %v3811
    %v3813 = vrot.slane %v2971, %v3812
    %v3814 = vsel %vm3147, %v3813, %v3809
    %v3815 = vlaneseq
    %v3816 = vshrl.u32 %v3815, 7
    %v3817 = vsub.s32 %v3149, %v3816
    %v3818 = vrot.slane %v2972, %v3817
    %v3819 = vsel %vm3154, %v3818, %v3814
    %v3820 = vlaneseq
    %v3821 = vshrl.u32 %v3820, 7
    %v3822 = vsub.s32 %v3156, %v3821
    %v3823 = vrot.slane %v2973, %v3822
    %v3824 = vsel %vm3161, %v3823, %v3819
    %v3825 = vlaneseq
    %v3826 = vshrl.u32 %v3825, 7
    %v3827 = vsub.s32 %v3163, %v3826
    %v3828 = vrot.slane %v2974, %v3827
    %v3829 = vsel %vm3168, %v3828, %v3824
    %v3830 = vlaneseq
    %v3831 = vshrl.u32 %v3830, 7
    %v3832 = vsub.s32 %v3170, %v3831
    %v3833 = vrot.slane %v2975, %v3832
    %v3834 = vsel %vm3175, %v3833, %v3829
    %v3835 = vlaneseq
    %v3836 = vshrl.u32 %v3835, 7
    %v3837 = vsub.s32 %v3177, %v3836
    %v3838 = vrot.slane %v2976, %v3837
    %v3839 = vsel %vm3182, %v3838, %v3834
    %v3840 = vsel %vm3263, %v3839, %v3760
    %3874 = vset.pattern.permute.xlu0 0
    %3875 = vperm.xlu0 %3874, %v3009
    %v3876 = vpop.permute.xlu0 %3875
    %3877 = vset.pattern.permute.xlu0 0
    %3878 = vperm.xlu0 %3877, %v3010
    %v3879 = vpop.permute.xlu0 %3878
    %3880 = vset.pattern.permute.xlu0 0
    %3881 = vperm.xlu0 %3880, %v3011
    %v3882 = vpop.permute.xlu0 %3881
    %3883 = vset.pattern.permute.xlu0 0
    %3884 = vperm.xlu0 %3883, %v3012
    %v3885 = vpop.permute.xlu0 %3884
    %3886 = vset.pattern.permute.xlu0 0
    %3887 = vperm.xlu0 %3886, %v3013
    %v3888 = vpop.permute.xlu0 %3887
    %3889 = vset.pattern.permute.xlu0 0
    %3890 = vperm.xlu0 %3889, %v3014
    %v3891 = vpop.permute.xlu0 %3890
    %3892 = vset.pattern.permute.xlu0 0
    %3893 = vperm.xlu0 %3892, %v3015
    %v3894 = vpop.permute.xlu0 %3893
    %3895 = vset.pattern.permute.xlu0 0
    %3896 = vperm.xlu0 %3895, %v3016
    %v3897 = vpop.permute.xlu0 %3896
    %3898 = vset.pattern.permute.xlu0 0
    %3899 = vperm.xlu0 %3898, %v3017
    %v3900 = vpop.permute.xlu0 %3899
    %3901 = vset.pattern.permute.xlu0 0
    %3902 = vperm.xlu0 %3901, %v3018
    %v3903 = vpop.permute.xlu0 %3902
    %3904 = vset.pattern.permute.xlu0 0
    %3905 = vperm.xlu0 %3904, %v3019
    %v3906 = vpop.permute.xlu0 %3905
    %3907 = vset.pattern.permute.xlu0 0
    %3908 = vperm.xlu0 %3907, %v3020
    %v3909 = vpop.permute.xlu0 %3908
    %3910 = vset.pattern.permute.xlu0 0
    %3911 = vperm.xlu0 %3910, %v3021
    %v3912 = vpop.permute.xlu0 %3911
    %3913 = vset.pattern.permute.xlu0 0
    %3914 = vperm.xlu0 %3913, %v3022
    %v3915 = vpop.permute.xlu0 %3914
    %3916 = vset.pattern.permute.xlu0 0
    %3917 = vperm.xlu0 %3916, %v3023
    %v3918 = vpop.permute.xlu0 %3917
    %3919 = vset.pattern.permute.xlu0 0
    %3920 = vperm.xlu0 %3919, %v3024
    %v3921 = vpop.permute.xlu0 %3920
    %3922 = vset.pattern.permute.xlu0 0
    %3923 = vperm.xlu0 %3922, %v3025
    %v3924 = vpop.permute.xlu0 %3923
    %3925 = vset.pattern.permute.xlu0 0
    %3926 = vperm.xlu0 %3925, %v3026
    %v3927 = vpop.permute.xlu0 %3926
    %3928 = vset.pattern.permute.xlu0 0
    %3929 = vperm.xlu0 %3928, %v3027
    %v3930 = vpop.permute.xlu0 %3929
    %3931 = vset.pattern.permute.xlu0 0
    %3932 = vperm.xlu0 %3931, %v3028
    %v3933 = vpop.permute.xlu0 %3932
    %3934 = vset.pattern.permute.xlu0 0
    %3935 = vperm.xlu0 %3934, %v3029
    %v3936 = vpop.permute.xlu0 %3935
    %3937 = vset.pattern.permute.xlu0 0
    %3938 = vperm.xlu0 %3937, %v3030
    %v3939 = vpop.permute.xlu0 %3938
    %3940 = vset.pattern.permute.xlu0 0
    %3941 = vperm.xlu0 %3940, %v3031
    %v3942 = vpop.permute.xlu0 %3941
    %3943 = vset.pattern.permute.xlu0 0
    %3944 = vperm.xlu0 %3943, %v3032
    %v3945 = vpop.permute.xlu0 %3944
    %3946 = vset.pattern.permute.xlu0 0
    %3947 = vperm.xlu0 %3946, %v3033
    %v3948 = vpop.permute.xlu0 %3947
    %3949 = vset.pattern.permute.xlu0 0
    %3950 = vperm.xlu0 %3949, %v3034
    %v3951 = vpop.permute.xlu0 %3950
    %3952 = vset.pattern.permute.xlu0 0
    %3953 = vperm.xlu0 %3952, %v3035
    %v3954 = vpop.permute.xlu0 %3953
    %3955 = vset.pattern.permute.xlu0 0
    %3956 = vperm.xlu0 %3955, %v3036
    %v3957 = vpop.permute.xlu0 %3956
    %3958 = vset.pattern.permute.xlu0 0
    %3959 = vperm.xlu0 %3958, %v3037
    %v3960 = vpop.permute.xlu0 %3959
    %3961 = vset.pattern.permute.xlu0 0
    %3962 = vperm.xlu0 %3961, %v3038
    %v3963 = vpop.permute.xlu0 %3962
    %3964 = vset.pattern.permute.xlu0 0
    %3965 = vperm.xlu0 %3964, %v3039
    %v3966 = vpop.permute.xlu0 %3965
    %3967 = vset.pattern.permute.xlu0 0
    %3968 = vperm.xlu0 %3967, %v3040
    %v3969 = vpop.permute.xlu0 %3968
    %v3970 = vlaneseq
    %v3971 = vshrl.u32 %v3970, 7
    %v3972 = vsub.s32 %v3074, %v3971
    %v3973 = vrot.slane %v3876, %v3972
    %v3974 = vlaneseq
    %v3975 = vshrl.u32 %v3974, 7
    %v3976 = vsub.s32 %v3079, %v3975
    %v3977 = vrot.slane %v3879, %v3976
    %v3978 = vsel %vm3084, %v3977, %v3973
    %v3979 = vlaneseq
    %v3980 = vshrl.u32 %v3979, 7
    %v3981 = vsub.s32 %v3086, %v3980
    %v3982 = vrot.slane %v3882, %v3981
    %v3983 = vsel %vm3091, %v3982, %v3978
    %v3984 = vlaneseq
    %v3985 = vshrl.u32 %v3984, 7
    %v3986 = vsub.s32 %v3093, %v3985
    %v3987 = vrot.slane %v3885, %v3986
    %v3988 = vsel %vm3098, %v3987, %v3983
    %v3989 = vlaneseq
    %v3990 = vshrl.u32 %v3989, 7
    %v3991 = vsub.s32 %v3100, %v3990
    %v3992 = vrot.slane %v3888, %v3991
    %v3993 = vsel %vm3105, %v3992, %v3988
    %v3994 = vlaneseq
    %v3995 = vshrl.u32 %v3994, 7
    %v3996 = vsub.s32 %v3107, %v3995
    %v3997 = vrot.slane %v3891, %v3996
    %v3998 = vsel %vm3112, %v3997, %v3993
    %v3999 = vlaneseq
    %v4000 = vshrl.u32 %v3999, 7
    %v4001 = vsub.s32 %v3114, %v4000
    %v4002 = vrot.slane %v3894, %v4001
    %v4003 = vsel %vm3119, %v4002, %v3998
    %v4004 = vlaneseq
    %v4005 = vshrl.u32 %v4004, 7
    %v4006 = vsub.s32 %v3121, %v4005
    %v4007 = vrot.slane %v3897, %v4006
    %v4008 = vsel %vm3126, %v4007, %v4003
    %v4009 = vlaneseq
    %v4010 = vshrl.u32 %v4009, 7
    %v4011 = vsub.s32 %v3128, %v4010
    %v4012 = vrot.slane %v3900, %v4011
    %v4013 = vsel %vm3133, %v4012, %v4008
    %v4014 = vlaneseq
    %v4015 = vshrl.u32 %v4014, 7
    %v4016 = vsub.s32 %v3135, %v4015
    %v4017 = vrot.slane %v3903, %v4016
    %v4018 = vsel %vm3140, %v4017, %v4013
    %v4019 = vlaneseq
    %v4020 = vshrl.u32 %v4019, 7
    %v4021 = vsub.s32 %v3142, %v4020
    %v4022 = vrot.slane %v3906, %v4021
    %v4023 = vsel %vm3147, %v4022, %v4018
    %v4024 = vlaneseq
    %v4025 = vshrl.u32 %v4024, 7
    %v4026 = vsub.s32 %v3149, %v4025
    %v4027 = vrot.slane %v3909, %v4026
    %v4028 = vsel %vm3154, %v4027, %v4023
    %v4029 = vlaneseq
    %v4030 = vshrl.u32 %v4029, 7
    %v4031 = vsub.s32 %v3156, %v4030
    %v4032 = vrot.slane %v3912, %v4031
    %v4033 = vsel %vm3161, %v4032, %v4028
    %v4034 = vlaneseq
    %v4035 = vshrl.u32 %v4034, 7
    %v4036 = vsub.s32 %v3163, %v4035
    %v4037 = vrot.slane %v3915, %v4036
    %v4038 = vsel %vm3168, %v4037, %v4033
    %v4039 = vlaneseq
    %v4040 = vshrl.u32 %v4039, 7
    %v4041 = vsub.s32 %v3170, %v4040
    %v4042 = vrot.slane %v3918, %v4041
    %v4043 = vsel %vm3175, %v4042, %v4038
    %v4044 = vlaneseq
    %v4045 = vshrl.u32 %v4044, 7
    %v4046 = vsub.s32 %v3177, %v4045
    %v4047 = vrot.slane %v3921, %v4046
    %v4048 = vsel %vm3182, %v4047, %v4043
    %v4049 = vlaneseq
    %v4050 = vshrl.u32 %v4049, 7
    %v4051 = vsub.s32 %v3074, %v4050
    %v4052 = vrot.slane %v3924, %v4051
    %v4053 = vlaneseq
    %v4054 = vshrl.u32 %v4053, 7
    %v4055 = vsub.s32 %v3079, %v4054
    %v4056 = vrot.slane %v3927, %v4055
    %v4057 = vsel %vm3084, %v4056, %v4052
    %v4058 = vlaneseq
    %v4059 = vshrl.u32 %v4058, 7
    %v4060 = vsub.s32 %v3086, %v4059
    %v4061 = vrot.slane %v3930, %v4060
    %v4062 = vsel %vm3091, %v4061, %v4057
    %v4063 = vlaneseq
    %v4064 = vshrl.u32 %v4063, 7
    %v4065 = vsub.s32 %v3093, %v4064
    %v4066 = vrot.slane %v3933, %v4065
    %v4067 = vsel %vm3098, %v4066, %v4062
    %v4068 = vlaneseq
    %v4069 = vshrl.u32 %v4068, 7
    %v4070 = vsub.s32 %v3100, %v4069
    %v4071 = vrot.slane %v3936, %v4070
    %v4072 = vsel %vm3105, %v4071, %v4067
    %v4073 = vlaneseq
    %v4074 = vshrl.u32 %v4073, 7
    %v4075 = vsub.s32 %v3107, %v4074
    %v4076 = vrot.slane %v3939, %v4075
    %v4077 = vsel %vm3112, %v4076, %v4072
    %v4078 = vlaneseq
    %v4079 = vshrl.u32 %v4078, 7
    %v4080 = vsub.s32 %v3114, %v4079
    %v4081 = vrot.slane %v3942, %v4080
    %v4082 = vsel %vm3119, %v4081, %v4077
    %v4083 = vlaneseq
    %v4084 = vshrl.u32 %v4083, 7
    %v4085 = vsub.s32 %v3121, %v4084
    %v4086 = vrot.slane %v3945, %v4085
    %v4087 = vsel %vm3126, %v4086, %v4082
    %v4088 = vlaneseq
    %v4089 = vshrl.u32 %v4088, 7
    %v4090 = vsub.s32 %v3128, %v4089
    %v4091 = vrot.slane %v3948, %v4090
    %v4092 = vsel %vm3133, %v4091, %v4087
    %v4093 = vlaneseq
    %v4094 = vshrl.u32 %v4093, 7
    %v4095 = vsub.s32 %v3135, %v4094
    %v4096 = vrot.slane %v3951, %v4095
    %v4097 = vsel %vm3140, %v4096, %v4092
    %v4098 = vlaneseq
    %v4099 = vshrl.u32 %v4098, 7
    %v4100 = vsub.s32 %v3142, %v4099
    %v4101 = vrot.slane %v3954, %v4100
    %v4102 = vsel %vm3147, %v4101, %v4097
    %v4103 = vlaneseq
    %v4104 = vshrl.u32 %v4103, 7
    %v4105 = vsub.s32 %v3149, %v4104
    %v4106 = vrot.slane %v3957, %v4105
    %v4107 = vsel %vm3154, %v4106, %v4102
    %v4108 = vlaneseq
    %v4109 = vshrl.u32 %v4108, 7
    %v4110 = vsub.s32 %v3156, %v4109
    %v4111 = vrot.slane %v3960, %v4110
    %v4112 = vsel %vm3161, %v4111, %v4107
    %v4113 = vlaneseq
    %v4114 = vshrl.u32 %v4113, 7
    %v4115 = vsub.s32 %v3163, %v4114
    %v4116 = vrot.slane %v3963, %v4115
    %v4117 = vsel %vm3168, %v4116, %v4112
    %v4118 = vlaneseq
    %v4119 = vshrl.u32 %v4118, 7
    %v4120 = vsub.s32 %v3170, %v4119
    %v4121 = vrot.slane %v3966, %v4120
    %v4122 = vsel %vm3175, %v4121, %v4117
    %v4123 = vlaneseq
    %v4124 = vshrl.u32 %v4123, 7
    %v4125 = vsub.s32 %v3177, %v4124
    %v4126 = vrot.slane %v3969, %v4125
    %v4127 = vsel %vm3182, %v4126, %v4122
    %v4128 = vsel %vm3263, %v4127, %v4048
    %v4130 = vld [vmem:[%s10] sm:$0xff]
    %v4131 = vld [vmem:[%s10 + $0x8] sm:$0xf]
    %v4132 = vld [vmem:[%s10 + $0xc] sm:$0xff]
    %v4133 = vld [vmem:[%s10 + $0x14] sm:$0xf]
    %v4134 = vld [vmem:[%s10 + $0x18] sm:$0xff]
    %v4135 = vld [vmem:[%s10 + $0x20] sm:$0xf]
    %v4136 = vld [vmem:[%s10 + $0x24] sm:$0xff]
    %v4137 = vld [vmem:[%s10 + $0x2c] sm:$0xf]
    %v4138 = vld [vmem:[%s10 + $0x30] sm:$0xff]
    %v4139 = vld [vmem:[%s10 + $0x38] sm:$0xf]
    %v4140 = vld [vmem:[%s10 + $0x3c] sm:$0xff]
    %v4141 = vld [vmem:[%s10 + $0x44] sm:$0xf]
    %v4142 = vld [vmem:[%s10 + $0x48] sm:$0xff]
    %v4143 = vld [vmem:[%s10 + $0x50] sm:$0xf]
    %v4144 = vld [vmem:[%s10 + $0x54] sm:$0xff]
    %v4145 = vld [vmem:[%s10 + $0x5c] sm:$0xf]
    %v4146 = vld [vmem:[%s10 + $0x60] sm:$0xff]
    %v4147 = vld [vmem:[%s10 + $0x68] sm:$0xf]
    %v4148 = vld [vmem:[%s10 + $0x6c] sm:$0xff]
    %v4149 = vld [vmem:[%s10 + $0x74] sm:$0xf]
    %v4150 = vld [vmem:[%s10 + $0x78] sm:$0xff]
    %v4151 = vld [vmem:[%s10 + $0x80] sm:$0xf]
    %v4152 = vld [vmem:[%s10 + $0x84] sm:$0xff]
    %v4153 = vld [vmem:[%s10 + $0x8c] sm:$0xf]
    %v4154 = vld [vmem:[%s10 + $0x90] sm:$0xff]
    %v4155 = vld [vmem:[%s10 + $0x98] sm:$0xf]
    %v4156 = vld [vmem:[%s10 + $0x9c] sm:$0xff]
    %v4157 = vld [vmem:[%s10 + $0xa4] sm:$0xf]
    %v4158 = vld [vmem:[%s10 + $0xa8] sm:$0xff]
    %v4159 = vld [vmem:[%s10 + $0xb0] sm:$0xf]
    %v4160 = vld [vmem:[%s10 + $0xb4] sm:$0xff]
    %v4161 = vld [vmem:[%s10 + $0xbc] sm:$0xf]
    %v4162 = vld [vmem:[%s10 + $0xc0] sm:$0xff]
    %v4163 = vld [vmem:[%s10 + $0xc8] sm:$0xf]
    %v4164 = vld [vmem:[%s10 + $0xcc] sm:$0xff]
    %v4165 = vld [vmem:[%s10 + $0xd4] sm:$0xf]
    %v4166 = vld [vmem:[%s10 + $0xd8] sm:$0xff]
    %v4167 = vld [vmem:[%s10 + $0xe0] sm:$0xf]
    %v4168 = vld [vmem:[%s10 + $0xe4] sm:$0xff]
    %v4169 = vld [vmem:[%s10 + $0xec] sm:$0xf]
    %v4170 = vld [vmem:[%s10 + $0xf0] sm:$0xff]
    %v4171 = vld [vmem:[%s10 + $0xf8] sm:$0xf]
    %v4172 = vld [vmem:[%s10 + $0xfc] sm:$0xff]
    %v4173 = vld [vmem:[%s10 + $0x104] sm:$0xf]
    %v4174 = vld [vmem:[%s10 + $0x108] sm:$0xff]
    %v4175 = vld [vmem:[%s10 + $0x110] sm:$0xf]
    %v4176 = vld [vmem:[%s10 + $0x114] sm:$0xff]
    %v4177 = vld [vmem:[%s10 + $0x11c] sm:$0xf]
    %v4178 = vld [vmem:[%s10 + $0x120] sm:$0xff]
    %v4179 = vld [vmem:[%s10 + $0x128] sm:$0xf]
    %v4180 = vld [vmem:[%s10 + $0x12c] sm:$0xff]
    %v4181 = vld [vmem:[%s10 + $0x134] sm:$0xf]
    %v4182 = vld [vmem:[%s10 + $0x138] sm:$0xff]
    %v4183 = vld [vmem:[%s10 + $0x140] sm:$0xf]
    %v4184 = vld [vmem:[%s10 + $0x144] sm:$0xff]
    %v4185 = vld [vmem:[%s10 + $0x14c] sm:$0xf]
    %v4186 = vld [vmem:[%s10 + $0x150] sm:$0xff]
    %v4187 = vld [vmem:[%s10 + $0x158] sm:$0xf]
    %v4188 = vld [vmem:[%s10 + $0x15c] sm:$0xff]
    %v4189 = vld [vmem:[%s10 + $0x164] sm:$0xf]
    %v4190 = vld [vmem:[%s10 + $0x168] sm:$0xff]
    %v4191 = vld [vmem:[%s10 + $0x170] sm:$0xf]
    %v4192 = vld [vmem:[%s10 + $0x174] sm:$0xff]
    %v4193 = vld [vmem:[%s10 + $0x17c] sm:$0xf]
    %v4194 = vld [vmem:[%s10 + $0x180] sm:$0xff]
    %v4195 = vld [vmem:[%s10 + $0x188] sm:$0xf]
    %v4196 = vld [vmem:[%s10 + $0x18c] sm:$0xff]
    %v4197 = vld [vmem:[%s10 + $0x194] sm:$0xf]
    %v4198 = vld [vmem:[%s10 + $0x198] sm:$0xff]
    %v4199 = vld [vmem:[%s10 + $0x1a0] sm:$0xf]
    %v4200 = vld [vmem:[%s10 + $0x1a4] sm:$0xff]
    %v4201 = vld [vmem:[%s10 + $0x1ac] sm:$0xf]
    %v4202 = vld [vmem:[%s10 + $0x1b0] sm:$0xff]
    %v4203 = vld [vmem:[%s10 + $0x1b8] sm:$0xf]
    %v4204 = vld [vmem:[%s10 + $0x1bc] sm:$0xff]
    %v4205 = vld [vmem:[%s10 + $0x1c4] sm:$0xf]
    %v4206 = vld [vmem:[%s10 + $0x1c8] sm:$0xff]
    %v4207 = vld [vmem:[%s10 + $0x1d0] sm:$0xf]
    %v4208 = vld [vmem:[%s10 + $0x1d4] sm:$0xff]
    %v4209 = vld [vmem:[%s10 + $0x1dc] sm:$0xf]
    %v4210 = vld [vmem:[%s10 + $0x1e0] sm:$0xff]
    %v4211 = vld [vmem:[%s10 + $0x1e8] sm:$0xf]
    %v4212 = vld [vmem:[%s10 + $0x1ec] sm:$0xff]
    %v4213 = vld [vmem:[%s10 + $0x1f4] sm:$0xf]
    %v4214 = vld [vmem:[%s10 + $0x1f8] sm:$0xff]
    %v4215 = vld [vmem:[%s10 + $0x200] sm:$0xf]
    %v4216 = vld [vmem:[%s10 + $0x204] sm:$0xff]
    %v4217 = vld [vmem:[%s10 + $0x20c] sm:$0xf]
    %v4218 = vld [vmem:[%s10 + $0x210] sm:$0xff]
    %v4219 = vld [vmem:[%s10 + $0x218] sm:$0xf]
    %v4220 = vld [vmem:[%s10 + $0x21c] sm:$0xff]
    %v4221 = vld [vmem:[%s10 + $0x224] sm:$0xf]
    %v4222 = vld [vmem:[%s10 + $0x228] sm:$0xff]
    %v4223 = vld [vmem:[%s10 + $0x230] sm:$0xf]
    %v4224 = vld [vmem:[%s10 + $0x234] sm:$0xff]
    %v4225 = vld [vmem:[%s10 + $0x23c] sm:$0xf]
    %v4226 = vld [vmem:[%s10 + $0x240] sm:$0xff]
    %v4227 = vld [vmem:[%s10 + $0x248] sm:$0xf]
    %v4228 = vld [vmem:[%s10 + $0x24c] sm:$0xff]
    %v4229 = vld [vmem:[%s10 + $0x254] sm:$0xf]
    %v4230 = vld [vmem:[%s10 + $0x258] sm:$0xff]
    %v4231 = vld [vmem:[%s10 + $0x260] sm:$0xf]
    %v4232 = vld [vmem:[%s10 + $0x264] sm:$0xff]
    %v4233 = vld [vmem:[%s10 + $0x26c] sm:$0xf]
    %v4234 = vld [vmem:[%s10 + $0x270] sm:$0xff]
    %v4235 = vld [vmem:[%s10 + $0x278] sm:$0xf]
    %v4236 = vld [vmem:[%s10 + $0x27c] sm:$0xff]
    %v4237 = vld [vmem:[%s10 + $0x284] sm:$0xf]
    %v4238 = vld [vmem:[%s10 + $0x288] sm:$0xff]
    %v4239 = vld [vmem:[%s10 + $0x290] sm:$0xf]
    %v4240 = vld [vmem:[%s10 + $0x294] sm:$0xff]
    %v4241 = vld [vmem:[%s10 + $0x29c] sm:$0xf]
    %v4242 = vld [vmem:[%s10 + $0x2a0] sm:$0xff]
    %v4243 = vld [vmem:[%s10 + $0x2a8] sm:$0xf]
    %v4244 = vld [vmem:[%s10 + $0x2ac] sm:$0xff]
    %v4245 = vld [vmem:[%s10 + $0x2b4] sm:$0xf]
    %v4246 = vld [vmem:[%s10 + $0x2b8] sm:$0xff]
    %v4247 = vld [vmem:[%s10 + $0x2c0] sm:$0xf]
    %v4248 = vld [vmem:[%s10 + $0x2c4] sm:$0xff]
    %v4249 = vld [vmem:[%s10 + $0x2cc] sm:$0xf]
    %v4250 = vld [vmem:[%s10 + $0x2d0] sm:$0xff]
    %v4251 = vld [vmem:[%s10 + $0x2d8] sm:$0xf]
    %v4252 = vld [vmem:[%s10 + $0x2dc] sm:$0xff]
    %v4253 = vld [vmem:[%s10 + $0x2e4] sm:$0xf]
    %v4254 = vld [vmem:[%s10 + $0x2e8] sm:$0xff]
    %v4255 = vld [vmem:[%s10 + $0x2f0] sm:$0xf]
    %v4256 = vld [vmem:[%s10 + $0x2f4] sm:$0xff]
    %v4257 = vld [vmem:[%s10 + $0x2fc] sm:$0xf]
    %v4258 = vld [vmem:[%s10 + $0x300] sm:$0xff]
    %v4259 = vld [vmem:[%s10 + $0x308] sm:$0xf]
    %v4260 = vld [vmem:[%s10 + $0x30c] sm:$0xff]
    %v4261 = vld [vmem:[%s10 + $0x314] sm:$0xf]
    %v4262 = vld [vmem:[%s10 + $0x318] sm:$0xff]
    %v4263 = vld [vmem:[%s10 + $0x320] sm:$0xf]
    %v4264 = vld [vmem:[%s10 + $0x324] sm:$0xff]
    %v4265 = vld [vmem:[%s10 + $0x32c] sm:$0xf]
    %v4266 = vld [vmem:[%s10 + $0x330] sm:$0xff]
    %v4267 = vld [vmem:[%s10 + $0x338] sm:$0xf]
    %v4268 = vld [vmem:[%s10 + $0x33c] sm:$0xff]
    %v4269 = vld [vmem:[%s10 + $0x344] sm:$0xf]
    %v4270 = vld [vmem:[%s10 + $0x348] sm:$0xff]
    %v4271 = vld [vmem:[%s10 + $0x350] sm:$0xf]
    %v4272 = vld [vmem:[%s10 + $0x354] sm:$0xff]
    %v4273 = vld [vmem:[%s10 + $0x35c] sm:$0xf]
    %v4274 = vld [vmem:[%s10 + $0x360] sm:$0xff]
    %v4275 = vld [vmem:[%s10 + $0x368] sm:$0xf]
    %v4276 = vld [vmem:[%s10 + $0x36c] sm:$0xff]
    %v4277 = vld [vmem:[%s10 + $0x374] sm:$0xf]
    %v4278 = vld [vmem:[%s10 + $0x378] sm:$0xff]
    %v4279 = vld [vmem:[%s10 + $0x380] sm:$0xf]
    %v4280 = vld [vmem:[%s10 + $0x384] sm:$0xff]
    %v4281 = vld [vmem:[%s10 + $0x38c] sm:$0xf]
    %v4282 = vld [vmem:[%s10 + $0x390] sm:$0xff]
    %v4283 = vld [vmem:[%s10 + $0x398] sm:$0xf]
    %v4284 = vld [vmem:[%s10 + $0x39c] sm:$0xff]
    %v4285 = vld [vmem:[%s10 + $0x3a4] sm:$0xf]
    %v4286 = vld [vmem:[%s10 + $0x3a8] sm:$0xff]
    %v4287 = vld [vmem:[%s10 + $0x3b0] sm:$0xf]
    %v4288 = vld [vmem:[%s10 + $0x3b4] sm:$0xff]
    %v4289 = vld [vmem:[%s10 + $0x3bc] sm:$0xf]
    %v4290 = vld [vmem:[%s10 + $0x3c0] sm:$0xff]
    %v4291 = vld [vmem:[%s10 + $0x3c8] sm:$0xf]
    %v4292 = vld [vmem:[%s10 + $0x3cc] sm:$0xff]
    %v4293 = vld [vmem:[%s10 + $0x3d4] sm:$0xf]
    %v4294 = vld [vmem:[%s10 + $0x3d8] sm:$0xff]
    %v4295 = vld [vmem:[%s10 + $0x3e0] sm:$0xf]
    %v4296 = vld [vmem:[%s10 + $0x3e4] sm:$0xff]
    %v4297 = vld [vmem:[%s10 + $0x3ec] sm:$0xf]
    %v4298 = vld [vmem:[%s10 + $0x3f0] sm:$0xff]
    %v4299 = vld [vmem:[%s10 + $0x3f8] sm:$0xf]
    %v4300 = vld [vmem:[%s10 + $0x3fc] sm:$0xff]
    %v4301 = vld [vmem:[%s10 + $0x404] sm:$0xf]
    %v4302 = vld [vmem:[%s10 + $0x408] sm:$0xff]
    %v4303 = vld [vmem:[%s10 + $0x410] sm:$0xf]
    %v4304 = vld [vmem:[%s10 + $0x414] sm:$0xff]
    %v4305 = vld [vmem:[%s10 + $0x41c] sm:$0xf]
    %v4306 = vld [vmem:[%s10 + $0x420] sm:$0xff]
    %v4307 = vld [vmem:[%s10 + $0x428] sm:$0xf]
    %v4308 = vld [vmem:[%s10 + $0x42c] sm:$0xff]
    %v4309 = vld [vmem:[%s10 + $0x434] sm:$0xf]
    %v4310 = vld [vmem:[%s10 + $0x438] sm:$0xff]
    %v4311 = vld [vmem:[%s10 + $0x440] sm:$0xf]
    %v4312 = vld [vmem:[%s10 + $0x444] sm:$0xff]
    %v4313 = vld [vmem:[%s10 + $0x44c] sm:$0xf]
    %v4314 = vld [vmem:[%s10 + $0x450] sm:$0xff]
    %v4315 = vld [vmem:[%s10 + $0x458] sm:$0xf]
    %v4316 = vld [vmem:[%s10 + $0x45c] sm:$0xff]
    %v4317 = vld [vmem:[%s10 + $0x464] sm:$0xf]
    %v4318 = vld [vmem:[%s10 + $0x468] sm:$0xff]
    %v4319 = vld [vmem:[%s10 + $0x470] sm:$0xf]
    %v4320 = vld [vmem:[%s10 + $0x474] sm:$0xff]
    %v4321 = vld [vmem:[%s10 + $0x47c] sm:$0xf]
    %v4322 = vld [vmem:[%s10 + $0x480] sm:$0xff]
    %v4323 = vld [vmem:[%s10 + $0x488] sm:$0xf]
    %v4324 = vld [vmem:[%s10 + $0x48c] sm:$0xff]
    %v4325 = vld [vmem:[%s10 + $0x494] sm:$0xf]
    %v4326 = vld [vmem:[%s10 + $0x498] sm:$0xff]
    %v4327 = vld [vmem:[%s10 + $0x4a0] sm:$0xf]
    %v4328 = vld [vmem:[%s10 + $0x4a4] sm:$0xff]
    %v4329 = vld [vmem:[%s10 + $0x4ac] sm:$0xf]
    %v4330 = vld [vmem:[%s10 + $0x4b0] sm:$0xff]
    %v4331 = vld [vmem:[%s10 + $0x4b8] sm:$0xf]
    %v4332 = vld [vmem:[%s10 + $0x4bc] sm:$0xff]
    %v4333 = vld [vmem:[%s10 + $0x4c4] sm:$0xf]
    %v4334 = vld [vmem:[%s10 + $0x4c8] sm:$0xff]
    %v4335 = vld [vmem:[%s10 + $0x4d0] sm:$0xf]
    %v4336 = vld [vmem:[%s10 + $0x4d4] sm:$0xff]
    %v4337 = vld [vmem:[%s10 + $0x4dc] sm:$0xf]
    %v4338 = vld [vmem:[%s10 + $0x4e0] sm:$0xff]
    %v4339 = vld [vmem:[%s10 + $0x4e8] sm:$0xf]
    %v4340 = vld [vmem:[%s10 + $0x4ec] sm:$0xff]
    %v4341 = vld [vmem:[%s10 + $0x4f4] sm:$0xf]
    %v4342 = vld [vmem:[%s10 + $0x4f8] sm:$0xff]
    %v4343 = vld [vmem:[%s10 + $0x500] sm:$0xf]
    %v4344 = vld [vmem:[%s10 + $0x504] sm:$0xff]
    %v4345 = vld [vmem:[%s10 + $0x50c] sm:$0xf]
    %v4346 = vld [vmem:[%s10 + $0x510] sm:$0xff]
    %v4347 = vld [vmem:[%s10 + $0x518] sm:$0xf]
    %v4348 = vld [vmem:[%s10 + $0x51c] sm:$0xff]
    %v4349 = vld [vmem:[%s10 + $0x524] sm:$0xf]
    %v4350 = vld [vmem:[%s10 + $0x528] sm:$0xff]
    %v4351 = vld [vmem:[%s10 + $0x530] sm:$0xf]
    %v4352 = vld [vmem:[%s10 + $0x534] sm:$0xff]
    %v4353 = vld [vmem:[%s10 + $0x53c] sm:$0xf]
    %v4354 = vld [vmem:[%s10 + $0x540] sm:$0xff]
    %v4355 = vld [vmem:[%s10 + $0x548] sm:$0xf]
    %v4356 = vld [vmem:[%s10 + $0x54c] sm:$0xff]
    %v4357 = vld [vmem:[%s10 + $0x554] sm:$0xf]
    %v4358 = vld [vmem:[%s10 + $0x558] sm:$0xff]
    %v4359 = vld [vmem:[%s10 + $0x560] sm:$0xf]
    %v4360 = vld [vmem:[%s10 + $0x564] sm:$0xff]
    %v4361 = vld [vmem:[%s10 + $0x56c] sm:$0xf]
    %v4362 = vld [vmem:[%s10 + $0x570] sm:$0xff]
    %v4363 = vld [vmem:[%s10 + $0x578] sm:$0xf]
    %v4364 = vld [vmem:[%s10 + $0x57c] sm:$0xff]
    %v4365 = vld [vmem:[%s10 + $0x584] sm:$0xf]
    %v4366 = vld [vmem:[%s10 + $0x588] sm:$0xff]
    %v4367 = vld [vmem:[%s10 + $0x590] sm:$0xf]
    %v4368 = vld [vmem:[%s10 + $0x594] sm:$0xff]
    %v4369 = vld [vmem:[%s10 + $0x59c] sm:$0xf]
    %v4370 = vld [vmem:[%s10 + $0x5a0] sm:$0xff]
    %v4371 = vld [vmem:[%s10 + $0x5a8] sm:$0xf]
    %v4372 = vld [vmem:[%s10 + $0x5ac] sm:$0xff]
    %v4373 = vld [vmem:[%s10 + $0x5b4] sm:$0xf]
    %v4374 = vld [vmem:[%s10 + $0x5b8] sm:$0xff]
    %v4375 = vld [vmem:[%s10 + $0x5c0] sm:$0xf]
    %v4376 = vld [vmem:[%s10 + $0x5c4] sm:$0xff]
    %v4377 = vld [vmem:[%s10 + $0x5cc] sm:$0xf]
    %v4378 = vld [vmem:[%s10 + $0x5d0] sm:$0xff]
    %v4379 = vld [vmem:[%s10 + $0x5d8] sm:$0xf]
    %v4380 = vld [vmem:[%s10 + $0x5dc] sm:$0xff]
    %v4381 = vld [vmem:[%s10 + $0x5e4] sm:$0xf]
    %v4382 = vld [vmem:[%s10 + $0x5e8] sm:$0xff]
    %v4383 = vld [vmem:[%s10 + $0x5f0] sm:$0xf]
    %v4384 = vld [vmem:[%s10 + $0x5f4] sm:$0xff]
    %v4385 = vld [vmem:[%s10 + $0x5fc] sm:$0xf]
    %v4386 = vld [vmem:[%s10 + $0x600] sm:$0xff]
    %v4387 = vld [vmem:[%s10 + $0x608] sm:$0xf]
    %v4388 = vld [vmem:[%s10 + $0x60c] sm:$0xff]
    %v4389 = vld [vmem:[%s10 + $0x614] sm:$0xf]
    %v4390 = vld [vmem:[%s10 + $0x618] sm:$0xff]
    %v4391 = vld [vmem:[%s10 + $0x620] sm:$0xf]
    %v4392 = vld [vmem:[%s10 + $0x624] sm:$0xff]
    %v4393 = vld [vmem:[%s10 + $0x62c] sm:$0xf]
    %v4394 = vld [vmem:[%s10 + $0x630] sm:$0xff]
    %v4395 = vld [vmem:[%s10 + $0x638] sm:$0xf]
    %v4396 = vld [vmem:[%s10 + $0x63c] sm:$0xff]
    %v4397 = vld [vmem:[%s10 + $0x644] sm:$0xf]
    %v4398 = vld [vmem:[%s10 + $0x648] sm:$0xff]
    %v4399 = vld [vmem:[%s10 + $0x650] sm:$0xf]
    %v4400 = vld [vmem:[%s10 + $0x654] sm:$0xff]
    %v4401 = vld [vmem:[%s10 + $0x65c] sm:$0xf]
    %v4402 = vld [vmem:[%s10 + $0x660] sm:$0xff]
    %v4403 = vld [vmem:[%s10 + $0x668] sm:$0xf]
    %v4404 = vld [vmem:[%s10 + $0x66c] sm:$0xff]
    %v4405 = vld [vmem:[%s10 + $0x674] sm:$0xf]
    %v4406 = vld [vmem:[%s10 + $0x678] sm:$0xff]
    %v4407 = vld [vmem:[%s10 + $0x680] sm:$0xf]
    %v4408 = vld [vmem:[%s10 + $0x684] sm:$0xff]
    %v4409 = vld [vmem:[%s10 + $0x68c] sm:$0xf]
    %v4410 = vld [vmem:[%s10 + $0x690] sm:$0xff]
    %v4411 = vld [vmem:[%s10 + $0x698] sm:$0xf]
    %v4412 = vld [vmem:[%s10 + $0x69c] sm:$0xff]
    %v4413 = vld [vmem:[%s10 + $0x6a4] sm:$0xf]
    %v4414 = vld [vmem:[%s10 + $0x6a8] sm:$0xff]
    %v4415 = vld [vmem:[%s10 + $0x6b0] sm:$0xf]
    %v4416 = vld [vmem:[%s10 + $0x6b4] sm:$0xff]
    %v4417 = vld [vmem:[%s10 + $0x6bc] sm:$0xf]
    %v4418 = vunpack.c.l.bf16 %v4130
    %v4419 = vunpack.c.h.bf16 %v4130
    %v4420 = vunpack.c.l.bf16 %v4131
    %v4421 = vunpack.c.l.bf16 %v4132
    %v4422 = vunpack.c.h.bf16 %v4132
    %v4423 = vunpack.c.l.bf16 %v4133
    %v4424 = vunpack.c.l.bf16 %v4134
    %v4425 = vunpack.c.h.bf16 %v4134
    %v4426 = vunpack.c.l.bf16 %v4135
    %v4427 = vunpack.c.l.bf16 %v4136
    %v4428 = vunpack.c.h.bf16 %v4136
    %v4429 = vunpack.c.l.bf16 %v4137
    %v4430 = vunpack.c.l.bf16 %v4138
    %v4431 = vunpack.c.h.bf16 %v4138
    %v4432 = vunpack.c.l.bf16 %v4139
    %v4433 = vunpack.c.l.bf16 %v4140
    %v4434 = vunpack.c.h.bf16 %v4140
    %v4435 = vunpack.c.l.bf16 %v4141
    %v4436 = vunpack.c.l.bf16 %v4142
    %v4437 = vunpack.c.h.bf16 %v4142
    %v4438 = vunpack.c.l.bf16 %v4143
    %v4439 = vunpack.c.l.bf16 %v4144
    %v4440 = vunpack.c.h.bf16 %v4144
    %v4441 = vunpack.c.l.bf16 %v4145
    %v4442 = vunpack.c.l.bf16 %v4146
    %v4443 = vunpack.c.h.bf16 %v4146
    %v4444 = vunpack.c.l.bf16 %v4147
    %v4445 = vunpack.c.l.bf16 %v4148
    %v4446 = vunpack.c.h.bf16 %v4148
    %v4447 = vunpack.c.l.bf16 %v4149
    %v4448 = vunpack.c.l.bf16 %v4150
    %v4449 = vunpack.c.h.bf16 %v4150
    %v4450 = vunpack.c.l.bf16 %v4151
    %v4451 = vunpack.c.l.bf16 %v4152
    %v4452 = vunpack.c.h.bf16 %v4152
    %v4453 = vunpack.c.l.bf16 %v4153
    %v4454 = vunpack.c.l.bf16 %v4154
    %v4455 = vunpack.c.h.bf16 %v4154
    %v4456 = vunpack.c.l.bf16 %v4155
    %v4457 = vunpack.c.l.bf16 %v4156
    %v4458 = vunpack.c.h.bf16 %v4156
    %v4459 = vunpack.c.l.bf16 %v4157
    %v4460 = vunpack.c.l.bf16 %v4158
    %v4461 = vunpack.c.h.bf16 %v4158
    %v4462 = vunpack.c.l.bf16 %v4159
    %v4463 = vunpack.c.l.bf16 %v4160
    %v4464 = vunpack.c.h.bf16 %v4160
    %v4465 = vunpack.c.l.bf16 %v4161
    %v4466 = vunpack.c.l.bf16 %v4162
    %v4467 = vunpack.c.h.bf16 %v4162
    %v4468 = vunpack.c.l.bf16 %v4163
    %v4469 = vunpack.c.l.bf16 %v4164
    %v4470 = vunpack.c.h.bf16 %v4164
    %v4471 = vunpack.c.l.bf16 %v4165
    %v4472 = vunpack.c.l.bf16 %v4166
    %v4473 = vunpack.c.h.bf16 %v4166
    %v4474 = vunpack.c.l.bf16 %v4167
    %v4475 = vunpack.c.l.bf16 %v4168
    %v4476 = vunpack.c.h.bf16 %v4168
    %v4477 = vunpack.c.l.bf16 %v4169
    %v4478 = vunpack.c.l.bf16 %v4170
    %v4479 = vunpack.c.h.bf16 %v4170
    %v4480 = vunpack.c.l.bf16 %v4171
    %v4481 = vunpack.c.l.bf16 %v4172
    %v4482 = vunpack.c.h.bf16 %v4172
    %v4483 = vunpack.c.l.bf16 %v4173
    %v4484 = vunpack.c.l.bf16 %v4174
    %v4485 = vunpack.c.h.bf16 %v4174
    %v4486 = vunpack.c.l.bf16 %v4175
    %v4487 = vunpack.c.l.bf16 %v4176
    %v4488 = vunpack.c.h.bf16 %v4176
    %v4489 = vunpack.c.l.bf16 %v4177
    %v4490 = vunpack.c.l.bf16 %v4178
    %v4491 = vunpack.c.h.bf16 %v4178
    %v4492 = vunpack.c.l.bf16 %v4179
    %v4493 = vunpack.c.l.bf16 %v4180
    %v4494 = vunpack.c.h.bf16 %v4180
    %v4495 = vunpack.c.l.bf16 %v4181
    %v4496 = vunpack.c.l.bf16 %v4182
    %v4497 = vunpack.c.h.bf16 %v4182
    %v4498 = vunpack.c.l.bf16 %v4183
    %v4499 = vunpack.c.l.bf16 %v4184
    %v4500 = vunpack.c.h.bf16 %v4184
    %v4501 = vunpack.c.l.bf16 %v4185
    %v4502 = vunpack.c.l.bf16 %v4186
    %v4503 = vunpack.c.h.bf16 %v4186
    %v4504 = vunpack.c.l.bf16 %v4187
    %v4505 = vunpack.c.l.bf16 %v4188
    %v4506 = vunpack.c.h.bf16 %v4188
    %v4507 = vunpack.c.l.bf16 %v4189
    %v4508 = vunpack.c.l.bf16 %v4190
    %v4509 = vunpack.c.h.bf16 %v4190
    %v4510 = vunpack.c.l.bf16 %v4191
    %v4511 = vunpack.c.l.bf16 %v4192
    %v4512 = vunpack.c.h.bf16 %v4192
    %v4513 = vunpack.c.l.bf16 %v4193
    %v4514 = vunpack.c.l.bf16 %v4194
    %v4515 = vunpack.c.h.bf16 %v4194
    %v4516 = vunpack.c.l.bf16 %v4195
    %v4517 = vunpack.c.l.bf16 %v4196
    %v4518 = vunpack.c.h.bf16 %v4196
    %v4519 = vunpack.c.l.bf16 %v4197
    %v4520 = vunpack.c.l.bf16 %v4198
    %v4521 = vunpack.c.h.bf16 %v4198
    %v4522 = vunpack.c.l.bf16 %v4199
    %v4523 = vunpack.c.l.bf16 %v4200
    %v4524 = vunpack.c.h.bf16 %v4200
    %v4525 = vunpack.c.l.bf16 %v4201
    %v4526 = vunpack.c.l.bf16 %v4202
    %v4527 = vunpack.c.h.bf16 %v4202
    %v4528 = vunpack.c.l.bf16 %v4203
    %v4529 = vunpack.c.l.bf16 %v4204
    %v4530 = vunpack.c.h.bf16 %v4204
    %v4531 = vunpack.c.l.bf16 %v4205
    %v4532 = vunpack.c.l.bf16 %v4206
    %v4533 = vunpack.c.h.bf16 %v4206
    %v4534 = vunpack.c.l.bf16 %v4207
    %v4535 = vunpack.c.l.bf16 %v4208
    %v4536 = vunpack.c.h.bf16 %v4208
    %v4537 = vunpack.c.l.bf16 %v4209
    %v4538 = vunpack.c.l.bf16 %v4210
    %v4539 = vunpack.c.h.bf16 %v4210
    %v4540 = vunpack.c.l.bf16 %v4211
    %v4541 = vunpack.c.l.bf16 %v4212
    %v4542 = vunpack.c.h.bf16 %v4212
    %v4543 = vunpack.c.l.bf16 %v4213
    %v4544 = vunpack.c.l.bf16 %v4214
    %v4545 = vunpack.c.h.bf16 %v4214
    %v4546 = vunpack.c.l.bf16 %v4215
    %v4547 = vunpack.c.l.bf16 %v4216
    %v4548 = vunpack.c.h.bf16 %v4216
    %v4549 = vunpack.c.l.bf16 %v4217
    %v4550 = vunpack.c.l.bf16 %v4218
    %v4551 = vunpack.c.h.bf16 %v4218
    %v4552 = vunpack.c.l.bf16 %v4219
    %v4553 = vunpack.c.l.bf16 %v4220
    %v4554 = vunpack.c.h.bf16 %v4220
    %v4555 = vunpack.c.l.bf16 %v4221
    %v4556 = vunpack.c.l.bf16 %v4222
    %v4557 = vunpack.c.h.bf16 %v4222
    %v4558 = vunpack.c.l.bf16 %v4223
    %v4559 = vunpack.c.l.bf16 %v4224
    %v4560 = vunpack.c.h.bf16 %v4224
    %v4561 = vunpack.c.l.bf16 %v4225
    %v4562 = vunpack.c.l.bf16 %v4226
    %v4563 = vunpack.c.h.bf16 %v4226
    %v4564 = vunpack.c.l.bf16 %v4227
    %v4565 = vunpack.c.l.bf16 %v4228
    %v4566 = vunpack.c.h.bf16 %v4228
    %v4567 = vunpack.c.l.bf16 %v4229
    %v4568 = vunpack.c.l.bf16 %v4230
    %v4569 = vunpack.c.h.bf16 %v4230
    %v4570 = vunpack.c.l.bf16 %v4231
    %v4571 = vunpack.c.l.bf16 %v4232
    %v4572 = vunpack.c.h.bf16 %v4232
    %v4573 = vunpack.c.l.bf16 %v4233
    %v4574 = vunpack.c.l.bf16 %v4234
    %v4575 = vunpack.c.h.bf16 %v4234
    %v4576 = vunpack.c.l.bf16 %v4235
    %v4577 = vunpack.c.l.bf16 %v4236
    %v4578 = vunpack.c.h.bf16 %v4236
    %v4579 = vunpack.c.l.bf16 %v4237
    %v4580 = vunpack.c.l.bf16 %v4238
    %v4581 = vunpack.c.h.bf16 %v4238
    %v4582 = vunpack.c.l.bf16 %v4239
    %v4583 = vunpack.c.l.bf16 %v4240
    %v4584 = vunpack.c.h.bf16 %v4240
    %v4585 = vunpack.c.l.bf16 %v4241
    %v4586 = vunpack.c.l.bf16 %v4242
    %v4587 = vunpack.c.h.bf16 %v4242
    %v4588 = vunpack.c.l.bf16 %v4243
    %v4589 = vunpack.c.l.bf16 %v4244
    %v4590 = vunpack.c.h.bf16 %v4244
    %v4591 = vunpack.c.l.bf16 %v4245
    %v4592 = vunpack.c.l.bf16 %v4246
    %v4593 = vunpack.c.h.bf16 %v4246
    %v4594 = vunpack.c.l.bf16 %v4247
    %v4595 = vunpack.c.l.bf16 %v4248
    %v4596 = vunpack.c.h.bf16 %v4248
    %v4597 = vunpack.c.l.bf16 %v4249
    %v4598 = vunpack.c.l.bf16 %v4250
    %v4599 = vunpack.c.h.bf16 %v4250
    %v4600 = vunpack.c.l.bf16 %v4251
    %v4601 = vunpack.c.l.bf16 %v4252
    %v4602 = vunpack.c.h.bf16 %v4252
    %v4603 = vunpack.c.l.bf16 %v4253
    %v4604 = vunpack.c.l.bf16 %v4254
    %v4605 = vunpack.c.h.bf16 %v4254
    %v4606 = vunpack.c.l.bf16 %v4255
    %v4607 = vunpack.c.l.bf16 %v4256
    %v4608 = vunpack.c.h.bf16 %v4256
    %v4609 = vunpack.c.l.bf16 %v4257
    %v4610 = vunpack.c.l.bf16 %v4258
    %v4611 = vunpack.c.h.bf16 %v4258
    %v4612 = vunpack.c.l.bf16 %v4259
    %v4613 = vunpack.c.l.bf16 %v4260
    %v4614 = vunpack.c.h.bf16 %v4260
    %v4615 = vunpack.c.l.bf16 %v4261
    %v4616 = vunpack.c.l.bf16 %v4262
    %v4617 = vunpack.c.h.bf16 %v4262
    %v4618 = vunpack.c.l.bf16 %v4263
    %v4619 = vunpack.c.l.bf16 %v4264
    %v4620 = vunpack.c.h.bf16 %v4264
    %v4621 = vunpack.c.l.bf16 %v4265
    %v4622 = vunpack.c.l.bf16 %v4266
    %v4623 = vunpack.c.h.bf16 %v4266
    %v4624 = vunpack.c.l.bf16 %v4267
    %v4625 = vunpack.c.l.bf16 %v4268
    %v4626 = vunpack.c.h.bf16 %v4268
    %v4627 = vunpack.c.l.bf16 %v4269
    %v4628 = vunpack.c.l.bf16 %v4270
    %v4629 = vunpack.c.h.bf16 %v4270
    %v4630 = vunpack.c.l.bf16 %v4271
    %v4631 = vunpack.c.l.bf16 %v4272
    %v4632 = vunpack.c.h.bf16 %v4272
    %v4633 = vunpack.c.l.bf16 %v4273
    %v4634 = vunpack.c.l.bf16 %v4274
    %v4635 = vunpack.c.h.bf16 %v4274
    %v4636 = vunpack.c.l.bf16 %v4275
    %v4637 = vunpack.c.l.bf16 %v4276
    %v4638 = vunpack.c.h.bf16 %v4276
    %v4639 = vunpack.c.l.bf16 %v4277
    %v4640 = vunpack.c.l.bf16 %v4278
    %v4641 = vunpack.c.h.bf16 %v4278
    %v4642 = vunpack.c.l.bf16 %v4279
    %v4643 = vunpack.c.l.bf16 %v4280
    %v4644 = vunpack.c.h.bf16 %v4280
    %v4645 = vunpack.c.l.bf16 %v4281
    %v4646 = vunpack.c.l.bf16 %v4282
    %v4647 = vunpack.c.h.bf16 %v4282
    %v4648 = vunpack.c.l.bf16 %v4283
    %v4649 = vunpack.c.l.bf16 %v4284
    %v4650 = vunpack.c.h.bf16 %v4284
    %v4651 = vunpack.c.l.bf16 %v4285
    %v4652 = vunpack.c.l.bf16 %v4286
    %v4653 = vunpack.c.h.bf16 %v4286
    %v4654 = vunpack.c.l.bf16 %v4287
    %v4655 = vunpack.c.l.bf16 %v4288
    %v4656 = vunpack.c.h.bf16 %v4288
    %v4657 = vunpack.c.l.bf16 %v4289
    %v4658 = vunpack.c.l.bf16 %v4290
    %v4659 = vunpack.c.h.bf16 %v4290
    %v4660 = vunpack.c.l.bf16 %v4291
    %v4661 = vunpack.c.l.bf16 %v4292
    %v4662 = vunpack.c.h.bf16 %v4292
    %v4663 = vunpack.c.l.bf16 %v4293
    %v4664 = vunpack.c.l.bf16 %v4294
    %v4665 = vunpack.c.h.bf16 %v4294
    %v4666 = vunpack.c.l.bf16 %v4295
    %v4667 = vunpack.c.l.bf16 %v4296
    %v4668 = vunpack.c.h.bf16 %v4296
    %v4669 = vunpack.c.l.bf16 %v4297
    %v4670 = vunpack.c.l.bf16 %v4298
    %v4671 = vunpack.c.h.bf16 %v4298
    %v4672 = vunpack.c.l.bf16 %v4299
    %v4673 = vunpack.c.l.bf16 %v4300
    %v4674 = vunpack.c.h.bf16 %v4300
    %v4675 = vunpack.c.l.bf16 %v4301
    %v4676 = vunpack.c.l.bf16 %v4302
    %v4677 = vunpack.c.h.bf16 %v4302
    %v4678 = vunpack.c.l.bf16 %v4303
    %v4679 = vunpack.c.l.bf16 %v4304
    %v4680 = vunpack.c.h.bf16 %v4304
    %v4681 = vunpack.c.l.bf16 %v4305
    %v4682 = vunpack.c.l.bf16 %v4306
    %v4683 = vunpack.c.h.bf16 %v4306
    %v4684 = vunpack.c.l.bf16 %v4307
    %v4685 = vunpack.c.l.bf16 %v4308
    %v4686 = vunpack.c.h.bf16 %v4308
    %v4687 = vunpack.c.l.bf16 %v4309
    %v4688 = vunpack.c.l.bf16 %v4310
    %v4689 = vunpack.c.h.bf16 %v4310
    %v4690 = vunpack.c.l.bf16 %v4311
    %v4691 = vunpack.c.l.bf16 %v4312
    %v4692 = vunpack.c.h.bf16 %v4312
    %v4693 = vunpack.c.l.bf16 %v4313
    %v4694 = vunpack.c.l.bf16 %v4314
    %v4695 = vunpack.c.h.bf16 %v4314
    %v4696 = vunpack.c.l.bf16 %v4315
    %v4697 = vunpack.c.l.bf16 %v4316
    %v4698 = vunpack.c.h.bf16 %v4316
    %v4699 = vunpack.c.l.bf16 %v4317
    %v4700 = vunpack.c.l.bf16 %v4318
    %v4701 = vunpack.c.h.bf16 %v4318
    %v4702 = vunpack.c.l.bf16 %v4319
    %v4703 = vunpack.c.l.bf16 %v4320
    %v4704 = vunpack.c.h.bf16 %v4320
    %v4705 = vunpack.c.l.bf16 %v4321
    %v4706 = vunpack.c.l.bf16 %v4322
    %v4707 = vunpack.c.h.bf16 %v4322
    %v4708 = vunpack.c.l.bf16 %v4323
    %v4709 = vunpack.c.l.bf16 %v4324
    %v4710 = vunpack.c.h.bf16 %v4324
    %v4711 = vunpack.c.l.bf16 %v4325
    %v4712 = vunpack.c.l.bf16 %v4326
    %v4713 = vunpack.c.h.bf16 %v4326
    %v4714 = vunpack.c.l.bf16 %v4327
    %v4715 = vunpack.c.l.bf16 %v4328
    %v4716 = vunpack.c.h.bf16 %v4328
    %v4717 = vunpack.c.l.bf16 %v4329
    %v4718 = vunpack.c.l.bf16 %v4330
    %v4719 = vunpack.c.h.bf16 %v4330
    %v4720 = vunpack.c.l.bf16 %v4331
    %v4721 = vunpack.c.l.bf16 %v4332
    %v4722 = vunpack.c.h.bf16 %v4332
    %v4723 = vunpack.c.l.bf16 %v4333
    %v4724 = vunpack.c.l.bf16 %v4334
    %v4725 = vunpack.c.h.bf16 %v4334
    %v4726 = vunpack.c.l.bf16 %v4335
    %v4727 = vunpack.c.l.bf16 %v4336
    %v4728 = vunpack.c.h.bf16 %v4336
    %v4729 = vunpack.c.l.bf16 %v4337
    %v4730 = vunpack.c.l.bf16 %v4338
    %v4731 = vunpack.c.h.bf16 %v4338
    %v4732 = vunpack.c.l.bf16 %v4339
    %v4733 = vunpack.c.l.bf16 %v4340
    %v4734 = vunpack.c.h.bf16 %v4340
    %v4735 = vunpack.c.l.bf16 %v4341
    %v4736 = vunpack.c.l.bf16 %v4342
    %v4737 = vunpack.c.h.bf16 %v4342
    %v4738 = vunpack.c.l.bf16 %v4343
    %v4739 = vunpack.c.l.bf16 %v4344
    %v4740 = vunpack.c.h.bf16 %v4344
    %v4741 = vunpack.c.l.bf16 %v4345
    %v4742 = vunpack.c.l.bf16 %v4346
    %v4743 = vunpack.c.h.bf16 %v4346
    %v4744 = vunpack.c.l.bf16 %v4347
    %v4745 = vunpack.c.l.bf16 %v4348
    %v4746 = vunpack.c.h.bf16 %v4348
    %v4747 = vunpack.c.l.bf16 %v4349
    %v4748 = vunpack.c.l.bf16 %v4350
    %v4749 = vunpack.c.h.bf16 %v4350
    %v4750 = vunpack.c.l.bf16 %v4351
    %v4751 = vunpack.c.l.bf16 %v4352
    %v4752 = vunpack.c.h.bf16 %v4352
    %v4753 = vunpack.c.l.bf16 %v4353
    %v4754 = vunpack.c.l.bf16 %v4354
    %v4755 = vunpack.c.h.bf16 %v4354
    %v4756 = vunpack.c.l.bf16 %v4355
    %v4757 = vunpack.c.l.bf16 %v4356
    %v4758 = vunpack.c.h.bf16 %v4356
    %v4759 = vunpack.c.l.bf16 %v4357
    %v4760 = vunpack.c.l.bf16 %v4358
    %v4761 = vunpack.c.h.bf16 %v4358
    %v4762 = vunpack.c.l.bf16 %v4359
    %v4763 = vunpack.c.l.bf16 %v4360
    %v4764 = vunpack.c.h.bf16 %v4360
    %v4765 = vunpack.c.l.bf16 %v4361
    %v4766 = vunpack.c.l.bf16 %v4362
    %v4767 = vunpack.c.h.bf16 %v4362
    %v4768 = vunpack.c.l.bf16 %v4363
    %v4769 = vunpack.c.l.bf16 %v4364
    %v4770 = vunpack.c.h.bf16 %v4364
    %v4771 = vunpack.c.l.bf16 %v4365
    %v4772 = vunpack.c.l.bf16 %v4366
    %v4773 = vunpack.c.h.bf16 %v4366
    %v4774 = vunpack.c.l.bf16 %v4367
    %v4775 = vunpack.c.l.bf16 %v4368
    %v4776 = vunpack.c.h.bf16 %v4368
    %v4777 = vunpack.c.l.bf16 %v4369
    %v4778 = vunpack.c.l.bf16 %v4370
    %v4779 = vunpack.c.h.bf16 %v4370
    %v4780 = vunpack.c.l.bf16 %v4371
    %v4781 = vunpack.c.l.bf16 %v4372
    %v4782 = vunpack.c.h.bf16 %v4372
    %v4783 = vunpack.c.l.bf16 %v4373
    %v4784 = vunpack.c.l.bf16 %v4374
    %v4785 = vunpack.c.h.bf16 %v4374
    %v4786 = vunpack.c.l.bf16 %v4375
    %v4787 = vunpack.c.l.bf16 %v4376
    %v4788 = vunpack.c.h.bf16 %v4376
    %v4789 = vunpack.c.l.bf16 %v4377
    %v4790 = vunpack.c.l.bf16 %v4378
    %v4791 = vunpack.c.h.bf16 %v4378
    %v4792 = vunpack.c.l.bf16 %v4379
    %v4793 = vunpack.c.l.bf16 %v4380
    %v4794 = vunpack.c.h.bf16 %v4380
    %v4795 = vunpack.c.l.bf16 %v4381
    %v4796 = vunpack.c.l.bf16 %v4382
    %v4797 = vunpack.c.h.bf16 %v4382
    %v4798 = vunpack.c.l.bf16 %v4383
    %v4799 = vunpack.c.l.bf16 %v4384
    %v4800 = vunpack.c.h.bf16 %v4384
    %v4801 = vunpack.c.l.bf16 %v4385
    %v4802 = vunpack.c.l.bf16 %v4386
    %v4803 = vunpack.c.h.bf16 %v4386
    %v4804 = vunpack.c.l.bf16 %v4387
    %v4805 = vunpack.c.l.bf16 %v4388
    %v4806 = vunpack.c.h.bf16 %v4388
    %v4807 = vunpack.c.l.bf16 %v4389
    %v4808 = vunpack.c.l.bf16 %v4390
    %v4809 = vunpack.c.h.bf16 %v4390
    %v4810 = vunpack.c.l.bf16 %v4391
    %v4811 = vunpack.c.l.bf16 %v4392
    %v4812 = vunpack.c.h.bf16 %v4392
    %v4813 = vunpack.c.l.bf16 %v4393
    %v4814 = vunpack.c.l.bf16 %v4394
    %v4815 = vunpack.c.h.bf16 %v4394
    %v4816 = vunpack.c.l.bf16 %v4395
    %v4817 = vunpack.c.l.bf16 %v4396
    %v4818 = vunpack.c.h.bf16 %v4396
    %v4819 = vunpack.c.l.bf16 %v4397
    %v4820 = vunpack.c.l.bf16 %v4398
    %v4821 = vunpack.c.h.bf16 %v4398
    %v4822 = vunpack.c.l.bf16 %v4399
    %v4823 = vunpack.c.l.bf16 %v4400
    %v4824 = vunpack.c.h.bf16 %v4400
    %v4825 = vunpack.c.l.bf16 %v4401
    %v4826 = vunpack.c.l.bf16 %v4402
    %v4827 = vunpack.c.h.bf16 %v4402
    %v4828 = vunpack.c.l.bf16 %v4403
    %v4829 = vunpack.c.l.bf16 %v4404
    %v4830 = vunpack.c.h.bf16 %v4404
    %v4831 = vunpack.c.l.bf16 %v4405
    %v4832 = vunpack.c.l.bf16 %v4406
    %v4833 = vunpack.c.h.bf16 %v4406
    %v4834 = vunpack.c.l.bf16 %v4407
    %v4835 = vunpack.c.l.bf16 %v4408
    %v4836 = vunpack.c.h.bf16 %v4408
    %v4837 = vunpack.c.l.bf16 %v4409
    %v4838 = vunpack.c.l.bf16 %v4410
    %v4839 = vunpack.c.h.bf16 %v4410
    %v4840 = vunpack.c.l.bf16 %v4411
    %v4841 = vunpack.c.l.bf16 %v4412
    %v4842 = vunpack.c.h.bf16 %v4412
    %v4843 = vunpack.c.l.bf16 %v4413
    %v4844 = vunpack.c.l.bf16 %v4414
    %v4845 = vunpack.c.h.bf16 %v4414
    %v4846 = vunpack.c.l.bf16 %v4415
    %v4847 = vunpack.c.l.bf16 %v4416
    %v4848 = vunpack.c.h.bf16 %v4416
    %v4849 = vunpack.c.l.bf16 %v4417
    %v4850 = vld [vmem:[#allocation10] sm:$0x7]
    %v4852 = vlaneseq
    %v4853 = vshrl.u32 %v4852, 7
    %v4854 = vsub.s32 0, %v4853
    %v4855 = vrot.slane %v4850, %v4854
    %v4856 = vlaneseq
    %v4857 = vshrl.u32 %v4856, 7
    %v4858 = vsub.s32 1, %v4857
    %v4859 = vrot.slane %v4850, %v4858
    %v4860 = vlaneseq
    %v4861 = vshrl.u32 %v4860, 7
    %v4862 = vsub.s32 2, %v4861
    %v4863 = vrot.slane %v4850, %v4862
    %4867 = vmatprep.subr.mxu0 %v4419
    %4868 = vmatpush1.msra.mxu0 %v4418
    %4869 = vmatprep.subr.mxu0 %v4422
    %4870 = vmatpush1.msra.mxu0 %v4421
    %4871 = vmatprep.subr.mxu0 %v4425
    %4872 = vmatpush1.msra.mxu0 %v4424
    %4873 = vmatprep.subr.mxu0 %v4428
    %4874 = vmatpush1.msra.mxu0 %v4427
    %4875 = vmatprep.subr.mxu0 %v4431
    %4876 = vmatpush1.msra.mxu0 %v4430
    %4877 = vmatprep.subr.mxu0 %v4434
    %4878 = vmatpush1.msra.mxu0 %v4433
    %4879 = vmatprep.subr.mxu0 %v4437
    %4880 = vmatpush1.msra.mxu0 %v4436
    %4881 = vmatprep.subr.mxu0 %v4440
    %4882 = vmatpush1.msra.mxu0 %v4439
    %4883 = vmatprep.subr.mxu0 %v4443
    %4884 = vmatpush1.msra.mxu0 %v4442
    %4885 = vmatprep.subr.mxu0 %v4446
    %4886 = vmatpush1.msra.mxu0 %v4445
    %4887 = vmatprep.subr.mxu0 %v4449
    %4888 = vmatpush1.msra.mxu0 %v4448
    %4889 = vmatprep.subr.mxu0 %v4452
    %4890 = vmatpush1.msra.mxu0 %v4451
    %4891 = vmatprep.subr.mxu0 %v4455
    %4892 = vmatpush1.msra.mxu0 %v4454
    %4893 = vmatprep.subr.mxu0 %v4458
    %4894 = vmatpush1.msra.mxu0 %v4457
    %4895 = vmatprep.subr.mxu0 %v4461
    %4896 = vmatpush1.msra.mxu0 %v4460
    %4897 = vmatprep.subr.mxu0 %v4464
    %4898 = vmatpush1.msra.mxu0 %v4463
    %4899 = vmatprep.subr.mxu0 %v4467
    %4900 = vmatpush1.msra.mxu0 %v4466
    %4901 = vmatprep.subr.mxu0 %v4470
    %4902 = vmatpush1.msra.mxu0 %v4469
    %4903 = vmatprep.subr.mxu0 %v4473
    %4904 = vmatpush1.msra.mxu0 %v4472
    %4905 = vmatprep.subr.mxu0 %v4476
    %4906 = vmatpush1.msra.mxu0 %v4475
    %4907 = vmatprep.subr.mxu0 %v4479
    %4908 = vmatpush1.msra.mxu0 %v4478
    %4909 = vmatprep.subr.mxu0 %v4482
    %4910 = vmatpush1.msra.mxu0 %v4481
    %4911 = vmatprep.subr.mxu0 %v4485
    %4912 = vmatpush1.msra.mxu0 %v4484
    %4913 = vmatprep.subr.mxu0 %v4488
    %4914 = vmatpush1.msra.mxu0 %v4487
    %4915 = vmatprep.subr.mxu0 %v4491
    %4916 = vmatpush1.msra.mxu0 %v4490
    %4917 = vmatprep.subr.mxu0 %v4494
    %4918 = vmatpush1.msra.mxu0 %v4493
    %4919 = vmatprep.subr.mxu0 %v4497
    %4920 = vmatpush1.msra.mxu0 %v4496
    %4921 = vmatprep.subr.mxu0 %v4500
    %4922 = vmatpush1.msra.mxu0 %v4499
    %4923 = vmatprep.subr.mxu0 %v4503
    %4924 = vmatpush1.msra.mxu0 %v4502
    %4925 = vmatprep.subr.mxu0 %v4506
    %4926 = vmatpush1.msra.mxu0 %v4505
    %4927 = vmatprep.subr.mxu0 %v4509
    %4928 = vmatpush1.msra.mxu0 %v4508
    %4929 = vmatprep.subr.mxu0 %v4512
    %4930 = vmatpush1.msra.mxu0 %v4511
    %4931 = vmatprep.mubr.f32.mxu0 %v3456
    %4932 = vmatmul.mubr.f32.gmra.mrb[0].mxu0 %v3264
    %v4933 = vpop.f32.mrb[0].mxu0
    %v4934 = vadd.f32 %v4855, %v4933
    %v4935 = vpop.f32.mrb[0].mxu0
    %v4936 = vadd.f32 %v4859, %v4935
    %4937 = vdwg.mxu0
    %4938 = vmatprep.subr.mxu0 %v4515
    %4939 = vmatpush1.msra.mxu0 %v4514
    %4940 = vmatprep.subr.mxu0 %v4518
    %4941 = vmatpush1.msra.mxu0 %v4517
    %4942 = vmatprep.subr.mxu0 %v4521
    %4943 = vmatpush1.msra.mxu0 %v4520
    %4944 = vmatprep.subr.mxu0 %v4524
    %4945 = vmatpush1.msra.mxu0 %v4523
    %4946 = vmatprep.subr.mxu0 %v4527
    %4947 = vmatpush1.msra.mxu0 %v4526
    %4948 = vmatprep.subr.mxu0 %v4530
    %4949 = vmatpush1.msra.mxu0 %v4529
    %4950 = vmatprep.subr.mxu0 %v4533
    %4951 = vmatpush1.msra.mxu0 %v4532
    %4952 = vmatprep.subr.mxu0 %v4536
    %4953 = vmatpush1.msra.mxu0 %v4535
    %4954 = vmatprep.subr.mxu0 %v4539
    %4955 = vmatpush1.msra.mxu0 %v4538
    %4956 = vmatprep.subr.mxu0 %v4542
    %4957 = vmatpush1.msra.mxu0 %v4541
    %4958 = vmatprep.subr.mxu0 %v4545
    %4959 = vmatpush1.msra.mxu0 %v4544
    %4960 = vmatprep.subr.mxu0 %v4548
    %4961 = vmatpush1.msra.mxu0 %v4547
    %4962 = vmatprep.subr.mxu0 %v4551
    %4963 = vmatpush1.msra.mxu0 %v4550
    %4964 = vmatprep.subr.mxu0 %v4554
    %4965 = vmatpush1.msra.mxu0 %v4553
    %4966 = vmatprep.subr.mxu0 %v4557
    %4967 = vmatpush1.msra.mxu0 %v4556
    %4968 = vmatprep.subr.mxu0 %v4560
    %4969 = vmatpush1.msra.mxu0 %v4559
    %4970 = vmatprep.subr.mxu0 %v4563
    %4971 = vmatpush1.msra.mxu0 %v4562
    %4972 = vmatprep.subr.mxu0 %v4566
    %4973 = vmatpush1.msra.mxu0 %v4565
    %4974 = vmatprep.subr.mxu0 %v4569
    %4975 = vmatpush1.msra.mxu0 %v4568
    %4976 = vmatprep.subr.mxu0 %v4572
    %4977 = vmatpush1.msra.mxu0 %v4571
    %4978 = vmatprep.subr.mxu0 %v4575
    %4979 = vmatpush1.msra.mxu0 %v4574
    %4980 = vmatprep.subr.mxu0 %v4578
    %4981 = vmatpush1.msra.mxu0 %v4577
    %4982 = vmatprep.subr.mxu0 %v4581
    %4983 = vmatpush1.msra.mxu0 %v4580
    %4984 = vmatprep.subr.mxu0 %v4584
    %4985 = vmatpush1.msra.mxu0 %v4583
    %4986 = vmatprep.subr.mxu0 %v4587
    %4987 = vmatpush1.msra.mxu0 %v4586
    %4988 = vmatprep.subr.mxu0 %v4590
    %4989 = vmatpush1.msra.mxu0 %v4589
    %4990 = vmatprep.subr.mxu0 %v4593
    %4991 = vmatpush1.msra.mxu0 %v4592
    %4992 = vmatprep.subr.mxu0 %v4596
    %4993 = vmatpush1.msra.mxu0 %v4595
    %4994 = vmatprep.subr.mxu0 %v4599
    %4995 = vmatpush1.msra.mxu0 %v4598
    %4996 = vmatprep.subr.mxu0 %v4602
    %4997 = vmatpush1.msra.mxu0 %v4601
    %4998 = vmatprep.subr.mxu0 %v4605
    %4999 = vmatpush1.msra.mxu0 %v4604
    %5000 = vmatprep.subr.mxu0 %v4608
    %5001 = vmatpush1.msra.mxu0 %v4607
    %5002 = vmatprep.mubr.f32.mxu0 %v3840
    %5003 = vmatmul.mubr.f32.gmra.mrb[0].mxu0 %v3648
    %v5004 = vpop.f32.mrb[0].mxu0
    %v5005 = vadd.f32 %v4934, %v5004
    %v5006 = vpop.f32.mrb[0].mxu0
    %v5007 = vadd.f32 %v4936, %v5006
    %5008 = vdwg.mxu0
    %5009 = vmatprep.subr.mxu0 %v4611
    %5010 = vmatpush1.msra.mxu0 %v4610
    %5011 = vmatprep.subr.mxu0 %v4614
    %5012 = vmatpush1.msra.mxu0 %v4613
    %5013 = vmatprep.subr.mxu0 %v4617
    %5014 = vmatpush1.msra.mxu0 %v4616
    %5015 = vmatprep.subr.mxu0 %v4620
    %5016 = vmatpush1.msra.mxu0 %v4619
    %5017 = vmatprep.subr.mxu0 %v4623
    %5018 = vmatpush1.msra.mxu0 %v4622
    %5019 = vmatprep.subr.mxu0 %v4626
    %5020 = vmatpush1.msra.mxu0 %v4625
    %5021 = vmatprep.subr.mxu0 %v4629
    %5022 = vmatpush1.msra.mxu0 %v4628
    %5023 = vmatprep.subr.mxu0 %v4632
    %5024 = vmatpush1.msra.mxu0 %v4631
    %5025 = vmatprep.subr.mxu0 %v4635
    %5026 = vmatpush1.msra.mxu0 %v4634
    %5027 = vmatprep.subr.mxu0 %v4638
    %5028 = vmatpush1.msra.mxu0 %v4637
    %5029 = vmatprep.subr.mxu0 %v4641
    %5030 = vmatpush1.msra.mxu0 %v4640
    %5031 = vmatprep.subr.mxu0 %v4644
    %5032 = vmatpush1.msra.mxu0 %v4643
    %5033 = vmatprep.subr.mxu0 %v4647
    %5034 = vmatpush1.msra.mxu0 %v4646
    %5035 = vmatprep.subr.mxu0 %v4650
    %5036 = vmatpush1.msra.mxu0 %v4649
    %5037 = vmatprep.subr.mxu0 %v4653
    %5038 = vmatpush1.msra.mxu0 %v4652
    %5039 = vmatprep.subr.mxu0 %v4656
    %5040 = vmatpush1.msra.mxu0 %v4655
    %5041 = vmatprep.subr.mxu0 %v4659
    %5042 = vmatpush1.msra.mxu0 %v4658
    %5043 = vmatprep.subr.mxu0 %v4662
    %5044 = vmatpush1.msra.mxu0 %v4661
    %5045 = vmatprep.subr.mxu0 %v4665
    %5046 = vmatpush1.msra.mxu0 %v4664
    %5047 = vmatprep.subr.mxu0 %v4668
    %5048 = vmatpush1.msra.mxu0 %v4667
    %5049 = vmatprep.subr.mxu0 %v4671
    %5050 = vmatpush1.msra.mxu0 %v4670
    %5051 = vmatprep.subr.mxu0 %v4674
    %5052 = vmatpush1.msra.mxu0 %v4673
    %5053 = vmatprep.subr.mxu0 %v4677
    %5054 = vmatpush1.msra.mxu0 %v4676
    %5055 = vmatprep.subr.mxu0 %v4680
    %5056 = vmatpush1.msra.mxu0 %v4679
    %5057 = vmatprep.subr.mxu0 %v4683
    %5058 = vmatpush1.msra.mxu0 %v4682
    %5059 = vmatprep.subr.mxu0 %v4686
    %5060 = vmatpush1.msra.mxu0 %v4685
    %5061 = vmatprep.subr.mxu0 %v4689
    %5062 = vmatpush1.msra.mxu0 %v4688
    %5063 = vmatprep.subr.mxu0 %v4692
    %5064 = vmatpush1.msra.mxu0 %v4691
    %5065 = vmatprep.subr.mxu0 %v4695
    %5066 = vmatpush1.msra.mxu0 %v4694
    %5067 = vmatprep.subr.mxu0 %v4698
    %5068 = vmatpush1.msra.mxu0 %v4697
    %5069 = vmatprep.subr.mxu0 %v4701
    %5070 = vmatpush1.msra.mxu0 %v4700
    %5071 = vmatprep.subr.mxu0 %v4704
    %5072 = vmatpush1.msra.mxu0 %v4703
    %5073 = vmatprep.mubr.f32.mxu0 %v2327
    %5074 = vmatmul.mubr.f32.gmra.mrb[0].mxu0 %v4128
    %v5075 = vpop.f32.mrb[0].mxu0
    %v5076 = vadd.f32 %v5005, %v5075
    %v5077 = vpop.f32.mrb[0].mxu0
    %v5078 = vadd.f32 %v5007, %v5077
    %5079 = vdwg.mxu0
    %5080 = vmatprep.subr.mxu0 %v4707
    %5081 = vmatpush1.msra.mxu0 %v4706
    %5082 = vmatprep.subr.mxu0 %v4710
    %5083 = vmatpush1.msra.mxu0 %v4709
    %5084 = vmatprep.subr.mxu0 %v4713
    %5085 = vmatpush1.msra.mxu0 %v4712
    %5086 = vmatprep.subr.mxu0 %v4716
    %5087 = vmatpush1.msra.mxu0 %v4715
    %5088 = vmatprep.subr.mxu0 %v4719
    %5089 = vmatpush1.msra.mxu0 %v4718
    %5090 = vmatprep.subr.mxu0 %v4722
    %5091 = vmatpush1.msra.mxu0 %v4721
    %5092 = vmatprep.subr.mxu0 %v4725
    %5093 = vmatpush1.msra.mxu0 %v4724
    %5094 = vmatprep.subr.mxu0 %v4728
    %5095 = vmatpush1.msra.mxu0 %v4727
    %5096 = vmatprep.subr.mxu0 %v4731
    %5097 = vmatpush1.msra.mxu0 %v4730
    %5098 = vmatprep.subr.mxu0 %v4734
    %5099 = vmatpush1.msra.mxu0 %v4733
    %5100 = vmatprep.subr.mxu0 %v4737
    %5101 = vmatpush1.msra.mxu0 %v4736
    %5102 = vmatprep.subr.mxu0 %v4740
    %5103 = vmatpush1.msra.mxu0 %v4739
    %5104 = vmatprep.subr.mxu0 %v4743
    %5105 = vmatpush1.msra.mxu0 %v4742
    %5106 = vmatprep.subr.mxu0 %v4746
    %5107 = vmatpush1.msra.mxu0 %v4745
    %5108 = vmatprep.subr.mxu0 %v4749
    %5109 = vmatpush1.msra.mxu0 %v4748
    %5110 = vmatprep.subr.mxu0 %v4752
    %5111 = vmatpush1.msra.mxu0 %v4751
    %5112 = vmatprep.subr.mxu0 %v4755
    %5113 = vmatpush1.msra.mxu0 %v4754
    %5114 = vmatprep.subr.mxu0 %v4758
    %5115 = vmatpush1.msra.mxu0 %v4757
    %5116 = vmatprep.subr.mxu0 %v4761
    %5117 = vmatpush1.msra.mxu0 %v4760
    %5118 = vmatprep.subr.mxu0 %v4764
    %5119 = vmatpush1.msra.mxu0 %v4763
    %5120 = vmatprep.subr.mxu0 %v4767
    %5121 = vmatpush1.msra.mxu0 %v4766
    %5122 = vmatprep.subr.mxu0 %v4770
    %5123 = vmatpush1.msra.mxu0 %v4769
    %5124 = vmatprep.subr.mxu0 %v4773
    %5125 = vmatpush1.msra.mxu0 %v4772
    %5126 = vmatprep.subr.mxu0 %v4776
    %5127 = vmatpush1.msra.mxu0 %v4775
    %5128 = vmatprep.subr.mxu0 %v4779
    %5129 = vmatpush1.msra.mxu0 %v4778
    %5130 = vmatprep.subr.mxu0 %v4782
    %5131 = vmatpush1.msra.mxu0 %v4781
    %5132 = vmatprep.subr.mxu0 %v4785
    %5133 = vmatpush1.msra.mxu0 %v4784
    %5134 = vmatprep.subr.mxu0 %v4788
    %5135 = vmatpush1.msra.mxu0 %v4787
    %5136 = vmatprep.subr.mxu0 %v4791
    %5137 = vmatpush1.msra.mxu0 %v4790
    %5138 = vmatprep.subr.mxu0 %v4794
    %5139 = vmatpush1.msra.mxu0 %v4793
    %5140 = vmatprep.subr.mxu0 %v4797
    %5141 = vmatpush1.msra.mxu0 %v4796
    %5142 = vmatprep.subr.mxu0 %v4800
    %5143 = vmatpush1.msra.mxu0 %v4799
    %5144 = vmatprep.mubr.f32.mxu0 %v2329
    %5145 = vmatmul.mubr.f32.gmra.mrb[0].mxu0 %v2328
    %v5146 = vpop.f32.mrb[0].mxu0
    %v5147 = vadd.f32 %v5076, %v5146
    %v5148 = vpop.f32.mrb[0].mxu0
    %v5149 = vadd.f32 %v5078, %v5148
    %5150 = vdwg.mxu0
    %5151 = vmatprep.subr.mxu0 %v4803
    %5152 = vmatpush1.msra.mxu0 %v4802
    %5153 = vmatprep.subr.mxu0 %v4806
    %5154 = vmatpush1.msra.mxu0 %v4805
    %5155 = vmatprep.subr.mxu0 %v4809
    %5156 = vmatpush1.msra.mxu0 %v4808
    %5157 = vmatprep.subr.mxu0 %v4812
    %5158 = vmatpush1.msra.mxu0 %v4811
    %5159 = vmatprep.subr.mxu0 %v4815
    %5160 = vmatpush1.msra.mxu0 %v4814
    %5161 = vmatprep.subr.mxu0 %v4818
    %5162 = vmatpush1.msra.mxu0 %v4817
    %5163 = vmatprep.subr.mxu0 %v4821
    %5164 = vmatpush1.msra.mxu0 %v4820
    %5165 = vmatprep.subr.mxu0 %v4824
    %5166 = vmatpush1.msra.mxu0 %v4823
    %5167 = vmatprep.subr.mxu0 %v4827
    %5168 = vmatpush1.msra.mxu0 %v4826
    %5169 = vmatprep.subr.mxu0 %v4830
    %5170 = vmatpush1.msra.mxu0 %v4829
    %5171 = vmatprep.subr.mxu0 %v4833
    %5172 = vmatpush1.msra.mxu0 %v4832
    %5173 = vmatprep.subr.mxu0 %v4836
    %5174 = vmatpush1.msra.mxu0 %v4835
    %5175 = vmatprep.subr.mxu0 %v4839
    %5176 = vmatpush1.msra.mxu0 %v4838
    %5177 = vmatprep.subr.mxu0 %v4842
    %5178 = vmatpush1.msra.mxu0 %v4841
    %5179 = vmatprep.subr.mxu0 %v4845
    %5180 = vmatpush1.msra.mxu0 %v4844
    %5181 = vmatprep.subr.mxu0 %v4848
    %5182 = vmatpush1.msra.mxu0 %v4847
    %5183 = vmatprep.subr.mxu0 0.0
    %5184 = vmatpush1.msra.mxu0 0.0
    %5185 = vmatprep.subr.mxu0 0.0
    %5186 = vmatpush1.msra.mxu0 0.0
    %5187 = vmatprep.subr.mxu0 0.0
    %5188 = vmatpush1.msra.mxu0 0.0
    %5189 = vmatprep.subr.mxu0 0.0
    %5190 = vmatpush1.msra.mxu0 0.0
    %5191 = vmatprep.subr.mxu0 0.0
    %5192 = vmatpush1.msra.mxu0 0.0
    %5193 = vmatprep.subr.mxu0 0.0
    %5194 = vmatpush1.msra.mxu0 0.0
    %5195 = vmatprep.subr.mxu0 0.0
    %5196 = vmatpush1.msra.mxu0 0.0
    %5197 = vmatprep.subr.mxu0 0.0
    %5198 = vmatpush1.msra.mxu0 0.0
    %5199 = vmatprep.subr.mxu0 0.0
    %5200 = vmatpush1.msra.mxu0 0.0
    %5201 = vmatprep.subr.mxu0 0.0
    %5202 = vmatpush1.msra.mxu0 0.0
    %5203 = vmatprep.subr.mxu0 0.0
    %5204 = vmatpush1.msra.mxu0 0.0
    %5205 = vmatprep.subr.mxu0 0.0
    %5206 = vmatpush1.msra.mxu0 0.0
    %5207 = vmatprep.subr.mxu0 0.0
    %5208 = vmatpush1.msra.mxu0 0.0
    %5209 = vmatprep.subr.mxu0 0.0
    %5210 = vmatpush1.msra.mxu0 0.0
    %5211 = vmatprep.subr.mxu0 0.0
    %5212 = vmatpush1.msra.mxu0 0.0
    %5213 = vmatprep.subr.mxu0 0.0
    %5214 = vmatpush1.msra.mxu0 0.0
    %5215 = vmatprep.mubr.f32.mxu0 0.0
    %5216 = vmatmul.mubr.f32.gmra.mrb[0].mxu0 %v2330
    %v5217 = vpop.f32.mrb[0].mxu0
    %v5218 = vadd.f32 %v5147, %v5217
    %v5219 = vpop.f32.mrb[0].mxu0
    %v5220 = vadd.f32 %v5149, %v5219
    %5221 = vdwg.mxu0
    %5222 = vmatprep.subr.mxu0 0.0
    %5223 = vmatpush1.msra.mxu0 %v4420
    %5224 = vmatprep.subr.mxu0 0.0
    %5225 = vmatpush1.msra.mxu0 %v4423
    %5226 = vmatprep.subr.mxu0 0.0
    %5227 = vmatpush1.msra.mxu0 %v4426
    %5228 = vmatprep.subr.mxu0 0.0
    %5229 = vmatpush1.msra.mxu0 %v4429
    %5230 = vmatprep.subr.mxu0 0.0
    %5231 = vmatpush1.msra.mxu0 %v4432
    %5232 = vmatprep.subr.mxu0 0.0
    %5233 = vmatpush1.msra.mxu0 %v4435
    %5234 = vmatprep.subr.mxu0 0.0
    %5235 = vmatpush1.msra.mxu0 %v4438
    %5236 = vmatprep.subr.mxu0 0.0
    %5237 = vmatpush1.msra.mxu0 %v4441
    %5238 = vmatprep.subr.mxu0 0.0
    %5239 = vmatpush1.msra.mxu0 %v4444
    %5240 = vmatprep.subr.mxu0 0.0
    %5241 = vmatpush1.msra.mxu0 %v4447
    %5242 = vmatprep.subr.mxu0 0.0
    %5243 = vmatpush1.msra.mxu0 %v4450
    %5244 = vmatprep.subr.mxu0 0.0
    %5245 = vmatpush1.msra.mxu0 %v4453
    %5246 = vmatprep.subr.mxu0 0.0
    %5247 = vmatpush1.msra.mxu0 %v4456
    %5248 = vmatprep.subr.mxu0 0.0
    %5249 = vmatpush1.msra.mxu0 %v4459
    %5250 = vmatprep.subr.mxu0 0.0
    %5251 = vmatpush1.msra.mxu0 %v4462
    %5252 = vmatprep.subr.mxu0 0.0
    %5253 = vmatpush1.msra.mxu0 %v4465
    %5254 = vmatprep.subr.mxu0 0.0
    %5255 = vmatpush1.msra.mxu0 %v4468
    %5256 = vmatprep.subr.mxu0 0.0
    %5257 = vmatpush1.msra.mxu0 %v4471
    %5258 = vmatprep.subr.mxu0 0.0
    %5259 = vmatpush1.msra.mxu0 %v4474
    %5260 = vmatprep.subr.mxu0 0.0
    %5261 = vmatpush1.msra.mxu0 %v4477
    %5262 = vmatprep.subr.mxu0 0.0
    %5263 = vmatpush1.msra.mxu0 %v4480
    %5264 = vmatprep.subr.mxu0 0.0
    %5265 = vmatpush1.msra.mxu0 %v4483
    %5266 = vmatprep.subr.mxu0 0.0
    %5267 = vmatpush1.msra.mxu0 %v4486
    %5268 = vmatprep.subr.mxu0 0.0
    %5269 = vmatpush1.msra.mxu0 %v4489
    %5270 = vmatprep.subr.mxu0 0.0
    %5271 = vmatpush1.msra.mxu0 %v4492
    %5272 = vmatprep.subr.mxu0 0.0
    %5273 = vmatpush1.msra.mxu0 %v4495
    %5274 = vmatprep.subr.mxu0 0.0
    %5275 = vmatpush1.msra.mxu0 %v4498
    %5276 = vmatprep.subr.mxu0 0.0
    %5277 = vmatpush1.msra.mxu0 %v4501
    %5278 = vmatprep.subr.mxu0 0.0
    %5279 = vmatpush1.msra.mxu0 %v4504
    %5280 = vmatprep.subr.mxu0 0.0
    %5281 = vmatpush1.msra.mxu0 %v4507
    %5282 = vmatprep.subr.mxu0 0.0
    %5283 = vmatpush1.msra.mxu0 %v4510
    %5284 = vmatprep.subr.mxu0 0.0
    %5285 = vmatpush1.msra.mxu0 %v4513
    %5286 = vmatprep.mubr.f32.mxu0 %v3456
    %5287 = vmatmul.mubr.f32.gmra.mrb[0].mxu0 %v3264
    %v5288 = vpop.f32.mrb[0].mxu0
    %v5289 = vadd.f32 %v4863, %v5288
    %v5290 = vpop.f32.mrb[0].mxu0
    %5291 = vdwg.mxu0
    %5292 = vmatprep.subr.mxu0 0.0
    %5293 = vmatpush1.msra.mxu0 %v4516
    %5294 = vmatprep.subr.mxu0 0.0
    %5295 = vmatpush1.msra.mxu0 %v4519
    %5296 = vmatprep.subr.mxu0 0.0
    %5297 = vmatpush1.msra.mxu0 %v4522
    %5298 = vmatprep.subr.mxu0 0.0
    %5299 = vmatpush1.msra.mxu0 %v4525
    %5300 = vmatprep.subr.mxu0 0.0
    %5301 = vmatpush1.msra.mxu0 %v4528
    %5302 = vmatprep.subr.mxu0 0.0
    %5303 = vmatpush1.msra.mxu0 %v4531
    %5304 = vmatprep.subr.mxu0 0.0
    %5305 = vmatpush1.msra.mxu0 %v4534
    %5306 = vmatprep.subr.mxu0 0.0
    %5307 = vmatpush1.msra.mxu0 %v4537
    %5308 = vmatprep.subr.mxu0 0.0
    %5309 = vmatpush1.msra.mxu0 %v4540
    %5310 = vmatprep.subr.mxu0 0.0
    %5311 = vmatpush1.msra.mxu0 %v4543
    %5312 = vmatprep.subr.mxu0 0.0
    %5313 = vmatpush1.msra.mxu0 %v4546
    %5314 = vmatprep.subr.mxu0 0.0
    %5315 = vmatpush1.msra.mxu0 %v4549
    %5316 = vmatprep.subr.mxu0 0.0
    %5317 = vmatpush1.msra.mxu0 %v4552
    %5318 = vmatprep.subr.mxu0 0.0
    %5319 = vmatpush1.msra.mxu0 %v4555
    %5320 = vmatprep.subr.mxu0 0.0
    %5321 = vmatpush1.msra.mxu0 %v4558
    %5322 = vmatprep.subr.mxu0 0.0
    %5323 = vmatpush1.msra.mxu0 %v4561
    %5324 = vmatprep.subr.mxu0 0.0
    %5325 = vmatpush1.msra.mxu0 %v4564
    %5326 = vmatprep.subr.mxu0 0.0
    %5327 = vmatpush1.msra.mxu0 %v4567
    %5328 = vmatprep.subr.mxu0 0.0
    %5329 = vmatpush1.msra.mxu0 %v4570
    %5330 = vmatprep.subr.mxu0 0.0
    %5331 = vmatpush1.msra.mxu0 %v4573
    %5332 = vmatprep.subr.mxu0 0.0
    %5333 = vmatpush1.msra.mxu0 %v4576
    %5334 = vmatprep.subr.mxu0 0.0
    %5335 = vmatpush1.msra.mxu0 %v4579
    %5336 = vmatprep.subr.mxu0 0.0
    %5337 = vmatpush1.msra.mxu0 %v4582
    %5338 = vmatprep.subr.mxu0 0.0
    %5339 = vmatpush1.msra.mxu0 %v4585
    %5340 = vmatprep.subr.mxu0 0.0
    %5341 = vmatpush1.msra.mxu0 %v4588
    %5342 = vmatprep.subr.mxu0 0.0
    %5343 = vmatpush1.msra.mxu0 %v4591
    %5344 = vmatprep.subr.mxu0 0.0
    %5345 = vmatpush1.msra.mxu0 %v4594
    %5346 = vmatprep.subr.mxu0 0.0
    %5347 = vmatpush1.msra.mxu0 %v4597
    %5348 = vmatprep.subr.mxu0 0.0
    %5349 = vmatpush1.msra.mxu0 %v4600
    %5350 = vmatprep.subr.mxu0 0.0
    %5351 = vmatpush1.msra.mxu0 %v4603
    %5352 = vmatprep.subr.mxu0 0.0
    %5353 = vmatpush1.msra.mxu0 %v4606
    %5354 = vmatprep.subr.mxu0 0.0
    %5355 = vmatpush1.msra.mxu0 %v4609
    %5356 = vmatprep.mubr.f32.mxu0 %v3840
    %5357 = vmatmul.mubr.f32.gmra.mrb[0].mxu0 %v3648
    %v5358 = vpop.f32.mrb[0].mxu0
    %v5359 = vadd.f32 %v5289, %v5358
    %v5360 = vpop.f32.mrb[0].mxu0
    %5361 = vdwg.mxu0
    %5362 = vmatprep.subr.mxu0 0.0
    %5363 = vmatpush1.msra.mxu0 %v4612
    %5364 = vmatprep.subr.mxu0 0.0
    %5365 = vmatpush1.msra.mxu0 %v4615
    %5366 = vmatprep.subr.mxu0 0.0
    %5367 = vmatpush1.msra.mxu0 %v4618
    %5368 = vmatprep.subr.mxu0 0.0
    %5369 = vmatpush1.msra.mxu0 %v4621
    %5370 = vmatprep.subr.mxu0 0.0
    %5371 = vmatpush1.msra.mxu0 %v4624
    %5372 = vmatprep.subr.mxu0 0.0
    %5373 = vmatpush1.msra.mxu0 %v4627
    %5374 = vmatprep.subr.mxu0 0.0
    %5375 = vmatpush1.msra.mxu0 %v4630
    %5376 = vmatprep.subr.mxu0 0.0
    %5377 = vmatpush1.msra.mxu0 %v4633
    %5378 = vmatprep.subr.mxu0 0.0
    %5379 = vmatpush1.msra.mxu0 %v4636
    %5380 = vmatprep.subr.mxu0 0.0
    %5381 = vmatpush1.msra.mxu0 %v4639
    %5382 = vmatprep.subr.mxu0 0.0
    %5383 = vmatpush1.msra.mxu0 %v4642
    %5384 = vmatprep.subr.mxu0 0.0
    %5385 = vmatpush1.msra.mxu0 %v4645
    %5386 = vmatprep.subr.mxu0 0.0
    %5387 = vmatpush1.msra.mxu0 %v4648
    %5388 = vmatprep.subr.mxu0 0.0
    %5389 = vmatpush1.msra.mxu0 %v4651
    %5390 = vmatprep.subr.mxu0 0.0
    %5391 = vmatpush1.msra.mxu0 %v4654
    %5392 = vmatprep.subr.mxu0 0.0
    %5393 = vmatpush1.msra.mxu0 %v4657
    %5394 = vmatprep.subr.mxu0 0.0
    %5395 = vmatpush1.msra.mxu0 %v4660
    %5396 = vmatprep.subr.mxu0 0.0
    %5397 = vmatpush1.msra.mxu0 %v4663
    %5398 = vmatprep.subr.mxu0 0.0
    %5399 = vmatpush1.msra.mxu0 %v4666
    %5400 = vmatprep.subr.mxu0 0.0
    %5401 = vmatpush1.msra.mxu0 %v4669
    %5402 = vmatprep.subr.mxu0 0.0
    %5403 = vmatpush1.msra.mxu0 %v4672
    %5404 = vmatprep.subr.mxu0 0.0
    %5405 = vmatpush1.msra.mxu0 %v4675
    %5406 = vmatprep.subr.mxu0 0.0
    %5407 = vmatpush1.msra.mxu0 %v4678
    %5408 = vmatprep.subr.mxu0 0.0
    %5409 = vmatpush1.msra.mxu0 %v4681
    %5410 = vmatprep.subr.mxu0 0.0
    %5411 = vmatpush1.msra.mxu0 %v4684
    %5412 = vmatprep.subr.mxu0 0.0
    %5413 = vmatpush1.msra.mxu0 %v4687
    %5414 = vmatprep.subr.mxu0 0.0
    %5415 = vmatpush1.msra.mxu0 %v4690
    %5416 = vmatprep.subr.mxu0 0.0
    %5417 = vmatpush1.msra.mxu0 %v4693
    %5418 = vmatprep.subr.mxu0 0.0
    %5419 = vmatpush1.msra.mxu0 %v4696
    %5420 = vmatprep.subr.mxu0 0.0
    %5421 = vmatpush1.msra.mxu0 %v4699
    %5422 = vmatprep.subr.mxu0 0.0
    %5423 = vmatpush1.msra.mxu0 %v4702
    %5424 = vmatprep.subr.mxu0 0.0
    %5425 = vmatpush1.msra.mxu0 %v4705
    %5426 = vmatprep.mubr.f32.mxu0 %v2327
    %5427 = vmatmul.mubr.f32.gmra.mrb[0].mxu0 %v4128
    %v5428 = vpop.f32.mrb[0].mxu0
    %v5429 = vadd.f32 %v5359, %v5428
    %v5430 = vpop.f32.mrb[0].mxu0
    %5431 = vdwg.mxu0
    %5432 = vmatprep.subr.mxu0 0.0
    %5433 = vmatpush1.msra.mxu0 %v4708
    %5434 = vmatprep.subr.mxu0 0.0
    %5435 = vmatpush1.msra.mxu0 %v4711
    %5436 = vmatprep.subr.mxu0 0.0
    %5437 = vmatpush1.msra.mxu0 %v4714
    %5438 = vmatprep.subr.mxu0 0.0
    %5439 = vmatpush1.msra.mxu0 %v4717
    %5440 = vmatprep.subr.mxu0 0.0
    %5441 = vmatpush1.msra.mxu0 %v4720
    %5442 = vmatprep.subr.mxu0 0.0
    %5443 = vmatpush1.msra.mxu0 %v4723
    %5444 = vmatprep.subr.mxu0 0.0
    %5445 = vmatpush1.msra.mxu0 %v4726
    %5446 = vmatprep.subr.mxu0 0.0
    %5447 = vmatpush1.msra.mxu0 %v4729
    %5448 = vmatprep.subr.mxu0 0.0
    %5449 = vmatpush1.msra.mxu0 %v4732
    %5450 = vmatprep.subr.mxu0 0.0
    %5451 = vmatpush1.msra.mxu0 %v4735
    %5452 = vmatprep.subr.mxu0 0.0
    %5453 = vmatpush1.msra.mxu0 %v4738
    %5454 = vmatprep.subr.mxu0 0.0
    %5455 = vmatpush1.msra.mxu0 %v4741
    %5456 = vmatprep.subr.mxu0 0.0
    %5457 = vmatpush1.msra.mxu0 %v4744
    %5458 = vmatprep.subr.mxu0 0.0
    %5459 = vmatpush1.msra.mxu0 %v4747
    %5460 = vmatprep.subr.mxu0 0.0
    %5461 = vmatpush1.msra.mxu0 %v4750
    %5462 = vmatprep.subr.mxu0 0.0
    %5463 = vmatpush1.msra.mxu0 %v4753
    %5464 = vmatprep.subr.mxu0 0.0
    %5465 = vmatpush1.msra.mxu0 %v4756
    %5466 = vmatprep.subr.mxu0 0.0
    %5467 = vmatpush1.msra.mxu0 %v4759
    %5468 = vmatprep.subr.mxu0 0.0
    %5469 = vmatpush1.msra.mxu0 %v4762
    %5470 = vmatprep.subr.mxu0 0.0
    %5471 = vmatpush1.msra.mxu0 %v4765
    %5472 = vmatprep.subr.mxu0 0.0
    %5473 = vmatpush1.msra.mxu0 %v4768
    %5474 = vmatprep.subr.mxu0 0.0
    %5475 = vmatpush1.msra.mxu0 %v4771
    %5476 = vmatprep.subr.mxu0 0.0
    %5477 = vmatpush1.msra.mxu0 %v4774
    %5478 = vmatprep.subr.mxu0 0.0
    %5479 = vmatpush1.msra.mxu0 %v4777
    %5480 = vmatprep.subr.mxu0 0.0
    %5481 = vmatpush1.msra.mxu0 %v4780
    %5482 = vmatprep.subr.mxu0 0.0
    %5483 = vmatpush1.msra.mxu0 %v4783
    %5484 = vmatprep.subr.mxu0 0.0
    %5485 = vmatpush1.msra.mxu0 %v4786
    %5486 = vmatprep.subr.mxu0 0.0
    %5487 = vmatpush1.msra.mxu0 %v4789
    %5488 = vmatprep.subr.mxu0 0.0
    %5489 = vmatpush1.msra.mxu0 %v4792
    %5490 = vmatprep.subr.mxu0 0.0
    %5491 = vmatpush1.msra.mxu0 %v4795
    %5492 = vmatprep.subr.mxu0 0.0
    %5493 = vmatpush1.msra.mxu0 %v4798
    %5494 = vmatprep.subr.mxu0 0.0
    %5495 = vmatpush1.msra.mxu0 %v4801
    %5496 = vmatprep.mubr.f32.mxu0 %v2329
    %5497 = vmatmul.mubr.f32.gmra.mrb[0].mxu0 %v2328
    %v5498 = vpop.f32.mrb[0].mxu0
    %v5499 = vadd.f32 %v5429, %v5498
    %v5500 = vpop.f32.mrb[0].mxu0
    %5501 = vdwg.mxu0
    %5502 = vmatprep.subr.mxu0 0.0
    %5503 = vmatpush1.msra.mxu0 %v4804
    %5504 = vmatprep.subr.mxu0 0.0
    %5505 = vmatpush1.msra.mxu0 %v4807
    %5506 = vmatprep.subr.mxu0 0.0
    %5507 = vmatpush1.msra.mxu0 %v4810
    %5508 = vmatprep.subr.mxu0 0.0
    %5509 = vmatpush1.msra.mxu0 %v4813
    %5510 = vmatprep.subr.mxu0 0.0
    %5511 = vmatpush1.msra.mxu0 %v4816
    %5512 = vmatprep.subr.mxu0 0.0
    %5513 = vmatpush1.msra.mxu0 %v4819
    %5514 = vmatprep.subr.mxu0 0.0
    %5515 = vmatpush1.msra.mxu0 %v4822
    %5516 = vmatprep.subr.mxu0 0.0
    %5517 = vmatpush1.msra.mxu0 %v4825
    %5518 = vmatprep.subr.mxu0 0.0
    %5519 = vmatpush1.msra.mxu0 %v4828
    %5520 = vmatprep.subr.mxu0 0.0
    %5521 = vmatpush1.msra.mxu0 %v4831
    %5522 = vmatprep.subr.mxu0 0.0
    %5523 = vmatpush1.msra.mxu0 %v4834
    %5524 = vmatprep.subr.mxu0 0.0
    %5525 = vmatpush1.msra.mxu0 %v4837
    %5526 = vmatprep.subr.mxu0 0.0
    %5527 = vmatpush1.msra.mxu0 %v4840
    %5528 = vmatprep.subr.mxu0 0.0
    %5529 = vmatpush1.msra.mxu0 %v4843
    %5530 = vmatprep.subr.mxu0 0.0
    %5531 = vmatpush1.msra.mxu0 %v4846
    %5532 = vmatprep.subr.mxu0 0.0
    %5533 = vmatpush1.msra.mxu0 %v4849
    %5534 = vmatprep.subr.mxu0 0.0
    %5535 = vmatpush1.msra.mxu0 0.0
    %5536 = vmatprep.subr.mxu0 0.0
    %5537 = vmatpush1.msra.mxu0 0.0
    %5538 = vmatprep.subr.mxu0 0.0
    %5539 = vmatpush1.msra.mxu0 0.0
    %5540 = vmatprep.subr.mxu0 0.0
    %5541 = vmatpush1.msra.mxu0 0.0
    %5542 = vmatprep.subr.mxu0 0.0
    %5543 = vmatpush1.msra.mxu0 0.0
    %5544 = vmatprep.subr.mxu0 0.0
    %5545 = vmatpush1.msra.mxu0 0.0
    %5546 = vmatprep.subr.mxu0 0.0
    %5547 = vmatpush1.msra.mxu0 0.0
    %5548 = vmatprep.subr.mxu0 0.0
    %5549 = vmatpush1.msra.mxu0 0.0
    %5550 = vmatprep.subr.mxu0 0.0
    %5551 = vmatpush1.msra.mxu0 0.0
    %5552 = vmatprep.subr.mxu0 0.0
    %5553 = vmatpush1.msra.mxu0 0.0
    %5554 = vmatprep.subr.mxu0 0.0
    %5555 = vmatpush1.msra.mxu0 0.0
    %5556 = vmatprep.subr.mxu0 0.0
    %5557 = vmatpush1.msra.mxu0 0.0
    %5558 = vmatprep.subr.mxu0 0.0
    %5559 = vmatpush1.msra.mxu0 0.0
    %5560 = vmatprep.subr.mxu0 0.0
    %5561 = vmatpush1.msra.mxu0 0.0
    %5562 = vmatprep.subr.mxu0 0.0
    %5563 = vmatpush1.msra.mxu0 0.0
    %5564 = vmatprep.subr.mxu0 0.0
    %5565 = vmatpush1.msra.mxu0 0.0
    %5566 = vmatprep.mubr.f32.mxu0 0.0
    %5567 = vmatmul.mubr.f32.gmra.mrb[0].mxu0 %v2330
    %v5568 = vpop.f32.mrb[0].mxu0
    %v5569 = vadd.f32 %v5499, %v5568
    %v5570 = vpop.f32.mrb[0].mxu0
    %5571 = vdwg.mxu0
    %v5572 = vmul.f32 %v5218, 0.5
    %v5573 = vmul.f32 %v5220, 0.5
    %v5574 = vmul.f32 %v5569, 0.5
    %v5575 = vmul.f32 %v5218, 0.044715
    %v5576 = vmul.f32 %v5220, 0.044715
    %v5577 = vmul.f32 %v5569, 0.044715
    %v5578 = vmul.f32 %v5575, %v5218
    %v5579 = vmul.f32 %v5576, %v5220
    %v5580 = vmul.f32 %v5577, %v5569
    %v5581 = vmul.f32 %v5578, %v5218
    %v5582 = vmul.f32 %v5579, %v5220
    %v5583 = vmul.f32 %v5580, %v5569
    %v5584 = vadd.f32 %v5218, %v5581
    %v5585 = vadd.f32 %v5220, %v5582
    %v5586 = vadd.f32 %v5569, %v5583
    %v5587 = vmul.f32 %v5584, 0.7978846
    %v5588 = vmul.f32 %v5585, 0.7978846
    %v5589 = vmul.f32 %v5586, 0.7978846
    %v5590 = vtanh.pop %v5587
    %v5591 = vtanh.pop %v5588
    %v5592 = vtanh.pop %v5589
    %v5593 = vadd.f32 %v5590, 1.0
    %v5594 = vadd.f32 %v5591, 1.0
    %v5595 = vadd.f32 %v5592, 1.0
    %v5596 = vmul.f32 %v5572, %v5593
    %v5597 = vmul.f32 %v5573, %v5594
    %v5598 = vmul.f32 %v5574, %v5595
    %v5599 = vld [vmem:[%s12] sm:$0xf]
    %v5600 = vld [vmem:[%s12 + $0x4] sm:$0xf]
    %v5601 = vld [vmem:[%s12 + $0x8] sm:$0xf]
    %v5602 = vld [vmem:[%s12 + $0xc] sm:$0xf]
    %v5603 = vld [vmem:[%s12 + $0x10] sm:$0xf]
    %v5604 = vld [vmem:[%s12 + $0x14] sm:$0xf]
    %v5605 = vld [vmem:[%s12 + $0x18] sm:$0xf]
    %v5606 = vld [vmem:[%s12 + $0x1c] sm:$0xf]
    %v5607 = vld [vmem:[%s12 + $0x20] sm:$0xf]
    %v5608 = vld [vmem:[%s12 + $0x24] sm:$0xf]
    %v5609 = vld [vmem:[%s12 + $0x28] sm:$0xf]
    %v5610 = vld [vmem:[%s12 + $0x2c] sm:$0xf]
    %v5611 = vld [vmem:[%s12 + $0x30] sm:$0xf]
    %v5612 = vld [vmem:[%s12 + $0x34] sm:$0xf]
    %v5613 = vld [vmem:[%s12 + $0x38] sm:$0xf]
    %v5614 = vld [vmem:[%s12 + $0x3c] sm:$0xf]
    %v5615 = vld [vmem:[%s12 + $0x40] sm:$0xf]
    %v5616 = vld [vmem:[%s12 + $0x44] sm:$0xf]
    %v5617 = vld [vmem:[%s12 + $0x48] sm:$0xf]
    %v5618 = vld [vmem:[%s12 + $0x4c] sm:$0xf]
    %v5619 = vld [vmem:[%s12 + $0x50] sm:$0xf]
    %v5620 = vld [vmem:[%s12 + $0x54] sm:$0xf]
    %v5621 = vld [vmem:[%s12 + $0x58] sm:$0xf]
    %v5622 = vld [vmem:[%s12 + $0x5c] sm:$0xf]
    %v5623 = vld [vmem:[%s12 + $0x60] sm:$0xf]
    %v5624 = vld [vmem:[%s12 + $0x64] sm:$0xf]
    %v5625 = vld [vmem:[%s12 + $0x68] sm:$0xf]
    %v5626 = vld [vmem:[%s12 + $0x6c] sm:$0xf]
    %v5627 = vld [vmem:[%s12 + $0x70] sm:$0xf]
    %v5628 = vld [vmem:[%s12 + $0x74] sm:$0xf]
    %v5629 = vld [vmem:[%s12 + $0x78] sm:$0xf]
    %v5630 = vld [vmem:[%s12 + $0x7c] sm:$0xf]
    %v5631 = vld [vmem:[%s12 + $0x80] sm:$0xf]
    %v5632 = vld [vmem:[%s12 + $0x84] sm:$0xf]
    %v5633 = vld [vmem:[%s12 + $0x88] sm:$0xf]
    %v5634 = vld [vmem:[%s12 + $0x8c] sm:$0xf]
    %v5635 = vld [vmem:[%s12 + $0x90] sm:$0xf]
    %v5636 = vld [vmem:[%s12 + $0x94] sm:$0xf]
    %v5637 = vld [vmem:[%s12 + $0x98] sm:$0xf]
    %v5638 = vld [vmem:[%s12 + $0x9c] sm:$0xf]
    %v5639 = vld [vmem:[%s12 + $0xa0] sm:$0xf]
    %v5640 = vld [vmem:[%s12 + $0xa4] sm:$0xf]
    %v5641 = vld [vmem:[%s12 + $0xa8] sm:$0xf]
    %v5642 = vld [vmem:[%s12 + $0xac] sm:$0xf]
    %v5643 = vld [vmem:[%s12 + $0xb0] sm:$0xf]
    %v5644 = vld [vmem:[%s12 + $0xb4] sm:$0xf]
    %v5645 = vld [vmem:[%s12 + $0xb8] sm:$0xf]
    %v5646 = vld [vmem:[%s12 + $0xbc] sm:$0xf]
    %v5647 = vunpack.c.l.bf16 %v5599
    %v5648 = vunpack.c.l.bf16 %v5600
    %v5649 = vunpack.c.l.bf16 %v5601
    %v5650 = vunpack.c.l.bf16 %v5602
    %v5651 = vunpack.c.l.bf16 %v5603
    %v5652 = vunpack.c.l.bf16 %v5604
    %v5653 = vunpack.c.l.bf16 %v5605
    %v5654 = vunpack.c.l.bf16 %v5606
    %v5655 = vunpack.c.l.bf16 %v5607
    %v5656 = vunpack.c.l.bf16 %v5608
    %v5657 = vunpack.c.l.bf16 %v5609
    %v5658 = vunpack.c.l.bf16 %v5610
    %v5659 = vunpack.c.l.bf16 %v5611
    %v5660 = vunpack.c.l.bf16 %v5612
    %v5661 = vunpack.c.l.bf16 %v5613
    %v5662 = vunpack.c.l.bf16 %v5614
    %v5663 = vunpack.c.l.bf16 %v5615
    %v5664 = vunpack.c.l.bf16 %v5616
    %v5665 = vunpack.c.l.bf16 %v5617
    %v5666 = vunpack.c.l.bf16 %v5618
    %v5667 = vunpack.c.l.bf16 %v5619
    %v5668 = vunpack.c.l.bf16 %v5620
    %v5669 = vunpack.c.l.bf16 %v5621
    %v5670 = vunpack.c.l.bf16 %v5622
    %v5671 = vunpack.c.l.bf16 %v5623
    %v5672 = vunpack.c.l.bf16 %v5624
    %v5673 = vunpack.c.l.bf16 %v5625
    %v5674 = vunpack.c.l.bf16 %v5626
    %v5675 = vunpack.c.l.bf16 %v5627
    %v5676 = vunpack.c.l.bf16 %v5628
    %v5677 = vunpack.c.l.bf16 %v5629
    %v5678 = vunpack.c.l.bf16 %v5630
    %v5679 = vunpack.c.l.bf16 %v5631
    %v5680 = vunpack.c.l.bf16 %v5632
    %v5681 = vunpack.c.l.bf16 %v5633
    %v5682 = vunpack.c.l.bf16 %v5634
    %v5683 = vunpack.c.l.bf16 %v5635
    %v5684 = vunpack.c.l.bf16 %v5636
    %v5685 = vunpack.c.l.bf16 %v5637
    %v5686 = vunpack.c.l.bf16 %v5638
    %v5687 = vunpack.c.l.bf16 %v5639
    %v5688 = vunpack.c.l.bf16 %v5640
    %v5689 = vunpack.c.l.bf16 %v5641
    %v5690 = vunpack.c.l.bf16 %v5642
    %v5691 = vunpack.c.l.bf16 %v5643
    %v5692 = vunpack.c.l.bf16 %v5644
    %v5693 = vunpack.c.l.bf16 %v5645
    %v5694 = vunpack.c.l.bf16 %v5646
    %v5695 = vld [vmem:[%s13] sm:$0x1]
    %v5697 = vlaneseq
    %v5698 = vshrl.u32 %v5697, 7
    %v5699 = vsub.s32 0, %v5698
    %v5700 = vrot.slane %v5695, %v5699
    %5702 = vmatprep.subr.mxu0 0.0
    %5703 = vmatpush1.msra.mxu0 %v5647
    %5704 = vmatprep.subr.mxu0 0.0
    %5705 = vmatpush1.msra.mxu0 %v5648
    %5706 = vmatprep.subr.mxu0 0.0
    %5707 = vmatpush1.msra.mxu0 %v5649
    %5708 = vmatprep.subr.mxu0 0.0
    %5709 = vmatpush1.msra.mxu0 %v5650
    %5710 = vmatprep.subr.mxu0 0.0
    %5711 = vmatpush1.msra.mxu0 %v5651
    %5712 = vmatprep.subr.mxu0 0.0
    %5713 = vmatpush1.msra.mxu0 %v5652
    %5714 = vmatprep.subr.mxu0 0.0
    %5715 = vmatpush1.msra.mxu0 %v5653
    %5716 = vmatprep.subr.mxu0 0.0
    %5717 = vmatpush1.msra.mxu0 %v5654
    %5718 = vmatprep.subr.mxu0 0.0
    %5719 = vmatpush1.msra.mxu0 %v5655
    %5720 = vmatprep.subr.mxu0 0.0
    %5721 = vmatpush1.msra.mxu0 %v5656
    %5722 = vmatprep.subr.mxu0 0.0
    %5723 = vmatpush1.msra.mxu0 %v5657
    %5724 = vmatprep.subr.mxu0 0.0
    %5725 = vmatpush1.msra.mxu0 %v5658
    %5726 = vmatprep.subr.mxu0 0.0
    %5727 = vmatpush1.msra.mxu0 %v5659
    %5728 = vmatprep.subr.mxu0 0.0
    %5729 = vmatpush1.msra.mxu0 %v5660
    %5730 = vmatprep.subr.mxu0 0.0
    %5731 = vmatpush1.msra.mxu0 %v5661
    %5732 = vmatprep.subr.mxu0 0.0
    %5733 = vmatpush1.msra.mxu0 %v5662
    %5734 = vmatprep.subr.mxu0 0.0
    %5735 = vmatpush1.msra.mxu0 %v5663
    %5736 = vmatprep.subr.mxu0 0.0
    %5737 = vmatpush1.msra.mxu0 %v5664
    %5738 = vmatprep.subr.mxu0 0.0
    %5739 = vmatpush1.msra.mxu0 %v5665
    %5740 = vmatprep.subr.mxu0 0.0
    %5741 = vmatpush1.msra.mxu0 %v5666
    %5742 = vmatprep.subr.mxu0 0.0
    %5743 = vmatpush1.msra.mxu0 %v5667
    %5744 = vmatprep.subr.mxu0 0.0
    %5745 = vmatpush1.msra.mxu0 %v5668
    %5746 = vmatprep.subr.mxu0 0.0
    %5747 = vmatpush1.msra.mxu0 %v5669
    %5748 = vmatprep.subr.mxu0 0.0
    %5749 = vmatpush1.msra.mxu0 %v5670
    %5750 = vmatprep.subr.mxu0 0.0
    %5751 = vmatpush1.msra.mxu0 %v5671
    %5752 = vmatprep.subr.mxu0 0.0
    %5753 = vmatpush1.msra.mxu0 %v5672
    %5754 = vmatprep.subr.mxu0 0.0
    %5755 = vmatpush1.msra.mxu0 %v5673
    %5756 = vmatprep.subr.mxu0 0.0
    %5757 = vmatpush1.msra.mxu0 %v5674
    %5758 = vmatprep.subr.mxu0 0.0
    %5759 = vmatpush1.msra.mxu0 %v5675
    %5760 = vmatprep.subr.mxu0 0.0
    %5761 = vmatpush1.msra.mxu0 %v5676
    %5762 = vmatprep.subr.mxu0 0.0
    %5763 = vmatpush1.msra.mxu0 %v5677
    %5764 = vmatprep.subr.mxu0 0.0
    %5765 = vmatpush1.msra.mxu0 %v5678
    %5766 = vmatprep.mubr.f32.mxu0 %v5597
    %5767 = vmatmul.mubr.f32.gmra.mrb[0].mxu0 %v5596
    %v5768 = vpop.f32.mrb[0].mxu0
    %v5769 = vadd.f32 %v5700, %v5768
    %v5770 = vpop.f32.mrb[0].mxu0
    %5771 = vdwg.mxu0
    %5772 = vmatprep.subr.mxu0 0.0
    %5773 = vmatpush1.msra.mxu0 %v5679
    %5774 = vmatprep.subr.mxu0 0.0
    %5775 = vmatpush1.msra.mxu0 %v5680
    %5776 = vmatprep.subr.mxu0 0.0
    %5777 = vmatpush1.msra.mxu0 %v5681
    %5778 = vmatprep.subr.mxu0 0.0
    %5779 = vmatpush1.msra.mxu0 %v5682
    %5780 = vmatprep.subr.mxu0 0.0
    %5781 = vmatpush1.msra.mxu0 %v5683
    %5782 = vmatprep.subr.mxu0 0.0
    %5783 = vmatpush1.msra.mxu0 %v5684
    %5784 = vmatprep.subr.mxu0 0.0
    %5785 = vmatpush1.msra.mxu0 %v5685
    %5786 = vmatprep.subr.mxu0 0.0
    %5787 = vmatpush1.msra.mxu0 %v5686
    %5788 = vmatprep.subr.mxu0 0.0
    %5789 = vmatpush1.msra.mxu0 %v5687
    %5790 = vmatprep.subr.mxu0 0.0
    %5791 = vmatpush1.msra.mxu0 %v5688
    %5792 = vmatprep.subr.mxu0 0.0
    %5793 = vmatpush1.msra.mxu0 %v5689
    %5794 = vmatprep.subr.mxu0 0.0
    %5795 = vmatpush1.msra.mxu0 %v5690
    %5796 = vmatprep.subr.mxu0 0.0
    %5797 = vmatpush1.msra.mxu0 %v5691
    %5798 = vmatprep.subr.mxu0 0.0
    %5799 = vmatpush1.msra.mxu0 %v5692
    %5800 = vmatprep.subr.mxu0 0.0
    %5801 = vmatpush1.msra.mxu0 %v5693
    %5802 = vmatprep.subr.mxu0 0.0
    %5803 = vmatpush1.msra.mxu0 %v5694
    %5804 = vmatprep.subr.mxu0 0.0
    %5805 = vmatpush1.msra.mxu0 0.0
    %5806 = vmatprep.subr.mxu0 0.0
    %5807 = vmatpush1.msra.mxu0 0.0
    %5808 = vmatprep.subr.mxu0 0.0
    %5809 = vmatpush1.msra.mxu0 0.0
    %5810 = vmatprep.subr.mxu0 0.0
    %5811 = vmatpush1.msra.mxu0 0.0
    %5812 = vmatprep.subr.mxu0 0.0
    %5813 = vmatpush1.msra.mxu0 0.0
    %5814 = vmatprep.subr.mxu0 0.0
    %5815 = vmatpush1.msra.mxu0 0.0
    %5816 = vmatprep.subr.mxu0 0.0
    %5817 = vmatpush1.msra.mxu0 0.0
    %5818 = vmatprep.subr.mxu0 0.0
    %5819 = vmatpush1.msra.mxu0 0.0
    %5820 = vmatprep.subr.mxu0 0.0
    %5821 = vmatpush1.msra.mxu0 0.0
    %5822 = vmatprep.subr.mxu0 0.0
    %5823 = vmatpush1.msra.mxu0 0.0
    %5824 = vmatprep.subr.mxu0 0.0
    %5825 = vmatpush1.msra.mxu0 0.0
    %5826 = vmatprep.subr.mxu0 0.0
    %5827 = vmatpush1.msra.mxu0 0.0
    %5828 = vmatprep.subr.mxu0 0.0
    %5829 = vmatpush1.msra.mxu0 0.0
    %5830 = vmatprep.subr.mxu0 0.0
    %5831 = vmatpush1.msra.mxu0 0.0
    %5832 = vmatprep.subr.mxu0 0.0
    %5833 = vmatpush1.msra.mxu0 0.0
    %5834 = vmatprep.subr.mxu0 0.0
    %5835 = vmatpush1.msra.mxu0 0.0
    %5836 = vmatprep.mubr.f32.mxu0 0.0
    %5837 = vmatmul.mubr.f32.gmra.mrb[0].mxu0 %v5598
    %v5838 = vpop.f32.mrb[0].mxu0
    %v5839 = vadd.f32 %v5769, %v5838
    %v5840 = vpop.f32.mrb[0].mxu0
    %5841 = vdwg.mxu0
    %v5842 = vsub.f32 0.0, %v5839
    %v5843 = vmul.f32 %v5842, 1.442695
    %v5844 = vpow.pop %v5843
    %v5845 = vadd.f32 %v5844, 1.0
    %v5846 = vrcp.pop %v5845
    %v5847 = vld [vmem:[#allocation11] sm:$0xf]
    %v5848 = vld [vmem:[#allocation11 + $0x4] sm:$0xf]
    %v5849 = vld [vmem:[#allocation11 + $0x8] sm:$0xf]
    %v5850 = vld [vmem:[#allocation11 + $0xc] sm:$0xf]
    %v5851 = vld [vmem:[#allocation11 + $0x10] sm:$0xf]
    %v5852 = vld [vmem:[#allocation11 + $0x14] sm:$0xf]
    %v5853 = vld [vmem:[#allocation11 + $0x18] sm:$0xf]
    %v5854 = vld [vmem:[#allocation11 + $0x1c] sm:$0xf]
    %v5855 = vld [vmem:[#allocation11 + $0x20] sm:$0xf]
    %v5856 = vld [vmem:[#allocation11 + $0x24] sm:$0xf]
    %v5857 = vld [vmem:[#allocation11 + $0x28] sm:$0xf]
    %v5858 = vld [vmem:[#allocation11 + $0x2c] sm:$0xf]
    %v5859 = vld [vmem:[#allocation11 + $0x30] sm:$0x3]
    %v5860 = vunpack.c.l.bf16 %v5847
    %v5861 = vunpack.c.l.bf16 %v5848
    %v5862 = vunpack.c.l.bf16 %v5849
    %v5863 = vunpack.c.l.bf16 %v5850
    %v5864 = vunpack.c.l.bf16 %v5851
    %v5865 = vunpack.c.l.bf16 %v5852
    %v5866 = vunpack.c.l.bf16 %v5853
    %v5867 = vunpack.c.l.bf16 %v5854
    %v5868 = vunpack.c.l.bf16 %v5855
    %v5869 = vunpack.c.l.bf16 %v5856
    %v5870 = vunpack.c.l.bf16 %v5857
    %v5871 = vunpack.c.l.bf16 %v5858
    %v5872 = vunpack.c.l.bf16 %v5859
    %vm5873 = vcmask 818176
    %v5875 = vsel %vm5873, %v5846, 0
    %vm5877 = vcmask 1043456
    %v5879 = vsel %vm5877, %v5872, 0
    %5881 = vmatprep.subr.mxu0 0.0
    %5882 = vmatpush1.msra.mxu0 %v5860
    %5883 = vmatprep.subr.mxu0 0.0
    %5884 = vmatpush1.msra.mxu0 %v5861
    %5885 = vmatprep.subr.mxu0 0.0
    %5886 = vmatpush1.msra.mxu0 %v5862
    %5887 = vmatprep.subr.mxu0 0.0
    %5888 = vmatpush1.msra.mxu0 %v5863
    %5889 = vmatprep.subr.mxu0 0.0
    %5890 = vmatpush1.msra.mxu0 %v5864
    %5891 = vmatprep.subr.mxu0 0.0
    %5892 = vmatpush1.msra.mxu0 %v5865
    %5893 = vmatprep.subr.mxu0 0.0
    %5894 = vmatpush1.msra.mxu0 %v5866
    %5895 = vmatprep.subr.mxu0 0.0
    %5896 = vmatpush1.msra.mxu0 %v5867
    %5897 = vmatprep.subr.mxu0 0.0
    %5898 = vmatpush1.msra.mxu0 %v5868
    %5899 = vmatprep.subr.mxu0 0.0
    %5900 = vmatpush1.msra.mxu0 %v5869
    %5901 = vmatprep.subr.mxu0 0.0
    %5902 = vmatpush1.msra.mxu0 %v5870
    %5903 = vmatprep.subr.mxu0 0.0
    %5904 = vmatpush1.msra.mxu0 %v5871
    %5905 = vmatprep.subr.mxu0 0.0
    %5906 = vmatpush1.msra.mxu0 %v5879
    %5907 = vmatprep.subr.mxu0 0.0
    %5908 = vmatpush1.msra.mxu0 0.0
    %5909 = vmatprep.subr.mxu0 0.0
    %5910 = vmatpush1.msra.mxu0 0.0
    %5911 = vmatprep.subr.mxu0 0.0
    %5912 = vmatpush1.msra.mxu0 0.0
    %5913 = vmatprep.subr.mxu0 0.0
    %5914 = vmatpush1.msra.mxu0 0.0
    %5915 = vmatprep.subr.mxu0 0.0
    %5916 = vmatpush1.msra.mxu0 0.0
    %5917 = vmatprep.subr.mxu0 0.0
    %5918 = vmatpush1.msra.mxu0 0.0
    %5919 = vmatprep.subr.mxu0 0.0
    %5920 = vmatpush1.msra.mxu0 0.0
    %5921 = vmatprep.subr.mxu0 0.0
    %5922 = vmatpush1.msra.mxu0 0.0
    %5923 = vmatprep.subr.mxu0 0.0
    %5924 = vmatpush1.msra.mxu0 0.0
    %5925 = vmatprep.subr.mxu0 0.0
    %5926 = vmatpush1.msra.mxu0 0.0
    %5927 = vmatprep.subr.mxu0 0.0
    %5928 = vmatpush1.msra.mxu0 0.0
    %5929 = vmatprep.subr.mxu0 0.0
    %5930 = vmatpush1.msra.mxu0 0.0
    %5931 = vmatprep.subr.mxu0 0.0
    %5932 = vmatpush1.msra.mxu0 0.0
    %5933 = vmatprep.subr.mxu0 0.0
    %5934 = vmatpush1.msra.mxu0 0.0
    %5935 = vmatprep.subr.mxu0 0.0
    %5936 = vmatpush1.msra.mxu0 0.0
    %5937 = vmatprep.subr.mxu0 0.0
    %5938 = vmatpush1.msra.mxu0 0.0
    %5939 = vmatprep.subr.mxu0 0.0
    %5940 = vmatpush1.msra.mxu0 0.0
    %5941 = vmatprep.subr.mxu0 0.0
    %5942 = vmatpush1.msra.mxu0 0.0
    %5943 = vmatprep.subr.mxu0 0.0
    %5944 = vmatpush1.msra.mxu0 0.0
    %5945 = vmatprep.mubr.f32.mxu0 0.0
    %5946 = vmatmul.mubr.f32.gmra.mrb[0].mxu0 %v5875
    %v5947 = vpop.f32.mrb[0].mxu0
    %v5948 = vadd.f32 0.0, %v5947
    %v5949 = vpop.f32.mrb[0].mxu0
    %5950 = vdwg.mxu0
    %v5951 = vld [vmem:[%s15] sm:$0xf]
    %v5952 = vld [vmem:[%s15 + $0x4] sm:$0xf]
    %v5953 = vld [vmem:[%s15 + $0x8] sm:$0xf]
    %v5954 = vld [vmem:[%s15 + $0xc] sm:$0xf]
    %v5955 = vld [vmem:[%s15 + $0x10] sm:$0xf]
    %v5956 = vld [vmem:[%s15 + $0x14] sm:$0xf]
    %v5957 = vld [vmem:[%s15 + $0x18] sm:$0xf]
    %v5958 = vld [vmem:[%s15 + $0x1c] sm:$0xf]
    %v5959 = vld [vmem:[%s15 + $0x20] sm:$0xf]
    %v5960 = vld [vmem:[%s15 + $0x24] sm:$0xf]
    %v5961 = vld [vmem:[%s15 + $0x28] sm:$0xf]
    %v5962 = vld [vmem:[%s15 + $0x2c] sm:$0xf]
    %v5963 = vld [vmem:[%s15 + $0x30] sm:$0xf]
    %v5964 = vld [vmem:[%s15 + $0x34] sm:$0xf]
    %v5965 = vld [vmem:[%s15 + $0x38] sm:$0xf]
    %v5966 = vld [vmem:[%s15 + $0x3c] sm:$0xf]
    %v5967 = vunpack.c.l.bf16 %v5951
    %v5968 = vunpack.c.l.bf16 %v5952
    %v5969 = vunpack.c.l.bf16 %v5953
    %v5970 = vunpack.c.l.bf16 %v5954
    %v5971 = vunpack.c.l.bf16 %v5955
    %v5972 = vunpack.c.l.bf16 %v5956
    %v5973 = vunpack.c.l.bf16 %v5957
    %v5974 = vunpack.c.l.bf16 %v5958
    %v5975 = vunpack.c.l.bf16 %v5959
    %v5976 = vunpack.c.l.bf16 %v5960
    %v5977 = vunpack.c.l.bf16 %v5961
    %v5978 = vunpack.c.l.bf16 %v5962
    %v5979 = vunpack.c.l.bf16 %v5963
    %v5980 = vunpack.c.l.bf16 %v5964
    %v5981 = vunpack.c.l.bf16 %v5965
    %v5982 = vunpack.c.l.bf16 %v5966
    %v5983 = vld [vmem:[%s16] sm:$0x1]
    %v5985 = vlaneseq
    %v5986 = vshrl.u32 %v5985, 7
    %v5987 = vsub.s32 0, %v5986
    %v5988 = vrot.slane %v5983, %v5987
    %5990 = vmatprep.subr.mxu0 0.0
    %5991 = vmatpush1.msra.mxu0 %v5967
    %5992 = vmatprep.subr.mxu0 0.0
    %5993 = vmatpush1.msra.mxu0 %v5968
    %5994 = vmatprep.subr.mxu0 0.0
    %5995 = vmatpush1.msra.mxu0 %v5969
    %5996 = vmatprep.subr.mxu0 0.0
    %5997 = vmatpush1.msra.mxu0 %v5970
    %5998 = vmatprep.subr.mxu0 0.0
    %5999 = vmatpush1.msra.mxu0 %v5971
    %6000 = vmatprep.subr.mxu0 0.0
    %6001 = vmatpush1.msra.mxu0 %v5972
    %6002 = vmatprep.subr.mxu0 0.0
    %6003 = vmatpush1.msra.mxu0 %v5973
    %6004 = vmatprep.subr.mxu0 0.0
    %6005 = vmatpush1.msra.mxu0 %v5974
    %6006 = vmatprep.subr.mxu0 0.0
    %6007 = vmatpush1.msra.mxu0 %v5975
    %6008 = vmatprep.subr.mxu0 0.0
    %6009 = vmatpush1.msra.mxu0 %v5976
    %6010 = vmatprep.subr.mxu0 0.0
    %6011 = vmatpush1.msra.mxu0 %v5977
    %6012 = vmatprep.subr.mxu0 0.0
    %6013 = vmatpush1.msra.mxu0 %v5978
    %6014 = vmatprep.subr.mxu0 0.0
    %6015 = vmatpush1.msra.mxu0 %v5979
    %6016 = vmatprep.subr.mxu0 0.0
    %6017 = vmatpush1.msra.mxu0 %v5980
    %6018 = vmatprep.subr.mxu0 0.0
    %6019 = vmatpush1.msra.mxu0 %v5981
    %6020 = vmatprep.subr.mxu0 0.0
    %6021 = vmatpush1.msra.mxu0 %v5982
    %6022 = vmatprep.subr.mxu0 0.0
    %6023 = vmatpush1.msra.mxu0 0.0
    %6024 = vmatprep.subr.mxu0 0.0
    %6025 = vmatpush1.msra.mxu0 0.0
    %6026 = vmatprep.subr.mxu0 0.0
    %6027 = vmatpush1.msra.mxu0 0.0
    %6028 = vmatprep.subr.mxu0 0.0
    %6029 = vmatpush1.msra.mxu0 0.0
    %6030 = vmatprep.subr.mxu0 0.0
    %6031 = vmatpush1.msra.mxu0 0.0
    %6032 = vmatprep.subr.mxu0 0.0
    %6033 = vmatpush1.msra.mxu0 0.0
    %6034 = vmatprep.subr.mxu0 0.0
    %6035 = vmatpush1.msra.mxu0 0.0
    %6036 = vmatprep.subr.mxu0 0.0
    %6037 = vmatpush1.msra.mxu0 0.0
    %6038 = vmatprep.subr.mxu0 0.0
    %6039 = vmatpush1.msra.mxu0 0.0
    %6040 = vmatprep.subr.mxu0 0.0
    %6041 = vmatpush1.msra.mxu0 0.0
    %6042 = vmatprep.subr.mxu0 0.0
    %6043 = vmatpush1.msra.mxu0 0.0
    %6044 = vmatprep.subr.mxu0 0.0
    %6045 = vmatpush1.msra.mxu0 0.0
    %6046 = vmatprep.subr.mxu0 0.0
    %6047 = vmatpush1.msra.mxu0 0.0
    %6048 = vmatprep.subr.mxu0 0.0
    %6049 = vmatpush1.msra.mxu0 0.0
    %6050 = vmatprep.subr.mxu0 0.0
    %6051 = vmatpush1.msra.mxu0 0.0
    %6052 = vmatprep.subr.mxu0 0.0
    %6053 = vmatpush1.msra.mxu0 0.0
    %6054 = vmatprep.mubr.f32.mxu0 0.0
    %6055 = vmatmul.mubr.f32.gmra.mrb[0].mxu0 %v5948
    %v6056 = vpop.f32.mrb[0].mxu0
    %v6057 = vadd.f32 %v5988, %v6056
    %v6058 = vpop.f32.mrb[0].mxu0
    %6059 = vdwg.mxu0
    %v6060 = vmul.f32 %v6057, 0.5
    %v6061 = vmul.f32 %v6057, 0.044715
    %v6062 = vmul.f32 %v6061, %v6057
    %v6063 = vmul.f32 %v6062, %v6057
    %v6064 = vadd.f32 %v6057, %v6063
    %v6065 = vmul.f32 %v6064, 0.7978846
    %v6066 = vtanh.pop %v6065
    %v6067 = vadd.f32 %v6066, 1.0
    %v6068 = vmul.f32 %v6060, %v6067
    %v6069 = vld [vmem:[%s17] sm:$0xf]
    %v6070 = vld [vmem:[%s17 + $0x4] sm:$0xf]
    %v6071 = vld [vmem:[%s17 + $0x8] sm:$0xf]
    %v6072 = vld [vmem:[%s17 + $0xc] sm:$0xf]
    %v6073 = vld [vmem:[%s17 + $0x10] sm:$0xf]
    %v6074 = vld [vmem:[%s17 + $0x14] sm:$0xf]
    %v6075 = vld [vmem:[%s17 + $0x18] sm:$0xf]
    %v6076 = vld [vmem:[%s17 + $0x1c] sm:$0xf]
    %v6077 = vld [vmem:[%s17 + $0x20] sm:$0xf]
    %v6078 = vld [vmem:[%s17 + $0x24] sm:$0xf]
    %v6079 = vld [vmem:[%s17 + $0x28] sm:$0xf]
    %v6080 = vld [vmem:[%s17 + $0x2c] sm:$0xf]
    %v6081 = vld [vmem:[%s17 + $0x30] sm:$0xf]
    %v6082 = vld [vmem:[%s17 + $0x34] sm:$0xf]
    %v6083 = vld [vmem:[%s17 + $0x38] sm:$0xf]
    %v6084 = vld [vmem:[%s17 + $0x3c] sm:$0xf]
    %v6085 = vunpack.c.l.bf16 %v6069
    %v6086 = vunpack.c.l.bf16 %v6070
    %v6087 = vunpack.c.l.bf16 %v6071
    %v6088 = vunpack.c.l.bf16 %v6072
    %v6089 = vunpack.c.l.bf16 %v6073
    %v6090 = vunpack.c.l.bf16 %v6074
    %v6091 = vunpack.c.l.bf16 %v6075
    %v6092 = vunpack.c.l.bf16 %v6076
    %v6093 = vunpack.c.l.bf16 %v6077
    %v6094 = vunpack.c.l.bf16 %v6078
    %v6095 = vunpack.c.l.bf16 %v6079
    %v6096 = vunpack.c.l.bf16 %v6080
    %v6097 = vunpack.c.l.bf16 %v6081
    %v6098 = vunpack.c.l.bf16 %v6082
    %v6099 = vunpack.c.l.bf16 %v6083
    %v6100 = vunpack.c.l.bf16 %v6084
    %v6101 = vld [vmem:[#allocation13] sm:$0x1]
    %v6103 = vlaneseq
    %v6104 = vshrl.u32 %v6103, 7
    %v6105 = vsub.s32 0, %v6104
    %v6106 = vrot.slane %v6101, %v6105
    %6108 = vmatprep.subr.mxu0 0.0
    %6109 = vmatpush1.msra.mxu0 %v6085
    %6110 = vmatprep.subr.mxu0 0.0
    %6111 = vmatpush1.msra.mxu0 %v6086
    %6112 = vmatprep.subr.mxu0 0.0
    %6113 = vmatpush1.msra.mxu0 %v6087
    %6114 = vmatprep.subr.mxu0 0.0
    %6115 = vmatpush1.msra.mxu0 %v6088
    %6116 = vmatprep.subr.mxu0 0.0
    %6117 = vmatpush1.msra.mxu0 %v6089
    %6118 = vmatprep.subr.mxu0 0.0
    %6119 = vmatpush1.msra.mxu0 %v6090
    %6120 = vmatprep.subr.mxu0 0.0
    %6121 = vmatpush1.msra.mxu0 %v6091
    %6122 = vmatprep.subr.mxu0 0.0
    %6123 = vmatpush1.msra.mxu0 %v6092
    %6124 = vmatprep.subr.mxu0 0.0
    %6125 = vmatpush1.msra.mxu0 %v6093
    %6126 = vmatprep.subr.mxu0 0.0
    %6127 = vmatpush1.msra.mxu0 %v6094
    %6128 = vmatprep.subr.mxu0 0.0
    %6129 = vmatpush1.msra.mxu0 %v6095
    %6130 = vmatprep.subr.mxu0 0.0
    %6131 = vmatpush1.msra.mxu0 %v6096
    %6132 = vmatprep.subr.mxu0 0.0
    %6133 = vmatpush1.msra.mxu0 %v6097
    %6134 = vmatprep.subr.mxu0 0.0
    %6135 = vmatpush1.msra.mxu0 %v6098
    %6136 = vmatprep.subr.mxu0 0.0
    %6137 = vmatpush1.msra.mxu0 %v6099
    %6138 = vmatprep.subr.mxu0 0.0
    %6139 = vmatpush1.msra.mxu0 %v6100
    %6140 = vmatprep.subr.mxu0 0.0
    %6141 = vmatpush1.msra.mxu0 0.0
    %6142 = vmatprep.subr.mxu0 0.0
    %6143 = vmatpush1.msra.mxu0 0.0
    %6144 = vmatprep.subr.mxu0 0.0
    %6145 = vmatpush1.msra.mxu0 0.0
    %6146 = vmatprep.subr.mxu0 0.0
    %6147 = vmatpush1.msra.mxu0 0.0
    %6148 = vmatprep.subr.mxu0 0.0
    %6149 = vmatpush1.msra.mxu0 0.0
    %6150 = vmatprep.subr.mxu0 0.0
    %6151 = vmatpush1.msra.mxu0 0.0
    %6152 = vmatprep.subr.mxu0 0.0
    %6153 = vmatpush1.msra.mxu0 0.0
    %6154 = vmatprep.subr.mxu0 0.0
    %6155 = vmatpush1.msra.mxu0 0.0
    %6156 = vmatprep.subr.mxu0 0.0
    %6157 = vmatpush1.msra.mxu0 0.0
    %6158 = vmatprep.subr.mxu0 0.0
    %6159 = vmatpush1.msra.mxu0 0.0
    %6160 = vmatprep.subr.mxu0 0.0
    %6161 = vmatpush1.msra.mxu0 0.0
    %6162 = vmatprep.subr.mxu0 0.0
    %6163 = vmatpush1.msra.mxu0 0.0
    %6164 = vmatprep.subr.mxu0 0.0
    %6165 = vmatpush1.msra.mxu0 0.0
    %6166 = vmatprep.subr.mxu0 0.0
    %6167 = vmatpush1.msra.mxu0 0.0
    %6168 = vmatprep.subr.mxu0 0.0
    %6169 = vmatpush1.msra.mxu0 0.0
    %6170 = vmatprep.subr.mxu0 0.0
    %6171 = vmatpush1.msra.mxu0 0.0
    %6172 = vmatprep.mubr.f32.mxu0 0.0
    %6173 = vmatmul.mubr.f32.gmra.mrb[0].mxu0 %v6068
    %v6174 = vpop.f32.mrb[0].mxu0
    %v6175 = vadd.f32 %v6106, %v6174
    %v6176 = vpop.f32.mrb[0].mxu0
    %6177 = vdwg.mxu0
    %v6178 = vld [vmem:[#allocation14] sm:$0x1]
    %v6180 = vlaneseq
    %v6181 = vshrl.u32 %v6180, 7
    %v6182 = vsub.s32 0, %v6181
    %v6183 = vrot.slane %v6178, %v6182
    %v6185 = vmul.f32 %v6183, %v6175
    %v6186 = vadd.f32 %v5948, %v6185
    %6187 = vst [vmem:[#allocation16] sm:$0x3] %v6186
    // Predicated region
    $region114: #{tpu_custom_call.1} parent=1 // pred_check
      _
    $region115: #{tpu_custom_call.1} parent=1 // pred_check_branch
      %6189 = sbr.rel (0) target = $region117
    $region116: #{tpu_custom_call.1} parent=1 // pred_region
      %s6191 = ssub.s32 32, 32
      %6192 = vsyncadd [#allocation4], %s6191
      %s6194 = sshll.u32 [#allocation16], 4
      %s6195 = int_to_ptr.vmem [resolvable:$true] %s6194
      %6197 = dma.vmem_to_hbm [thread:$0]  %s6195, 32, %s20, [#allocation4]
    $region117: #{tpu_custom_call.1} parent=1 // pred_fallthru
      _
    // Predicated region
    $region118: #{tpu_custom_call.1} parent=1 // pred_check
      _
    $region119: #{tpu_custom_call.1} parent=1 // pred_check_branch
      %6199 = sbr.rel (0) target = $region121
    $region120: #{tpu_custom_call.1} parent=1 // pred_region
      %6200 = dma.done [#allocation4], 32
    $region121: #{tpu_custom_call.1} parent=1 // pred_fallthru
      _
    %6201 = vsyncpa [#allocation3], 1
    %6202 = vsyncpa [#allocation6], 1
    %6203 = vsyncpa [#allocation9], 1
    %6204 = vsyncpa [#allocation12], 1
    %6205 = vsyncpa [#allocation15], 1
    %6206 = vsyncpa [#allocation4], 1

</llo_original>
